<compile_context>
chip_gen: v7x
topology: tpu7x:2x2x1
jax: 0.10.0
libtpu: 0.0.40
codegen_flags: <defaults>
</compile_context>

<pallas_src>
import functools

import jax
import jax.numpy as jnp
from jax.experimental import pallas as pl
from jax.experimental.pallas import tpu as pltpu

NORM_CLAMP = 1e-7                     # reference min_norm=1e-15; 1e-7 keeps f32 intermediates well-scaled
PROJ_EPS = 4e-3                       # HGCN proj() eps for float32
VMEM_LIMIT_BYTES = 48 * 1024 * 1024   # explicit scoped-VMEM budget: > v5e's 16 MiB default, < v7x's 64 MiB physical


def _round_up(v, m):
    return ((v + m - 1) // m) * m


def _artanh(z):
    # arctanh with an f32-representable clamp (reference clamps to 1 - 1e-15, not representable in f32).
    z = jnp.clip(z, -1.0 + 1e-7, 1.0 - 1e-7)
    return 0.5 * jnp.log((1.0 + z) / (1.0 - z))


def _row_norm(v):
    return jnp.maximum(jnp.sqrt(jnp.sum(v * v, axis=-1, keepdims=True)), NORM_CLAMP)


def _proj_ball(p, sqrt_c):
    # proj onto the open ball of radius (1 - eps) / sqrt(c); exact divide (epilogue-only, negligible cost)
    maxnorm = (1.0 - PROJ_EPS) / sqrt_c
    n = _row_norm(p)
    return jnp.where(n > maxnorm, p * (maxnorm / n), p)


def _linear_logmap_kernel(x_ref, w_ref, h_ref, *, curvature):
    """hidden = logmap0(mobius_matvec(W, x, c), c) for one row tile of nodes."""
    sqrt_c = curvature ** 0.5
    x = x_ref[...]                                   # (Tn, Fin) f32, Poincare points
    x_norm = _row_norm(x)

    # bf16 MXU inputs, f32 accumulation (hidden is consumed as bf16 downstream anyway).
    mx = jnp.dot(x.astype(jnp.bfloat16), w_ref[...],
                 preferred_element_type=jnp.float32)            # (Tn, Fout)
    mx_norm = _row_norm(mx)

    # mobius_matvec (HGCN PoincareBall); norm math stays f32.
    arg = mx_norm * pl.reciprocal(x_norm, approx=True) * _artanh(sqrt_c * x_norm)
    res = jnp.tanh(arg) * mx * pl.reciprocal(sqrt_c * mx_norm, approx=True)
    res = jnp.where(jnp.max(jnp.abs(mx), axis=-1, keepdims=True) == 0.0, 0.0, res)

    # poincare2euclidean == logmap0 (assumed)
    r_norm = _row_norm(res)
    hidden = _artanh(sqrt_c * r_norm) * res * pl.reciprocal(sqrt_c * r_norm, approx=True)

    # stored as bf16: it is only consumed as the bf16 RHS of the aggregation matmul.
    h_ref[...] = hidden.astype(h_ref.dtype)


def _aggregate_kernel(adj_ref, h_ref, out_ref, *, curvature, tk, hidden_resident):
    """support = adj @ hidden (column-tile reduction accumulated directly into the VMEM-resident
    f32 out block), then euclidean2poincare + hyperbolic ReLU epilogue at the last k step."""
    k = pl.program_id(1)

    @pl.when(k == 0)
    def _():
        out_ref[...] = jnp.zeros_like(out_ref)

    adj = adj_ref[...]
    if adj.dtype != jnp.bfloat16:
        adj = adj.astype(jnp.bfloat16)        # per-tile cast: no wrapper-side full-(N,N) cast pass

    if hidden_resident:
        off = pl.multiple_of(k * tk, tk)
        h = h_ref[pl.ds(off, tk), :]          # hidden pinned in VMEM across the whole grid
    else:
        h = h_ref[...]                        # streamed (Tk, Fout) tile

    out_ref[...] += jnp.dot(adj, h, preferred_element_type=jnp.float32)

    @pl.when(k == pl.num_programs(1) - 1)
    def _():
        sqrt_c = curvature ** 0.5
        s = out_ref[...]                                           # (Tr, Fout) f32 accumulated support

        # euclidean2poincare == proj(expmap0(s, c), c)  (assumed)
        s_norm = _row_norm(s)
        p = jnp.tanh(sqrt_c * s_norm) * s * pl.reciprocal(sqrt_c * s_norm, approx=True)
        p = _proj_ball(p, sqrt_c)

        # Act: relu(logmap0(p, c)); proj_tan0 is the identity on the Poincare ball.
        p_norm = _row_norm(p)
        t = _artanh(sqrt_c * p_norm) * p * pl.reciprocal(sqrt_c * p_norm, approx=True)
        t = jnp.maximum(t, 0.0)

        # proj(expmap0(t, c), c)
        t_norm = _row_norm(t)
        o = jnp.tanh(sqrt_c * t_norm) * t * pl.reciprocal(sqrt_c * t_norm, approx=True)
        out_ref[...] = _proj_ball(o, sqrt_c)


def _aggregation_tiles(n):
    """Pick (Np, Tr, Tk).  Prefer 512x512 tiles (256-aligned for the v6e/v7x MXU, amortizes the
    ~0.35us/grid-step overhead of the HBM-bound adjacency stream) and keep >=2 row tiles so the
    'parallel' row axis can shard across v7x's two TensorCores.  Awkward N falls back to the
    largest 128-multiple tiles that divide the 128-padded size (avoids inflating the padded (N,N)
    adjacency)."""
    np128 = _round_up(n, 128)
    np512 = _round_up(n, 512)
    if np512 == np128:
        np_ = np512
        tk = min(512, np_)
        tr = min(512, np_) if np_ // min(512, np_) >= 2 else max(128, np_ // 2)
    else:
        np_ = np128
        tk = next(t for t in (512, 256, 128) if np_ % t == 0)
        tr = next(t for t in (512, 256, 128)
                  if np_ % t == 0 and (np_ // t >= 2 or t == 128))
    return np_, tr, tk


def poincare_graph_convolution(x, adj, weight, *, curvature=1.0):
    """x: (N, Fin) f32 Poincare points; adj: (N, N) aggregation matrix (densified if sparse;
    bf16 preferred — other dtypes are cast per-tile in-kernel); weight: (Fout, Fin) f32
    in PyTorch Linear layout."""
    N, Fin = x.shape
    Fout = weight.shape[0]
    # weight is tiny: a one-time bf16 cast feeds the MXU natively at negligible cost.
    w_t = jnp.asarray(weight, jnp.float32).T.astype(jnp.bfloat16)   # (Fin, Fout)

    Np, Tr, Tk = _aggregation_tiles(N)
    if Np != N:
        # TODO(synk): for large graphs, produce adj already tile-aligned (and bf16) upstream —
        # this pad is a full (N, N) HBM pass and only triggers when N is not tile-aligned.
        x = jnp.pad(x, ((0, Np - N), (0, 0)))
        adj = jnp.pad(adj, ((0, Np - N), (0, Np - N)))

    # ---- kernel 1: Poincare linear + logmap0 (row-parallel producer of bf16 `hidden`) ----
    Tn = next(t for t in (1024, 512, 256, 128) if Np % t == 0)
    hidden = pl.pallas_call(
        functools.partial(_linear_logmap_kernel, curvature=curvature),
        grid=(Np // Tn,),
        in_specs=[pl.BlockSpec((Tn, Fin), lambda i: (i, 0)),
                  pl.BlockSpec((Fin, Fout), lambda i: (0, 0))],
        out_specs=pl.BlockSpec((Tn, Fout), lambda i: (i, 0)),
        out_shape=jax.ShapeDtypeStruct((Np, Fout), jnp.bfloat16),
        compiler_params=pltpu.CompilerParams(
            dimension_semantics=("parallel",),
            vmem_limit_bytes=VMEM_LIMIT_BYTES),
    )(x.astype(jnp.float32), w_t)

    # ---- kernel 2: aggregation + euclidean2poincare + hyperbolic ReLU ----
    # Pin `hidden` fully in VMEM when it fits the budget (halves HBM read traffic);
    # otherwise stream it in Tk-row tiles.  Budget check keeps the config v7x (64 MiB) safe.
    adj_item = jnp.dtype(adj.dtype).itemsize
    resident_bytes = (2 * Np * Fout * 2            # resident hidden (worst case: double-buffered)
                      + 2 * Tr * Tk * adj_item     # adj tile double buffer
                      + 2 * Tr * Fout * 4)         # f32 output block
    hidden_resident = resident_bytes <= int(0.85 * VMEM_LIMIT_BYTES)

    if hidden_resident:
        h_spec = pl.BlockSpec((Np, Fout), lambda i, k: (0, 0))
    else:
        h_spec = pl.BlockSpec((Tk, Fout), lambda i, k: (k, 0))

    out = pl.pallas_call(
        functools.partial(_aggregate_kernel, curvature=curvature,
                          tk=Tk, hidden_resident=hidden_resident),
        grid=(Np // Tr, Np // Tk),
        in_specs=[pl.BlockSpec((Tr, Tk), lambda i, k: (i, k)),
                  h_spec],
        out_specs=pl.BlockSpec((Tr, Fout), lambda i, k: (i, 0)),
        out_shape=jax.ShapeDtypeStruct((Np, Fout), jnp.float32),
        compiler_params=pltpu.CompilerParams(
            dimension_semantics=("parallel", "arbitrary"),
            vmem_limit_bytes=VMEM_LIMIT_BYTES),
    )(adj, hidden)

    return out[:N]


if __name__ == "__main__":
    # Small but tiling-exercising shapes: N=1024 nodes (2x2 grid of 512x512 aggregation tiles,
    # so the v7x 'parallel' row axis has 2 tiles), Fin=64 -> Fout=128 (lane-dense output).
    N, Fin, Fout = 1024, 64, 128
    curvature = 1.0

    key = jax.random.PRNGKey(0)
    k_x, k_w, k_e = jax.random.split(key, 3)

    # Node features already inside the Poincare ball (small-norm points, c=1).
    x = 0.05 * jax.random.normal(k_x, (N, Fin), dtype=jnp.float32)

    # Poincare Linear weight, PyTorch layout (out, in), xavier_uniform_ with gain=sqrt(2).
    bound = (2.0 ** 0.5) * (6.0 / (Fin + Fout)) ** 0.5
    W = jax.random.uniform(k_w, (Fout, Fin), dtype=jnp.float32,
                           minval=-bound, maxval=bound)

    # Symmetrically normalized adjacency with self-loops (standard GCN aggregation matrix).
    # The sparse spmm of the reference is densified in glue code, and the densified matrix is
    # materialized directly in bf16 / tile-aligned so no extra (N,N) pad/cast pass hits the kernel.
    edges = jax.random.bernoulli(k_e, 0.02, (N, N)).astype(jnp.float32)
    a = jnp.minimum(jnp.maximum(edges, edges.T) + jnp.eye(N, dtype=jnp.float32), 1.0)
    d_inv_sqrt = 1.0 / jnp.sqrt(jnp.sum(a, axis=-1))
    adj = (a * d_inv_sqrt[:, None] * d_inv_sqrt[None, :]).astype(jnp.bfloat16)

    out = poincare_graph_convolution(x, adj, W, curvature=curvature)
    out = jax.block_until_ready(out)

    assert out.shape == (N, Fout)
    assert not bool(jnp.any(jnp.isnan(out)))
    # every output row must lie strictly inside the unit ball (c = 1)
    assert bool(jnp.all(jnp.sum(out * out, axis=-1) < 1.0))
    print("KERNEL_OK")
</pallas_src>

<mosaic_0001>
module attributes {stable_mosaic.version = 11 : i64} {
  func.func @_linear_logmap_kernel(%arg0: i32, %arg1: memref<1024x64xf32, #tpu.memory_space<vmem>>, %arg2: memref<64x128xbf16, #tpu.memory_space<vmem>>, %arg3: memref<1024x128xbf16, #tpu.memory_space<vmem>>) attributes {dimension_semantics = [#tpu.dimension_semantics<parallel>], iteration_bounds = array<i64: 1>, scalar_prefetch = 0 : i64, scratch_operands = 0 : i64, tpu.core_type = #tpu.core_type<tc>, window_params = [{transform_indices = @transform_0, window_bounds = array<i64: 1024, 64>}, {pipeline_mode = #tpu.pipeline_mode<synchronous>, transform_indices = @transform_1, window_bounds = array<i64: 64, 128>}, {transform_indices = @transform_2, window_bounds = array<i64: 1024, 128>}]} {
    %c0 = arith.constant 0 : index
    %c0_0 = arith.constant 0 : index
    %0 = vector.load %arg1[%c0, %c0_0] : memref<1024x64xf32, #tpu.memory_space<vmem>>, vector<1024x64xf32>
    %1 = arith.mulf %0, %0 : vector<1024x64xf32>
    %cst = arith.constant dense<0.000000e+00> : vector<1024xf32>
    %2 = vector.multi_reduction <add>, %1, %cst [1] : vector<1024x64xf32> to vector<1024xf32>
    %3 = vector.shape_cast %2 : vector<1024xf32> to vector<1024x1xf32>
    %4 = math.sqrt %3 : vector<1024x1xf32>
    %cst_1 = arith.constant 1.000000e-07 : f32
    %5 = vector.broadcast %cst_1 : f32 to vector<1024x1xf32>
    %6 = arith.maximumf %4, %5 : vector<1024x1xf32>
    %7 = arith.truncf %0 : vector<1024x64xf32> to vector<1024x64xbf16>
    %c0_2 = arith.constant 0 : index
    %c0_3 = arith.constant 0 : index
    %8 = vector.load %arg2[%c0_2, %c0_3] : memref<64x128xbf16, #tpu.memory_space<vmem>>, vector<64x128xbf16>
    %cst_4 = arith.constant dense<0.000000e+00> : vector<1024x128xf32>
    %9 = tpu.matmul %7, %8, %cst_4 {dimension_numbers = #tpu.dot_dimension_numbers<[1], [0], [0], [1], [0, 0, 1, 1], [], []>} : vector<1024x64xbf16>, vector<64x128xbf16>, vector<1024x128xf32> -> vector<1024x128xf32>
    %10 = arith.mulf %9, %9 : vector<1024x128xf32>
    %cst_5 = arith.constant dense<0.000000e+00> : vector<1024xf32>
    %11 = vector.multi_reduction <add>, %10, %cst_5 [1] : vector<1024x128xf32> to vector<1024xf32>
    %12 = vector.shape_cast %11 : vector<1024xf32> to vector<1024x1xf32>
    %13 = math.sqrt %12 : vector<1024x1xf32>
    %cst_6 = arith.constant 1.000000e-07 : f32
    %14 = vector.broadcast %cst_6 : f32 to vector<1024x1xf32>
    %15 = arith.maximumf %13, %14 : vector<1024x1xf32>
    %16 = tpu.reciprocal %6 {approx = true} : vector<1024x1xf32> -> vector<1024x1xf32>
    %17 = arith.mulf %15, %16 : vector<1024x1xf32>
    %cst_7 = arith.constant 1.000000e+00 : f32
    %18 = vector.broadcast %cst_7 : f32 to vector<1024x1xf32>
    %19 = arith.mulf %18, %6 : vector<1024x1xf32>
    %cst_8 = arith.constant -0.99999988 : f32
    %cst_9 = arith.constant 0.99999988 : f32
    %20 = vector.broadcast %cst_8 : f32 to vector<1024x1xf32>
    %21 = arith.maximumf %20, %19 : vector<1024x1xf32>
    %22 = vector.broadcast %cst_9 : f32 to vector<1024x1xf32>
    %23 = arith.minimumf %22, %21 : vector<1024x1xf32>
    %cst_10 = arith.constant 1.000000e+00 : f32
    %24 = vector.broadcast %cst_10 : f32 to vector<1024x1xf32>
    %25 = arith.addf %24, %23 : vector<1024x1xf32>
    %cst_11 = arith.constant 1.000000e+00 : f32
    %26 = vector.broadcast %cst_11 : f32 to vector<1024x1xf32>
    %27 = arith.subf %26, %23 : vector<1024x1xf32>
    %28 = arith.divf %25, %27 : vector<1024x1xf32>
    %29 = math.log %28 : vector<1024x1xf32>
    %cst_12 = arith.constant 5.000000e-01 : f32
    %30 = vector.broadcast %cst_12 : f32 to vector<1024x1xf32>
    %31 = arith.mulf %30, %29 : vector<1024x1xf32>
    %32 = arith.mulf %17, %31 : vector<1024x1xf32>
    %33 = math.tanh %32 : vector<1024x1xf32>
    %34 = vector.broadcast %33 : vector<1024x1xf32> to vector<1024x128xf32>
    %35 = arith.mulf %34, %9 : vector<1024x128xf32>
    %cst_13 = arith.constant 1.000000e+00 : f32
    %36 = vector.broadcast %cst_13 : f32 to vector<1024x1xf32>
    %37 = arith.mulf %36, %15 : vector<1024x1xf32>
    %38 = tpu.reciprocal %37 {approx = true} : vector<1024x1xf32> -> vector<1024x1xf32>
    %39 = vector.broadcast %38 : vector<1024x1xf32> to vector<1024x128xf32>
    %40 = arith.mulf %35, %39 : vector<1024x128xf32>
    %41 = math.absf %9 : vector<1024x128xf32>
    %cst_14 = arith.constant dense<0xFF800000> : vector<1024xf32>
    %42 = vector.multi_reduction <maximumf>, %41, %cst_14 [1] : vector<1024x128xf32> to vector<1024xf32>
    %43 = vector.shape_cast %42 : vector<1024xf32> to vector<1024x1xf32>
    %cst_15 = arith.constant 0.000000e+00 : f32
    %44 = vector.broadcast %cst_15 : f32 to vector<1024x1xf32>
    %45 = arith.cmpf oeq, %43, %44 : vector<1024x1xf32>
    %cst_16 = arith.constant 0.000000e+00 : f32
    %46 = vector.shape_cast %45 : vector<1024x1xi1> to vector<1024x1xi1>
    %47 = vector.broadcast %46 : vector<1024x1xi1> to vector<1024x128xi1>
    %48 = vector.broadcast %cst_16 : f32 to vector<1024x128xf32>
    %49 = arith.select %47, %48, %40 : vector<1024x128xi1>, vector<1024x128xf32>
    %50 = arith.mulf %49, %49 : vector<1024x128xf32>
    %cst_17 = arith.constant dense<0.000000e+00> : vector<1024xf32>
    %51 = vector.multi_reduction <add>, %50, %cst_17 [1] : vector<1024x128xf32> to vector<1024xf32>
    %52 = vector.shape_cast %51 : vector<1024xf32> to vector<1024x1xf32>
    %53 = math.sqrt %52 : vector<1024x1xf32>
    %cst_18 = arith.constant 1.000000e-07 : f32
    %54 = vector.broadcast %cst_18 : f32 to vector<1024x1xf32>
    %55 = arith.maximumf %53, %54 : vector<1024x1xf32>
    %cst_19 = arith.constant 1.000000e+00 : f32
    %56 = vector.broadcast %cst_19 : f32 to vector<1024x1xf32>
    %57 = arith.mulf %56, %55 : vector<1024x1xf32>
    %cst_20 = arith.constant -0.99999988 : f32
    %cst_21 = arith.constant 0.99999988 : f32
    %58 = vector.broadcast %cst_20 : f32 to vector<1024x1xf32>
    %59 = arith.maximumf %58, %57 : vector<1024x1xf32>
    %60 = vector.broadcast %cst_21 : f32 to vector<1024x1xf32>
    %61 = arith.minimumf %60, %59 : vector<1024x1xf32>
    %cst_22 = arith.constant 1.000000e+00 : f32
    %62 = vector.broadcast %cst_22 : f32 to vector<1024x1xf32>
    %63 = arith.addf %62, %61 : vector<1024x1xf32>
    %cst_23 = arith.constant 1.000000e+00 : f32
    %64 = vector.broadcast %cst_23 : f32 to vector<1024x1xf32>
    %65 = arith.subf %64, %61 : vector<1024x1xf32>
    %66 = arith.divf %63, %65 : vector<1024x1xf32>
    %67 = math.log %66 : vector<1024x1xf32>
    %cst_24 = arith.constant 5.000000e-01 : f32
    %68 = vector.broadcast %cst_24 : f32 to vector<1024x1xf32>
    %69 = arith.mulf %68, %67 : vector<1024x1xf32>
    %70 = vector.broadcast %69 : vector<1024x1xf32> to vector<1024x128xf32>
    %71 = arith.mulf %70, %49 : vector<1024x128xf32>
    %cst_25 = arith.constant 1.000000e+00 : f32
    %72 = vector.broadcast %cst_25 : f32 to vector<1024x1xf32>
    %73 = arith.mulf %72, %55 : vector<1024x1xf32>
    %74 = tpu.reciprocal %73 {approx = true} : vector<1024x1xf32> -> vector<1024x1xf32>
    %75 = vector.broadcast %74 : vector<1024x1xf32> to vector<1024x128xf32>
    %76 = arith.mulf %71, %75 : vector<1024x128xf32>
    %77 = arith.truncf %76 : vector<1024x128xf32> to vector<1024x128xbf16>
    %c0_26 = arith.constant 0 : index
    %c0_27 = arith.constant 0 : index
    %78 = vector.load %arg3[%c0_26, %c0_27] : memref<1024x128xbf16, #tpu.memory_space<vmem>>, vector<1024x128xbf16>
    tpu.vector_store %arg3[%c0_26, %c0_27], %77 {strides = array<i32>} : memref<1024x128xbf16, #tpu.memory_space<vmem>>, vector<1024x128xbf16>,
    return
  }
  func.func @transform_0(%arg0: i32) -> (i32, i32) {
    %c0_i32 = arith.constant 0 : i32
    %c0_i32_0 = arith.constant 0 : i32
    return %arg0, %c0_i32 : i32, i32
  }
  func.func @transform_1(%arg0: i32) -> (i32, i32) {
    %c0_i32 = arith.constant 0 : i32
    %c0_i32_0 = arith.constant 0 : i32
    %c0_i32_1 = arith.constant 0 : i32
    return %c0_i32, %c0_i32_0 : i32, i32
  }
  func.func @transform_2(%arg0: i32) -> (i32, i32) {
    %c0_i32 = arith.constant 0 : i32
    %c0_i32_0 = arith.constant 0 : i32
    return %arg0, %c0_i32 : i32, i32
  }
}

</mosaic_0001>

<llo_original>
// kernel: tpu_custom_call.1
$region0: #{tpu_custom_call.1}
  #allocation0 [shape = 'u32[]', space=smem, size = 0x4, offset = 0x4, fixed_abs, tag = 'smem constant byte address 0x4 - core index']
  #allocation1 [shape = 'u32[144,128]{1,0:T(1,128)}', space=vmem, size = 0x12000, scoped, tag = 'internal scratch']
  %s0 = inlined_call_operand.vmem [shape: f32[1024,64], index: 0, kind: input, shape index: {}]
  %s1 = inlined_call_operand.vmem [shape: bf16[64,128], index: 1, kind: input, shape index: {}]
  %s2 = inlined_call_operand.hbm [shape: bf16[1024,128], index: 2, kind: output, shape index: {}]
  %s3 = sld [smem:[#allocation0]]
  $region18: #{tpu_custom_call.1} parent=0
    _
  %s5 = ssub.s32 1, %s3
  %s6 = scalar_select 0, %s5, %s3
  $region1: #{tpu_custom_call.1} parent=0
    #allocation2 [shape = 'u8[262144]{0}', space=vmem, size = 0x40000, scoped, tag = 'output window, operand 0, single buffered']
    #allocation3 [shape = 's32[1]{0}', space=sflag, size = 0x4, scoped, tag = 'scoped memory for tpu_custom_call.1']
    %7 = vsyncpa [#allocation3], 0
    // Predicated region
    $region2: #{tpu_custom_call.1} parent=1 // pred_check
      _
    $region3: #{tpu_custom_call.1} parent=1 // pred_check_branch
      %9 = sbr.rel (0) target = $region5
    $region4: #{tpu_custom_call.1} parent=1 // pred_region
      _
    $region5: #{tpu_custom_call.1} parent=1 // pred_fallthru
      _
    // Predicated region
    $region6: #{tpu_custom_call.1} parent=1 // pred_check
      _
    $region7: #{tpu_custom_call.1} parent=1 // pred_check_branch
      %11 = sbr.rel (0) target = $region9
    $region8: #{tpu_custom_call.1} parent=1 // pred_region
      _
    $region9: #{tpu_custom_call.1} parent=1 // pred_fallthru
      _
    %v13 = vld [vmem:[%s0] sm:$0xff]
    %v14 = vld [vmem:[%s0 + $0x8] sm:$0xff]
    %v15 = vld [vmem:[%s0 + $0x10] sm:$0xff]
    %v16 = vld [vmem:[%s0 + $0x18] sm:$0xff]
    %v17 = vld [vmem:[%s0 + $0x20] sm:$0xff]
    %v18 = vld [vmem:[%s0 + $0x28] sm:$0xff]
    %v19 = vld [vmem:[%s0 + $0x30] sm:$0xff]
    %v20 = vld [vmem:[%s0 + $0x38] sm:$0xff]
    %v21 = vld [vmem:[%s0 + $0x40] sm:$0xff]
    %v22 = vld [vmem:[%s0 + $0x48] sm:$0xff]
    %v23 = vld [vmem:[%s0 + $0x50] sm:$0xff]
    %v24 = vld [vmem:[%s0 + $0x58] sm:$0xff]
    %v25 = vld [vmem:[%s0 + $0x60] sm:$0xff]
    %v26 = vld [vmem:[%s0 + $0x68] sm:$0xff]
    %v27 = vld [vmem:[%s0 + $0x70] sm:$0xff]
    %v28 = vld [vmem:[%s0 + $0x78] sm:$0xff]
    %v29 = vld [vmem:[%s0 + $0x80] sm:$0xff]
    %v30 = vld [vmem:[%s0 + $0x88] sm:$0xff]
    %v31 = vld [vmem:[%s0 + $0x90] sm:$0xff]
    %v32 = vld [vmem:[%s0 + $0x98] sm:$0xff]
    %v33 = vld [vmem:[%s0 + $0xa0] sm:$0xff]
    %v34 = vld [vmem:[%s0 + $0xa8] sm:$0xff]
    %v35 = vld [vmem:[%s0 + $0xb0] sm:$0xff]
    %v36 = vld [vmem:[%s0 + $0xb8] sm:$0xff]
    %v37 = vld [vmem:[%s0 + $0xc0] sm:$0xff]
    %v38 = vld [vmem:[%s0 + $0xc8] sm:$0xff]
    %v39 = vld [vmem:[%s0 + $0xd0] sm:$0xff]
    %v40 = vld [vmem:[%s0 + $0xd8] sm:$0xff]
    %v41 = vld [vmem:[%s0 + $0xe0] sm:$0xff]
    %v42 = vld [vmem:[%s0 + $0xe8] sm:$0xff]
    %v43 = vld [vmem:[%s0 + $0xf0] sm:$0xff]
    %v44 = vld [vmem:[%s0 + $0xf8] sm:$0xff]
    %v45 = vld [vmem:[%s0 + $0x100] sm:$0xff]
    %v46 = vld [vmem:[%s0 + $0x108] sm:$0xff]
    %v47 = vld [vmem:[%s0 + $0x110] sm:$0xff]
    %v48 = vld [vmem:[%s0 + $0x118] sm:$0xff]
    %v49 = vld [vmem:[%s0 + $0x120] sm:$0xff]
    %v50 = vld [vmem:[%s0 + $0x128] sm:$0xff]
    %v51 = vld [vmem:[%s0 + $0x130] sm:$0xff]
    %v52 = vld [vmem:[%s0 + $0x138] sm:$0xff]
    %v53 = vld [vmem:[%s0 + $0x140] sm:$0xff]
    %v54 = vld [vmem:[%s0 + $0x148] sm:$0xff]
    %v55 = vld [vmem:[%s0 + $0x150] sm:$0xff]
    %v56 = vld [vmem:[%s0 + $0x158] sm:$0xff]
    %v57 = vld [vmem:[%s0 + $0x160] sm:$0xff]
    %v58 = vld [vmem:[%s0 + $0x168] sm:$0xff]
    %v59 = vld [vmem:[%s0 + $0x170] sm:$0xff]
    %v60 = vld [vmem:[%s0 + $0x178] sm:$0xff]
    %v61 = vld [vmem:[%s0 + $0x180] sm:$0xff]
    %v62 = vld [vmem:[%s0 + $0x188] sm:$0xff]
    %v63 = vld [vmem:[%s0 + $0x190] sm:$0xff]
    %v64 = vld [vmem:[%s0 + $0x198] sm:$0xff]
    %v65 = vld [vmem:[%s0 + $0x1a0] sm:$0xff]
    %v66 = vld [vmem:[%s0 + $0x1a8] sm:$0xff]
    %v67 = vld [vmem:[%s0 + $0x1b0] sm:$0xff]
    %v68 = vld [vmem:[%s0 + $0x1b8] sm:$0xff]
    %v69 = vld [vmem:[%s0 + $0x1c0] sm:$0xff]
    %v70 = vld [vmem:[%s0 + $0x1c8] sm:$0xff]
    %v71 = vld [vmem:[%s0 + $0x1d0] sm:$0xff]
    %v72 = vld [vmem:[%s0 + $0x1d8] sm:$0xff]
    %v73 = vld [vmem:[%s0 + $0x1e0] sm:$0xff]
    %v74 = vld [vmem:[%s0 + $0x1e8] sm:$0xff]
    %v75 = vld [vmem:[%s0 + $0x1f0] sm:$0xff]
    %v76 = vld [vmem:[%s0 + $0x1f8] sm:$0xff]
    %v77 = vld [vmem:[%s0 + $0x200] sm:$0xff]
    %v78 = vld [vmem:[%s0 + $0x208] sm:$0xff]
    %v79 = vld [vmem:[%s0 + $0x210] sm:$0xff]
    %v80 = vld [vmem:[%s0 + $0x218] sm:$0xff]
    %v81 = vld [vmem:[%s0 + $0x220] sm:$0xff]
    %v82 = vld [vmem:[%s0 + $0x228] sm:$0xff]
    %v83 = vld [vmem:[%s0 + $0x230] sm:$0xff]
    %v84 = vld [vmem:[%s0 + $0x238] sm:$0xff]
    %v85 = vld [vmem:[%s0 + $0x240] sm:$0xff]
    %v86 = vld [vmem:[%s0 + $0x248] sm:$0xff]
    %v87 = vld [vmem:[%s0 + $0x250] sm:$0xff]
    %v88 = vld [vmem:[%s0 + $0x258] sm:$0xff]
    %v89 = vld [vmem:[%s0 + $0x260] sm:$0xff]
    %v90 = vld [vmem:[%s0 + $0x268] sm:$0xff]
    %v91 = vld [vmem:[%s0 + $0x270] sm:$0xff]
    %v92 = vld [vmem:[%s0 + $0x278] sm:$0xff]
    %v93 = vld [vmem:[%s0 + $0x280] sm:$0xff]
    %v94 = vld [vmem:[%s0 + $0x288] sm:$0xff]
    %v95 = vld [vmem:[%s0 + $0x290] sm:$0xff]
    %v96 = vld [vmem:[%s0 + $0x298] sm:$0xff]
    %v97 = vld [vmem:[%s0 + $0x2a0] sm:$0xff]
    %v98 = vld [vmem:[%s0 + $0x2a8] sm:$0xff]
    %v99 = vld [vmem:[%s0 + $0x2b0] sm:$0xff]
    %v100 = vld [vmem:[%s0 + $0x2b8] sm:$0xff]
    %v101 = vld [vmem:[%s0 + $0x2c0] sm:$0xff]
    %v102 = vld [vmem:[%s0 + $0x2c8] sm:$0xff]
    %v103 = vld [vmem:[%s0 + $0x2d0] sm:$0xff]
    %v104 = vld [vmem:[%s0 + $0x2d8] sm:$0xff]
    %v105 = vld [vmem:[%s0 + $0x2e0] sm:$0xff]
    %v106 = vld [vmem:[%s0 + $0x2e8] sm:$0xff]
    %v107 = vld [vmem:[%s0 + $0x2f0] sm:$0xff]
    %v108 = vld [vmem:[%s0 + $0x2f8] sm:$0xff]
    %v109 = vld [vmem:[%s0 + $0x300] sm:$0xff]
    %v110 = vld [vmem:[%s0 + $0x308] sm:$0xff]
    %v111 = vld [vmem:[%s0 + $0x310] sm:$0xff]
    %v112 = vld [vmem:[%s0 + $0x318] sm:$0xff]
    %v113 = vld [vmem:[%s0 + $0x320] sm:$0xff]
    %v114 = vld [vmem:[%s0 + $0x328] sm:$0xff]
    %v115 = vld [vmem:[%s0 + $0x330] sm:$0xff]
    %v116 = vld [vmem:[%s0 + $0x338] sm:$0xff]
    %v117 = vld [vmem:[%s0 + $0x340] sm:$0xff]
    %v118 = vld [vmem:[%s0 + $0x348] sm:$0xff]
    %v119 = vld [vmem:[%s0 + $0x350] sm:$0xff]
    %v120 = vld [vmem:[%s0 + $0x358] sm:$0xff]
    %v121 = vld [vmem:[%s0 + $0x360] sm:$0xff]
    %v122 = vld [vmem:[%s0 + $0x368] sm:$0xff]
    %v123 = vld [vmem:[%s0 + $0x370] sm:$0xff]
    %v124 = vld [vmem:[%s0 + $0x378] sm:$0xff]
    %v125 = vld [vmem:[%s0 + $0x380] sm:$0xff]
    %v126 = vld [vmem:[%s0 + $0x388] sm:$0xff]
    %v127 = vld [vmem:[%s0 + $0x390] sm:$0xff]
    %v128 = vld [vmem:[%s0 + $0x398] sm:$0xff]
    %v129 = vld [vmem:[%s0 + $0x3a0] sm:$0xff]
    %v130 = vld [vmem:[%s0 + $0x3a8] sm:$0xff]
    %v131 = vld [vmem:[%s0 + $0x3b0] sm:$0xff]
    %v132 = vld [vmem:[%s0 + $0x3b8] sm:$0xff]
    %v133 = vld [vmem:[%s0 + $0x3c0] sm:$0xff]
    %v134 = vld [vmem:[%s0 + $0x3c8] sm:$0xff]
    %v135 = vld [vmem:[%s0 + $0x3d0] sm:$0xff]
    %v136 = vld [vmem:[%s0 + $0x3d8] sm:$0xff]
    %v137 = vld [vmem:[%s0 + $0x3e0] sm:$0xff]
    %v138 = vld [vmem:[%s0 + $0x3e8] sm:$0xff]
    %v139 = vld [vmem:[%s0 + $0x3f0] sm:$0xff]
    %v140 = vld [vmem:[%s0 + $0x3f8] sm:$0xff]
    %v141 = vmul.f32 %v13, %v13
    %v142 = vmul.f32 %v14, %v14
    %v143 = vmul.f32 %v15, %v15
    %v144 = vmul.f32 %v16, %v16
    %v145 = vmul.f32 %v17, %v17
    %v146 = vmul.f32 %v18, %v18
    %v147 = vmul.f32 %v19, %v19
    %v148 = vmul.f32 %v20, %v20
    %v149 = vmul.f32 %v21, %v21
    %v150 = vmul.f32 %v22, %v22
    %v151 = vmul.f32 %v23, %v23
    %v152 = vmul.f32 %v24, %v24
    %v153 = vmul.f32 %v25, %v25
    %v154 = vmul.f32 %v26, %v26
    %v155 = vmul.f32 %v27, %v27
    %v156 = vmul.f32 %v28, %v28
    %v157 = vmul.f32 %v29, %v29
    %v158 = vmul.f32 %v30, %v30
    %v159 = vmul.f32 %v31, %v31
    %v160 = vmul.f32 %v32, %v32
    %v161 = vmul.f32 %v33, %v33
    %v162 = vmul.f32 %v34, %v34
    %v163 = vmul.f32 %v35, %v35
    %v164 = vmul.f32 %v36, %v36
    %v165 = vmul.f32 %v37, %v37
    %v166 = vmul.f32 %v38, %v38
    %v167 = vmul.f32 %v39, %v39
    %v168 = vmul.f32 %v40, %v40
    %v169 = vmul.f32 %v41, %v41
    %v170 = vmul.f32 %v42, %v42
    %v171 = vmul.f32 %v43, %v43
    %v172 = vmul.f32 %v44, %v44
    %v173 = vmul.f32 %v45, %v45
    %v174 = vmul.f32 %v46, %v46
    %v175 = vmul.f32 %v47, %v47
    %v176 = vmul.f32 %v48, %v48
    %v177 = vmul.f32 %v49, %v49
    %v178 = vmul.f32 %v50, %v50
    %v179 = vmul.f32 %v51, %v51
    %v180 = vmul.f32 %v52, %v52
    %v181 = vmul.f32 %v53, %v53
    %v182 = vmul.f32 %v54, %v54
    %v183 = vmul.f32 %v55, %v55
    %v184 = vmul.f32 %v56, %v56
    %v185 = vmul.f32 %v57, %v57
    %v186 = vmul.f32 %v58, %v58
    %v187 = vmul.f32 %v59, %v59
    %v188 = vmul.f32 %v60, %v60
    %v189 = vmul.f32 %v61, %v61
    %v190 = vmul.f32 %v62, %v62
    %v191 = vmul.f32 %v63, %v63
    %v192 = vmul.f32 %v64, %v64
    %v193 = vmul.f32 %v65, %v65
    %v194 = vmul.f32 %v66, %v66
    %v195 = vmul.f32 %v67, %v67
    %v196 = vmul.f32 %v68, %v68
    %v197 = vmul.f32 %v69, %v69
    %v198 = vmul.f32 %v70, %v70
    %v199 = vmul.f32 %v71, %v71
    %v200 = vmul.f32 %v72, %v72
    %v201 = vmul.f32 %v73, %v73
    %v202 = vmul.f32 %v74, %v74
    %v203 = vmul.f32 %v75, %v75
    %v204 = vmul.f32 %v76, %v76
    %v205 = vmul.f32 %v77, %v77
    %v206 = vmul.f32 %v78, %v78
    %v207 = vmul.f32 %v79, %v79
    %v208 = vmul.f32 %v80, %v80
    %v209 = vmul.f32 %v81, %v81
    %v210 = vmul.f32 %v82, %v82
    %v211 = vmul.f32 %v83, %v83
    %v212 = vmul.f32 %v84, %v84
    %v213 = vmul.f32 %v85, %v85
    %v214 = vmul.f32 %v86, %v86
    %v215 = vmul.f32 %v87, %v87
    %v216 = vmul.f32 %v88, %v88
    %v217 = vmul.f32 %v89, %v89
    %v218 = vmul.f32 %v90, %v90
    %v219 = vmul.f32 %v91, %v91
    %v220 = vmul.f32 %v92, %v92
    %v221 = vmul.f32 %v93, %v93
    %v222 = vmul.f32 %v94, %v94
    %v223 = vmul.f32 %v95, %v95
    %v224 = vmul.f32 %v96, %v96
    %v225 = vmul.f32 %v97, %v97
    %v226 = vmul.f32 %v98, %v98
    %v227 = vmul.f32 %v99, %v99
    %v228 = vmul.f32 %v100, %v100
    %v229 = vmul.f32 %v101, %v101
    %v230 = vmul.f32 %v102, %v102
    %v231 = vmul.f32 %v103, %v103
    %v232 = vmul.f32 %v104, %v104
    %v233 = vmul.f32 %v105, %v105
    %v234 = vmul.f32 %v106, %v106
    %v235 = vmul.f32 %v107, %v107
    %v236 = vmul.f32 %v108, %v108
    %v237 = vmul.f32 %v109, %v109
    %v238 = vmul.f32 %v110, %v110
    %v239 = vmul.f32 %v111, %v111
    %v240 = vmul.f32 %v112, %v112
    %v241 = vmul.f32 %v113, %v113
    %v242 = vmul.f32 %v114, %v114
    %v243 = vmul.f32 %v115, %v115
    %v244 = vmul.f32 %v116, %v116
    %v245 = vmul.f32 %v117, %v117
    %v246 = vmul.f32 %v118, %v118
    %v247 = vmul.f32 %v119, %v119
    %v248 = vmul.f32 %v120, %v120
    %v249 = vmul.f32 %v121, %v121
    %v250 = vmul.f32 %v122, %v122
    %v251 = vmul.f32 %v123, %v123
    %v252 = vmul.f32 %v124, %v124
    %v253 = vmul.f32 %v125, %v125
    %v254 = vmul.f32 %v126, %v126
    %v255 = vmul.f32 %v127, %v127
    %v256 = vmul.f32 %v128, %v128
    %v257 = vmul.f32 %v129, %v129
    %v258 = vmul.f32 %v130, %v130
    %v259 = vmul.f32 %v131, %v131
    %v260 = vmul.f32 %v132, %v132
    %v261 = vmul.f32 %v133, %v133
    %v262 = vmul.f32 %v134, %v134
    %v263 = vmul.f32 %v135, %v135
    %v264 = vmul.f32 %v136, %v136
    %v265 = vmul.f32 %v137, %v137
    %v266 = vmul.f32 %v138, %v138
    %v267 = vmul.f32 %v139, %v139
    %v268 = vmul.f32 %v140, %v140
    %vm269 = vcmask 523264
    %v270 = vsel %vm269, %v141, 0.0
    %271 = vadd.xlane.f32.xlu0 %v270
    %v272 = vpop.xlane.xlu0 %271
    %v273 = vsel %vm269, %v142, 0.0
    %274 = vadd.xlane.f32.xlu0 %v273
    %v275 = vpop.xlane.xlu0 %274
    %v276 = vsel %vm269, %v143, 0.0
    %277 = vadd.xlane.f32.xlu0 %v276
    %v278 = vpop.xlane.xlu0 %277
    %v279 = vsel %vm269, %v144, 0.0
    %280 = vadd.xlane.f32.xlu0 %v279
    %v281 = vpop.xlane.xlu0 %280
    %v282 = vsel %vm269, %v145, 0.0
    %283 = vadd.xlane.f32.xlu0 %v282
    %v284 = vpop.xlane.xlu0 %283
    %v285 = vsel %vm269, %v146, 0.0
    %286 = vadd.xlane.f32.xlu0 %v285
    %v287 = vpop.xlane.xlu0 %286
    %v288 = vsel %vm269, %v147, 0.0
    %289 = vadd.xlane.f32.xlu0 %v288
    %v290 = vpop.xlane.xlu0 %289
    %v291 = vsel %vm269, %v148, 0.0
    %292 = vadd.xlane.f32.xlu0 %v291
    %v293 = vpop.xlane.xlu0 %292
    %v294 = vsel %vm269, %v149, 0.0
    %295 = vadd.xlane.f32.xlu0 %v294
    %v296 = vpop.xlane.xlu0 %295
    %v297 = vsel %vm269, %v150, 0.0
    %298 = vadd.xlane.f32.xlu0 %v297
    %v299 = vpop.xlane.xlu0 %298
    %v300 = vsel %vm269, %v151, 0.0
    %301 = vadd.xlane.f32.xlu0 %v300
    %v302 = vpop.xlane.xlu0 %301
    %v303 = vsel %vm269, %v152, 0.0
    %304 = vadd.xlane.f32.xlu0 %v303
    %v305 = vpop.xlane.xlu0 %304
    %v306 = vsel %vm269, %v153, 0.0
    %307 = vadd.xlane.f32.xlu0 %v306
    %v308 = vpop.xlane.xlu0 %307
    %v309 = vsel %vm269, %v154, 0.0
    %310 = vadd.xlane.f32.xlu0 %v309
    %v311 = vpop.xlane.xlu0 %310
    %v312 = vsel %vm269, %v155, 0.0
    %313 = vadd.xlane.f32.xlu0 %v312
    %v314 = vpop.xlane.xlu0 %313
    %v315 = vsel %vm269, %v156, 0.0
    %316 = vadd.xlane.f32.xlu0 %v315
    %v317 = vpop.xlane.xlu0 %316
    %v318 = vsel %vm269, %v157, 0.0
    %319 = vadd.xlane.f32.xlu0 %v318
    %v320 = vpop.xlane.xlu0 %319
    %v321 = vsel %vm269, %v158, 0.0
    %322 = vadd.xlane.f32.xlu0 %v321
    %v323 = vpop.xlane.xlu0 %322
    %v324 = vsel %vm269, %v159, 0.0
    %325 = vadd.xlane.f32.xlu0 %v324
    %v326 = vpop.xlane.xlu0 %325
    %v327 = vsel %vm269, %v160, 0.0
    %328 = vadd.xlane.f32.xlu0 %v327
    %v329 = vpop.xlane.xlu0 %328
    %v330 = vsel %vm269, %v161, 0.0
    %331 = vadd.xlane.f32.xlu0 %v330
    %v332 = vpop.xlane.xlu0 %331
    %v333 = vsel %vm269, %v162, 0.0
    %334 = vadd.xlane.f32.xlu0 %v333
    %v335 = vpop.xlane.xlu0 %334
    %v336 = vsel %vm269, %v163, 0.0
    %337 = vadd.xlane.f32.xlu0 %v336
    %v338 = vpop.xlane.xlu0 %337
    %v339 = vsel %vm269, %v164, 0.0
    %340 = vadd.xlane.f32.xlu0 %v339
    %v341 = vpop.xlane.xlu0 %340
    %v342 = vsel %vm269, %v165, 0.0
    %343 = vadd.xlane.f32.xlu0 %v342
    %v344 = vpop.xlane.xlu0 %343
    %v345 = vsel %vm269, %v166, 0.0
    %346 = vadd.xlane.f32.xlu0 %v345
    %v347 = vpop.xlane.xlu0 %346
    %v348 = vsel %vm269, %v167, 0.0
    %349 = vadd.xlane.f32.xlu0 %v348
    %v350 = vpop.xlane.xlu0 %349
    %v351 = vsel %vm269, %v168, 0.0
    %352 = vadd.xlane.f32.xlu0 %v351
    %v353 = vpop.xlane.xlu0 %352
    %v354 = vsel %vm269, %v169, 0.0
    %355 = vadd.xlane.f32.xlu0 %v354
    %v356 = vpop.xlane.xlu0 %355
    %v357 = vsel %vm269, %v170, 0.0
    %358 = vadd.xlane.f32.xlu0 %v357
    %v359 = vpop.xlane.xlu0 %358
    %v360 = vsel %vm269, %v171, 0.0
    %361 = vadd.xlane.f32.xlu0 %v360
    %v362 = vpop.xlane.xlu0 %361
    %v363 = vsel %vm269, %v172, 0.0
    %364 = vadd.xlane.f32.xlu0 %v363
    %v365 = vpop.xlane.xlu0 %364
    %v366 = vsel %vm269, %v173, 0.0
    %367 = vadd.xlane.f32.xlu0 %v366
    %v368 = vpop.xlane.xlu0 %367
    %v369 = vsel %vm269, %v174, 0.0
    %370 = vadd.xlane.f32.xlu0 %v369
    %v371 = vpop.xlane.xlu0 %370
    %v372 = vsel %vm269, %v175, 0.0
    %373 = vadd.xlane.f32.xlu0 %v372
    %v374 = vpop.xlane.xlu0 %373
    %v375 = vsel %vm269, %v176, 0.0
    %376 = vadd.xlane.f32.xlu0 %v375
    %v377 = vpop.xlane.xlu0 %376
    %v378 = vsel %vm269, %v177, 0.0
    %379 = vadd.xlane.f32.xlu0 %v378
    %v380 = vpop.xlane.xlu0 %379
    %v381 = vsel %vm269, %v178, 0.0
    %382 = vadd.xlane.f32.xlu0 %v381
    %v383 = vpop.xlane.xlu0 %382
    %v384 = vsel %vm269, %v179, 0.0
    %385 = vadd.xlane.f32.xlu0 %v384
    %v386 = vpop.xlane.xlu0 %385
    %v387 = vsel %vm269, %v180, 0.0
    %388 = vadd.xlane.f32.xlu0 %v387
    %v389 = vpop.xlane.xlu0 %388
    %v390 = vsel %vm269, %v181, 0.0
    %391 = vadd.xlane.f32.xlu0 %v390
    %v392 = vpop.xlane.xlu0 %391
    %v393 = vsel %vm269, %v182, 0.0
    %394 = vadd.xlane.f32.xlu0 %v393
    %v395 = vpop.xlane.xlu0 %394
    %v396 = vsel %vm269, %v183, 0.0
    %397 = vadd.xlane.f32.xlu0 %v396
    %v398 = vpop.xlane.xlu0 %397
    %v399 = vsel %vm269, %v184, 0.0
    %400 = vadd.xlane.f32.xlu0 %v399
    %v401 = vpop.xlane.xlu0 %400
    %v402 = vsel %vm269, %v185, 0.0
    %403 = vadd.xlane.f32.xlu0 %v402
    %v404 = vpop.xlane.xlu0 %403
    %v405 = vsel %vm269, %v186, 0.0
    %406 = vadd.xlane.f32.xlu0 %v405
    %v407 = vpop.xlane.xlu0 %406
    %v408 = vsel %vm269, %v187, 0.0
    %409 = vadd.xlane.f32.xlu0 %v408
    %v410 = vpop.xlane.xlu0 %409
    %v411 = vsel %vm269, %v188, 0.0
    %412 = vadd.xlane.f32.xlu0 %v411
    %v413 = vpop.xlane.xlu0 %412
    %v414 = vsel %vm269, %v189, 0.0
    %415 = vadd.xlane.f32.xlu0 %v414
    %v416 = vpop.xlane.xlu0 %415
    %v417 = vsel %vm269, %v190, 0.0
    %418 = vadd.xlane.f32.xlu0 %v417
    %v419 = vpop.xlane.xlu0 %418
    %v420 = vsel %vm269, %v191, 0.0
    %421 = vadd.xlane.f32.xlu0 %v420
    %v422 = vpop.xlane.xlu0 %421
    %v423 = vsel %vm269, %v192, 0.0
    %424 = vadd.xlane.f32.xlu0 %v423
    %v425 = vpop.xlane.xlu0 %424
    %v426 = vsel %vm269, %v193, 0.0
    %427 = vadd.xlane.f32.xlu0 %v426
    %v428 = vpop.xlane.xlu0 %427
    %v429 = vsel %vm269, %v194, 0.0
    %430 = vadd.xlane.f32.xlu0 %v429
    %v431 = vpop.xlane.xlu0 %430
    %v432 = vsel %vm269, %v195, 0.0
    %433 = vadd.xlane.f32.xlu0 %v432
    %v434 = vpop.xlane.xlu0 %433
    %v435 = vsel %vm269, %v196, 0.0
    %436 = vadd.xlane.f32.xlu0 %v435
    %v437 = vpop.xlane.xlu0 %436
    %v438 = vsel %vm269, %v197, 0.0
    %439 = vadd.xlane.f32.xlu0 %v438
    %v440 = vpop.xlane.xlu0 %439
    %v441 = vsel %vm269, %v198, 0.0
    %442 = vadd.xlane.f32.xlu0 %v441
    %v443 = vpop.xlane.xlu0 %442
    %v444 = vsel %vm269, %v199, 0.0
    %445 = vadd.xlane.f32.xlu0 %v444
    %v446 = vpop.xlane.xlu0 %445
    %v447 = vsel %vm269, %v200, 0.0
    %448 = vadd.xlane.f32.xlu0 %v447
    %v449 = vpop.xlane.xlu0 %448
    %v450 = vsel %vm269, %v201, 0.0
    %451 = vadd.xlane.f32.xlu0 %v450
    %v452 = vpop.xlane.xlu0 %451
    %v453 = vsel %vm269, %v202, 0.0
    %454 = vadd.xlane.f32.xlu0 %v453
    %v455 = vpop.xlane.xlu0 %454
    %v456 = vsel %vm269, %v203, 0.0
    %457 = vadd.xlane.f32.xlu0 %v456
    %v458 = vpop.xlane.xlu0 %457
    %v459 = vsel %vm269, %v204, 0.0
    %460 = vadd.xlane.f32.xlu0 %v459
    %v461 = vpop.xlane.xlu0 %460
    %v462 = vsel %vm269, %v205, 0.0
    %463 = vadd.xlane.f32.xlu0 %v462
    %v464 = vpop.xlane.xlu0 %463
    %v465 = vsel %vm269, %v206, 0.0
    %466 = vadd.xlane.f32.xlu0 %v465
    %v467 = vpop.xlane.xlu0 %466
    %v468 = vsel %vm269, %v207, 0.0
    %469 = vadd.xlane.f32.xlu0 %v468
    %v470 = vpop.xlane.xlu0 %469
    %v471 = vsel %vm269, %v208, 0.0
    %472 = vadd.xlane.f32.xlu0 %v471
    %v473 = vpop.xlane.xlu0 %472
    %v474 = vsel %vm269, %v209, 0.0
    %475 = vadd.xlane.f32.xlu0 %v474
    %v476 = vpop.xlane.xlu0 %475
    %v477 = vsel %vm269, %v210, 0.0
    %478 = vadd.xlane.f32.xlu0 %v477
    %v479 = vpop.xlane.xlu0 %478
    %v480 = vsel %vm269, %v211, 0.0
    %481 = vadd.xlane.f32.xlu0 %v480
    %v482 = vpop.xlane.xlu0 %481
    %v483 = vsel %vm269, %v212, 0.0
    %484 = vadd.xlane.f32.xlu0 %v483
    %v485 = vpop.xlane.xlu0 %484
    %v486 = vsel %vm269, %v213, 0.0
    %487 = vadd.xlane.f32.xlu0 %v486
    %v488 = vpop.xlane.xlu0 %487
    %v489 = vsel %vm269, %v214, 0.0
    %490 = vadd.xlane.f32.xlu0 %v489
    %v491 = vpop.xlane.xlu0 %490
    %v492 = vsel %vm269, %v215, 0.0
    %493 = vadd.xlane.f32.xlu0 %v492
    %v494 = vpop.xlane.xlu0 %493
    %v495 = vsel %vm269, %v216, 0.0
    %496 = vadd.xlane.f32.xlu0 %v495
    %v497 = vpop.xlane.xlu0 %496
    %v498 = vsel %vm269, %v217, 0.0
    %499 = vadd.xlane.f32.xlu0 %v498
    %v500 = vpop.xlane.xlu0 %499
    %v501 = vsel %vm269, %v218, 0.0
    %502 = vadd.xlane.f32.xlu0 %v501
    %v503 = vpop.xlane.xlu0 %502
    %v504 = vsel %vm269, %v219, 0.0
    %505 = vadd.xlane.f32.xlu0 %v504
    %v506 = vpop.xlane.xlu0 %505
    %v507 = vsel %vm269, %v220, 0.0
    %508 = vadd.xlane.f32.xlu0 %v507
    %v509 = vpop.xlane.xlu0 %508
    %v510 = vsel %vm269, %v221, 0.0
    %511 = vadd.xlane.f32.xlu0 %v510
    %v512 = vpop.xlane.xlu0 %511
    %v513 = vsel %vm269, %v222, 0.0
    %514 = vadd.xlane.f32.xlu0 %v513
    %v515 = vpop.xlane.xlu0 %514
    %v516 = vsel %vm269, %v223, 0.0
    %517 = vadd.xlane.f32.xlu0 %v516
    %v518 = vpop.xlane.xlu0 %517
    %v519 = vsel %vm269, %v224, 0.0
    %520 = vadd.xlane.f32.xlu0 %v519
    %v521 = vpop.xlane.xlu0 %520
    %v522 = vsel %vm269, %v225, 0.0
    %523 = vadd.xlane.f32.xlu0 %v522
    %v524 = vpop.xlane.xlu0 %523
    %v525 = vsel %vm269, %v226, 0.0
    %526 = vadd.xlane.f32.xlu0 %v525
    %v527 = vpop.xlane.xlu0 %526
    %v528 = vsel %vm269, %v227, 0.0
    %529 = vadd.xlane.f32.xlu0 %v528
    %v530 = vpop.xlane.xlu0 %529
    %v531 = vsel %vm269, %v228, 0.0
    %532 = vadd.xlane.f32.xlu0 %v531
    %v533 = vpop.xlane.xlu0 %532
    %v534 = vsel %vm269, %v229, 0.0
    %535 = vadd.xlane.f32.xlu0 %v534
    %v536 = vpop.xlane.xlu0 %535
    %v537 = vsel %vm269, %v230, 0.0
    %538 = vadd.xlane.f32.xlu0 %v537
    %v539 = vpop.xlane.xlu0 %538
    %v540 = vsel %vm269, %v231, 0.0
    %541 = vadd.xlane.f32.xlu0 %v540
    %v542 = vpop.xlane.xlu0 %541
    %v543 = vsel %vm269, %v232, 0.0
    %544 = vadd.xlane.f32.xlu0 %v543
    %v545 = vpop.xlane.xlu0 %544
    %v546 = vsel %vm269, %v233, 0.0
    %547 = vadd.xlane.f32.xlu0 %v546
    %v548 = vpop.xlane.xlu0 %547
    %v549 = vsel %vm269, %v234, 0.0
    %550 = vadd.xlane.f32.xlu0 %v549
    %v551 = vpop.xlane.xlu0 %550
    %v552 = vsel %vm269, %v235, 0.0
    %553 = vadd.xlane.f32.xlu0 %v552
    %v554 = vpop.xlane.xlu0 %553
    %v555 = vsel %vm269, %v236, 0.0
    %556 = vadd.xlane.f32.xlu0 %v555
    %v557 = vpop.xlane.xlu0 %556
    %v558 = vsel %vm269, %v237, 0.0
    %559 = vadd.xlane.f32.xlu0 %v558
    %v560 = vpop.xlane.xlu0 %559
    %v561 = vsel %vm269, %v238, 0.0
    %562 = vadd.xlane.f32.xlu0 %v561
    %v563 = vpop.xlane.xlu0 %562
    %v564 = vsel %vm269, %v239, 0.0
    %565 = vadd.xlane.f32.xlu0 %v564
    %v566 = vpop.xlane.xlu0 %565
    %v567 = vsel %vm269, %v240, 0.0
    %568 = vadd.xlane.f32.xlu0 %v567
    %v569 = vpop.xlane.xlu0 %568
    %v570 = vsel %vm269, %v241, 0.0
    %571 = vadd.xlane.f32.xlu0 %v570
    %v572 = vpop.xlane.xlu0 %571
    %v573 = vsel %vm269, %v242, 0.0
    %574 = vadd.xlane.f32.xlu0 %v573
    %v575 = vpop.xlane.xlu0 %574
    %v576 = vsel %vm269, %v243, 0.0
    %577 = vadd.xlane.f32.xlu0 %v576
    %v578 = vpop.xlane.xlu0 %577
    %v579 = vsel %vm269, %v244, 0.0
    %580 = vadd.xlane.f32.xlu0 %v579
    %v581 = vpop.xlane.xlu0 %580
    %v582 = vsel %vm269, %v245, 0.0
    %583 = vadd.xlane.f32.xlu0 %v582
    %v584 = vpop.xlane.xlu0 %583
    %v585 = vsel %vm269, %v246, 0.0
    %586 = vadd.xlane.f32.xlu0 %v585
    %v587 = vpop.xlane.xlu0 %586
    %v588 = vsel %vm269, %v247, 0.0
    %589 = vadd.xlane.f32.xlu0 %v588
    %v590 = vpop.xlane.xlu0 %589
    %v591 = vsel %vm269, %v248, 0.0
    %592 = vadd.xlane.f32.xlu0 %v591
    %v593 = vpop.xlane.xlu0 %592
    %v594 = vsel %vm269, %v249, 0.0
    %595 = vadd.xlane.f32.xlu0 %v594
    %v596 = vpop.xlane.xlu0 %595
    %v597 = vsel %vm269, %v250, 0.0
    %598 = vadd.xlane.f32.xlu0 %v597
    %v599 = vpop.xlane.xlu0 %598
    %v600 = vsel %vm269, %v251, 0.0
    %601 = vadd.xlane.f32.xlu0 %v600
    %v602 = vpop.xlane.xlu0 %601
    %v603 = vsel %vm269, %v252, 0.0
    %604 = vadd.xlane.f32.xlu0 %v603
    %v605 = vpop.xlane.xlu0 %604
    %v606 = vsel %vm269, %v253, 0.0
    %607 = vadd.xlane.f32.xlu0 %v606
    %v608 = vpop.xlane.xlu0 %607
    %v609 = vsel %vm269, %v254, 0.0
    %610 = vadd.xlane.f32.xlu0 %v609
    %v611 = vpop.xlane.xlu0 %610
    %v612 = vsel %vm269, %v255, 0.0
    %613 = vadd.xlane.f32.xlu0 %v612
    %v614 = vpop.xlane.xlu0 %613
    %v615 = vsel %vm269, %v256, 0.0
    %616 = vadd.xlane.f32.xlu0 %v615
    %v617 = vpop.xlane.xlu0 %616
    %v618 = vsel %vm269, %v257, 0.0
    %619 = vadd.xlane.f32.xlu0 %v618
    %v620 = vpop.xlane.xlu0 %619
    %v621 = vsel %vm269, %v258, 0.0
    %622 = vadd.xlane.f32.xlu0 %v621
    %v623 = vpop.xlane.xlu0 %622
    %v624 = vsel %vm269, %v259, 0.0
    %625 = vadd.xlane.f32.xlu0 %v624
    %v626 = vpop.xlane.xlu0 %625
    %v627 = vsel %vm269, %v260, 0.0
    %628 = vadd.xlane.f32.xlu0 %v627
    %v629 = vpop.xlane.xlu0 %628
    %v630 = vsel %vm269, %v261, 0.0
    %631 = vadd.xlane.f32.xlu0 %v630
    %v632 = vpop.xlane.xlu0 %631
    %v633 = vsel %vm269, %v262, 0.0
    %634 = vadd.xlane.f32.xlu0 %v633
    %v635 = vpop.xlane.xlu0 %634
    %v636 = vsel %vm269, %v263, 0.0
    %637 = vadd.xlane.f32.xlu0 %v636
    %v638 = vpop.xlane.xlu0 %637
    %v639 = vsel %vm269, %v264, 0.0
    %640 = vadd.xlane.f32.xlu0 %v639
    %v641 = vpop.xlane.xlu0 %640
    %v642 = vsel %vm269, %v265, 0.0
    %643 = vadd.xlane.f32.xlu0 %v642
    %v644 = vpop.xlane.xlu0 %643
    %v645 = vsel %vm269, %v266, 0.0
    %646 = vadd.xlane.f32.xlu0 %v645
    %v647 = vpop.xlane.xlu0 %646
    %v648 = vsel %vm269, %v267, 0.0
    %649 = vadd.xlane.f32.xlu0 %v648
    %v650 = vpop.xlane.xlu0 %649
    %v651 = vsel %vm269, %v268, 0.0
    %652 = vadd.xlane.f32.xlu0 %v651
    %v653 = vpop.xlane.xlu0 %652
    %v654 = vrsqrt.pop %v272
    %v655 = vmul.f32 %v272, %v654
    %vm656 = vcmp.eq.f32.partialorder %v272, inf
    %v657 = vsel %vm656, %v272, %v655
    %vm658 = vcmp.eq.f32.partialorder %v272, 0.0
    %v659 = vand.u32 %v272, 2147483648
    %v660 = vsel %vm658, %v659, %v657
    %v661 = vrsqrt.pop %v275
    %v662 = vmul.f32 %v275, %v661
    %vm663 = vcmp.eq.f32.partialorder %v275, inf
    %v664 = vsel %vm663, %v275, %v662
    %vm665 = vcmp.eq.f32.partialorder %v275, 0.0
    %v666 = vand.u32 %v275, 2147483648
    %v667 = vsel %vm665, %v666, %v664
    %v668 = vrsqrt.pop %v278
    %v669 = vmul.f32 %v278, %v668
    %vm670 = vcmp.eq.f32.partialorder %v278, inf
    %v671 = vsel %vm670, %v278, %v669
    %vm672 = vcmp.eq.f32.partialorder %v278, 0.0
    %v673 = vand.u32 %v278, 2147483648
    %v674 = vsel %vm672, %v673, %v671
    %v675 = vrsqrt.pop %v281
    %v676 = vmul.f32 %v281, %v675
    %vm677 = vcmp.eq.f32.partialorder %v281, inf
    %v678 = vsel %vm677, %v281, %v676
    %vm679 = vcmp.eq.f32.partialorder %v281, 0.0
    %v680 = vand.u32 %v281, 2147483648
    %v681 = vsel %vm679, %v680, %v678
    %v682 = vrsqrt.pop %v284
    %v683 = vmul.f32 %v284, %v682
    %vm684 = vcmp.eq.f32.partialorder %v284, inf
    %v685 = vsel %vm684, %v284, %v683
    %vm686 = vcmp.eq.f32.partialorder %v284, 0.0
    %v687 = vand.u32 %v284, 2147483648
    %v688 = vsel %vm686, %v687, %v685
    %v689 = vrsqrt.pop %v287
    %v690 = vmul.f32 %v287, %v689
    %vm691 = vcmp.eq.f32.partialorder %v287, inf
    %v692 = vsel %vm691, %v287, %v690
    %vm693 = vcmp.eq.f32.partialorder %v287, 0.0
    %v694 = vand.u32 %v287, 2147483648
    %v695 = vsel %vm693, %v694, %v692
    %v696 = vrsqrt.pop %v290
    %v697 = vmul.f32 %v290, %v696
    %vm698 = vcmp.eq.f32.partialorder %v290, inf
    %v699 = vsel %vm698, %v290, %v697
    %vm700 = vcmp.eq.f32.partialorder %v290, 0.0
    %v701 = vand.u32 %v290, 2147483648
    %v702 = vsel %vm700, %v701, %v699
    %v703 = vrsqrt.pop %v293
    %v704 = vmul.f32 %v293, %v703
    %vm705 = vcmp.eq.f32.partialorder %v293, inf
    %v706 = vsel %vm705, %v293, %v704
    %vm707 = vcmp.eq.f32.partialorder %v293, 0.0
    %v708 = vand.u32 %v293, 2147483648
    %v709 = vsel %vm707, %v708, %v706
    %v710 = vrsqrt.pop %v296
    %v711 = vmul.f32 %v296, %v710
    %vm712 = vcmp.eq.f32.partialorder %v296, inf
    %v713 = vsel %vm712, %v296, %v711
    %vm714 = vcmp.eq.f32.partialorder %v296, 0.0
    %v715 = vand.u32 %v296, 2147483648
    %v716 = vsel %vm714, %v715, %v713
    %v717 = vrsqrt.pop %v299
    %v718 = vmul.f32 %v299, %v717
    %vm719 = vcmp.eq.f32.partialorder %v299, inf
    %v720 = vsel %vm719, %v299, %v718
    %vm721 = vcmp.eq.f32.partialorder %v299, 0.0
    %v722 = vand.u32 %v299, 2147483648
    %v723 = vsel %vm721, %v722, %v720
    %v724 = vrsqrt.pop %v302
    %v725 = vmul.f32 %v302, %v724
    %vm726 = vcmp.eq.f32.partialorder %v302, inf
    %v727 = vsel %vm726, %v302, %v725
    %vm728 = vcmp.eq.f32.partialorder %v302, 0.0
    %v729 = vand.u32 %v302, 2147483648
    %v730 = vsel %vm728, %v729, %v727
    %v731 = vrsqrt.pop %v305
    %v732 = vmul.f32 %v305, %v731
    %vm733 = vcmp.eq.f32.partialorder %v305, inf
    %v734 = vsel %vm733, %v305, %v732
    %vm735 = vcmp.eq.f32.partialorder %v305, 0.0
    %v736 = vand.u32 %v305, 2147483648
    %v737 = vsel %vm735, %v736, %v734
    %v738 = vrsqrt.pop %v308
    %v739 = vmul.f32 %v308, %v738
    %vm740 = vcmp.eq.f32.partialorder %v308, inf
    %v741 = vsel %vm740, %v308, %v739
    %vm742 = vcmp.eq.f32.partialorder %v308, 0.0
    %v743 = vand.u32 %v308, 2147483648
    %v744 = vsel %vm742, %v743, %v741
    %v745 = vrsqrt.pop %v311
    %v746 = vmul.f32 %v311, %v745
    %vm747 = vcmp.eq.f32.partialorder %v311, inf
    %v748 = vsel %vm747, %v311, %v746
    %vm749 = vcmp.eq.f32.partialorder %v311, 0.0
    %v750 = vand.u32 %v311, 2147483648
    %v751 = vsel %vm749, %v750, %v748
    %v752 = vrsqrt.pop %v314
    %v753 = vmul.f32 %v314, %v752
    %vm754 = vcmp.eq.f32.partialorder %v314, inf
    %v755 = vsel %vm754, %v314, %v753
    %vm756 = vcmp.eq.f32.partialorder %v314, 0.0
    %v757 = vand.u32 %v314, 2147483648
    %v758 = vsel %vm756, %v757, %v755
    %v759 = vrsqrt.pop %v317
    %v760 = vmul.f32 %v317, %v759
    %vm761 = vcmp.eq.f32.partialorder %v317, inf
    %v762 = vsel %vm761, %v317, %v760
    %vm763 = vcmp.eq.f32.partialorder %v317, 0.0
    %v764 = vand.u32 %v317, 2147483648
    %v765 = vsel %vm763, %v764, %v762
    %v766 = vrsqrt.pop %v320
    %v767 = vmul.f32 %v320, %v766
    %vm768 = vcmp.eq.f32.partialorder %v320, inf
    %v769 = vsel %vm768, %v320, %v767
    %vm770 = vcmp.eq.f32.partialorder %v320, 0.0
    %v771 = vand.u32 %v320, 2147483648
    %v772 = vsel %vm770, %v771, %v769
    %v773 = vrsqrt.pop %v323
    %v774 = vmul.f32 %v323, %v773
    %vm775 = vcmp.eq.f32.partialorder %v323, inf
    %v776 = vsel %vm775, %v323, %v774
    %vm777 = vcmp.eq.f32.partialorder %v323, 0.0
    %v778 = vand.u32 %v323, 2147483648
    %v779 = vsel %vm777, %v778, %v776
    %v780 = vrsqrt.pop %v326
    %v781 = vmul.f32 %v326, %v780
    %vm782 = vcmp.eq.f32.partialorder %v326, inf
    %v783 = vsel %vm782, %v326, %v781
    %vm784 = vcmp.eq.f32.partialorder %v326, 0.0
    %v785 = vand.u32 %v326, 2147483648
    %v786 = vsel %vm784, %v785, %v783
    %v787 = vrsqrt.pop %v329
    %v788 = vmul.f32 %v329, %v787
    %vm789 = vcmp.eq.f32.partialorder %v329, inf
    %v790 = vsel %vm789, %v329, %v788
    %vm791 = vcmp.eq.f32.partialorder %v329, 0.0
    %v792 = vand.u32 %v329, 2147483648
    %v793 = vsel %vm791, %v792, %v790
    %v794 = vrsqrt.pop %v332
    %v795 = vmul.f32 %v332, %v794
    %vm796 = vcmp.eq.f32.partialorder %v332, inf
    %v797 = vsel %vm796, %v332, %v795
    %vm798 = vcmp.eq.f32.partialorder %v332, 0.0
    %v799 = vand.u32 %v332, 2147483648
    %v800 = vsel %vm798, %v799, %v797
    %v801 = vrsqrt.pop %v335
    %v802 = vmul.f32 %v335, %v801
    %vm803 = vcmp.eq.f32.partialorder %v335, inf
    %v804 = vsel %vm803, %v335, %v802
    %vm805 = vcmp.eq.f32.partialorder %v335, 0.0
    %v806 = vand.u32 %v335, 2147483648
    %v807 = vsel %vm805, %v806, %v804
    %v808 = vrsqrt.pop %v338
    %v809 = vmul.f32 %v338, %v808
    %vm810 = vcmp.eq.f32.partialorder %v338, inf
    %v811 = vsel %vm810, %v338, %v809
    %vm812 = vcmp.eq.f32.partialorder %v338, 0.0
    %v813 = vand.u32 %v338, 2147483648
    %v814 = vsel %vm812, %v813, %v811
    %v815 = vrsqrt.pop %v341
    %v816 = vmul.f32 %v341, %v815
    %vm817 = vcmp.eq.f32.partialorder %v341, inf
    %v818 = vsel %vm817, %v341, %v816
    %vm819 = vcmp.eq.f32.partialorder %v341, 0.0
    %v820 = vand.u32 %v341, 2147483648
    %v821 = vsel %vm819, %v820, %v818
    %v822 = vrsqrt.pop %v344
    %v823 = vmul.f32 %v344, %v822
    %vm824 = vcmp.eq.f32.partialorder %v344, inf
    %v825 = vsel %vm824, %v344, %v823
    %vm826 = vcmp.eq.f32.partialorder %v344, 0.0
    %v827 = vand.u32 %v344, 2147483648
    %v828 = vsel %vm826, %v827, %v825
    %v829 = vrsqrt.pop %v347
    %v830 = vmul.f32 %v347, %v829
    %vm831 = vcmp.eq.f32.partialorder %v347, inf
    %v832 = vsel %vm831, %v347, %v830
    %vm833 = vcmp.eq.f32.partialorder %v347, 0.0
    %v834 = vand.u32 %v347, 2147483648
    %v835 = vsel %vm833, %v834, %v832
    %v836 = vrsqrt.pop %v350
    %v837 = vmul.f32 %v350, %v836
    %vm838 = vcmp.eq.f32.partialorder %v350, inf
    %v839 = vsel %vm838, %v350, %v837
    %vm840 = vcmp.eq.f32.partialorder %v350, 0.0
    %v841 = vand.u32 %v350, 2147483648
    %v842 = vsel %vm840, %v841, %v839
    %v843 = vrsqrt.pop %v353
    %v844 = vmul.f32 %v353, %v843
    %vm845 = vcmp.eq.f32.partialorder %v353, inf
    %v846 = vsel %vm845, %v353, %v844
    %vm847 = vcmp.eq.f32.partialorder %v353, 0.0
    %v848 = vand.u32 %v353, 2147483648
    %v849 = vsel %vm847, %v848, %v846
    %v850 = vrsqrt.pop %v356
    %v851 = vmul.f32 %v356, %v850
    %vm852 = vcmp.eq.f32.partialorder %v356, inf
    %v853 = vsel %vm852, %v356, %v851
    %vm854 = vcmp.eq.f32.partialorder %v356, 0.0
    %v855 = vand.u32 %v356, 2147483648
    %v856 = vsel %vm854, %v855, %v853
    %v857 = vrsqrt.pop %v359
    %v858 = vmul.f32 %v359, %v857
    %vm859 = vcmp.eq.f32.partialorder %v359, inf
    %v860 = vsel %vm859, %v359, %v858
    %vm861 = vcmp.eq.f32.partialorder %v359, 0.0
    %v862 = vand.u32 %v359, 2147483648
    %v863 = vsel %vm861, %v862, %v860
    %v864 = vrsqrt.pop %v362
    %v865 = vmul.f32 %v362, %v864
    %vm866 = vcmp.eq.f32.partialorder %v362, inf
    %v867 = vsel %vm866, %v362, %v865
    %vm868 = vcmp.eq.f32.partialorder %v362, 0.0
    %v869 = vand.u32 %v362, 2147483648
    %v870 = vsel %vm868, %v869, %v867
    %v871 = vrsqrt.pop %v365
    %v872 = vmul.f32 %v365, %v871
    %vm873 = vcmp.eq.f32.partialorder %v365, inf
    %v874 = vsel %vm873, %v365, %v872
    %vm875 = vcmp.eq.f32.partialorder %v365, 0.0
    %v876 = vand.u32 %v365, 2147483648
    %v877 = vsel %vm875, %v876, %v874
    %v878 = vrsqrt.pop %v368
    %v879 = vmul.f32 %v368, %v878
    %vm880 = vcmp.eq.f32.partialorder %v368, inf
    %v881 = vsel %vm880, %v368, %v879
    %vm882 = vcmp.eq.f32.partialorder %v368, 0.0
    %v883 = vand.u32 %v368, 2147483648
    %v884 = vsel %vm882, %v883, %v881
    %v885 = vrsqrt.pop %v371
    %v886 = vmul.f32 %v371, %v885
    %vm887 = vcmp.eq.f32.partialorder %v371, inf
    %v888 = vsel %vm887, %v371, %v886
    %vm889 = vcmp.eq.f32.partialorder %v371, 0.0
    %v890 = vand.u32 %v371, 2147483648
    %v891 = vsel %vm889, %v890, %v888
    %v892 = vrsqrt.pop %v374
    %v893 = vmul.f32 %v374, %v892
    %vm894 = vcmp.eq.f32.partialorder %v374, inf
    %v895 = vsel %vm894, %v374, %v893
    %vm896 = vcmp.eq.f32.partialorder %v374, 0.0
    %v897 = vand.u32 %v374, 2147483648
    %v898 = vsel %vm896, %v897, %v895
    %v899 = vrsqrt.pop %v377
    %v900 = vmul.f32 %v377, %v899
    %vm901 = vcmp.eq.f32.partialorder %v377, inf
    %v902 = vsel %vm901, %v377, %v900
    %vm903 = vcmp.eq.f32.partialorder %v377, 0.0
    %v904 = vand.u32 %v377, 2147483648
    %v905 = vsel %vm903, %v904, %v902
    %v906 = vrsqrt.pop %v380
    %v907 = vmul.f32 %v380, %v906
    %vm908 = vcmp.eq.f32.partialorder %v380, inf
    %v909 = vsel %vm908, %v380, %v907
    %vm910 = vcmp.eq.f32.partialorder %v380, 0.0
    %v911 = vand.u32 %v380, 2147483648
    %v912 = vsel %vm910, %v911, %v909
    %v913 = vrsqrt.pop %v383
    %v914 = vmul.f32 %v383, %v913
    %vm915 = vcmp.eq.f32.partialorder %v383, inf
    %v916 = vsel %vm915, %v383, %v914
    %vm917 = vcmp.eq.f32.partialorder %v383, 0.0
    %v918 = vand.u32 %v383, 2147483648
    %v919 = vsel %vm917, %v918, %v916
    %v920 = vrsqrt.pop %v386
    %v921 = vmul.f32 %v386, %v920
    %vm922 = vcmp.eq.f32.partialorder %v386, inf
    %v923 = vsel %vm922, %v386, %v921
    %vm924 = vcmp.eq.f32.partialorder %v386, 0.0
    %v925 = vand.u32 %v386, 2147483648
    %v926 = vsel %vm924, %v925, %v923
    %v927 = vrsqrt.pop %v389
    %v928 = vmul.f32 %v389, %v927
    %vm929 = vcmp.eq.f32.partialorder %v389, inf
    %v930 = vsel %vm929, %v389, %v928
    %vm931 = vcmp.eq.f32.partialorder %v389, 0.0
    %v932 = vand.u32 %v389, 2147483648
    %v933 = vsel %vm931, %v932, %v930
    %v934 = vrsqrt.pop %v392
    %v935 = vmul.f32 %v392, %v934
    %vm936 = vcmp.eq.f32.partialorder %v392, inf
    %v937 = vsel %vm936, %v392, %v935
    %vm938 = vcmp.eq.f32.partialorder %v392, 0.0
    %v939 = vand.u32 %v392, 2147483648
    %v940 = vsel %vm938, %v939, %v937
    %v941 = vrsqrt.pop %v395
    %v942 = vmul.f32 %v395, %v941
    %vm943 = vcmp.eq.f32.partialorder %v395, inf
    %v944 = vsel %vm943, %v395, %v942
    %vm945 = vcmp.eq.f32.partialorder %v395, 0.0
    %v946 = vand.u32 %v395, 2147483648
    %v947 = vsel %vm945, %v946, %v944
    %v948 = vrsqrt.pop %v398
    %v949 = vmul.f32 %v398, %v948
    %vm950 = vcmp.eq.f32.partialorder %v398, inf
    %v951 = vsel %vm950, %v398, %v949
    %vm952 = vcmp.eq.f32.partialorder %v398, 0.0
    %v953 = vand.u32 %v398, 2147483648
    %v954 = vsel %vm952, %v953, %v951
    %v955 = vrsqrt.pop %v401
    %v956 = vmul.f32 %v401, %v955
    %vm957 = vcmp.eq.f32.partialorder %v401, inf
    %v958 = vsel %vm957, %v401, %v956
    %vm959 = vcmp.eq.f32.partialorder %v401, 0.0
    %v960 = vand.u32 %v401, 2147483648
    %v961 = vsel %vm959, %v960, %v958
    %v962 = vrsqrt.pop %v404
    %v963 = vmul.f32 %v404, %v962
    %vm964 = vcmp.eq.f32.partialorder %v404, inf
    %v965 = vsel %vm964, %v404, %v963
    %vm966 = vcmp.eq.f32.partialorder %v404, 0.0
    %v967 = vand.u32 %v404, 2147483648
    %v968 = vsel %vm966, %v967, %v965
    %v969 = vrsqrt.pop %v407
    %v970 = vmul.f32 %v407, %v969
    %vm971 = vcmp.eq.f32.partialorder %v407, inf
    %v972 = vsel %vm971, %v407, %v970
    %vm973 = vcmp.eq.f32.partialorder %v407, 0.0
    %v974 = vand.u32 %v407, 2147483648
    %v975 = vsel %vm973, %v974, %v972
    %v976 = vrsqrt.pop %v410
    %v977 = vmul.f32 %v410, %v976
    %vm978 = vcmp.eq.f32.partialorder %v410, inf
    %v979 = vsel %vm978, %v410, %v977
    %vm980 = vcmp.eq.f32.partialorder %v410, 0.0
    %v981 = vand.u32 %v410, 2147483648
    %v982 = vsel %vm980, %v981, %v979
    %v983 = vrsqrt.pop %v413
    %v984 = vmul.f32 %v413, %v983
    %vm985 = vcmp.eq.f32.partialorder %v413, inf
    %v986 = vsel %vm985, %v413, %v984
    %vm987 = vcmp.eq.f32.partialorder %v413, 0.0
    %v988 = vand.u32 %v413, 2147483648
    %v989 = vsel %vm987, %v988, %v986
    %v990 = vrsqrt.pop %v416
    %v991 = vmul.f32 %v416, %v990
    %vm992 = vcmp.eq.f32.partialorder %v416, inf
    %v993 = vsel %vm992, %v416, %v991
    %vm994 = vcmp.eq.f32.partialorder %v416, 0.0
    %v995 = vand.u32 %v416, 2147483648
    %v996 = vsel %vm994, %v995, %v993
    %v997 = vrsqrt.pop %v419
    %v998 = vmul.f32 %v419, %v997
    %vm999 = vcmp.eq.f32.partialorder %v419, inf
    %v1000 = vsel %vm999, %v419, %v998
    %vm1001 = vcmp.eq.f32.partialorder %v419, 0.0
    %v1002 = vand.u32 %v419, 2147483648
    %v1003 = vsel %vm1001, %v1002, %v1000
    %v1004 = vrsqrt.pop %v422
    %v1005 = vmul.f32 %v422, %v1004
    %vm1006 = vcmp.eq.f32.partialorder %v422, inf
    %v1007 = vsel %vm1006, %v422, %v1005
    %vm1008 = vcmp.eq.f32.partialorder %v422, 0.0
    %v1009 = vand.u32 %v422, 2147483648
    %v1010 = vsel %vm1008, %v1009, %v1007
    %v1011 = vrsqrt.pop %v425
    %v1012 = vmul.f32 %v425, %v1011
    %vm1013 = vcmp.eq.f32.partialorder %v425, inf
    %v1014 = vsel %vm1013, %v425, %v1012
    %vm1015 = vcmp.eq.f32.partialorder %v425, 0.0
    %v1016 = vand.u32 %v425, 2147483648
    %v1017 = vsel %vm1015, %v1016, %v1014
    %v1018 = vrsqrt.pop %v428
    %v1019 = vmul.f32 %v428, %v1018
    %vm1020 = vcmp.eq.f32.partialorder %v428, inf
    %v1021 = vsel %vm1020, %v428, %v1019
    %vm1022 = vcmp.eq.f32.partialorder %v428, 0.0
    %v1023 = vand.u32 %v428, 2147483648
    %v1024 = vsel %vm1022, %v1023, %v1021
    %v1025 = vrsqrt.pop %v431
    %v1026 = vmul.f32 %v431, %v1025
    %vm1027 = vcmp.eq.f32.partialorder %v431, inf
    %v1028 = vsel %vm1027, %v431, %v1026
    %vm1029 = vcmp.eq.f32.partialorder %v431, 0.0
    %v1030 = vand.u32 %v431, 2147483648
    %v1031 = vsel %vm1029, %v1030, %v1028
    %v1032 = vrsqrt.pop %v434
    %v1033 = vmul.f32 %v434, %v1032
    %vm1034 = vcmp.eq.f32.partialorder %v434, inf
    %v1035 = vsel %vm1034, %v434, %v1033
    %vm1036 = vcmp.eq.f32.partialorder %v434, 0.0
    %v1037 = vand.u32 %v434, 2147483648
    %v1038 = vsel %vm1036, %v1037, %v1035
    %v1039 = vrsqrt.pop %v437
    %v1040 = vmul.f32 %v437, %v1039
    %vm1041 = vcmp.eq.f32.partialorder %v437, inf
    %v1042 = vsel %vm1041, %v437, %v1040
    %vm1043 = vcmp.eq.f32.partialorder %v437, 0.0
    %v1044 = vand.u32 %v437, 2147483648
    %v1045 = vsel %vm1043, %v1044, %v1042
    %v1046 = vrsqrt.pop %v440
    %v1047 = vmul.f32 %v440, %v1046
    %vm1048 = vcmp.eq.f32.partialorder %v440, inf
    %v1049 = vsel %vm1048, %v440, %v1047
    %vm1050 = vcmp.eq.f32.partialorder %v440, 0.0
    %v1051 = vand.u32 %v440, 2147483648
    %v1052 = vsel %vm1050, %v1051, %v1049
    %v1053 = vrsqrt.pop %v443
    %v1054 = vmul.f32 %v443, %v1053
    %vm1055 = vcmp.eq.f32.partialorder %v443, inf
    %v1056 = vsel %vm1055, %v443, %v1054
    %vm1057 = vcmp.eq.f32.partialorder %v443, 0.0
    %v1058 = vand.u32 %v443, 2147483648
    %v1059 = vsel %vm1057, %v1058, %v1056
    %v1060 = vrsqrt.pop %v446
    %v1061 = vmul.f32 %v446, %v1060
    %vm1062 = vcmp.eq.f32.partialorder %v446, inf
    %v1063 = vsel %vm1062, %v446, %v1061
    %vm1064 = vcmp.eq.f32.partialorder %v446, 0.0
    %v1065 = vand.u32 %v446, 2147483648
    %v1066 = vsel %vm1064, %v1065, %v1063
    %v1067 = vrsqrt.pop %v449
    %v1068 = vmul.f32 %v449, %v1067
    %vm1069 = vcmp.eq.f32.partialorder %v449, inf
    %v1070 = vsel %vm1069, %v449, %v1068
    %vm1071 = vcmp.eq.f32.partialorder %v449, 0.0
    %v1072 = vand.u32 %v449, 2147483648
    %v1073 = vsel %vm1071, %v1072, %v1070
    %v1074 = vrsqrt.pop %v452
    %v1075 = vmul.f32 %v452, %v1074
    %vm1076 = vcmp.eq.f32.partialorder %v452, inf
    %v1077 = vsel %vm1076, %v452, %v1075
    %vm1078 = vcmp.eq.f32.partialorder %v452, 0.0
    %v1079 = vand.u32 %v452, 2147483648
    %v1080 = vsel %vm1078, %v1079, %v1077
    %v1081 = vrsqrt.pop %v455
    %v1082 = vmul.f32 %v455, %v1081
    %vm1083 = vcmp.eq.f32.partialorder %v455, inf
    %v1084 = vsel %vm1083, %v455, %v1082
    %vm1085 = vcmp.eq.f32.partialorder %v455, 0.0
    %v1086 = vand.u32 %v455, 2147483648
    %v1087 = vsel %vm1085, %v1086, %v1084
    %v1088 = vrsqrt.pop %v458
    %v1089 = vmul.f32 %v458, %v1088
    %vm1090 = vcmp.eq.f32.partialorder %v458, inf
    %v1091 = vsel %vm1090, %v458, %v1089
    %vm1092 = vcmp.eq.f32.partialorder %v458, 0.0
    %v1093 = vand.u32 %v458, 2147483648
    %v1094 = vsel %vm1092, %v1093, %v1091
    %v1095 = vrsqrt.pop %v461
    %v1096 = vmul.f32 %v461, %v1095
    %vm1097 = vcmp.eq.f32.partialorder %v461, inf
    %v1098 = vsel %vm1097, %v461, %v1096
    %vm1099 = vcmp.eq.f32.partialorder %v461, 0.0
    %v1100 = vand.u32 %v461, 2147483648
    %v1101 = vsel %vm1099, %v1100, %v1098
    %v1102 = vrsqrt.pop %v464
    %v1103 = vmul.f32 %v464, %v1102
    %vm1104 = vcmp.eq.f32.partialorder %v464, inf
    %v1105 = vsel %vm1104, %v464, %v1103
    %vm1106 = vcmp.eq.f32.partialorder %v464, 0.0
    %v1107 = vand.u32 %v464, 2147483648
    %v1108 = vsel %vm1106, %v1107, %v1105
    %v1109 = vrsqrt.pop %v467
    %v1110 = vmul.f32 %v467, %v1109
    %vm1111 = vcmp.eq.f32.partialorder %v467, inf
    %v1112 = vsel %vm1111, %v467, %v1110
    %vm1113 = vcmp.eq.f32.partialorder %v467, 0.0
    %v1114 = vand.u32 %v467, 2147483648
    %v1115 = vsel %vm1113, %v1114, %v1112
    %v1116 = vrsqrt.pop %v470
    %v1117 = vmul.f32 %v470, %v1116
    %vm1118 = vcmp.eq.f32.partialorder %v470, inf
    %v1119 = vsel %vm1118, %v470, %v1117
    %vm1120 = vcmp.eq.f32.partialorder %v470, 0.0
    %v1121 = vand.u32 %v470, 2147483648
    %v1122 = vsel %vm1120, %v1121, %v1119
    %v1123 = vrsqrt.pop %v473
    %v1124 = vmul.f32 %v473, %v1123
    %vm1125 = vcmp.eq.f32.partialorder %v473, inf
    %v1126 = vsel %vm1125, %v473, %v1124
    %vm1127 = vcmp.eq.f32.partialorder %v473, 0.0
    %v1128 = vand.u32 %v473, 2147483648
    %v1129 = vsel %vm1127, %v1128, %v1126
    %v1130 = vrsqrt.pop %v476
    %v1131 = vmul.f32 %v476, %v1130
    %vm1132 = vcmp.eq.f32.partialorder %v476, inf
    %v1133 = vsel %vm1132, %v476, %v1131
    %vm1134 = vcmp.eq.f32.partialorder %v476, 0.0
    %v1135 = vand.u32 %v476, 2147483648
    %v1136 = vsel %vm1134, %v1135, %v1133
    %v1137 = vrsqrt.pop %v479
    %v1138 = vmul.f32 %v479, %v1137
    %vm1139 = vcmp.eq.f32.partialorder %v479, inf
    %v1140 = vsel %vm1139, %v479, %v1138
    %vm1141 = vcmp.eq.f32.partialorder %v479, 0.0
    %v1142 = vand.u32 %v479, 2147483648
    %v1143 = vsel %vm1141, %v1142, %v1140
    %v1144 = vrsqrt.pop %v482
    %v1145 = vmul.f32 %v482, %v1144
    %vm1146 = vcmp.eq.f32.partialorder %v482, inf
    %v1147 = vsel %vm1146, %v482, %v1145
    %vm1148 = vcmp.eq.f32.partialorder %v482, 0.0
    %v1149 = vand.u32 %v482, 2147483648
    %v1150 = vsel %vm1148, %v1149, %v1147
    %v1151 = vrsqrt.pop %v485
    %v1152 = vmul.f32 %v485, %v1151
    %vm1153 = vcmp.eq.f32.partialorder %v485, inf
    %v1154 = vsel %vm1153, %v485, %v1152
    %vm1155 = vcmp.eq.f32.partialorder %v485, 0.0
    %v1156 = vand.u32 %v485, 2147483648
    %v1157 = vsel %vm1155, %v1156, %v1154
    %v1158 = vrsqrt.pop %v488
    %v1159 = vmul.f32 %v488, %v1158
    %vm1160 = vcmp.eq.f32.partialorder %v488, inf
    %v1161 = vsel %vm1160, %v488, %v1159
    %vm1162 = vcmp.eq.f32.partialorder %v488, 0.0
    %v1163 = vand.u32 %v488, 2147483648
    %v1164 = vsel %vm1162, %v1163, %v1161
    %v1165 = vrsqrt.pop %v491
    %v1166 = vmul.f32 %v491, %v1165
    %vm1167 = vcmp.eq.f32.partialorder %v491, inf
    %v1168 = vsel %vm1167, %v491, %v1166
    %vm1169 = vcmp.eq.f32.partialorder %v491, 0.0
    %v1170 = vand.u32 %v491, 2147483648
    %v1171 = vsel %vm1169, %v1170, %v1168
    %v1172 = vrsqrt.pop %v494
    %v1173 = vmul.f32 %v494, %v1172
    %vm1174 = vcmp.eq.f32.partialorder %v494, inf
    %v1175 = vsel %vm1174, %v494, %v1173
    %vm1176 = vcmp.eq.f32.partialorder %v494, 0.0
    %v1177 = vand.u32 %v494, 2147483648
    %v1178 = vsel %vm1176, %v1177, %v1175
    %v1179 = vrsqrt.pop %v497
    %v1180 = vmul.f32 %v497, %v1179
    %vm1181 = vcmp.eq.f32.partialorder %v497, inf
    %v1182 = vsel %vm1181, %v497, %v1180
    %vm1183 = vcmp.eq.f32.partialorder %v497, 0.0
    %v1184 = vand.u32 %v497, 2147483648
    %v1185 = vsel %vm1183, %v1184, %v1182
    %v1186 = vrsqrt.pop %v500
    %v1187 = vmul.f32 %v500, %v1186
    %vm1188 = vcmp.eq.f32.partialorder %v500, inf
    %v1189 = vsel %vm1188, %v500, %v1187
    %vm1190 = vcmp.eq.f32.partialorder %v500, 0.0
    %v1191 = vand.u32 %v500, 2147483648
    %v1192 = vsel %vm1190, %v1191, %v1189
    %v1193 = vrsqrt.pop %v503
    %v1194 = vmul.f32 %v503, %v1193
    %vm1195 = vcmp.eq.f32.partialorder %v503, inf
    %v1196 = vsel %vm1195, %v503, %v1194
    %vm1197 = vcmp.eq.f32.partialorder %v503, 0.0
    %v1198 = vand.u32 %v503, 2147483648
    %v1199 = vsel %vm1197, %v1198, %v1196
    %v1200 = vrsqrt.pop %v506
    %v1201 = vmul.f32 %v506, %v1200
    %vm1202 = vcmp.eq.f32.partialorder %v506, inf
    %v1203 = vsel %vm1202, %v506, %v1201
    %vm1204 = vcmp.eq.f32.partialorder %v506, 0.0
    %v1205 = vand.u32 %v506, 2147483648
    %v1206 = vsel %vm1204, %v1205, %v1203
    %v1207 = vrsqrt.pop %v509
    %v1208 = vmul.f32 %v509, %v1207
    %vm1209 = vcmp.eq.f32.partialorder %v509, inf
    %v1210 = vsel %vm1209, %v509, %v1208
    %vm1211 = vcmp.eq.f32.partialorder %v509, 0.0
    %v1212 = vand.u32 %v509, 2147483648
    %v1213 = vsel %vm1211, %v1212, %v1210
    %v1214 = vrsqrt.pop %v512
    %v1215 = vmul.f32 %v512, %v1214
    %vm1216 = vcmp.eq.f32.partialorder %v512, inf
    %v1217 = vsel %vm1216, %v512, %v1215
    %vm1218 = vcmp.eq.f32.partialorder %v512, 0.0
    %v1219 = vand.u32 %v512, 2147483648
    %v1220 = vsel %vm1218, %v1219, %v1217
    %v1221 = vrsqrt.pop %v515
    %v1222 = vmul.f32 %v515, %v1221
    %vm1223 = vcmp.eq.f32.partialorder %v515, inf
    %v1224 = vsel %vm1223, %v515, %v1222
    %vm1225 = vcmp.eq.f32.partialorder %v515, 0.0
    %v1226 = vand.u32 %v515, 2147483648
    %v1227 = vsel %vm1225, %v1226, %v1224
    %v1228 = vrsqrt.pop %v518
    %v1229 = vmul.f32 %v518, %v1228
    %vm1230 = vcmp.eq.f32.partialorder %v518, inf
    %v1231 = vsel %vm1230, %v518, %v1229
    %vm1232 = vcmp.eq.f32.partialorder %v518, 0.0
    %v1233 = vand.u32 %v518, 2147483648
    %v1234 = vsel %vm1232, %v1233, %v1231
    %v1235 = vrsqrt.pop %v521
    %v1236 = vmul.f32 %v521, %v1235
    %vm1237 = vcmp.eq.f32.partialorder %v521, inf
    %v1238 = vsel %vm1237, %v521, %v1236
    %vm1239 = vcmp.eq.f32.partialorder %v521, 0.0
    %v1240 = vand.u32 %v521, 2147483648
    %v1241 = vsel %vm1239, %v1240, %v1238
    %v1242 = vrsqrt.pop %v524
    %v1243 = vmul.f32 %v524, %v1242
    %vm1244 = vcmp.eq.f32.partialorder %v524, inf
    %v1245 = vsel %vm1244, %v524, %v1243
    %vm1246 = vcmp.eq.f32.partialorder %v524, 0.0
    %v1247 = vand.u32 %v524, 2147483648
    %v1248 = vsel %vm1246, %v1247, %v1245
    %v1249 = vrsqrt.pop %v527
    %v1250 = vmul.f32 %v527, %v1249
    %vm1251 = vcmp.eq.f32.partialorder %v527, inf
    %v1252 = vsel %vm1251, %v527, %v1250
    %vm1253 = vcmp.eq.f32.partialorder %v527, 0.0
    %v1254 = vand.u32 %v527, 2147483648
    %v1255 = vsel %vm1253, %v1254, %v1252
    %v1256 = vrsqrt.pop %v530
    %v1257 = vmul.f32 %v530, %v1256
    %vm1258 = vcmp.eq.f32.partialorder %v530, inf
    %v1259 = vsel %vm1258, %v530, %v1257
    %vm1260 = vcmp.eq.f32.partialorder %v530, 0.0
    %v1261 = vand.u32 %v530, 2147483648
    %v1262 = vsel %vm1260, %v1261, %v1259
    %v1263 = vrsqrt.pop %v533
    %v1264 = vmul.f32 %v533, %v1263
    %vm1265 = vcmp.eq.f32.partialorder %v533, inf
    %v1266 = vsel %vm1265, %v533, %v1264
    %vm1267 = vcmp.eq.f32.partialorder %v533, 0.0
    %v1268 = vand.u32 %v533, 2147483648
    %v1269 = vsel %vm1267, %v1268, %v1266
    %v1270 = vrsqrt.pop %v536
    %v1271 = vmul.f32 %v536, %v1270
    %vm1272 = vcmp.eq.f32.partialorder %v536, inf
    %v1273 = vsel %vm1272, %v536, %v1271
    %vm1274 = vcmp.eq.f32.partialorder %v536, 0.0
    %v1275 = vand.u32 %v536, 2147483648
    %v1276 = vsel %vm1274, %v1275, %v1273
    %v1277 = vrsqrt.pop %v539
    %v1278 = vmul.f32 %v539, %v1277
    %vm1279 = vcmp.eq.f32.partialorder %v539, inf
    %v1280 = vsel %vm1279, %v539, %v1278
    %vm1281 = vcmp.eq.f32.partialorder %v539, 0.0
    %v1282 = vand.u32 %v539, 2147483648
    %v1283 = vsel %vm1281, %v1282, %v1280
    %v1284 = vrsqrt.pop %v542
    %v1285 = vmul.f32 %v542, %v1284
    %vm1286 = vcmp.eq.f32.partialorder %v542, inf
    %v1287 = vsel %vm1286, %v542, %v1285
    %vm1288 = vcmp.eq.f32.partialorder %v542, 0.0
    %v1289 = vand.u32 %v542, 2147483648
    %v1290 = vsel %vm1288, %v1289, %v1287
    %v1291 = vrsqrt.pop %v545
    %v1292 = vmul.f32 %v545, %v1291
    %vm1293 = vcmp.eq.f32.partialorder %v545, inf
    %v1294 = vsel %vm1293, %v545, %v1292
    %vm1295 = vcmp.eq.f32.partialorder %v545, 0.0
    %v1296 = vand.u32 %v545, 2147483648
    %v1297 = vsel %vm1295, %v1296, %v1294
    %v1298 = vrsqrt.pop %v548
    %v1299 = vmul.f32 %v548, %v1298
    %vm1300 = vcmp.eq.f32.partialorder %v548, inf
    %v1301 = vsel %vm1300, %v548, %v1299
    %vm1302 = vcmp.eq.f32.partialorder %v548, 0.0
    %v1303 = vand.u32 %v548, 2147483648
    %v1304 = vsel %vm1302, %v1303, %v1301
    %v1305 = vrsqrt.pop %v551
    %v1306 = vmul.f32 %v551, %v1305
    %vm1307 = vcmp.eq.f32.partialorder %v551, inf
    %v1308 = vsel %vm1307, %v551, %v1306
    %vm1309 = vcmp.eq.f32.partialorder %v551, 0.0
    %v1310 = vand.u32 %v551, 2147483648
    %v1311 = vsel %vm1309, %v1310, %v1308
    %v1312 = vrsqrt.pop %v554
    %v1313 = vmul.f32 %v554, %v1312
    %vm1314 = vcmp.eq.f32.partialorder %v554, inf
    %v1315 = vsel %vm1314, %v554, %v1313
    %vm1316 = vcmp.eq.f32.partialorder %v554, 0.0
    %v1317 = vand.u32 %v554, 2147483648
    %v1318 = vsel %vm1316, %v1317, %v1315
    %v1319 = vrsqrt.pop %v557
    %v1320 = vmul.f32 %v557, %v1319
    %vm1321 = vcmp.eq.f32.partialorder %v557, inf
    %v1322 = vsel %vm1321, %v557, %v1320
    %vm1323 = vcmp.eq.f32.partialorder %v557, 0.0
    %v1324 = vand.u32 %v557, 2147483648
    %v1325 = vsel %vm1323, %v1324, %v1322
    %v1326 = vrsqrt.pop %v560
    %v1327 = vmul.f32 %v560, %v1326
    %vm1328 = vcmp.eq.f32.partialorder %v560, inf
    %v1329 = vsel %vm1328, %v560, %v1327
    %vm1330 = vcmp.eq.f32.partialorder %v560, 0.0
    %v1331 = vand.u32 %v560, 2147483648
    %v1332 = vsel %vm1330, %v1331, %v1329
    %v1333 = vrsqrt.pop %v563
    %v1334 = vmul.f32 %v563, %v1333
    %vm1335 = vcmp.eq.f32.partialorder %v563, inf
    %v1336 = vsel %vm1335, %v563, %v1334
    %vm1337 = vcmp.eq.f32.partialorder %v563, 0.0
    %v1338 = vand.u32 %v563, 2147483648
    %v1339 = vsel %vm1337, %v1338, %v1336
    %v1340 = vrsqrt.pop %v566
    %v1341 = vmul.f32 %v566, %v1340
    %vm1342 = vcmp.eq.f32.partialorder %v566, inf
    %v1343 = vsel %vm1342, %v566, %v1341
    %vm1344 = vcmp.eq.f32.partialorder %v566, 0.0
    %v1345 = vand.u32 %v566, 2147483648
    %v1346 = vsel %vm1344, %v1345, %v1343
    %v1347 = vrsqrt.pop %v569
    %v1348 = vmul.f32 %v569, %v1347
    %vm1349 = vcmp.eq.f32.partialorder %v569, inf
    %v1350 = vsel %vm1349, %v569, %v1348
    %vm1351 = vcmp.eq.f32.partialorder %v569, 0.0
    %v1352 = vand.u32 %v569, 2147483648
    %v1353 = vsel %vm1351, %v1352, %v1350
    %v1354 = vrsqrt.pop %v572
    %v1355 = vmul.f32 %v572, %v1354
    %vm1356 = vcmp.eq.f32.partialorder %v572, inf
    %v1357 = vsel %vm1356, %v572, %v1355
    %vm1358 = vcmp.eq.f32.partialorder %v572, 0.0
    %v1359 = vand.u32 %v572, 2147483648
    %v1360 = vsel %vm1358, %v1359, %v1357
    %v1361 = vrsqrt.pop %v575
    %v1362 = vmul.f32 %v575, %v1361
    %vm1363 = vcmp.eq.f32.partialorder %v575, inf
    %v1364 = vsel %vm1363, %v575, %v1362
    %vm1365 = vcmp.eq.f32.partialorder %v575, 0.0
    %v1366 = vand.u32 %v575, 2147483648
    %v1367 = vsel %vm1365, %v1366, %v1364
    %v1368 = vrsqrt.pop %v578
    %v1369 = vmul.f32 %v578, %v1368
    %vm1370 = vcmp.eq.f32.partialorder %v578, inf
    %v1371 = vsel %vm1370, %v578, %v1369
    %vm1372 = vcmp.eq.f32.partialorder %v578, 0.0
    %v1373 = vand.u32 %v578, 2147483648
    %v1374 = vsel %vm1372, %v1373, %v1371
    %v1375 = vrsqrt.pop %v581
    %v1376 = vmul.f32 %v581, %v1375
    %vm1377 = vcmp.eq.f32.partialorder %v581, inf
    %v1378 = vsel %vm1377, %v581, %v1376
    %vm1379 = vcmp.eq.f32.partialorder %v581, 0.0
    %v1380 = vand.u32 %v581, 2147483648
    %v1381 = vsel %vm1379, %v1380, %v1378
    %v1382 = vrsqrt.pop %v584
    %v1383 = vmul.f32 %v584, %v1382
    %vm1384 = vcmp.eq.f32.partialorder %v584, inf
    %v1385 = vsel %vm1384, %v584, %v1383
    %vm1386 = vcmp.eq.f32.partialorder %v584, 0.0
    %v1387 = vand.u32 %v584, 2147483648
    %v1388 = vsel %vm1386, %v1387, %v1385
    %v1389 = vrsqrt.pop %v587
    %v1390 = vmul.f32 %v587, %v1389
    %vm1391 = vcmp.eq.f32.partialorder %v587, inf
    %v1392 = vsel %vm1391, %v587, %v1390
    %vm1393 = vcmp.eq.f32.partialorder %v587, 0.0
    %v1394 = vand.u32 %v587, 2147483648
    %v1395 = vsel %vm1393, %v1394, %v1392
    %v1396 = vrsqrt.pop %v590
    %v1397 = vmul.f32 %v590, %v1396
    %vm1398 = vcmp.eq.f32.partialorder %v590, inf
    %v1399 = vsel %vm1398, %v590, %v1397
    %vm1400 = vcmp.eq.f32.partialorder %v590, 0.0
    %v1401 = vand.u32 %v590, 2147483648
    %v1402 = vsel %vm1400, %v1401, %v1399
    %v1403 = vrsqrt.pop %v593
    %v1404 = vmul.f32 %v593, %v1403
    %vm1405 = vcmp.eq.f32.partialorder %v593, inf
    %v1406 = vsel %vm1405, %v593, %v1404
    %vm1407 = vcmp.eq.f32.partialorder %v593, 0.0
    %v1408 = vand.u32 %v593, 2147483648
    %v1409 = vsel %vm1407, %v1408, %v1406
    %v1410 = vrsqrt.pop %v596
    %v1411 = vmul.f32 %v596, %v1410
    %vm1412 = vcmp.eq.f32.partialorder %v596, inf
    %v1413 = vsel %vm1412, %v596, %v1411
    %vm1414 = vcmp.eq.f32.partialorder %v596, 0.0
    %v1415 = vand.u32 %v596, 2147483648
    %v1416 = vsel %vm1414, %v1415, %v1413
    %v1417 = vrsqrt.pop %v599
    %v1418 = vmul.f32 %v599, %v1417
    %vm1419 = vcmp.eq.f32.partialorder %v599, inf
    %v1420 = vsel %vm1419, %v599, %v1418
    %vm1421 = vcmp.eq.f32.partialorder %v599, 0.0
    %v1422 = vand.u32 %v599, 2147483648
    %v1423 = vsel %vm1421, %v1422, %v1420
    %v1424 = vrsqrt.pop %v602
    %v1425 = vmul.f32 %v602, %v1424
    %vm1426 = vcmp.eq.f32.partialorder %v602, inf
    %v1427 = vsel %vm1426, %v602, %v1425
    %vm1428 = vcmp.eq.f32.partialorder %v602, 0.0
    %v1429 = vand.u32 %v602, 2147483648
    %v1430 = vsel %vm1428, %v1429, %v1427
    %v1431 = vrsqrt.pop %v605
    %v1432 = vmul.f32 %v605, %v1431
    %vm1433 = vcmp.eq.f32.partialorder %v605, inf
    %v1434 = vsel %vm1433, %v605, %v1432
    %vm1435 = vcmp.eq.f32.partialorder %v605, 0.0
    %v1436 = vand.u32 %v605, 2147483648
    %v1437 = vsel %vm1435, %v1436, %v1434
    %v1438 = vrsqrt.pop %v608
    %v1439 = vmul.f32 %v608, %v1438
    %vm1440 = vcmp.eq.f32.partialorder %v608, inf
    %v1441 = vsel %vm1440, %v608, %v1439
    %vm1442 = vcmp.eq.f32.partialorder %v608, 0.0
    %v1443 = vand.u32 %v608, 2147483648
    %v1444 = vsel %vm1442, %v1443, %v1441
    %v1445 = vrsqrt.pop %v611
    %v1446 = vmul.f32 %v611, %v1445
    %vm1447 = vcmp.eq.f32.partialorder %v611, inf
    %v1448 = vsel %vm1447, %v611, %v1446
    %vm1449 = vcmp.eq.f32.partialorder %v611, 0.0
    %v1450 = vand.u32 %v611, 2147483648
    %v1451 = vsel %vm1449, %v1450, %v1448
    %v1452 = vrsqrt.pop %v614
    %v1453 = vmul.f32 %v614, %v1452
    %vm1454 = vcmp.eq.f32.partialorder %v614, inf
    %v1455 = vsel %vm1454, %v614, %v1453
    %vm1456 = vcmp.eq.f32.partialorder %v614, 0.0
    %v1457 = vand.u32 %v614, 2147483648
    %v1458 = vsel %vm1456, %v1457, %v1455
    %v1459 = vrsqrt.pop %v617
    %v1460 = vmul.f32 %v617, %v1459
    %vm1461 = vcmp.eq.f32.partialorder %v617, inf
    %v1462 = vsel %vm1461, %v617, %v1460
    %vm1463 = vcmp.eq.f32.partialorder %v617, 0.0
    %v1464 = vand.u32 %v617, 2147483648
    %v1465 = vsel %vm1463, %v1464, %v1462
    %v1466 = vrsqrt.pop %v620
    %v1467 = vmul.f32 %v620, %v1466
    %vm1468 = vcmp.eq.f32.partialorder %v620, inf
    %v1469 = vsel %vm1468, %v620, %v1467
    %vm1470 = vcmp.eq.f32.partialorder %v620, 0.0
    %v1471 = vand.u32 %v620, 2147483648
    %v1472 = vsel %vm1470, %v1471, %v1469
    %v1473 = vrsqrt.pop %v623
    %v1474 = vmul.f32 %v623, %v1473
    %vm1475 = vcmp.eq.f32.partialorder %v623, inf
    %v1476 = vsel %vm1475, %v623, %v1474
    %vm1477 = vcmp.eq.f32.partialorder %v623, 0.0
    %v1478 = vand.u32 %v623, 2147483648
    %v1479 = vsel %vm1477, %v1478, %v1476
    %v1480 = vrsqrt.pop %v626
    %v1481 = vmul.f32 %v626, %v1480
    %vm1482 = vcmp.eq.f32.partialorder %v626, inf
    %v1483 = vsel %vm1482, %v626, %v1481
    %vm1484 = vcmp.eq.f32.partialorder %v626, 0.0
    %v1485 = vand.u32 %v626, 2147483648
    %v1486 = vsel %vm1484, %v1485, %v1483
    %v1487 = vrsqrt.pop %v629
    %v1488 = vmul.f32 %v629, %v1487
    %vm1489 = vcmp.eq.f32.partialorder %v629, inf
    %v1490 = vsel %vm1489, %v629, %v1488
    %vm1491 = vcmp.eq.f32.partialorder %v629, 0.0
    %v1492 = vand.u32 %v629, 2147483648
    %v1493 = vsel %vm1491, %v1492, %v1490
    %v1494 = vrsqrt.pop %v632
    %v1495 = vmul.f32 %v632, %v1494
    %vm1496 = vcmp.eq.f32.partialorder %v632, inf
    %v1497 = vsel %vm1496, %v632, %v1495
    %vm1498 = vcmp.eq.f32.partialorder %v632, 0.0
    %v1499 = vand.u32 %v632, 2147483648
    %v1500 = vsel %vm1498, %v1499, %v1497
    %v1501 = vrsqrt.pop %v635
    %v1502 = vmul.f32 %v635, %v1501
    %vm1503 = vcmp.eq.f32.partialorder %v635, inf
    %v1504 = vsel %vm1503, %v635, %v1502
    %vm1505 = vcmp.eq.f32.partialorder %v635, 0.0
    %v1506 = vand.u32 %v635, 2147483648
    %v1507 = vsel %vm1505, %v1506, %v1504
    %v1508 = vrsqrt.pop %v638
    %v1509 = vmul.f32 %v638, %v1508
    %vm1510 = vcmp.eq.f32.partialorder %v638, inf
    %v1511 = vsel %vm1510, %v638, %v1509
    %vm1512 = vcmp.eq.f32.partialorder %v638, 0.0
    %v1513 = vand.u32 %v638, 2147483648
    %v1514 = vsel %vm1512, %v1513, %v1511
    %v1515 = vrsqrt.pop %v641
    %v1516 = vmul.f32 %v641, %v1515
    %vm1517 = vcmp.eq.f32.partialorder %v641, inf
    %v1518 = vsel %vm1517, %v641, %v1516
    %vm1519 = vcmp.eq.f32.partialorder %v641, 0.0
    %v1520 = vand.u32 %v641, 2147483648
    %v1521 = vsel %vm1519, %v1520, %v1518
    %v1522 = vrsqrt.pop %v644
    %v1523 = vmul.f32 %v644, %v1522
    %vm1524 = vcmp.eq.f32.partialorder %v644, inf
    %v1525 = vsel %vm1524, %v644, %v1523
    %vm1526 = vcmp.eq.f32.partialorder %v644, 0.0
    %v1527 = vand.u32 %v644, 2147483648
    %v1528 = vsel %vm1526, %v1527, %v1525
    %v1529 = vrsqrt.pop %v647
    %v1530 = vmul.f32 %v647, %v1529
    %vm1531 = vcmp.eq.f32.partialorder %v647, inf
    %v1532 = vsel %vm1531, %v647, %v1530
    %vm1533 = vcmp.eq.f32.partialorder %v647, 0.0
    %v1534 = vand.u32 %v647, 2147483648
    %v1535 = vsel %vm1533, %v1534, %v1532
    %v1536 = vrsqrt.pop %v650
    %v1537 = vmul.f32 %v650, %v1536
    %vm1538 = vcmp.eq.f32.partialorder %v650, inf
    %v1539 = vsel %vm1538, %v650, %v1537
    %vm1540 = vcmp.eq.f32.partialorder %v650, 0.0
    %v1541 = vand.u32 %v650, 2147483648
    %v1542 = vsel %vm1540, %v1541, %v1539
    %v1543 = vrsqrt.pop %v653
    %v1544 = vmul.f32 %v653, %v1543
    %vm1545 = vcmp.eq.f32.partialorder %v653, inf
    %v1546 = vsel %vm1545, %v653, %v1544
    %vm1547 = vcmp.eq.f32.partialorder %v653, 0.0
    %v1548 = vand.u32 %v653, 2147483648
    %v1549 = vsel %vm1547, %v1548, %v1546
    %v1550 = vmax.f32 %v660, 1e-07
    %v1551 = vmax.f32 %v667, 1e-07
    %v1552 = vmax.f32 %v674, 1e-07
    %v1553 = vmax.f32 %v681, 1e-07
    %v1554 = vmax.f32 %v688, 1e-07
    %v1555 = vmax.f32 %v695, 1e-07
    %v1556 = vmax.f32 %v702, 1e-07
    %v1557 = vmax.f32 %v709, 1e-07
    %v1558 = vmax.f32 %v716, 1e-07
    %v1559 = vmax.f32 %v723, 1e-07
    %v1560 = vmax.f32 %v730, 1e-07
    %v1561 = vmax.f32 %v737, 1e-07
    %v1562 = vmax.f32 %v744, 1e-07
    %v1563 = vmax.f32 %v751, 1e-07
    %v1564 = vmax.f32 %v758, 1e-07
    %v1565 = vmax.f32 %v765, 1e-07
    %v1566 = vmax.f32 %v772, 1e-07
    %v1567 = vmax.f32 %v779, 1e-07
    %v1568 = vmax.f32 %v786, 1e-07
    %v1569 = vmax.f32 %v793, 1e-07
    %v1570 = vmax.f32 %v800, 1e-07
    %v1571 = vmax.f32 %v807, 1e-07
    %v1572 = vmax.f32 %v814, 1e-07
    %v1573 = vmax.f32 %v821, 1e-07
    %v1574 = vmax.f32 %v828, 1e-07
    %v1575 = vmax.f32 %v835, 1e-07
    %v1576 = vmax.f32 %v842, 1e-07
    %v1577 = vmax.f32 %v849, 1e-07
    %v1578 = vmax.f32 %v856, 1e-07
    %v1579 = vmax.f32 %v863, 1e-07
    %v1580 = vmax.f32 %v870, 1e-07
    %v1581 = vmax.f32 %v877, 1e-07
    %v1582 = vmax.f32 %v884, 1e-07
    %v1583 = vmax.f32 %v891, 1e-07
    %v1584 = vmax.f32 %v898, 1e-07
    %v1585 = vmax.f32 %v905, 1e-07
    %v1586 = vmax.f32 %v912, 1e-07
    %v1587 = vmax.f32 %v919, 1e-07
    %v1588 = vmax.f32 %v926, 1e-07
    %v1589 = vmax.f32 %v933, 1e-07
    %v1590 = vmax.f32 %v940, 1e-07
    %v1591 = vmax.f32 %v947, 1e-07
    %v1592 = vmax.f32 %v954, 1e-07
    %v1593 = vmax.f32 %v961, 1e-07
    %v1594 = vmax.f32 %v968, 1e-07
    %v1595 = vmax.f32 %v975, 1e-07
    %v1596 = vmax.f32 %v982, 1e-07
    %v1597 = vmax.f32 %v989, 1e-07
    %v1598 = vmax.f32 %v996, 1e-07
    %v1599 = vmax.f32 %v1003, 1e-07
    %v1600 = vmax.f32 %v1010, 1e-07
    %v1601 = vmax.f32 %v1017, 1e-07
    %v1602 = vmax.f32 %v1024, 1e-07
    %v1603 = vmax.f32 %v1031, 1e-07
    %v1604 = vmax.f32 %v1038, 1e-07
    %v1605 = vmax.f32 %v1045, 1e-07
    %v1606 = vmax.f32 %v1052, 1e-07
    %v1607 = vmax.f32 %v1059, 1e-07
    %v1608 = vmax.f32 %v1066, 1e-07
    %v1609 = vmax.f32 %v1073, 1e-07
    %v1610 = vmax.f32 %v1080, 1e-07
    %v1611 = vmax.f32 %v1087, 1e-07
    %v1612 = vmax.f32 %v1094, 1e-07
    %v1613 = vmax.f32 %v1101, 1e-07
    %v1614 = vmax.f32 %v1108, 1e-07
    %v1615 = vmax.f32 %v1115, 1e-07
    %v1616 = vmax.f32 %v1122, 1e-07
    %v1617 = vmax.f32 %v1129, 1e-07
    %v1618 = vmax.f32 %v1136, 1e-07
    %v1619 = vmax.f32 %v1143, 1e-07
    %v1620 = vmax.f32 %v1150, 1e-07
    %v1621 = vmax.f32 %v1157, 1e-07
    %v1622 = vmax.f32 %v1164, 1e-07
    %v1623 = vmax.f32 %v1171, 1e-07
    %v1624 = vmax.f32 %v1178, 1e-07
    %v1625 = vmax.f32 %v1185, 1e-07
    %v1626 = vmax.f32 %v1192, 1e-07
    %v1627 = vmax.f32 %v1199, 1e-07
    %v1628 = vmax.f32 %v1206, 1e-07
    %v1629 = vmax.f32 %v1213, 1e-07
    %v1630 = vmax.f32 %v1220, 1e-07
    %v1631 = vmax.f32 %v1227, 1e-07
    %v1632 = vmax.f32 %v1234, 1e-07
    %v1633 = vmax.f32 %v1241, 1e-07
    %v1634 = vmax.f32 %v1248, 1e-07
    %v1635 = vmax.f32 %v1255, 1e-07
    %v1636 = vmax.f32 %v1262, 1e-07
    %v1637 = vmax.f32 %v1269, 1e-07
    %v1638 = vmax.f32 %v1276, 1e-07
    %v1639 = vmax.f32 %v1283, 1e-07
    %v1640 = vmax.f32 %v1290, 1e-07
    %v1641 = vmax.f32 %v1297, 1e-07
    %v1642 = vmax.f32 %v1304, 1e-07
    %v1643 = vmax.f32 %v1311, 1e-07
    %v1644 = vmax.f32 %v1318, 1e-07
    %v1645 = vmax.f32 %v1325, 1e-07
    %v1646 = vmax.f32 %v1332, 1e-07
    %v1647 = vmax.f32 %v1339, 1e-07
    %v1648 = vmax.f32 %v1346, 1e-07
    %v1649 = vmax.f32 %v1353, 1e-07
    %v1650 = vmax.f32 %v1360, 1e-07
    %v1651 = vmax.f32 %v1367, 1e-07
    %v1652 = vmax.f32 %v1374, 1e-07
    %v1653 = vmax.f32 %v1381, 1e-07
    %v1654 = vmax.f32 %v1388, 1e-07
    %v1655 = vmax.f32 %v1395, 1e-07
    %v1656 = vmax.f32 %v1402, 1e-07
    %v1657 = vmax.f32 %v1409, 1e-07
    %v1658 = vmax.f32 %v1416, 1e-07
    %v1659 = vmax.f32 %v1423, 1e-07
    %v1660 = vmax.f32 %v1430, 1e-07
    %v1661 = vmax.f32 %v1437, 1e-07
    %v1662 = vmax.f32 %v1444, 1e-07
    %v1663 = vmax.f32 %v1451, 1e-07
    %v1664 = vmax.f32 %v1458, 1e-07
    %v1665 = vmax.f32 %v1465, 1e-07
    %v1666 = vmax.f32 %v1472, 1e-07
    %v1667 = vmax.f32 %v1479, 1e-07
    %v1668 = vmax.f32 %v1486, 1e-07
    %v1669 = vmax.f32 %v1493, 1e-07
    %v1670 = vmax.f32 %v1500, 1e-07
    %v1671 = vmax.f32 %v1507, 1e-07
    %v1672 = vmax.f32 %v1514, 1e-07
    %v1673 = vmax.f32 %v1521, 1e-07
    %v1674 = vmax.f32 %v1528, 1e-07
    %v1675 = vmax.f32 %v1535, 1e-07
    %v1676 = vmax.f32 %v1542, 1e-07
    %v1677 = vmax.f32 %v1549, 1e-07
    %v1678 = vpack.c.bf16 %v14, %v13
    %v1679 = vpack.c.bf16 %v16, %v15
    %v1680 = vpack.c.bf16 %v18, %v17
    %v1681 = vpack.c.bf16 %v20, %v19
    %v1682 = vpack.c.bf16 %v22, %v21
    %v1683 = vpack.c.bf16 %v24, %v23
    %v1684 = vpack.c.bf16 %v26, %v25
    %v1685 = vpack.c.bf16 %v28, %v27
    %v1686 = vpack.c.bf16 %v30, %v29
    %v1687 = vpack.c.bf16 %v32, %v31
    %v1688 = vpack.c.bf16 %v34, %v33
    %v1689 = vpack.c.bf16 %v36, %v35
    %v1690 = vpack.c.bf16 %v38, %v37
    %v1691 = vpack.c.bf16 %v40, %v39
    %v1692 = vpack.c.bf16 %v42, %v41
    %v1693 = vpack.c.bf16 %v44, %v43
    %v1694 = vpack.c.bf16 %v46, %v45
    %v1695 = vpack.c.bf16 %v48, %v47
    %v1696 = vpack.c.bf16 %v50, %v49
    %v1697 = vpack.c.bf16 %v52, %v51
    %v1698 = vpack.c.bf16 %v54, %v53
    %v1699 = vpack.c.bf16 %v56, %v55
    %v1700 = vpack.c.bf16 %v58, %v57
    %v1701 = vpack.c.bf16 %v60, %v59
    %v1702 = vpack.c.bf16 %v62, %v61
    %v1703 = vpack.c.bf16 %v64, %v63
    %v1704 = vpack.c.bf16 %v66, %v65
    %v1705 = vpack.c.bf16 %v68, %v67
    %v1706 = vpack.c.bf16 %v70, %v69
    %v1707 = vpack.c.bf16 %v72, %v71
    %v1708 = vpack.c.bf16 %v74, %v73
    %v1709 = vpack.c.bf16 %v76, %v75
    %v1710 = vpack.c.bf16 %v78, %v77
    %v1711 = vpack.c.bf16 %v80, %v79
    %v1712 = vpack.c.bf16 %v82, %v81
    %v1713 = vpack.c.bf16 %v84, %v83
    %v1714 = vpack.c.bf16 %v86, %v85
    %v1715 = vpack.c.bf16 %v88, %v87
    %v1716 = vpack.c.bf16 %v90, %v89
    %v1717 = vpack.c.bf16 %v92, %v91
    %v1718 = vpack.c.bf16 %v94, %v93
    %v1719 = vpack.c.bf16 %v96, %v95
    %v1720 = vpack.c.bf16 %v98, %v97
    %v1721 = vpack.c.bf16 %v100, %v99
    %v1722 = vpack.c.bf16 %v102, %v101
    %v1723 = vpack.c.bf16 %v104, %v103
    %v1724 = vpack.c.bf16 %v106, %v105
    %v1725 = vpack.c.bf16 %v108, %v107
    %v1726 = vpack.c.bf16 %v110, %v109
    %v1727 = vpack.c.bf16 %v112, %v111
    %v1728 = vpack.c.bf16 %v114, %v113
    %v1729 = vpack.c.bf16 %v116, %v115
    %v1730 = vpack.c.bf16 %v118, %v117
    %v1731 = vpack.c.bf16 %v120, %v119
    %v1732 = vpack.c.bf16 %v122, %v121
    %v1733 = vpack.c.bf16 %v124, %v123
    %v1734 = vpack.c.bf16 %v126, %v125
    %v1735 = vpack.c.bf16 %v128, %v127
    %v1736 = vpack.c.bf16 %v130, %v129
    %v1737 = vpack.c.bf16 %v132, %v131
    %v1738 = vpack.c.bf16 %v134, %v133
    %v1739 = vpack.c.bf16 %v136, %v135
    %v1740 = vpack.c.bf16 %v138, %v137
    %v1741 = vpack.c.bf16 %v140, %v139
    %v1742 = vld [vmem:[%s1] sm:$0xf]
    %v1743 = vld [vmem:[%s1 + $0x4] sm:$0xf]
    %v1744 = vld [vmem:[%s1 + $0x8] sm:$0xf]
    %v1745 = vld [vmem:[%s1 + $0xc] sm:$0xf]
    %v1746 = vld [vmem:[%s1 + $0x10] sm:$0xf]
    %v1747 = vld [vmem:[%s1 + $0x14] sm:$0xf]
    %v1748 = vld [vmem:[%s1 + $0x18] sm:$0xf]
    %v1749 = vld [vmem:[%s1 + $0x1c] sm:$0xf]
    %v1758 = vunpack.c.l.b16 %v1742
    %v1759 = vunpack.c.l.b16 %v1743
    %v1760 = vunpack.c.l.b16 %v1744
    %v1761 = vunpack.c.l.b16 %v1745
    %v1762 = vunpack.c.l.b16 %v1746
    %v1763 = vunpack.c.l.b16 %v1747
    %v1764 = vunpack.c.l.b16 %v1748
    %v1765 = vunpack.c.l.b16 %v1749
    %v1766 = vpack.c.b16 %v1759, %v1758
    %v1767 = vpack.c.b16 %v1761, %v1760
    %v1768 = vpack.c.b16 %v1763, %v1762
    %v1769 = vpack.c.b16 %v1765, %v1764
    %v1775 = vsel %vm269, %v1678, 0
    %v1778 = vsel %vm269, %v1679, 0
    %v1781 = vsel %vm269, %v1680, 0
    %v1784 = vsel %vm269, %v1681, 0
    %v1787 = vsel %vm269, %v1682, 0
    %v1790 = vsel %vm269, %v1683, 0
    %v1793 = vsel %vm269, %v1684, 0
    %v1796 = vsel %vm269, %v1685, 0
    %v1799 = vsel %vm269, %v1686, 0
    %v1802 = vsel %vm269, %v1687, 0
    %v1805 = vsel %vm269, %v1688, 0
    %v1808 = vsel %vm269, %v1689, 0
    %v1811 = vsel %vm269, %v1690, 0
    %v1814 = vsel %vm269, %v1691, 0
    %v1817 = vsel %vm269, %v1692, 0
    %v1820 = vsel %vm269, %v1693, 0
    %v1823 = vsel %vm269, %v1694, 0
    %v1826 = vsel %vm269, %v1695, 0
    %v1829 = vsel %vm269, %v1696, 0
    %v1832 = vsel %vm269, %v1697, 0
    %v1835 = vsel %vm269, %v1698, 0
    %v1838 = vsel %vm269, %v1699, 0
    %v1841 = vsel %vm269, %v1700, 0
    %v1844 = vsel %vm269, %v1701, 0
    %v1847 = vsel %vm269, %v1702, 0
    %v1850 = vsel %vm269, %v1703, 0
    %v1853 = vsel %vm269, %v1704, 0
    %v1856 = vsel %vm269, %v1705, 0
    %v1859 = vsel %vm269, %v1706, 0
    %v1862 = vsel %vm269, %v1707, 0
    %v1865 = vsel %vm269, %v1708, 0
    %v1868 = vsel %vm269, %v1709, 0
    %v1871 = vsel %vm269, %v1710, 0
    %v1874 = vsel %vm269, %v1711, 0
    %v1877 = vsel %vm269, %v1712, 0
    %v1880 = vsel %vm269, %v1713, 0
    %v1883 = vsel %vm269, %v1714, 0
    %v1886 = vsel %vm269, %v1715, 0
    %v1889 = vsel %vm269, %v1716, 0
    %v1892 = vsel %vm269, %v1717, 0
    %v1895 = vsel %vm269, %v1718, 0
    %v1898 = vsel %vm269, %v1719, 0
    %v1901 = vsel %vm269, %v1720, 0
    %v1904 = vsel %vm269, %v1721, 0
    %v1907 = vsel %vm269, %v1722, 0
    %v1910 = vsel %vm269, %v1723, 0
    %v1913 = vsel %vm269, %v1724, 0
    %v1916 = vsel %vm269, %v1725, 0
    %v1919 = vsel %vm269, %v1726, 0
    %v1922 = vsel %vm269, %v1727, 0
    %v1925 = vsel %vm269, %v1728, 0
    %v1928 = vsel %vm269, %v1729, 0
    %v1931 = vsel %vm269, %v1730, 0
    %v1934 = vsel %vm269, %v1731, 0
    %v1937 = vsel %vm269, %v1732, 0
    %v1940 = vsel %vm269, %v1733, 0
    %v1943 = vsel %vm269, %v1734, 0
    %v1946 = vsel %vm269, %v1735, 0
    %v1949 = vsel %vm269, %v1736, 0
    %v1952 = vsel %vm269, %v1737, 0
    %v1955 = vsel %vm269, %v1738, 0
    %v1958 = vsel %vm269, %v1739, 0
    %v1961 = vsel %vm269, %v1740, 0
    %v1964 = vsel %vm269, %v1741, 0
    %1966 = vmatprep.subr.bf16.mxu0 0
    %1967 = vmatpush1.bf16.msra.mxu0 %v1766
    %1968 = vmatprep.subr.bf16.mxu0 0
    %1969 = vmatpush1.bf16.msra.mxu0 %v1767
    %1970 = vmatprep.subr.bf16.mxu0 0
    %1971 = vmatpush1.bf16.msra.mxu0 %v1768
    %1972 = vmatprep.subr.bf16.mxu0 0
    %1973 = vmatpush1.bf16.msra.mxu0 %v1769
    %1974 = vmatprep.subr.bf16.mxu0 0
    %1975 = vmatpush1.bf16.msra.mxu0 0
    %1976 = vmatprep.subr.bf16.mxu0 0
    %1977 = vmatpush1.bf16.msra.mxu0 0
    %1978 = vmatprep.subr.bf16.mxu0 0
    %1979 = vmatpush1.bf16.msra.mxu0 0
    %1980 = vmatprep.subr.bf16.mxu0 0
    %1981 = vmatpush1.bf16.msra.mxu0 0
    %1982 = vmatprep.subr.bf16.mxu0 0
    %1983 = vmatpush1.bf16.msra.mxu0 0
    %1984 = vmatprep.subr.bf16.mxu0 0
    %1985 = vmatpush1.bf16.msra.mxu0 0
    %1986 = vmatprep.subr.bf16.mxu0 0
    %1987 = vmatpush1.bf16.msra.mxu0 0
    %1988 = vmatprep.subr.bf16.mxu0 0
    %1989 = vmatpush1.bf16.msra.mxu0 0
    %1990 = vmatprep.subr.bf16.mxu0 0
    %1991 = vmatpush1.bf16.msra.mxu0 0
    %1992 = vmatprep.subr.bf16.mxu0 0
    %1993 = vmatpush1.bf16.msra.mxu0 0
    %1994 = vmatprep.subr.bf16.mxu0 0
    %1995 = vmatpush1.bf16.msra.mxu0 0
    %1996 = vmatprep.subr.bf16.mxu0 0
    %1997 = vmatpush1.bf16.msra.mxu0 0
    %1998 = vmatprep.mubr.bf16.mxu0 0
    %1999 = vmatmul.mubr.bf16.gmra.mrb[0].mxu0 %v1775
    %v2000 = vpop.f32.mrb[0].mxu0
    %v2001 = vadd.f32 0.0, %v2000
    %v2002 = vpop.f32.mrb[0].mxu0
    %v2003 = vpop.f32.mrb[0].mxu0
    %v2004 = vadd.f32 0.0, %v2003
    %v2005 = vpop.f32.mrb[0].mxu0
    %2006 = vmatprep.mubr.bf16.mxu0 0
    %2007 = vmatmul.mubr.bf16.gmra.mrb[0].mxu0 %v1778
    %v2008 = vpop.f32.mrb[0].mxu0
    %v2009 = vadd.f32 0.0, %v2008
    %v2010 = vpop.f32.mrb[0].mxu0
    %v2011 = vpop.f32.mrb[0].mxu0
    %v2012 = vadd.f32 0.0, %v2011
    %v2013 = vpop.f32.mrb[0].mxu0
    %2014 = vmatprep.mubr.bf16.mxu0 0
    %2015 = vmatmul.mubr.bf16.gmra.mrb[0].mxu0 %v1781
    %v2016 = vpop.f32.mrb[0].mxu0
    %v2017 = vadd.f32 0.0, %v2016
    %v2018 = vpop.f32.mrb[0].mxu0
    %v2019 = vpop.f32.mrb[0].mxu0
    %v2020 = vadd.f32 0.0, %v2019
    %v2021 = vpop.f32.mrb[0].mxu0
    %2022 = vmatprep.mubr.bf16.mxu0 0
    %2023 = vmatmul.mubr.bf16.gmra.mrb[0].mxu0 %v1784
    %v2024 = vpop.f32.mrb[0].mxu0
    %v2025 = vadd.f32 0.0, %v2024
    %v2026 = vpop.f32.mrb[0].mxu0
    %v2027 = vpop.f32.mrb[0].mxu0
    %v2028 = vadd.f32 0.0, %v2027
    %v2029 = vpop.f32.mrb[0].mxu0
    %2030 = vmatprep.mubr.bf16.mxu0 0
    %2031 = vmatmul.mubr.bf16.gmra.mrb[0].mxu0 %v1787
    %v2032 = vpop.f32.mrb[0].mxu0
    %v2033 = vadd.f32 0.0, %v2032
    %v2034 = vpop.f32.mrb[0].mxu0
    %v2035 = vpop.f32.mrb[0].mxu0
    %v2036 = vadd.f32 0.0, %v2035
    %v2037 = vpop.f32.mrb[0].mxu0
    %2038 = vmatprep.mubr.bf16.mxu0 0
    %2039 = vmatmul.mubr.bf16.gmra.mrb[0].mxu0 %v1790
    %v2040 = vpop.f32.mrb[0].mxu0
    %v2041 = vadd.f32 0.0, %v2040
    %v2042 = vpop.f32.mrb[0].mxu0
    %v2043 = vpop.f32.mrb[0].mxu0
    %v2044 = vadd.f32 0.0, %v2043
    %v2045 = vpop.f32.mrb[0].mxu0
    %2046 = vmatprep.mubr.bf16.mxu0 0
    %2047 = vmatmul.mubr.bf16.gmra.mrb[0].mxu0 %v1793
    %v2048 = vpop.f32.mrb[0].mxu0
    %v2049 = vadd.f32 0.0, %v2048
    %v2050 = vpop.f32.mrb[0].mxu0
    %v2051 = vpop.f32.mrb[0].mxu0
    %v2052 = vadd.f32 0.0, %v2051
    %v2053 = vpop.f32.mrb[0].mxu0
    %2054 = vmatprep.mubr.bf16.mxu0 0
    %2055 = vmatmul.mubr.bf16.gmra.mrb[0].mxu0 %v1796
    %v2056 = vpop.f32.mrb[0].mxu0
    %v2057 = vadd.f32 0.0, %v2056
    %v2058 = vpop.f32.mrb[0].mxu0
    %v2059 = vpop.f32.mrb[0].mxu0
    %v2060 = vadd.f32 0.0, %v2059
    %v2061 = vpop.f32.mrb[0].mxu0
    %2062 = vmatprep.mubr.bf16.mxu0 0
    %2063 = vmatmul.mubr.bf16.gmra.mrb[0].mxu0 %v1799
    %v2064 = vpop.f32.mrb[0].mxu0
    %v2065 = vadd.f32 0.0, %v2064
    %v2066 = vpop.f32.mrb[0].mxu0
    %v2067 = vpop.f32.mrb[0].mxu0
    %v2068 = vadd.f32 0.0, %v2067
    %v2069 = vpop.f32.mrb[0].mxu0
    %2070 = vmatprep.mubr.bf16.mxu0 0
    %2071 = vmatmul.mubr.bf16.gmra.mrb[0].mxu0 %v1802
    %v2072 = vpop.f32.mrb[0].mxu0
    %v2073 = vadd.f32 0.0, %v2072
    %v2074 = vpop.f32.mrb[0].mxu0
    %v2075 = vpop.f32.mrb[0].mxu0
    %v2076 = vadd.f32 0.0, %v2075
    %v2077 = vpop.f32.mrb[0].mxu0
    %2078 = vmatprep.mubr.bf16.mxu0 0
    %2079 = vmatmul.mubr.bf16.gmra.mrb[0].mxu0 %v1805
    %v2080 = vpop.f32.mrb[0].mxu0
    %v2081 = vadd.f32 0.0, %v2080
    %v2082 = vpop.f32.mrb[0].mxu0
    %v2083 = vpop.f32.mrb[0].mxu0
    %v2084 = vadd.f32 0.0, %v2083
    %v2085 = vpop.f32.mrb[0].mxu0
    %2086 = vmatprep.mubr.bf16.mxu0 0
    %2087 = vmatmul.mubr.bf16.gmra.mrb[0].mxu0 %v1808
    %v2088 = vpop.f32.mrb[0].mxu0
    %v2089 = vadd.f32 0.0, %v2088
    %v2090 = vpop.f32.mrb[0].mxu0
    %v2091 = vpop.f32.mrb[0].mxu0
    %v2092 = vadd.f32 0.0, %v2091
    %v2093 = vpop.f32.mrb[0].mxu0
    %2094 = vmatprep.mubr.bf16.mxu0 0
    %2095 = vmatmul.mubr.bf16.gmra.mrb[0].mxu0 %v1811
    %v2096 = vpop.f32.mrb[0].mxu0
    %v2097 = vadd.f32 0.0, %v2096
    %v2098 = vpop.f32.mrb[0].mxu0
    %v2099 = vpop.f32.mrb[0].mxu0
    %v2100 = vadd.f32 0.0, %v2099
    %v2101 = vpop.f32.mrb[0].mxu0
    %2102 = vmatprep.mubr.bf16.mxu0 0
    %2103 = vmatmul.mubr.bf16.gmra.mrb[0].mxu0 %v1814
    %v2104 = vpop.f32.mrb[0].mxu0
    %v2105 = vadd.f32 0.0, %v2104
    %v2106 = vpop.f32.mrb[0].mxu0
    %v2107 = vpop.f32.mrb[0].mxu0
    %v2108 = vadd.f32 0.0, %v2107
    %v2109 = vpop.f32.mrb[0].mxu0
    %2110 = vmatprep.mubr.bf16.mxu0 0
    %2111 = vmatmul.mubr.bf16.gmra.mrb[0].mxu0 %v1817
    %v2112 = vpop.f32.mrb[0].mxu0
    %v2113 = vadd.f32 0.0, %v2112
    %v2114 = vpop.f32.mrb[0].mxu0
    %v2115 = vpop.f32.mrb[0].mxu0
    %v2116 = vadd.f32 0.0, %v2115
    %v2117 = vpop.f32.mrb[0].mxu0
    %2118 = vmatprep.mubr.bf16.mxu0 0
    %2119 = vmatmul.mubr.bf16.gmra.mrb[0].mxu0 %v1820
    %v2120 = vpop.f32.mrb[0].mxu0
    %v2121 = vadd.f32 0.0, %v2120
    %v2122 = vpop.f32.mrb[0].mxu0
    %v2123 = vpop.f32.mrb[0].mxu0
    %v2124 = vadd.f32 0.0, %v2123
    %v2125 = vpop.f32.mrb[0].mxu0
    %2126 = vmatprep.mubr.bf16.mxu0 0
    %2127 = vmatmul.mubr.bf16.gmra.mrb[0].mxu0 %v1823
    %v2128 = vpop.f32.mrb[0].mxu0
    %v2129 = vadd.f32 0.0, %v2128
    %v2130 = vpop.f32.mrb[0].mxu0
    %v2131 = vpop.f32.mrb[0].mxu0
    %v2132 = vadd.f32 0.0, %v2131
    %v2133 = vpop.f32.mrb[0].mxu0
    %2134 = vmatprep.mubr.bf16.mxu0 0
    %2135 = vmatmul.mubr.bf16.gmra.mrb[0].mxu0 %v1826
    %v2136 = vpop.f32.mrb[0].mxu0
    %v2137 = vadd.f32 0.0, %v2136
    %v2138 = vpop.f32.mrb[0].mxu0
    %v2139 = vpop.f32.mrb[0].mxu0
    %v2140 = vadd.f32 0.0, %v2139
    %v2141 = vpop.f32.mrb[0].mxu0
    %2142 = vmatprep.mubr.bf16.mxu0 0
    %2143 = vmatmul.mubr.bf16.gmra.mrb[0].mxu0 %v1829
    %v2144 = vpop.f32.mrb[0].mxu0
    %v2145 = vadd.f32 0.0, %v2144
    %v2146 = vpop.f32.mrb[0].mxu0
    %v2147 = vpop.f32.mrb[0].mxu0
    %v2148 = vadd.f32 0.0, %v2147
    %v2149 = vpop.f32.mrb[0].mxu0
    %2150 = vmatprep.mubr.bf16.mxu0 0
    %2151 = vmatmul.mubr.bf16.gmra.mrb[0].mxu0 %v1832
    %v2152 = vpop.f32.mrb[0].mxu0
    %v2153 = vadd.f32 0.0, %v2152
    %v2154 = vpop.f32.mrb[0].mxu0
    %v2155 = vpop.f32.mrb[0].mxu0
    %v2156 = vadd.f32 0.0, %v2155
    %v2157 = vpop.f32.mrb[0].mxu0
    %2158 = vmatprep.mubr.bf16.mxu0 0
    %2159 = vmatmul.mubr.bf16.gmra.mrb[0].mxu0 %v1835
    %v2160 = vpop.f32.mrb[0].mxu0
    %v2161 = vadd.f32 0.0, %v2160
    %v2162 = vpop.f32.mrb[0].mxu0
    %v2163 = vpop.f32.mrb[0].mxu0
    %v2164 = vadd.f32 0.0, %v2163
    %v2165 = vpop.f32.mrb[0].mxu0
    %2166 = vmatprep.mubr.bf16.mxu0 0
    %2167 = vmatmul.mubr.bf16.gmra.mrb[0].mxu0 %v1838
    %v2168 = vpop.f32.mrb[0].mxu0
    %v2169 = vadd.f32 0.0, %v2168
    %v2170 = vpop.f32.mrb[0].mxu0
    %v2171 = vpop.f32.mrb[0].mxu0
    %v2172 = vadd.f32 0.0, %v2171
    %v2173 = vpop.f32.mrb[0].mxu0
    %2174 = vmatprep.mubr.bf16.mxu0 0
    %2175 = vmatmul.mubr.bf16.gmra.mrb[0].mxu0 %v1841
    %v2176 = vpop.f32.mrb[0].mxu0
    %v2177 = vadd.f32 0.0, %v2176
    %v2178 = vpop.f32.mrb[0].mxu0
    %v2179 = vpop.f32.mrb[0].mxu0
    %v2180 = vadd.f32 0.0, %v2179
    %v2181 = vpop.f32.mrb[0].mxu0
    %2182 = vmatprep.mubr.bf16.mxu0 0
    %2183 = vmatmul.mubr.bf16.gmra.mrb[0].mxu0 %v1844
    %v2184 = vpop.f32.mrb[0].mxu0
    %v2185 = vadd.f32 0.0, %v2184
    %v2186 = vpop.f32.mrb[0].mxu0
    %v2187 = vpop.f32.mrb[0].mxu0
    %v2188 = vadd.f32 0.0, %v2187
    %v2189 = vpop.f32.mrb[0].mxu0
    %2190 = vmatprep.mubr.bf16.mxu0 0
    %2191 = vmatmul.mubr.bf16.gmra.mrb[0].mxu0 %v1847
    %v2192 = vpop.f32.mrb[0].mxu0
    %v2193 = vadd.f32 0.0, %v2192
    %v2194 = vpop.f32.mrb[0].mxu0
    %v2195 = vpop.f32.mrb[0].mxu0
    %v2196 = vadd.f32 0.0, %v2195
    %v2197 = vpop.f32.mrb[0].mxu0
    %2198 = vmatprep.mubr.bf16.mxu0 0
    %2199 = vmatmul.mubr.bf16.gmra.mrb[0].mxu0 %v1850
    %v2200 = vpop.f32.mrb[0].mxu0
    %v2201 = vadd.f32 0.0, %v2200
    %v2202 = vpop.f32.mrb[0].mxu0
    %v2203 = vpop.f32.mrb[0].mxu0
    %v2204 = vadd.f32 0.0, %v2203
    %v2205 = vpop.f32.mrb[0].mxu0
    %2206 = vmatprep.mubr.bf16.mxu0 0
    %2207 = vmatmul.mubr.bf16.gmra.mrb[0].mxu0 %v1853
    %v2208 = vpop.f32.mrb[0].mxu0
    %v2209 = vadd.f32 0.0, %v2208
    %v2210 = vpop.f32.mrb[0].mxu0
    %v2211 = vpop.f32.mrb[0].mxu0
    %v2212 = vadd.f32 0.0, %v2211
    %v2213 = vpop.f32.mrb[0].mxu0
    %2214 = vmatprep.mubr.bf16.mxu0 0
    %2215 = vmatmul.mubr.bf16.gmra.mrb[0].mxu0 %v1856
    %v2216 = vpop.f32.mrb[0].mxu0
    %v2217 = vadd.f32 0.0, %v2216
    %v2218 = vpop.f32.mrb[0].mxu0
    %v2219 = vpop.f32.mrb[0].mxu0
    %v2220 = vadd.f32 0.0, %v2219
    %v2221 = vpop.f32.mrb[0].mxu0
    %2222 = vmatprep.mubr.bf16.mxu0 0
    %2223 = vmatmul.mubr.bf16.gmra.mrb[0].mxu0 %v1859
    %v2224 = vpop.f32.mrb[0].mxu0
    %v2225 = vadd.f32 0.0, %v2224
    %v2226 = vpop.f32.mrb[0].mxu0
    %v2227 = vpop.f32.mrb[0].mxu0
    %v2228 = vadd.f32 0.0, %v2227
    %v2229 = vpop.f32.mrb[0].mxu0
    %2230 = vmatprep.mubr.bf16.mxu0 0
    %2231 = vmatmul.mubr.bf16.gmra.mrb[0].mxu0 %v1862
    %v2232 = vpop.f32.mrb[0].mxu0
    %v2233 = vadd.f32 0.0, %v2232
    %v2234 = vpop.f32.mrb[0].mxu0
    %v2235 = vpop.f32.mrb[0].mxu0
    %v2236 = vadd.f32 0.0, %v2235
    %v2237 = vpop.f32.mrb[0].mxu0
    %2238 = vmatprep.mubr.bf16.mxu0 0
    %2239 = vmatmul.mubr.bf16.gmra.mrb[0].mxu0 %v1865
    %v2240 = vpop.f32.mrb[0].mxu0
    %v2241 = vadd.f32 0.0, %v2240
    %v2242 = vpop.f32.mrb[0].mxu0
    %v2243 = vpop.f32.mrb[0].mxu0
    %v2244 = vadd.f32 0.0, %v2243
    %v2245 = vpop.f32.mrb[0].mxu0
    %2246 = vmatprep.mubr.bf16.mxu0 0
    %2247 = vmatmul.mubr.bf16.gmra.mrb[0].mxu0 %v1868
    %v2248 = vpop.f32.mrb[0].mxu0
    %v2249 = vadd.f32 0.0, %v2248
    %v2250 = vpop.f32.mrb[0].mxu0
    %v2251 = vpop.f32.mrb[0].mxu0
    %v2252 = vadd.f32 0.0, %v2251
    %v2253 = vpop.f32.mrb[0].mxu0
    %2254 = vmatprep.mubr.bf16.mxu0 0
    %2255 = vmatmul.mubr.bf16.gmra.mrb[0].mxu0 %v1871
    %v2256 = vpop.f32.mrb[0].mxu0
    %v2257 = vadd.f32 0.0, %v2256
    %v2258 = vpop.f32.mrb[0].mxu0
    %v2259 = vpop.f32.mrb[0].mxu0
    %v2260 = vadd.f32 0.0, %v2259
    %v2261 = vpop.f32.mrb[0].mxu0
    %2262 = vmatprep.mubr.bf16.mxu0 0
    %2263 = vmatmul.mubr.bf16.gmra.mrb[0].mxu0 %v1874
    %v2264 = vpop.f32.mrb[0].mxu0
    %v2265 = vadd.f32 0.0, %v2264
    %v2266 = vpop.f32.mrb[0].mxu0
    %v2267 = vpop.f32.mrb[0].mxu0
    %v2268 = vadd.f32 0.0, %v2267
    %v2269 = vpop.f32.mrb[0].mxu0
    %2270 = vmatprep.mubr.bf16.mxu0 0
    %2271 = vmatmul.mubr.bf16.gmra.mrb[0].mxu0 %v1877
    %v2272 = vpop.f32.mrb[0].mxu0
    %v2273 = vadd.f32 0.0, %v2272
    %v2274 = vpop.f32.mrb[0].mxu0
    %v2275 = vpop.f32.mrb[0].mxu0
    %v2276 = vadd.f32 0.0, %v2275
    %v2277 = vpop.f32.mrb[0].mxu0
    %2278 = vmatprep.mubr.bf16.mxu0 0
    %2279 = vmatmul.mubr.bf16.gmra.mrb[0].mxu0 %v1880
    %v2280 = vpop.f32.mrb[0].mxu0
    %v2281 = vadd.f32 0.0, %v2280
    %v2282 = vpop.f32.mrb[0].mxu0
    %v2283 = vpop.f32.mrb[0].mxu0
    %v2284 = vadd.f32 0.0, %v2283
    %v2285 = vpop.f32.mrb[0].mxu0
    %2286 = vmatprep.mubr.bf16.mxu0 0
    %2287 = vmatmul.mubr.bf16.gmra.mrb[0].mxu0 %v1883
    %v2288 = vpop.f32.mrb[0].mxu0
    %v2289 = vadd.f32 0.0, %v2288
    %v2290 = vpop.f32.mrb[0].mxu0
    %v2291 = vpop.f32.mrb[0].mxu0
    %v2292 = vadd.f32 0.0, %v2291
    %v2293 = vpop.f32.mrb[0].mxu0
    %2294 = vmatprep.mubr.bf16.mxu0 0
    %2295 = vmatmul.mubr.bf16.gmra.mrb[0].mxu0 %v1886
    %v2296 = vpop.f32.mrb[0].mxu0
    %v2297 = vadd.f32 0.0, %v2296
    %v2298 = vpop.f32.mrb[0].mxu0
    %v2299 = vpop.f32.mrb[0].mxu0
    %v2300 = vadd.f32 0.0, %v2299
    %v2301 = vpop.f32.mrb[0].mxu0
    %2302 = vmatprep.mubr.bf16.mxu0 0
    %2303 = vmatmul.mubr.bf16.gmra.mrb[0].mxu0 %v1889
    %v2304 = vpop.f32.mrb[0].mxu0
    %v2305 = vadd.f32 0.0, %v2304
    %v2306 = vpop.f32.mrb[0].mxu0
    %v2307 = vpop.f32.mrb[0].mxu0
    %v2308 = vadd.f32 0.0, %v2307
    %v2309 = vpop.f32.mrb[0].mxu0
    %2310 = vmatprep.mubr.bf16.mxu0 0
    %2311 = vmatmul.mubr.bf16.gmra.mrb[0].mxu0 %v1892
    %v2312 = vpop.f32.mrb[0].mxu0
    %v2313 = vadd.f32 0.0, %v2312
    %v2314 = vpop.f32.mrb[0].mxu0
    %v2315 = vpop.f32.mrb[0].mxu0
    %v2316 = vadd.f32 0.0, %v2315
    %v2317 = vpop.f32.mrb[0].mxu0
    %2318 = vmatprep.mubr.bf16.mxu0 0
    %2319 = vmatmul.mubr.bf16.gmra.mrb[0].mxu0 %v1895
    %v2320 = vpop.f32.mrb[0].mxu0
    %v2321 = vadd.f32 0.0, %v2320
    %v2322 = vpop.f32.mrb[0].mxu0
    %v2323 = vpop.f32.mrb[0].mxu0
    %v2324 = vadd.f32 0.0, %v2323
    %v2325 = vpop.f32.mrb[0].mxu0
    %2326 = vmatprep.mubr.bf16.mxu0 0
    %2327 = vmatmul.mubr.bf16.gmra.mrb[0].mxu0 %v1898
    %v2328 = vpop.f32.mrb[0].mxu0
    %v2329 = vadd.f32 0.0, %v2328
    %v2330 = vpop.f32.mrb[0].mxu0
    %v2331 = vpop.f32.mrb[0].mxu0
    %v2332 = vadd.f32 0.0, %v2331
    %v2333 = vpop.f32.mrb[0].mxu0
    %2334 = vmatprep.mubr.bf16.mxu0 0
    %2335 = vmatmul.mubr.bf16.gmra.mrb[0].mxu0 %v1901
    %v2336 = vpop.f32.mrb[0].mxu0
    %v2337 = vadd.f32 0.0, %v2336
    %v2338 = vpop.f32.mrb[0].mxu0
    %v2339 = vpop.f32.mrb[0].mxu0
    %v2340 = vadd.f32 0.0, %v2339
    %v2341 = vpop.f32.mrb[0].mxu0
    %2342 = vmatprep.mubr.bf16.mxu0 0
    %2343 = vmatmul.mubr.bf16.gmra.mrb[0].mxu0 %v1904
    %v2344 = vpop.f32.mrb[0].mxu0
    %v2345 = vadd.f32 0.0, %v2344
    %v2346 = vpop.f32.mrb[0].mxu0
    %v2347 = vpop.f32.mrb[0].mxu0
    %v2348 = vadd.f32 0.0, %v2347
    %v2349 = vpop.f32.mrb[0].mxu0
    %2350 = vmatprep.mubr.bf16.mxu0 0
    %2351 = vmatmul.mubr.bf16.gmra.mrb[0].mxu0 %v1907
    %v2352 = vpop.f32.mrb[0].mxu0
    %v2353 = vadd.f32 0.0, %v2352
    %v2354 = vpop.f32.mrb[0].mxu0
    %v2355 = vpop.f32.mrb[0].mxu0
    %v2356 = vadd.f32 0.0, %v2355
    %v2357 = vpop.f32.mrb[0].mxu0
    %2358 = vmatprep.mubr.bf16.mxu0 0
    %2359 = vmatmul.mubr.bf16.gmra.mrb[0].mxu0 %v1910
    %v2360 = vpop.f32.mrb[0].mxu0
    %v2361 = vadd.f32 0.0, %v2360
    %v2362 = vpop.f32.mrb[0].mxu0
    %v2363 = vpop.f32.mrb[0].mxu0
    %v2364 = vadd.f32 0.0, %v2363
    %v2365 = vpop.f32.mrb[0].mxu0
    %2366 = vmatprep.mubr.bf16.mxu0 0
    %2367 = vmatmul.mubr.bf16.gmra.mrb[0].mxu0 %v1913
    %v2368 = vpop.f32.mrb[0].mxu0
    %v2369 = vadd.f32 0.0, %v2368
    %v2370 = vpop.f32.mrb[0].mxu0
    %v2371 = vpop.f32.mrb[0].mxu0
    %v2372 = vadd.f32 0.0, %v2371
    %v2373 = vpop.f32.mrb[0].mxu0
    %2374 = vmatprep.mubr.bf16.mxu0 0
    %2375 = vmatmul.mubr.bf16.gmra.mrb[0].mxu0 %v1916
    %v2376 = vpop.f32.mrb[0].mxu0
    %v2377 = vadd.f32 0.0, %v2376
    %v2378 = vpop.f32.mrb[0].mxu0
    %v2379 = vpop.f32.mrb[0].mxu0
    %v2380 = vadd.f32 0.0, %v2379
    %v2381 = vpop.f32.mrb[0].mxu0
    %2382 = vmatprep.mubr.bf16.mxu0 0
    %2383 = vmatmul.mubr.bf16.gmra.mrb[0].mxu0 %v1919
    %v2384 = vpop.f32.mrb[0].mxu0
    %v2385 = vadd.f32 0.0, %v2384
    %v2386 = vpop.f32.mrb[0].mxu0
    %v2387 = vpop.f32.mrb[0].mxu0
    %v2388 = vadd.f32 0.0, %v2387
    %v2389 = vpop.f32.mrb[0].mxu0
    %2390 = vmatprep.mubr.bf16.mxu0 0
    %2391 = vmatmul.mubr.bf16.gmra.mrb[0].mxu0 %v1922
    %v2392 = vpop.f32.mrb[0].mxu0
    %v2393 = vadd.f32 0.0, %v2392
    %v2394 = vpop.f32.mrb[0].mxu0
    %v2395 = vpop.f32.mrb[0].mxu0
    %v2396 = vadd.f32 0.0, %v2395
    %v2397 = vpop.f32.mrb[0].mxu0
    %2398 = vmatprep.mubr.bf16.mxu0 0
    %2399 = vmatmul.mubr.bf16.gmra.mrb[0].mxu0 %v1925
    %v2400 = vpop.f32.mrb[0].mxu0
    %v2401 = vadd.f32 0.0, %v2400
    %v2402 = vpop.f32.mrb[0].mxu0
    %v2403 = vpop.f32.mrb[0].mxu0
    %v2404 = vadd.f32 0.0, %v2403
    %v2405 = vpop.f32.mrb[0].mxu0
    %2406 = vmatprep.mubr.bf16.mxu0 0
    %2407 = vmatmul.mubr.bf16.gmra.mrb[0].mxu0 %v1928
    %v2408 = vpop.f32.mrb[0].mxu0
    %v2409 = vadd.f32 0.0, %v2408
    %v2410 = vpop.f32.mrb[0].mxu0
    %v2411 = vpop.f32.mrb[0].mxu0
    %v2412 = vadd.f32 0.0, %v2411
    %v2413 = vpop.f32.mrb[0].mxu0
    %2414 = vmatprep.mubr.bf16.mxu0 0
    %2415 = vmatmul.mubr.bf16.gmra.mrb[0].mxu0 %v1931
    %v2416 = vpop.f32.mrb[0].mxu0
    %v2417 = vadd.f32 0.0, %v2416
    %v2418 = vpop.f32.mrb[0].mxu0
    %v2419 = vpop.f32.mrb[0].mxu0
    %v2420 = vadd.f32 0.0, %v2419
    %v2421 = vpop.f32.mrb[0].mxu0
    %2422 = vmatprep.mubr.bf16.mxu0 0
    %2423 = vmatmul.mubr.bf16.gmra.mrb[0].mxu0 %v1934
    %v2424 = vpop.f32.mrb[0].mxu0
    %v2425 = vadd.f32 0.0, %v2424
    %v2426 = vpop.f32.mrb[0].mxu0
    %v2427 = vpop.f32.mrb[0].mxu0
    %v2428 = vadd.f32 0.0, %v2427
    %v2429 = vpop.f32.mrb[0].mxu0
    %2430 = vmatprep.mubr.bf16.mxu0 0
    %2431 = vmatmul.mubr.bf16.gmra.mrb[0].mxu0 %v1937
    %v2432 = vpop.f32.mrb[0].mxu0
    %v2433 = vadd.f32 0.0, %v2432
    %v2434 = vpop.f32.mrb[0].mxu0
    %v2435 = vpop.f32.mrb[0].mxu0
    %v2436 = vadd.f32 0.0, %v2435
    %v2437 = vpop.f32.mrb[0].mxu0
    %2438 = vmatprep.mubr.bf16.mxu0 0
    %2439 = vmatmul.mubr.bf16.gmra.mrb[0].mxu0 %v1940
    %v2440 = vpop.f32.mrb[0].mxu0
    %v2441 = vadd.f32 0.0, %v2440
    %v2442 = vpop.f32.mrb[0].mxu0
    %v2443 = vpop.f32.mrb[0].mxu0
    %v2444 = vadd.f32 0.0, %v2443
    %v2445 = vpop.f32.mrb[0].mxu0
    %2446 = vmatprep.mubr.bf16.mxu0 0
    %2447 = vmatmul.mubr.bf16.gmra.mrb[0].mxu0 %v1943
    %v2448 = vpop.f32.mrb[0].mxu0
    %v2449 = vadd.f32 0.0, %v2448
    %v2450 = vpop.f32.mrb[0].mxu0
    %v2451 = vpop.f32.mrb[0].mxu0
    %v2452 = vadd.f32 0.0, %v2451
    %v2453 = vpop.f32.mrb[0].mxu0
    %2454 = vmatprep.mubr.bf16.mxu0 0
    %2455 = vmatmul.mubr.bf16.gmra.mrb[0].mxu0 %v1946
    %v2456 = vpop.f32.mrb[0].mxu0
    %v2457 = vadd.f32 0.0, %v2456
    %v2458 = vpop.f32.mrb[0].mxu0
    %v2459 = vpop.f32.mrb[0].mxu0
    %v2460 = vadd.f32 0.0, %v2459
    %v2461 = vpop.f32.mrb[0].mxu0
    %2462 = vmatprep.mubr.bf16.mxu0 0
    %2463 = vmatmul.mubr.bf16.gmra.mrb[0].mxu0 %v1949
    %v2464 = vpop.f32.mrb[0].mxu0
    %v2465 = vadd.f32 0.0, %v2464
    %v2466 = vpop.f32.mrb[0].mxu0
    %v2467 = vpop.f32.mrb[0].mxu0
    %v2468 = vadd.f32 0.0, %v2467
    %v2469 = vpop.f32.mrb[0].mxu0
    %2470 = vmatprep.mubr.bf16.mxu0 0
    %2471 = vmatmul.mubr.bf16.gmra.mrb[0].mxu0 %v1952
    %v2472 = vpop.f32.mrb[0].mxu0
    %v2473 = vadd.f32 0.0, %v2472
    %v2474 = vpop.f32.mrb[0].mxu0
    %v2475 = vpop.f32.mrb[0].mxu0
    %v2476 = vadd.f32 0.0, %v2475
    %v2477 = vpop.f32.mrb[0].mxu0
    %2478 = vmatprep.mubr.bf16.mxu0 0
    %2479 = vmatmul.mubr.bf16.gmra.mrb[0].mxu0 %v1955
    %v2480 = vpop.f32.mrb[0].mxu0
    %v2481 = vadd.f32 0.0, %v2480
    %v2482 = vpop.f32.mrb[0].mxu0
    %v2483 = vpop.f32.mrb[0].mxu0
    %v2484 = vadd.f32 0.0, %v2483
    %v2485 = vpop.f32.mrb[0].mxu0
    %2486 = vmatprep.mubr.bf16.mxu0 0
    %2487 = vmatmul.mubr.bf16.gmra.mrb[0].mxu0 %v1958
    %v2488 = vpop.f32.mrb[0].mxu0
    %v2489 = vadd.f32 0.0, %v2488
    %v2490 = vpop.f32.mrb[0].mxu0
    %v2491 = vpop.f32.mrb[0].mxu0
    %v2492 = vadd.f32 0.0, %v2491
    %v2493 = vpop.f32.mrb[0].mxu0
    %2494 = vmatprep.mubr.bf16.mxu0 0
    %2495 = vmatmul.mubr.bf16.gmra.mrb[0].mxu0 %v1961
    %v2496 = vpop.f32.mrb[0].mxu0
    %v2497 = vadd.f32 0.0, %v2496
    %v2498 = vpop.f32.mrb[0].mxu0
    %v2499 = vpop.f32.mrb[0].mxu0
    %v2500 = vadd.f32 0.0, %v2499
    %v2501 = vpop.f32.mrb[0].mxu0
    %2502 = vmatprep.mubr.bf16.mxu0 0
    %2503 = vmatmul.mubr.bf16.gmra.mrb[0].mxu0 %v1964
    %v2504 = vpop.f32.mrb[0].mxu0
    %v2505 = vadd.f32 0.0, %v2504
    %v2506 = vpop.f32.mrb[0].mxu0
    %v2507 = vpop.f32.mrb[0].mxu0
    %v2508 = vadd.f32 0.0, %v2507
    %v2509 = vpop.f32.mrb[0].mxu0
    %2510 = vdwg.mxu0
    %v2511 = vmul.f32 %v2001, %v2001
    %v2512 = vmul.f32 %v2004, %v2004
    %v2513 = vmul.f32 %v2009, %v2009
    %v2514 = vmul.f32 %v2012, %v2012
    %v2515 = vmul.f32 %v2017, %v2017
    %v2516 = vmul.f32 %v2020, %v2020
    %v2517 = vmul.f32 %v2025, %v2025
    %v2518 = vmul.f32 %v2028, %v2028
    %v2519 = vmul.f32 %v2033, %v2033
    %v2520 = vmul.f32 %v2036, %v2036
    %v2521 = vmul.f32 %v2041, %v2041
    %v2522 = vmul.f32 %v2044, %v2044
    %v2523 = vmul.f32 %v2049, %v2049
    %v2524 = vmul.f32 %v2052, %v2052
    %v2525 = vmul.f32 %v2057, %v2057
    %v2526 = vmul.f32 %v2060, %v2060
    %v2527 = vmul.f32 %v2065, %v2065
    %v2528 = vmul.f32 %v2068, %v2068
    %v2529 = vmul.f32 %v2073, %v2073
    %v2530 = vmul.f32 %v2076, %v2076
    %v2531 = vmul.f32 %v2081, %v2081
    %v2532 = vmul.f32 %v2084, %v2084
    %v2533 = vmul.f32 %v2089, %v2089
    %v2534 = vmul.f32 %v2092, %v2092
    %v2535 = vmul.f32 %v2097, %v2097
    %v2536 = vmul.f32 %v2100, %v2100
    %v2537 = vmul.f32 %v2105, %v2105
    %v2538 = vmul.f32 %v2108, %v2108
    %v2539 = vmul.f32 %v2113, %v2113
    %v2540 = vmul.f32 %v2116, %v2116
    %v2541 = vmul.f32 %v2121, %v2121
    %v2542 = vmul.f32 %v2124, %v2124
    %v2543 = vmul.f32 %v2129, %v2129
    %v2544 = vmul.f32 %v2132, %v2132
    %v2545 = vmul.f32 %v2137, %v2137
    %v2546 = vmul.f32 %v2140, %v2140
    %v2547 = vmul.f32 %v2145, %v2145
    %v2548 = vmul.f32 %v2148, %v2148
    %v2549 = vmul.f32 %v2153, %v2153
    %v2550 = vmul.f32 %v2156, %v2156
    %v2551 = vmul.f32 %v2161, %v2161
    %v2552 = vmul.f32 %v2164, %v2164
    %v2553 = vmul.f32 %v2169, %v2169
    %v2554 = vmul.f32 %v2172, %v2172
    %v2555 = vmul.f32 %v2177, %v2177
    %v2556 = vmul.f32 %v2180, %v2180
    %v2557 = vmul.f32 %v2185, %v2185
    %v2558 = vmul.f32 %v2188, %v2188
    %v2559 = vmul.f32 %v2193, %v2193
    %v2560 = vmul.f32 %v2196, %v2196
    %v2561 = vmul.f32 %v2201, %v2201
    %v2562 = vmul.f32 %v2204, %v2204
    %v2563 = vmul.f32 %v2209, %v2209
    %v2564 = vmul.f32 %v2212, %v2212
    %v2565 = vmul.f32 %v2217, %v2217
    %v2566 = vmul.f32 %v2220, %v2220
    %v2567 = vmul.f32 %v2225, %v2225
    %v2568 = vmul.f32 %v2228, %v2228
    %v2569 = vmul.f32 %v2233, %v2233
    %v2570 = vmul.f32 %v2236, %v2236
    %v2571 = vmul.f32 %v2241, %v2241
    %v2572 = vmul.f32 %v2244, %v2244
    %v2573 = vmul.f32 %v2249, %v2249
    %v2574 = vmul.f32 %v2252, %v2252
    %v2575 = vmul.f32 %v2257, %v2257
    %v2576 = vmul.f32 %v2260, %v2260
    %v2577 = vmul.f32 %v2265, %v2265
    %v2578 = vmul.f32 %v2268, %v2268
    %v2579 = vmul.f32 %v2273, %v2273
    %v2580 = vmul.f32 %v2276, %v2276
    %v2581 = vmul.f32 %v2281, %v2281
    %v2582 = vmul.f32 %v2284, %v2284
    %v2583 = vmul.f32 %v2289, %v2289
    %v2584 = vmul.f32 %v2292, %v2292
    %v2585 = vmul.f32 %v2297, %v2297
    %v2586 = vmul.f32 %v2300, %v2300
    %v2587 = vmul.f32 %v2305, %v2305
    %v2588 = vmul.f32 %v2308, %v2308
    %v2589 = vmul.f32 %v2313, %v2313
    %v2590 = vmul.f32 %v2316, %v2316
    %v2591 = vmul.f32 %v2321, %v2321
    %v2592 = vmul.f32 %v2324, %v2324
    %v2593 = vmul.f32 %v2329, %v2329
    %v2594 = vmul.f32 %v2332, %v2332
    %v2595 = vmul.f32 %v2337, %v2337
    %v2596 = vmul.f32 %v2340, %v2340
    %v2597 = vmul.f32 %v2345, %v2345
    %v2598 = vmul.f32 %v2348, %v2348
    %v2599 = vmul.f32 %v2353, %v2353
    %v2600 = vmul.f32 %v2356, %v2356
    %v2601 = vmul.f32 %v2361, %v2361
    %v2602 = vmul.f32 %v2364, %v2364
    %v2603 = vmul.f32 %v2369, %v2369
    %v2604 = vmul.f32 %v2372, %v2372
    %v2605 = vmul.f32 %v2377, %v2377
    %v2606 = vmul.f32 %v2380, %v2380
    %v2607 = vmul.f32 %v2385, %v2385
    %v2608 = vmul.f32 %v2388, %v2388
    %v2609 = vmul.f32 %v2393, %v2393
    %v2610 = vmul.f32 %v2396, %v2396
    %v2611 = vmul.f32 %v2401, %v2401
    %v2612 = vmul.f32 %v2404, %v2404
    %v2613 = vmul.f32 %v2409, %v2409
    %v2614 = vmul.f32 %v2412, %v2412
    %v2615 = vmul.f32 %v2417, %v2417
    %v2616 = vmul.f32 %v2420, %v2420
    %v2617 = vmul.f32 %v2425, %v2425
    %v2618 = vmul.f32 %v2428, %v2428
    %v2619 = vmul.f32 %v2433, %v2433
    %v2620 = vmul.f32 %v2436, %v2436
    %v2621 = vmul.f32 %v2441, %v2441
    %v2622 = vmul.f32 %v2444, %v2444
    %v2623 = vmul.f32 %v2449, %v2449
    %v2624 = vmul.f32 %v2452, %v2452
    %v2625 = vmul.f32 %v2457, %v2457
    %v2626 = vmul.f32 %v2460, %v2460
    %v2627 = vmul.f32 %v2465, %v2465
    %v2628 = vmul.f32 %v2468, %v2468
    %v2629 = vmul.f32 %v2473, %v2473
    %v2630 = vmul.f32 %v2476, %v2476
    %v2631 = vmul.f32 %v2481, %v2481
    %v2632 = vmul.f32 %v2484, %v2484
    %v2633 = vmul.f32 %v2489, %v2489
    %v2634 = vmul.f32 %v2492, %v2492
    %v2635 = vmul.f32 %v2497, %v2497
    %v2636 = vmul.f32 %v2500, %v2500
    %v2637 = vmul.f32 %v2505, %v2505
    %v2638 = vmul.f32 %v2508, %v2508
    %2639 = vadd.xlane.f32.xlu0 %v2511
    %v2640 = vpop.xlane.xlu0 %2639
    %2641 = vadd.xlane.f32.xlu0 %v2512
    %v2642 = vpop.xlane.xlu0 %2641
    %2643 = vadd.xlane.f32.xlu0 %v2513
    %v2644 = vpop.xlane.xlu0 %2643
    %2645 = vadd.xlane.f32.xlu0 %v2514
    %v2646 = vpop.xlane.xlu0 %2645
    %2647 = vadd.xlane.f32.xlu0 %v2515
    %v2648 = vpop.xlane.xlu0 %2647
    %2649 = vadd.xlane.f32.xlu0 %v2516
    %v2650 = vpop.xlane.xlu0 %2649
    %2651 = vadd.xlane.f32.xlu0 %v2517
    %v2652 = vpop.xlane.xlu0 %2651
    %2653 = vadd.xlane.f32.xlu0 %v2518
    %v2654 = vpop.xlane.xlu0 %2653
    %2655 = vadd.xlane.f32.xlu0 %v2519
    %v2656 = vpop.xlane.xlu0 %2655
    %2657 = vadd.xlane.f32.xlu0 %v2520
    %v2658 = vpop.xlane.xlu0 %2657
    %2659 = vadd.xlane.f32.xlu0 %v2521
    %v2660 = vpop.xlane.xlu0 %2659
    %2661 = vadd.xlane.f32.xlu0 %v2522
    %v2662 = vpop.xlane.xlu0 %2661
    %2663 = vadd.xlane.f32.xlu0 %v2523
    %v2664 = vpop.xlane.xlu0 %2663
    %2665 = vadd.xlane.f32.xlu0 %v2524
    %v2666 = vpop.xlane.xlu0 %2665
    %2667 = vadd.xlane.f32.xlu0 %v2525
    %v2668 = vpop.xlane.xlu0 %2667
    %2669 = vadd.xlane.f32.xlu0 %v2526
    %v2670 = vpop.xlane.xlu0 %2669
    %2671 = vadd.xlane.f32.xlu0 %v2527
    %v2672 = vpop.xlane.xlu0 %2671
    %2673 = vadd.xlane.f32.xlu0 %v2528
    %v2674 = vpop.xlane.xlu0 %2673
    %2675 = vadd.xlane.f32.xlu0 %v2529
    %v2676 = vpop.xlane.xlu0 %2675
    %2677 = vadd.xlane.f32.xlu0 %v2530
    %v2678 = vpop.xlane.xlu0 %2677
    %2679 = vadd.xlane.f32.xlu0 %v2531
    %v2680 = vpop.xlane.xlu0 %2679
    %2681 = vadd.xlane.f32.xlu0 %v2532
    %v2682 = vpop.xlane.xlu0 %2681
    %2683 = vadd.xlane.f32.xlu0 %v2533
    %v2684 = vpop.xlane.xlu0 %2683
    %2685 = vadd.xlane.f32.xlu0 %v2534
    %v2686 = vpop.xlane.xlu0 %2685
    %2687 = vadd.xlane.f32.xlu0 %v2535
    %v2688 = vpop.xlane.xlu0 %2687
    %2689 = vadd.xlane.f32.xlu0 %v2536
    %v2690 = vpop.xlane.xlu0 %2689
    %2691 = vadd.xlane.f32.xlu0 %v2537
    %v2692 = vpop.xlane.xlu0 %2691
    %2693 = vadd.xlane.f32.xlu0 %v2538
    %v2694 = vpop.xlane.xlu0 %2693
    %2695 = vadd.xlane.f32.xlu0 %v2539
    %v2696 = vpop.xlane.xlu0 %2695
    %2697 = vadd.xlane.f32.xlu0 %v2540
    %v2698 = vpop.xlane.xlu0 %2697
    %2699 = vadd.xlane.f32.xlu0 %v2541
    %v2700 = vpop.xlane.xlu0 %2699
    %2701 = vadd.xlane.f32.xlu0 %v2542
    %v2702 = vpop.xlane.xlu0 %2701
    %2703 = vadd.xlane.f32.xlu0 %v2543
    %v2704 = vpop.xlane.xlu0 %2703
    %2705 = vadd.xlane.f32.xlu0 %v2544
    %v2706 = vpop.xlane.xlu0 %2705
    %2707 = vadd.xlane.f32.xlu0 %v2545
    %v2708 = vpop.xlane.xlu0 %2707
    %2709 = vadd.xlane.f32.xlu0 %v2546
    %v2710 = vpop.xlane.xlu0 %2709
    %2711 = vadd.xlane.f32.xlu0 %v2547
    %v2712 = vpop.xlane.xlu0 %2711
    %2713 = vadd.xlane.f32.xlu0 %v2548
    %v2714 = vpop.xlane.xlu0 %2713
    %2715 = vadd.xlane.f32.xlu0 %v2549
    %v2716 = vpop.xlane.xlu0 %2715
    %2717 = vadd.xlane.f32.xlu0 %v2550
    %v2718 = vpop.xlane.xlu0 %2717
    %2719 = vadd.xlane.f32.xlu0 %v2551
    %v2720 = vpop.xlane.xlu0 %2719
    %2721 = vadd.xlane.f32.xlu0 %v2552
    %v2722 = vpop.xlane.xlu0 %2721
    %2723 = vadd.xlane.f32.xlu0 %v2553
    %v2724 = vpop.xlane.xlu0 %2723
    %2725 = vadd.xlane.f32.xlu0 %v2554
    %v2726 = vpop.xlane.xlu0 %2725
    %2727 = vadd.xlane.f32.xlu0 %v2555
    %v2728 = vpop.xlane.xlu0 %2727
    %2729 = vadd.xlane.f32.xlu0 %v2556
    %v2730 = vpop.xlane.xlu0 %2729
    %2731 = vadd.xlane.f32.xlu0 %v2557
    %v2732 = vpop.xlane.xlu0 %2731
    %2733 = vadd.xlane.f32.xlu0 %v2558
    %v2734 = vpop.xlane.xlu0 %2733
    %2735 = vadd.xlane.f32.xlu0 %v2559
    %v2736 = vpop.xlane.xlu0 %2735
    %2737 = vadd.xlane.f32.xlu0 %v2560
    %v2738 = vpop.xlane.xlu0 %2737
    %2739 = vadd.xlane.f32.xlu0 %v2561
    %v2740 = vpop.xlane.xlu0 %2739
    %2741 = vadd.xlane.f32.xlu0 %v2562
    %v2742 = vpop.xlane.xlu0 %2741
    %2743 = vadd.xlane.f32.xlu0 %v2563
    %v2744 = vpop.xlane.xlu0 %2743
    %2745 = vadd.xlane.f32.xlu0 %v2564
    %v2746 = vpop.xlane.xlu0 %2745
    %2747 = vadd.xlane.f32.xlu0 %v2565
    %v2748 = vpop.xlane.xlu0 %2747
    %2749 = vadd.xlane.f32.xlu0 %v2566
    %v2750 = vpop.xlane.xlu0 %2749
    %2751 = vadd.xlane.f32.xlu0 %v2567
    %v2752 = vpop.xlane.xlu0 %2751
    %2753 = vadd.xlane.f32.xlu0 %v2568
    %v2754 = vpop.xlane.xlu0 %2753
    %2755 = vadd.xlane.f32.xlu0 %v2569
    %v2756 = vpop.xlane.xlu0 %2755
    %2757 = vadd.xlane.f32.xlu0 %v2570
    %v2758 = vpop.xlane.xlu0 %2757
    %2759 = vadd.xlane.f32.xlu0 %v2571
    %v2760 = vpop.xlane.xlu0 %2759
    %2761 = vadd.xlane.f32.xlu0 %v2572
    %v2762 = vpop.xlane.xlu0 %2761
    %2763 = vadd.xlane.f32.xlu0 %v2573
    %v2764 = vpop.xlane.xlu0 %2763
    %2765 = vadd.xlane.f32.xlu0 %v2574
    %v2766 = vpop.xlane.xlu0 %2765
    %2767 = vadd.xlane.f32.xlu0 %v2575
    %v2768 = vpop.xlane.xlu0 %2767
    %2769 = vadd.xlane.f32.xlu0 %v2576
    %v2770 = vpop.xlane.xlu0 %2769
    %2771 = vadd.xlane.f32.xlu0 %v2577
    %v2772 = vpop.xlane.xlu0 %2771
    %2773 = vadd.xlane.f32.xlu0 %v2578
    %v2774 = vpop.xlane.xlu0 %2773
    %2775 = vadd.xlane.f32.xlu0 %v2579
    %v2776 = vpop.xlane.xlu0 %2775
    %2777 = vadd.xlane.f32.xlu0 %v2580
    %v2778 = vpop.xlane.xlu0 %2777
    %2779 = vadd.xlane.f32.xlu0 %v2581
    %v2780 = vpop.xlane.xlu0 %2779
    %2781 = vadd.xlane.f32.xlu0 %v2582
    %v2782 = vpop.xlane.xlu0 %2781
    %2783 = vadd.xlane.f32.xlu0 %v2583
    %v2784 = vpop.xlane.xlu0 %2783
    %2785 = vadd.xlane.f32.xlu0 %v2584
    %v2786 = vpop.xlane.xlu0 %2785
    %2787 = vadd.xlane.f32.xlu0 %v2585
    %v2788 = vpop.xlane.xlu0 %2787
    %2789 = vadd.xlane.f32.xlu0 %v2586
    %v2790 = vpop.xlane.xlu0 %2789
    %2791 = vadd.xlane.f32.xlu0 %v2587
    %v2792 = vpop.xlane.xlu0 %2791
    %2793 = vadd.xlane.f32.xlu0 %v2588
    %v2794 = vpop.xlane.xlu0 %2793
    %2795 = vadd.xlane.f32.xlu0 %v2589
    %v2796 = vpop.xlane.xlu0 %2795
    %2797 = vadd.xlane.f32.xlu0 %v2590
    %v2798 = vpop.xlane.xlu0 %2797
    %2799 = vadd.xlane.f32.xlu0 %v2591
    %v2800 = vpop.xlane.xlu0 %2799
    %2801 = vadd.xlane.f32.xlu0 %v2592
    %v2802 = vpop.xlane.xlu0 %2801
    %2803 = vadd.xlane.f32.xlu0 %v2593
    %v2804 = vpop.xlane.xlu0 %2803
    %2805 = vadd.xlane.f32.xlu0 %v2594
    %v2806 = vpop.xlane.xlu0 %2805
    %2807 = vadd.xlane.f32.xlu0 %v2595
    %v2808 = vpop.xlane.xlu0 %2807
    %2809 = vadd.xlane.f32.xlu0 %v2596
    %v2810 = vpop.xlane.xlu0 %2809
    %2811 = vadd.xlane.f32.xlu0 %v2597
    %v2812 = vpop.xlane.xlu0 %2811
    %2813 = vadd.xlane.f32.xlu0 %v2598
    %v2814 = vpop.xlane.xlu0 %2813
    %2815 = vadd.xlane.f32.xlu0 %v2599
    %v2816 = vpop.xlane.xlu0 %2815
    %2817 = vadd.xlane.f32.xlu0 %v2600
    %v2818 = vpop.xlane.xlu0 %2817
    %2819 = vadd.xlane.f32.xlu0 %v2601
    %v2820 = vpop.xlane.xlu0 %2819
    %2821 = vadd.xlane.f32.xlu0 %v2602
    %v2822 = vpop.xlane.xlu0 %2821
    %2823 = vadd.xlane.f32.xlu0 %v2603
    %v2824 = vpop.xlane.xlu0 %2823
    %2825 = vadd.xlane.f32.xlu0 %v2604
    %v2826 = vpop.xlane.xlu0 %2825
    %2827 = vadd.xlane.f32.xlu0 %v2605
    %v2828 = vpop.xlane.xlu0 %2827
    %2829 = vadd.xlane.f32.xlu0 %v2606
    %v2830 = vpop.xlane.xlu0 %2829
    %2831 = vadd.xlane.f32.xlu0 %v2607
    %v2832 = vpop.xlane.xlu0 %2831
    %2833 = vadd.xlane.f32.xlu0 %v2608
    %v2834 = vpop.xlane.xlu0 %2833
    %2835 = vadd.xlane.f32.xlu0 %v2609
    %v2836 = vpop.xlane.xlu0 %2835
    %2837 = vadd.xlane.f32.xlu0 %v2610
    %v2838 = vpop.xlane.xlu0 %2837
    %2839 = vadd.xlane.f32.xlu0 %v2611
    %v2840 = vpop.xlane.xlu0 %2839
    %2841 = vadd.xlane.f32.xlu0 %v2612
    %v2842 = vpop.xlane.xlu0 %2841
    %2843 = vadd.xlane.f32.xlu0 %v2613
    %v2844 = vpop.xlane.xlu0 %2843
    %2845 = vadd.xlane.f32.xlu0 %v2614
    %v2846 = vpop.xlane.xlu0 %2845
    %2847 = vadd.xlane.f32.xlu0 %v2615
    %v2848 = vpop.xlane.xlu0 %2847
    %2849 = vadd.xlane.f32.xlu0 %v2616
    %v2850 = vpop.xlane.xlu0 %2849
    %2851 = vadd.xlane.f32.xlu0 %v2617
    %v2852 = vpop.xlane.xlu0 %2851
    %2853 = vadd.xlane.f32.xlu0 %v2618
    %v2854 = vpop.xlane.xlu0 %2853
    %2855 = vadd.xlane.f32.xlu0 %v2619
    %v2856 = vpop.xlane.xlu0 %2855
    %2857 = vadd.xlane.f32.xlu0 %v2620
    %v2858 = vpop.xlane.xlu0 %2857
    %2859 = vadd.xlane.f32.xlu0 %v2621
    %v2860 = vpop.xlane.xlu0 %2859
    %2861 = vadd.xlane.f32.xlu0 %v2622
    %v2862 = vpop.xlane.xlu0 %2861
    %2863 = vadd.xlane.f32.xlu0 %v2623
    %v2864 = vpop.xlane.xlu0 %2863
    %2865 = vadd.xlane.f32.xlu0 %v2624
    %v2866 = vpop.xlane.xlu0 %2865
    %2867 = vadd.xlane.f32.xlu0 %v2625
    %v2868 = vpop.xlane.xlu0 %2867
    %2869 = vadd.xlane.f32.xlu0 %v2626
    %v2870 = vpop.xlane.xlu0 %2869
    %2871 = vadd.xlane.f32.xlu0 %v2627
    %v2872 = vpop.xlane.xlu0 %2871
    %2873 = vadd.xlane.f32.xlu0 %v2628
    %v2874 = vpop.xlane.xlu0 %2873
    %2875 = vadd.xlane.f32.xlu0 %v2629
    %v2876 = vpop.xlane.xlu0 %2875
    %2877 = vadd.xlane.f32.xlu0 %v2630
    %v2878 = vpop.xlane.xlu0 %2877
    %2879 = vadd.xlane.f32.xlu0 %v2631
    %v2880 = vpop.xlane.xlu0 %2879
    %2881 = vadd.xlane.f32.xlu0 %v2632
    %v2882 = vpop.xlane.xlu0 %2881
    %2883 = vadd.xlane.f32.xlu0 %v2633
    %v2884 = vpop.xlane.xlu0 %2883
    %2885 = vadd.xlane.f32.xlu0 %v2634
    %v2886 = vpop.xlane.xlu0 %2885
    %2887 = vadd.xlane.f32.xlu0 %v2635
    %v2888 = vpop.xlane.xlu0 %2887
    %2889 = vadd.xlane.f32.xlu0 %v2636
    %v2890 = vpop.xlane.xlu0 %2889
    %2891 = vadd.xlane.f32.xlu0 %v2637
    %v2892 = vpop.xlane.xlu0 %2891
    %2893 = vadd.xlane.f32.xlu0 %v2638
    %v2894 = vpop.xlane.xlu0 %2893
    %v2895 = vrsqrt.pop %v2640
    %v2896 = vmul.f32 %v2640, %v2895
    %vm2897 = vcmp.eq.f32.partialorder %v2640, inf
    %v2898 = vsel %vm2897, %v2640, %v2896
    %vm2899 = vcmp.eq.f32.partialorder %v2640, 0.0
    %v2900 = vand.u32 %v2640, 2147483648
    %v2901 = vsel %vm2899, %v2900, %v2898
    %v2902 = vrsqrt.pop %v2642
    %v2903 = vmul.f32 %v2642, %v2902
    %vm2904 = vcmp.eq.f32.partialorder %v2642, inf
    %v2905 = vsel %vm2904, %v2642, %v2903
    %vm2906 = vcmp.eq.f32.partialorder %v2642, 0.0
    %v2907 = vand.u32 %v2642, 2147483648
    %v2908 = vsel %vm2906, %v2907, %v2905
    %v2909 = vrsqrt.pop %v2644
    %v2910 = vmul.f32 %v2644, %v2909
    %vm2911 = vcmp.eq.f32.partialorder %v2644, inf
    %v2912 = vsel %vm2911, %v2644, %v2910
    %vm2913 = vcmp.eq.f32.partialorder %v2644, 0.0
    %v2914 = vand.u32 %v2644, 2147483648
    %v2915 = vsel %vm2913, %v2914, %v2912
    %v2916 = vrsqrt.pop %v2646
    %v2917 = vmul.f32 %v2646, %v2916
    %vm2918 = vcmp.eq.f32.partialorder %v2646, inf
    %v2919 = vsel %vm2918, %v2646, %v2917
    %vm2920 = vcmp.eq.f32.partialorder %v2646, 0.0
    %v2921 = vand.u32 %v2646, 2147483648
    %v2922 = vsel %vm2920, %v2921, %v2919
    %v2923 = vrsqrt.pop %v2648
    %v2924 = vmul.f32 %v2648, %v2923
    %vm2925 = vcmp.eq.f32.partialorder %v2648, inf
    %v2926 = vsel %vm2925, %v2648, %v2924
    %vm2927 = vcmp.eq.f32.partialorder %v2648, 0.0
    %v2928 = vand.u32 %v2648, 2147483648
    %v2929 = vsel %vm2927, %v2928, %v2926
    %v2930 = vrsqrt.pop %v2650
    %v2931 = vmul.f32 %v2650, %v2930
    %vm2932 = vcmp.eq.f32.partialorder %v2650, inf
    %v2933 = vsel %vm2932, %v2650, %v2931
    %vm2934 = vcmp.eq.f32.partialorder %v2650, 0.0
    %v2935 = vand.u32 %v2650, 2147483648
    %v2936 = vsel %vm2934, %v2935, %v2933
    %v2937 = vrsqrt.pop %v2652
    %v2938 = vmul.f32 %v2652, %v2937
    %vm2939 = vcmp.eq.f32.partialorder %v2652, inf
    %v2940 = vsel %vm2939, %v2652, %v2938
    %vm2941 = vcmp.eq.f32.partialorder %v2652, 0.0
    %v2942 = vand.u32 %v2652, 2147483648
    %v2943 = vsel %vm2941, %v2942, %v2940
    %v2944 = vrsqrt.pop %v2654
    %v2945 = vmul.f32 %v2654, %v2944
    %vm2946 = vcmp.eq.f32.partialorder %v2654, inf
    %v2947 = vsel %vm2946, %v2654, %v2945
    %vm2948 = vcmp.eq.f32.partialorder %v2654, 0.0
    %v2949 = vand.u32 %v2654, 2147483648
    %v2950 = vsel %vm2948, %v2949, %v2947
    %v2951 = vrsqrt.pop %v2656
    %v2952 = vmul.f32 %v2656, %v2951
    %vm2953 = vcmp.eq.f32.partialorder %v2656, inf
    %v2954 = vsel %vm2953, %v2656, %v2952
    %vm2955 = vcmp.eq.f32.partialorder %v2656, 0.0
    %v2956 = vand.u32 %v2656, 2147483648
    %v2957 = vsel %vm2955, %v2956, %v2954
    %v2958 = vrsqrt.pop %v2658
    %v2959 = vmul.f32 %v2658, %v2958
    %vm2960 = vcmp.eq.f32.partialorder %v2658, inf
    %v2961 = vsel %vm2960, %v2658, %v2959
    %vm2962 = vcmp.eq.f32.partialorder %v2658, 0.0
    %v2963 = vand.u32 %v2658, 2147483648
    %v2964 = vsel %vm2962, %v2963, %v2961
    %v2965 = vrsqrt.pop %v2660
    %v2966 = vmul.f32 %v2660, %v2965
    %vm2967 = vcmp.eq.f32.partialorder %v2660, inf
    %v2968 = vsel %vm2967, %v2660, %v2966
    %vm2969 = vcmp.eq.f32.partialorder %v2660, 0.0
    %v2970 = vand.u32 %v2660, 2147483648
    %v2971 = vsel %vm2969, %v2970, %v2968
    %v2972 = vrsqrt.pop %v2662
    %v2973 = vmul.f32 %v2662, %v2972
    %vm2974 = vcmp.eq.f32.partialorder %v2662, inf
    %v2975 = vsel %vm2974, %v2662, %v2973
    %vm2976 = vcmp.eq.f32.partialorder %v2662, 0.0
    %v2977 = vand.u32 %v2662, 2147483648
    %v2978 = vsel %vm2976, %v2977, %v2975
    %v2979 = vrsqrt.pop %v2664
    %v2980 = vmul.f32 %v2664, %v2979
    %vm2981 = vcmp.eq.f32.partialorder %v2664, inf
    %v2982 = vsel %vm2981, %v2664, %v2980
    %vm2983 = vcmp.eq.f32.partialorder %v2664, 0.0
    %v2984 = vand.u32 %v2664, 2147483648
    %v2985 = vsel %vm2983, %v2984, %v2982
    %v2986 = vrsqrt.pop %v2666
    %v2987 = vmul.f32 %v2666, %v2986
    %vm2988 = vcmp.eq.f32.partialorder %v2666, inf
    %v2989 = vsel %vm2988, %v2666, %v2987
    %vm2990 = vcmp.eq.f32.partialorder %v2666, 0.0
    %v2991 = vand.u32 %v2666, 2147483648
    %v2992 = vsel %vm2990, %v2991, %v2989
    %v2993 = vrsqrt.pop %v2668
    %v2994 = vmul.f32 %v2668, %v2993
    %vm2995 = vcmp.eq.f32.partialorder %v2668, inf
    %v2996 = vsel %vm2995, %v2668, %v2994
    %vm2997 = vcmp.eq.f32.partialorder %v2668, 0.0
    %v2998 = vand.u32 %v2668, 2147483648
    %v2999 = vsel %vm2997, %v2998, %v2996
    %v3000 = vrsqrt.pop %v2670
    %v3001 = vmul.f32 %v2670, %v3000
    %vm3002 = vcmp.eq.f32.partialorder %v2670, inf
    %v3003 = vsel %vm3002, %v2670, %v3001
    %vm3004 = vcmp.eq.f32.partialorder %v2670, 0.0
    %v3005 = vand.u32 %v2670, 2147483648
    %v3006 = vsel %vm3004, %v3005, %v3003
    %v3007 = vrsqrt.pop %v2672
    %v3008 = vmul.f32 %v2672, %v3007
    %vm3009 = vcmp.eq.f32.partialorder %v2672, inf
    %v3010 = vsel %vm3009, %v2672, %v3008
    %vm3011 = vcmp.eq.f32.partialorder %v2672, 0.0
    %v3012 = vand.u32 %v2672, 2147483648
    %v3013 = vsel %vm3011, %v3012, %v3010
    %v3014 = vrsqrt.pop %v2674
    %v3015 = vmul.f32 %v2674, %v3014
    %vm3016 = vcmp.eq.f32.partialorder %v2674, inf
    %v3017 = vsel %vm3016, %v2674, %v3015
    %vm3018 = vcmp.eq.f32.partialorder %v2674, 0.0
    %v3019 = vand.u32 %v2674, 2147483648
    %v3020 = vsel %vm3018, %v3019, %v3017
    %v3021 = vrsqrt.pop %v2676
    %v3022 = vmul.f32 %v2676, %v3021
    %vm3023 = vcmp.eq.f32.partialorder %v2676, inf
    %v3024 = vsel %vm3023, %v2676, %v3022
    %vm3025 = vcmp.eq.f32.partialorder %v2676, 0.0
    %v3026 = vand.u32 %v2676, 2147483648
    %v3027 = vsel %vm3025, %v3026, %v3024
    %v3028 = vrsqrt.pop %v2678
    %v3029 = vmul.f32 %v2678, %v3028
    %vm3030 = vcmp.eq.f32.partialorder %v2678, inf
    %v3031 = vsel %vm3030, %v2678, %v3029
    %vm3032 = vcmp.eq.f32.partialorder %v2678, 0.0
    %v3033 = vand.u32 %v2678, 2147483648
    %v3034 = vsel %vm3032, %v3033, %v3031
    %v3035 = vrsqrt.pop %v2680
    %v3036 = vmul.f32 %v2680, %v3035
    %vm3037 = vcmp.eq.f32.partialorder %v2680, inf
    %v3038 = vsel %vm3037, %v2680, %v3036
    %vm3039 = vcmp.eq.f32.partialorder %v2680, 0.0
    %v3040 = vand.u32 %v2680, 2147483648
    %v3041 = vsel %vm3039, %v3040, %v3038
    %v3042 = vrsqrt.pop %v2682
    %v3043 = vmul.f32 %v2682, %v3042
    %vm3044 = vcmp.eq.f32.partialorder %v2682, inf
    %v3045 = vsel %vm3044, %v2682, %v3043
    %vm3046 = vcmp.eq.f32.partialorder %v2682, 0.0
    %v3047 = vand.u32 %v2682, 2147483648
    %v3048 = vsel %vm3046, %v3047, %v3045
    %v3049 = vrsqrt.pop %v2684
    %v3050 = vmul.f32 %v2684, %v3049
    %vm3051 = vcmp.eq.f32.partialorder %v2684, inf
    %v3052 = vsel %vm3051, %v2684, %v3050
    %vm3053 = vcmp.eq.f32.partialorder %v2684, 0.0
    %v3054 = vand.u32 %v2684, 2147483648
    %v3055 = vsel %vm3053, %v3054, %v3052
    %v3056 = vrsqrt.pop %v2686
    %v3057 = vmul.f32 %v2686, %v3056
    %vm3058 = vcmp.eq.f32.partialorder %v2686, inf
    %v3059 = vsel %vm3058, %v2686, %v3057
    %vm3060 = vcmp.eq.f32.partialorder %v2686, 0.0
    %v3061 = vand.u32 %v2686, 2147483648
    %v3062 = vsel %vm3060, %v3061, %v3059
    %v3063 = vrsqrt.pop %v2688
    %v3064 = vmul.f32 %v2688, %v3063
    %vm3065 = vcmp.eq.f32.partialorder %v2688, inf
    %v3066 = vsel %vm3065, %v2688, %v3064
    %vm3067 = vcmp.eq.f32.partialorder %v2688, 0.0
    %v3068 = vand.u32 %v2688, 2147483648
    %v3069 = vsel %vm3067, %v3068, %v3066
    %v3070 = vrsqrt.pop %v2690
    %v3071 = vmul.f32 %v2690, %v3070
    %vm3072 = vcmp.eq.f32.partialorder %v2690, inf
    %v3073 = vsel %vm3072, %v2690, %v3071
    %vm3074 = vcmp.eq.f32.partialorder %v2690, 0.0
    %v3075 = vand.u32 %v2690, 2147483648
    %v3076 = vsel %vm3074, %v3075, %v3073
    %v3077 = vrsqrt.pop %v2692
    %v3078 = vmul.f32 %v2692, %v3077
    %vm3079 = vcmp.eq.f32.partialorder %v2692, inf
    %v3080 = vsel %vm3079, %v2692, %v3078
    %vm3081 = vcmp.eq.f32.partialorder %v2692, 0.0
    %v3082 = vand.u32 %v2692, 2147483648
    %v3083 = vsel %vm3081, %v3082, %v3080
    %v3084 = vrsqrt.pop %v2694
    %v3085 = vmul.f32 %v2694, %v3084
    %vm3086 = vcmp.eq.f32.partialorder %v2694, inf
    %v3087 = vsel %vm3086, %v2694, %v3085
    %vm3088 = vcmp.eq.f32.partialorder %v2694, 0.0
    %v3089 = vand.u32 %v2694, 2147483648
    %v3090 = vsel %vm3088, %v3089, %v3087
    %v3091 = vrsqrt.pop %v2696
    %v3092 = vmul.f32 %v2696, %v3091
    %vm3093 = vcmp.eq.f32.partialorder %v2696, inf
    %v3094 = vsel %vm3093, %v2696, %v3092
    %vm3095 = vcmp.eq.f32.partialorder %v2696, 0.0
    %v3096 = vand.u32 %v2696, 2147483648
    %v3097 = vsel %vm3095, %v3096, %v3094
    %v3098 = vrsqrt.pop %v2698
    %v3099 = vmul.f32 %v2698, %v3098
    %vm3100 = vcmp.eq.f32.partialorder %v2698, inf
    %v3101 = vsel %vm3100, %v2698, %v3099
    %vm3102 = vcmp.eq.f32.partialorder %v2698, 0.0
    %v3103 = vand.u32 %v2698, 2147483648
    %v3104 = vsel %vm3102, %v3103, %v3101
    %v3105 = vrsqrt.pop %v2700
    %v3106 = vmul.f32 %v2700, %v3105
    %vm3107 = vcmp.eq.f32.partialorder %v2700, inf
    %v3108 = vsel %vm3107, %v2700, %v3106
    %vm3109 = vcmp.eq.f32.partialorder %v2700, 0.0
    %v3110 = vand.u32 %v2700, 2147483648
    %v3111 = vsel %vm3109, %v3110, %v3108
    %v3112 = vrsqrt.pop %v2702
    %v3113 = vmul.f32 %v2702, %v3112
    %vm3114 = vcmp.eq.f32.partialorder %v2702, inf
    %v3115 = vsel %vm3114, %v2702, %v3113
    %vm3116 = vcmp.eq.f32.partialorder %v2702, 0.0
    %v3117 = vand.u32 %v2702, 2147483648
    %v3118 = vsel %vm3116, %v3117, %v3115
    %v3119 = vrsqrt.pop %v2704
    %v3120 = vmul.f32 %v2704, %v3119
    %vm3121 = vcmp.eq.f32.partialorder %v2704, inf
    %v3122 = vsel %vm3121, %v2704, %v3120
    %vm3123 = vcmp.eq.f32.partialorder %v2704, 0.0
    %v3124 = vand.u32 %v2704, 2147483648
    %v3125 = vsel %vm3123, %v3124, %v3122
    %v3126 = vrsqrt.pop %v2706
    %v3127 = vmul.f32 %v2706, %v3126
    %vm3128 = vcmp.eq.f32.partialorder %v2706, inf
    %v3129 = vsel %vm3128, %v2706, %v3127
    %vm3130 = vcmp.eq.f32.partialorder %v2706, 0.0
    %v3131 = vand.u32 %v2706, 2147483648
    %v3132 = vsel %vm3130, %v3131, %v3129
    %v3133 = vrsqrt.pop %v2708
    %v3134 = vmul.f32 %v2708, %v3133
    %vm3135 = vcmp.eq.f32.partialorder %v2708, inf
    %v3136 = vsel %vm3135, %v2708, %v3134
    %vm3137 = vcmp.eq.f32.partialorder %v2708, 0.0
    %v3138 = vand.u32 %v2708, 2147483648
    %v3139 = vsel %vm3137, %v3138, %v3136
    %v3140 = vrsqrt.pop %v2710
    %v3141 = vmul.f32 %v2710, %v3140
    %vm3142 = vcmp.eq.f32.partialorder %v2710, inf
    %v3143 = vsel %vm3142, %v2710, %v3141
    %vm3144 = vcmp.eq.f32.partialorder %v2710, 0.0
    %v3145 = vand.u32 %v2710, 2147483648
    %v3146 = vsel %vm3144, %v3145, %v3143
    %v3147 = vrsqrt.pop %v2712
    %v3148 = vmul.f32 %v2712, %v3147
    %vm3149 = vcmp.eq.f32.partialorder %v2712, inf
    %v3150 = vsel %vm3149, %v2712, %v3148
    %vm3151 = vcmp.eq.f32.partialorder %v2712, 0.0
    %v3152 = vand.u32 %v2712, 2147483648
    %v3153 = vsel %vm3151, %v3152, %v3150
    %v3154 = vrsqrt.pop %v2714
    %v3155 = vmul.f32 %v2714, %v3154
    %vm3156 = vcmp.eq.f32.partialorder %v2714, inf
    %v3157 = vsel %vm3156, %v2714, %v3155
    %vm3158 = vcmp.eq.f32.partialorder %v2714, 0.0
    %v3159 = vand.u32 %v2714, 2147483648
    %v3160 = vsel %vm3158, %v3159, %v3157
    %v3161 = vrsqrt.pop %v2716
    %v3162 = vmul.f32 %v2716, %v3161
    %vm3163 = vcmp.eq.f32.partialorder %v2716, inf
    %v3164 = vsel %vm3163, %v2716, %v3162
    %vm3165 = vcmp.eq.f32.partialorder %v2716, 0.0
    %v3166 = vand.u32 %v2716, 2147483648
    %v3167 = vsel %vm3165, %v3166, %v3164
    %v3168 = vrsqrt.pop %v2718
    %v3169 = vmul.f32 %v2718, %v3168
    %vm3170 = vcmp.eq.f32.partialorder %v2718, inf
    %v3171 = vsel %vm3170, %v2718, %v3169
    %vm3172 = vcmp.eq.f32.partialorder %v2718, 0.0
    %v3173 = vand.u32 %v2718, 2147483648
    %v3174 = vsel %vm3172, %v3173, %v3171
    %v3175 = vrsqrt.pop %v2720
    %v3176 = vmul.f32 %v2720, %v3175
    %vm3177 = vcmp.eq.f32.partialorder %v2720, inf
    %v3178 = vsel %vm3177, %v2720, %v3176
    %vm3179 = vcmp.eq.f32.partialorder %v2720, 0.0
    %v3180 = vand.u32 %v2720, 2147483648
    %v3181 = vsel %vm3179, %v3180, %v3178
    %v3182 = vrsqrt.pop %v2722
    %v3183 = vmul.f32 %v2722, %v3182
    %vm3184 = vcmp.eq.f32.partialorder %v2722, inf
    %v3185 = vsel %vm3184, %v2722, %v3183
    %vm3186 = vcmp.eq.f32.partialorder %v2722, 0.0
    %v3187 = vand.u32 %v2722, 2147483648
    %v3188 = vsel %vm3186, %v3187, %v3185
    %v3189 = vrsqrt.pop %v2724
    %v3190 = vmul.f32 %v2724, %v3189
    %vm3191 = vcmp.eq.f32.partialorder %v2724, inf
    %v3192 = vsel %vm3191, %v2724, %v3190
    %vm3193 = vcmp.eq.f32.partialorder %v2724, 0.0
    %v3194 = vand.u32 %v2724, 2147483648
    %v3195 = vsel %vm3193, %v3194, %v3192
    %v3196 = vrsqrt.pop %v2726
    %v3197 = vmul.f32 %v2726, %v3196
    %vm3198 = vcmp.eq.f32.partialorder %v2726, inf
    %v3199 = vsel %vm3198, %v2726, %v3197
    %vm3200 = vcmp.eq.f32.partialorder %v2726, 0.0
    %v3201 = vand.u32 %v2726, 2147483648
    %v3202 = vsel %vm3200, %v3201, %v3199
    %v3203 = vrsqrt.pop %v2728
    %v3204 = vmul.f32 %v2728, %v3203
    %vm3205 = vcmp.eq.f32.partialorder %v2728, inf
    %v3206 = vsel %vm3205, %v2728, %v3204
    %vm3207 = vcmp.eq.f32.partialorder %v2728, 0.0
    %v3208 = vand.u32 %v2728, 2147483648
    %v3209 = vsel %vm3207, %v3208, %v3206
    %v3210 = vrsqrt.pop %v2730
    %v3211 = vmul.f32 %v2730, %v3210
    %vm3212 = vcmp.eq.f32.partialorder %v2730, inf
    %v3213 = vsel %vm3212, %v2730, %v3211
    %vm3214 = vcmp.eq.f32.partialorder %v2730, 0.0
    %v3215 = vand.u32 %v2730, 2147483648
    %v3216 = vsel %vm3214, %v3215, %v3213
    %v3217 = vrsqrt.pop %v2732
    %v3218 = vmul.f32 %v2732, %v3217
    %vm3219 = vcmp.eq.f32.partialorder %v2732, inf
    %v3220 = vsel %vm3219, %v2732, %v3218
    %vm3221 = vcmp.eq.f32.partialorder %v2732, 0.0
    %v3222 = vand.u32 %v2732, 2147483648
    %v3223 = vsel %vm3221, %v3222, %v3220
    %v3224 = vrsqrt.pop %v2734
    %v3225 = vmul.f32 %v2734, %v3224
    %vm3226 = vcmp.eq.f32.partialorder %v2734, inf
    %v3227 = vsel %vm3226, %v2734, %v3225
    %vm3228 = vcmp.eq.f32.partialorder %v2734, 0.0
    %v3229 = vand.u32 %v2734, 2147483648
    %v3230 = vsel %vm3228, %v3229, %v3227
    %v3231 = vrsqrt.pop %v2736
    %v3232 = vmul.f32 %v2736, %v3231
    %vm3233 = vcmp.eq.f32.partialorder %v2736, inf
    %v3234 = vsel %vm3233, %v2736, %v3232
    %vm3235 = vcmp.eq.f32.partialorder %v2736, 0.0
    %v3236 = vand.u32 %v2736, 2147483648
    %v3237 = vsel %vm3235, %v3236, %v3234
    %v3238 = vrsqrt.pop %v2738
    %v3239 = vmul.f32 %v2738, %v3238
    %vm3240 = vcmp.eq.f32.partialorder %v2738, inf
    %v3241 = vsel %vm3240, %v2738, %v3239
    %vm3242 = vcmp.eq.f32.partialorder %v2738, 0.0
    %v3243 = vand.u32 %v2738, 2147483648
    %v3244 = vsel %vm3242, %v3243, %v3241
    %v3245 = vrsqrt.pop %v2740
    %v3246 = vmul.f32 %v2740, %v3245
    %vm3247 = vcmp.eq.f32.partialorder %v2740, inf
    %v3248 = vsel %vm3247, %v2740, %v3246
    %vm3249 = vcmp.eq.f32.partialorder %v2740, 0.0
    %v3250 = vand.u32 %v2740, 2147483648
    %v3251 = vsel %vm3249, %v3250, %v3248
    %v3252 = vrsqrt.pop %v2742
    %v3253 = vmul.f32 %v2742, %v3252
    %vm3254 = vcmp.eq.f32.partialorder %v2742, inf
    %v3255 = vsel %vm3254, %v2742, %v3253
    %vm3256 = vcmp.eq.f32.partialorder %v2742, 0.0
    %v3257 = vand.u32 %v2742, 2147483648
    %v3258 = vsel %vm3256, %v3257, %v3255
    %v3259 = vrsqrt.pop %v2744
    %v3260 = vmul.f32 %v2744, %v3259
    %vm3261 = vcmp.eq.f32.partialorder %v2744, inf
    %v3262 = vsel %vm3261, %v2744, %v3260
    %vm3263 = vcmp.eq.f32.partialorder %v2744, 0.0
    %v3264 = vand.u32 %v2744, 2147483648
    %v3265 = vsel %vm3263, %v3264, %v3262
    %v3266 = vrsqrt.pop %v2746
    %v3267 = vmul.f32 %v2746, %v3266
    %vm3268 = vcmp.eq.f32.partialorder %v2746, inf
    %v3269 = vsel %vm3268, %v2746, %v3267
    %vm3270 = vcmp.eq.f32.partialorder %v2746, 0.0
    %v3271 = vand.u32 %v2746, 2147483648
    %v3272 = vsel %vm3270, %v3271, %v3269
    %v3273 = vrsqrt.pop %v2748
    %v3274 = vmul.f32 %v2748, %v3273
    %vm3275 = vcmp.eq.f32.partialorder %v2748, inf
    %v3276 = vsel %vm3275, %v2748, %v3274
    %vm3277 = vcmp.eq.f32.partialorder %v2748, 0.0
    %v3278 = vand.u32 %v2748, 2147483648
    %v3279 = vsel %vm3277, %v3278, %v3276
    %v3280 = vrsqrt.pop %v2750
    %v3281 = vmul.f32 %v2750, %v3280
    %vm3282 = vcmp.eq.f32.partialorder %v2750, inf
    %v3283 = vsel %vm3282, %v2750, %v3281
    %vm3284 = vcmp.eq.f32.partialorder %v2750, 0.0
    %v3285 = vand.u32 %v2750, 2147483648
    %v3286 = vsel %vm3284, %v3285, %v3283
    %v3287 = vrsqrt.pop %v2752
    %v3288 = vmul.f32 %v2752, %v3287
    %vm3289 = vcmp.eq.f32.partialorder %v2752, inf
    %v3290 = vsel %vm3289, %v2752, %v3288
    %vm3291 = vcmp.eq.f32.partialorder %v2752, 0.0
    %v3292 = vand.u32 %v2752, 2147483648
    %v3293 = vsel %vm3291, %v3292, %v3290
    %v3294 = vrsqrt.pop %v2754
    %v3295 = vmul.f32 %v2754, %v3294
    %vm3296 = vcmp.eq.f32.partialorder %v2754, inf
    %v3297 = vsel %vm3296, %v2754, %v3295
    %vm3298 = vcmp.eq.f32.partialorder %v2754, 0.0
    %v3299 = vand.u32 %v2754, 2147483648
    %v3300 = vsel %vm3298, %v3299, %v3297
    %v3301 = vrsqrt.pop %v2756
    %v3302 = vmul.f32 %v2756, %v3301
    %vm3303 = vcmp.eq.f32.partialorder %v2756, inf
    %v3304 = vsel %vm3303, %v2756, %v3302
    %vm3305 = vcmp.eq.f32.partialorder %v2756, 0.0
    %v3306 = vand.u32 %v2756, 2147483648
    %v3307 = vsel %vm3305, %v3306, %v3304
    %v3308 = vrsqrt.pop %v2758
    %v3309 = vmul.f32 %v2758, %v3308
    %vm3310 = vcmp.eq.f32.partialorder %v2758, inf
    %v3311 = vsel %vm3310, %v2758, %v3309
    %vm3312 = vcmp.eq.f32.partialorder %v2758, 0.0
    %v3313 = vand.u32 %v2758, 2147483648
    %v3314 = vsel %vm3312, %v3313, %v3311
    %v3315 = vrsqrt.pop %v2760
    %v3316 = vmul.f32 %v2760, %v3315
    %vm3317 = vcmp.eq.f32.partialorder %v2760, inf
    %v3318 = vsel %vm3317, %v2760, %v3316
    %vm3319 = vcmp.eq.f32.partialorder %v2760, 0.0
    %v3320 = vand.u32 %v2760, 2147483648
    %v3321 = vsel %vm3319, %v3320, %v3318
    %v3322 = vrsqrt.pop %v2762
    %v3323 = vmul.f32 %v2762, %v3322
    %vm3324 = vcmp.eq.f32.partialorder %v2762, inf
    %v3325 = vsel %vm3324, %v2762, %v3323
    %vm3326 = vcmp.eq.f32.partialorder %v2762, 0.0
    %v3327 = vand.u32 %v2762, 2147483648
    %v3328 = vsel %vm3326, %v3327, %v3325
    %v3329 = vrsqrt.pop %v2764
    %v3330 = vmul.f32 %v2764, %v3329
    %vm3331 = vcmp.eq.f32.partialorder %v2764, inf
    %v3332 = vsel %vm3331, %v2764, %v3330
    %vm3333 = vcmp.eq.f32.partialorder %v2764, 0.0
    %v3334 = vand.u32 %v2764, 2147483648
    %v3335 = vsel %vm3333, %v3334, %v3332
    %v3336 = vrsqrt.pop %v2766
    %v3337 = vmul.f32 %v2766, %v3336
    %vm3338 = vcmp.eq.f32.partialorder %v2766, inf
    %v3339 = vsel %vm3338, %v2766, %v3337
    %vm3340 = vcmp.eq.f32.partialorder %v2766, 0.0
    %v3341 = vand.u32 %v2766, 2147483648
    %v3342 = vsel %vm3340, %v3341, %v3339
    %v3343 = vrsqrt.pop %v2768
    %v3344 = vmul.f32 %v2768, %v3343
    %vm3345 = vcmp.eq.f32.partialorder %v2768, inf
    %v3346 = vsel %vm3345, %v2768, %v3344
    %vm3347 = vcmp.eq.f32.partialorder %v2768, 0.0
    %v3348 = vand.u32 %v2768, 2147483648
    %v3349 = vsel %vm3347, %v3348, %v3346
    %v3350 = vrsqrt.pop %v2770
    %v3351 = vmul.f32 %v2770, %v3350
    %vm3352 = vcmp.eq.f32.partialorder %v2770, inf
    %v3353 = vsel %vm3352, %v2770, %v3351
    %vm3354 = vcmp.eq.f32.partialorder %v2770, 0.0
    %v3355 = vand.u32 %v2770, 2147483648
    %v3356 = vsel %vm3354, %v3355, %v3353
    %v3357 = vrsqrt.pop %v2772
    %v3358 = vmul.f32 %v2772, %v3357
    %vm3359 = vcmp.eq.f32.partialorder %v2772, inf
    %v3360 = vsel %vm3359, %v2772, %v3358
    %vm3361 = vcmp.eq.f32.partialorder %v2772, 0.0
    %v3362 = vand.u32 %v2772, 2147483648
    %v3363 = vsel %vm3361, %v3362, %v3360
    %v3364 = vrsqrt.pop %v2774
    %v3365 = vmul.f32 %v2774, %v3364
    %vm3366 = vcmp.eq.f32.partialorder %v2774, inf
    %v3367 = vsel %vm3366, %v2774, %v3365
    %vm3368 = vcmp.eq.f32.partialorder %v2774, 0.0
    %v3369 = vand.u32 %v2774, 2147483648
    %v3370 = vsel %vm3368, %v3369, %v3367
    %v3371 = vrsqrt.pop %v2776
    %v3372 = vmul.f32 %v2776, %v3371
    %vm3373 = vcmp.eq.f32.partialorder %v2776, inf
    %v3374 = vsel %vm3373, %v2776, %v3372
    %vm3375 = vcmp.eq.f32.partialorder %v2776, 0.0
    %v3376 = vand.u32 %v2776, 2147483648
    %v3377 = vsel %vm3375, %v3376, %v3374
    %v3378 = vrsqrt.pop %v2778
    %v3379 = vmul.f32 %v2778, %v3378
    %vm3380 = vcmp.eq.f32.partialorder %v2778, inf
    %v3381 = vsel %vm3380, %v2778, %v3379
    %vm3382 = vcmp.eq.f32.partialorder %v2778, 0.0
    %v3383 = vand.u32 %v2778, 2147483648
    %v3384 = vsel %vm3382, %v3383, %v3381
    %v3385 = vrsqrt.pop %v2780
    %v3386 = vmul.f32 %v2780, %v3385
    %vm3387 = vcmp.eq.f32.partialorder %v2780, inf
    %v3388 = vsel %vm3387, %v2780, %v3386
    %vm3389 = vcmp.eq.f32.partialorder %v2780, 0.0
    %v3390 = vand.u32 %v2780, 2147483648
    %v3391 = vsel %vm3389, %v3390, %v3388
    %v3392 = vrsqrt.pop %v2782
    %v3393 = vmul.f32 %v2782, %v3392
    %vm3394 = vcmp.eq.f32.partialorder %v2782, inf
    %v3395 = vsel %vm3394, %v2782, %v3393
    %vm3396 = vcmp.eq.f32.partialorder %v2782, 0.0
    %v3397 = vand.u32 %v2782, 2147483648
    %v3398 = vsel %vm3396, %v3397, %v3395
    %v3399 = vrsqrt.pop %v2784
    %v3400 = vmul.f32 %v2784, %v3399
    %vm3401 = vcmp.eq.f32.partialorder %v2784, inf
    %v3402 = vsel %vm3401, %v2784, %v3400
    %vm3403 = vcmp.eq.f32.partialorder %v2784, 0.0
    %v3404 = vand.u32 %v2784, 2147483648
    %v3405 = vsel %vm3403, %v3404, %v3402
    %v3406 = vrsqrt.pop %v2786
    %v3407 = vmul.f32 %v2786, %v3406
    %vm3408 = vcmp.eq.f32.partialorder %v2786, inf
    %v3409 = vsel %vm3408, %v2786, %v3407
    %vm3410 = vcmp.eq.f32.partialorder %v2786, 0.0
    %v3411 = vand.u32 %v2786, 2147483648
    %v3412 = vsel %vm3410, %v3411, %v3409
    %v3413 = vrsqrt.pop %v2788
    %v3414 = vmul.f32 %v2788, %v3413
    %vm3415 = vcmp.eq.f32.partialorder %v2788, inf
    %v3416 = vsel %vm3415, %v2788, %v3414
    %vm3417 = vcmp.eq.f32.partialorder %v2788, 0.0
    %v3418 = vand.u32 %v2788, 2147483648
    %v3419 = vsel %vm3417, %v3418, %v3416
    %v3420 = vrsqrt.pop %v2790
    %v3421 = vmul.f32 %v2790, %v3420
    %vm3422 = vcmp.eq.f32.partialorder %v2790, inf
    %v3423 = vsel %vm3422, %v2790, %v3421
    %vm3424 = vcmp.eq.f32.partialorder %v2790, 0.0
    %v3425 = vand.u32 %v2790, 2147483648
    %v3426 = vsel %vm3424, %v3425, %v3423
    %v3427 = vrsqrt.pop %v2792
    %v3428 = vmul.f32 %v2792, %v3427
    %vm3429 = vcmp.eq.f32.partialorder %v2792, inf
    %v3430 = vsel %vm3429, %v2792, %v3428
    %vm3431 = vcmp.eq.f32.partialorder %v2792, 0.0
    %v3432 = vand.u32 %v2792, 2147483648
    %v3433 = vsel %vm3431, %v3432, %v3430
    %v3434 = vrsqrt.pop %v2794
    %v3435 = vmul.f32 %v2794, %v3434
    %vm3436 = vcmp.eq.f32.partialorder %v2794, inf
    %v3437 = vsel %vm3436, %v2794, %v3435
    %vm3438 = vcmp.eq.f32.partialorder %v2794, 0.0
    %v3439 = vand.u32 %v2794, 2147483648
    %v3440 = vsel %vm3438, %v3439, %v3437
    %v3441 = vrsqrt.pop %v2796
    %v3442 = vmul.f32 %v2796, %v3441
    %vm3443 = vcmp.eq.f32.partialorder %v2796, inf
    %v3444 = vsel %vm3443, %v2796, %v3442
    %vm3445 = vcmp.eq.f32.partialorder %v2796, 0.0
    %v3446 = vand.u32 %v2796, 2147483648
    %v3447 = vsel %vm3445, %v3446, %v3444
    %v3448 = vrsqrt.pop %v2798
    %v3449 = vmul.f32 %v2798, %v3448
    %vm3450 = vcmp.eq.f32.partialorder %v2798, inf
    %v3451 = vsel %vm3450, %v2798, %v3449
    %vm3452 = vcmp.eq.f32.partialorder %v2798, 0.0
    %v3453 = vand.u32 %v2798, 2147483648
    %v3454 = vsel %vm3452, %v3453, %v3451
    %v3455 = vrsqrt.pop %v2800
    %v3456 = vmul.f32 %v2800, %v3455
    %vm3457 = vcmp.eq.f32.partialorder %v2800, inf
    %v3458 = vsel %vm3457, %v2800, %v3456
    %vm3459 = vcmp.eq.f32.partialorder %v2800, 0.0
    %v3460 = vand.u32 %v2800, 2147483648
    %v3461 = vsel %vm3459, %v3460, %v3458
    %v3462 = vrsqrt.pop %v2802
    %v3463 = vmul.f32 %v2802, %v3462
    %vm3464 = vcmp.eq.f32.partialorder %v2802, inf
    %v3465 = vsel %vm3464, %v2802, %v3463
    %vm3466 = vcmp.eq.f32.partialorder %v2802, 0.0
    %v3467 = vand.u32 %v2802, 2147483648
    %v3468 = vsel %vm3466, %v3467, %v3465
    %v3469 = vrsqrt.pop %v2804
    %v3470 = vmul.f32 %v2804, %v3469
    %vm3471 = vcmp.eq.f32.partialorder %v2804, inf
    %v3472 = vsel %vm3471, %v2804, %v3470
    %vm3473 = vcmp.eq.f32.partialorder %v2804, 0.0
    %v3474 = vand.u32 %v2804, 2147483648
    %v3475 = vsel %vm3473, %v3474, %v3472
    %v3476 = vrsqrt.pop %v2806
    %v3477 = vmul.f32 %v2806, %v3476
    %vm3478 = vcmp.eq.f32.partialorder %v2806, inf
    %v3479 = vsel %vm3478, %v2806, %v3477
    %vm3480 = vcmp.eq.f32.partialorder %v2806, 0.0
    %v3481 = vand.u32 %v2806, 2147483648
    %v3482 = vsel %vm3480, %v3481, %v3479
    %v3483 = vrsqrt.pop %v2808
    %v3484 = vmul.f32 %v2808, %v3483
    %vm3485 = vcmp.eq.f32.partialorder %v2808, inf
    %v3486 = vsel %vm3485, %v2808, %v3484
    %vm3487 = vcmp.eq.f32.partialorder %v2808, 0.0
    %v3488 = vand.u32 %v2808, 2147483648
    %v3489 = vsel %vm3487, %v3488, %v3486
    %v3490 = vrsqrt.pop %v2810
    %v3491 = vmul.f32 %v2810, %v3490
    %vm3492 = vcmp.eq.f32.partialorder %v2810, inf
    %v3493 = vsel %vm3492, %v2810, %v3491
    %vm3494 = vcmp.eq.f32.partialorder %v2810, 0.0
    %v3495 = vand.u32 %v2810, 2147483648
    %v3496 = vsel %vm3494, %v3495, %v3493
    %v3497 = vrsqrt.pop %v2812
    %v3498 = vmul.f32 %v2812, %v3497
    %vm3499 = vcmp.eq.f32.partialorder %v2812, inf
    %v3500 = vsel %vm3499, %v2812, %v3498
    %vm3501 = vcmp.eq.f32.partialorder %v2812, 0.0
    %v3502 = vand.u32 %v2812, 2147483648
    %v3503 = vsel %vm3501, %v3502, %v3500
    %v3504 = vrsqrt.pop %v2814
    %v3505 = vmul.f32 %v2814, %v3504
    %vm3506 = vcmp.eq.f32.partialorder %v2814, inf
    %v3507 = vsel %vm3506, %v2814, %v3505
    %vm3508 = vcmp.eq.f32.partialorder %v2814, 0.0
    %v3509 = vand.u32 %v2814, 2147483648
    %v3510 = vsel %vm3508, %v3509, %v3507
    %v3511 = vrsqrt.pop %v2816
    %v3512 = vmul.f32 %v2816, %v3511
    %vm3513 = vcmp.eq.f32.partialorder %v2816, inf
    %v3514 = vsel %vm3513, %v2816, %v3512
    %vm3515 = vcmp.eq.f32.partialorder %v2816, 0.0
    %v3516 = vand.u32 %v2816, 2147483648
    %v3517 = vsel %vm3515, %v3516, %v3514
    %v3518 = vrsqrt.pop %v2818
    %v3519 = vmul.f32 %v2818, %v3518
    %vm3520 = vcmp.eq.f32.partialorder %v2818, inf
    %v3521 = vsel %vm3520, %v2818, %v3519
    %vm3522 = vcmp.eq.f32.partialorder %v2818, 0.0
    %v3523 = vand.u32 %v2818, 2147483648
    %v3524 = vsel %vm3522, %v3523, %v3521
    %v3525 = vrsqrt.pop %v2820
    %v3526 = vmul.f32 %v2820, %v3525
    %vm3527 = vcmp.eq.f32.partialorder %v2820, inf
    %v3528 = vsel %vm3527, %v2820, %v3526
    %vm3529 = vcmp.eq.f32.partialorder %v2820, 0.0
    %v3530 = vand.u32 %v2820, 2147483648
    %v3531 = vsel %vm3529, %v3530, %v3528
    %v3532 = vrsqrt.pop %v2822
    %v3533 = vmul.f32 %v2822, %v3532
    %vm3534 = vcmp.eq.f32.partialorder %v2822, inf
    %v3535 = vsel %vm3534, %v2822, %v3533
    %vm3536 = vcmp.eq.f32.partialorder %v2822, 0.0
    %v3537 = vand.u32 %v2822, 2147483648
    %v3538 = vsel %vm3536, %v3537, %v3535
    %v3539 = vrsqrt.pop %v2824
    %v3540 = vmul.f32 %v2824, %v3539
    %vm3541 = vcmp.eq.f32.partialorder %v2824, inf
    %v3542 = vsel %vm3541, %v2824, %v3540
    %vm3543 = vcmp.eq.f32.partialorder %v2824, 0.0
    %v3544 = vand.u32 %v2824, 2147483648
    %v3545 = vsel %vm3543, %v3544, %v3542
    %v3546 = vrsqrt.pop %v2826
    %v3547 = vmul.f32 %v2826, %v3546
    %vm3548 = vcmp.eq.f32.partialorder %v2826, inf
    %v3549 = vsel %vm3548, %v2826, %v3547
    %vm3550 = vcmp.eq.f32.partialorder %v2826, 0.0
    %v3551 = vand.u32 %v2826, 2147483648
    %v3552 = vsel %vm3550, %v3551, %v3549
    %v3553 = vrsqrt.pop %v2828
    %v3554 = vmul.f32 %v2828, %v3553
    %vm3555 = vcmp.eq.f32.partialorder %v2828, inf
    %v3556 = vsel %vm3555, %v2828, %v3554
    %vm3557 = vcmp.eq.f32.partialorder %v2828, 0.0
    %v3558 = vand.u32 %v2828, 2147483648
    %v3559 = vsel %vm3557, %v3558, %v3556
    %v3560 = vrsqrt.pop %v2830
    %v3561 = vmul.f32 %v2830, %v3560
    %vm3562 = vcmp.eq.f32.partialorder %v2830, inf
    %v3563 = vsel %vm3562, %v2830, %v3561
    %vm3564 = vcmp.eq.f32.partialorder %v2830, 0.0
    %v3565 = vand.u32 %v2830, 2147483648
    %v3566 = vsel %vm3564, %v3565, %v3563
    %v3567 = vrsqrt.pop %v2832
    %v3568 = vmul.f32 %v2832, %v3567
    %vm3569 = vcmp.eq.f32.partialorder %v2832, inf
    %v3570 = vsel %vm3569, %v2832, %v3568
    %vm3571 = vcmp.eq.f32.partialorder %v2832, 0.0
    %v3572 = vand.u32 %v2832, 2147483648
    %v3573 = vsel %vm3571, %v3572, %v3570
    %v3574 = vrsqrt.pop %v2834
    %v3575 = vmul.f32 %v2834, %v3574
    %vm3576 = vcmp.eq.f32.partialorder %v2834, inf
    %v3577 = vsel %vm3576, %v2834, %v3575
    %vm3578 = vcmp.eq.f32.partialorder %v2834, 0.0
    %v3579 = vand.u32 %v2834, 2147483648
    %v3580 = vsel %vm3578, %v3579, %v3577
    %v3581 = vrsqrt.pop %v2836
    %v3582 = vmul.f32 %v2836, %v3581
    %vm3583 = vcmp.eq.f32.partialorder %v2836, inf
    %v3584 = vsel %vm3583, %v2836, %v3582
    %vm3585 = vcmp.eq.f32.partialorder %v2836, 0.0
    %v3586 = vand.u32 %v2836, 2147483648
    %v3587 = vsel %vm3585, %v3586, %v3584
    %v3588 = vrsqrt.pop %v2838
    %v3589 = vmul.f32 %v2838, %v3588
    %vm3590 = vcmp.eq.f32.partialorder %v2838, inf
    %v3591 = vsel %vm3590, %v2838, %v3589
    %vm3592 = vcmp.eq.f32.partialorder %v2838, 0.0
    %v3593 = vand.u32 %v2838, 2147483648
    %v3594 = vsel %vm3592, %v3593, %v3591
    %v3595 = vrsqrt.pop %v2840
    %v3596 = vmul.f32 %v2840, %v3595
    %vm3597 = vcmp.eq.f32.partialorder %v2840, inf
    %v3598 = vsel %vm3597, %v2840, %v3596
    %vm3599 = vcmp.eq.f32.partialorder %v2840, 0.0
    %v3600 = vand.u32 %v2840, 2147483648
    %v3601 = vsel %vm3599, %v3600, %v3598
    %v3602 = vrsqrt.pop %v2842
    %v3603 = vmul.f32 %v2842, %v3602
    %vm3604 = vcmp.eq.f32.partialorder %v2842, inf
    %v3605 = vsel %vm3604, %v2842, %v3603
    %vm3606 = vcmp.eq.f32.partialorder %v2842, 0.0
    %v3607 = vand.u32 %v2842, 2147483648
    %v3608 = vsel %vm3606, %v3607, %v3605
    %v3609 = vrsqrt.pop %v2844
    %v3610 = vmul.f32 %v2844, %v3609
    %vm3611 = vcmp.eq.f32.partialorder %v2844, inf
    %v3612 = vsel %vm3611, %v2844, %v3610
    %vm3613 = vcmp.eq.f32.partialorder %v2844, 0.0
    %v3614 = vand.u32 %v2844, 2147483648
    %v3615 = vsel %vm3613, %v3614, %v3612
    %v3616 = vrsqrt.pop %v2846
    %v3617 = vmul.f32 %v2846, %v3616
    %vm3618 = vcmp.eq.f32.partialorder %v2846, inf
    %v3619 = vsel %vm3618, %v2846, %v3617
    %vm3620 = vcmp.eq.f32.partialorder %v2846, 0.0
    %v3621 = vand.u32 %v2846, 2147483648
    %v3622 = vsel %vm3620, %v3621, %v3619
    %v3623 = vrsqrt.pop %v2848
    %v3624 = vmul.f32 %v2848, %v3623
    %vm3625 = vcmp.eq.f32.partialorder %v2848, inf
    %v3626 = vsel %vm3625, %v2848, %v3624
    %vm3627 = vcmp.eq.f32.partialorder %v2848, 0.0
    %v3628 = vand.u32 %v2848, 2147483648
    %v3629 = vsel %vm3627, %v3628, %v3626
    %v3630 = vrsqrt.pop %v2850
    %v3631 = vmul.f32 %v2850, %v3630
    %vm3632 = vcmp.eq.f32.partialorder %v2850, inf
    %v3633 = vsel %vm3632, %v2850, %v3631
    %vm3634 = vcmp.eq.f32.partialorder %v2850, 0.0
    %v3635 = vand.u32 %v2850, 2147483648
    %v3636 = vsel %vm3634, %v3635, %v3633
    %v3637 = vrsqrt.pop %v2852
    %v3638 = vmul.f32 %v2852, %v3637
    %vm3639 = vcmp.eq.f32.partialorder %v2852, inf
    %v3640 = vsel %vm3639, %v2852, %v3638
    %vm3641 = vcmp.eq.f32.partialorder %v2852, 0.0
    %v3642 = vand.u32 %v2852, 2147483648
    %v3643 = vsel %vm3641, %v3642, %v3640
    %v3644 = vrsqrt.pop %v2854
    %v3645 = vmul.f32 %v2854, %v3644
    %vm3646 = vcmp.eq.f32.partialorder %v2854, inf
    %v3647 = vsel %vm3646, %v2854, %v3645
    %vm3648 = vcmp.eq.f32.partialorder %v2854, 0.0
    %v3649 = vand.u32 %v2854, 2147483648
    %v3650 = vsel %vm3648, %v3649, %v3647
    %v3651 = vrsqrt.pop %v2856
    %v3652 = vmul.f32 %v2856, %v3651
    %vm3653 = vcmp.eq.f32.partialorder %v2856, inf
    %v3654 = vsel %vm3653, %v2856, %v3652
    %vm3655 = vcmp.eq.f32.partialorder %v2856, 0.0
    %v3656 = vand.u32 %v2856, 2147483648
    %v3657 = vsel %vm3655, %v3656, %v3654
    %v3658 = vrsqrt.pop %v2858
    %v3659 = vmul.f32 %v2858, %v3658
    %vm3660 = vcmp.eq.f32.partialorder %v2858, inf
    %v3661 = vsel %vm3660, %v2858, %v3659
    %vm3662 = vcmp.eq.f32.partialorder %v2858, 0.0
    %v3663 = vand.u32 %v2858, 2147483648
    %v3664 = vsel %vm3662, %v3663, %v3661
    %v3665 = vrsqrt.pop %v2860
    %v3666 = vmul.f32 %v2860, %v3665
    %vm3667 = vcmp.eq.f32.partialorder %v2860, inf
    %v3668 = vsel %vm3667, %v2860, %v3666
    %vm3669 = vcmp.eq.f32.partialorder %v2860, 0.0
    %v3670 = vand.u32 %v2860, 2147483648
    %v3671 = vsel %vm3669, %v3670, %v3668
    %v3672 = vrsqrt.pop %v2862
    %v3673 = vmul.f32 %v2862, %v3672
    %vm3674 = vcmp.eq.f32.partialorder %v2862, inf
    %v3675 = vsel %vm3674, %v2862, %v3673
    %vm3676 = vcmp.eq.f32.partialorder %v2862, 0.0
    %v3677 = vand.u32 %v2862, 2147483648
    %v3678 = vsel %vm3676, %v3677, %v3675
    %v3679 = vrsqrt.pop %v2864
    %v3680 = vmul.f32 %v2864, %v3679
    %vm3681 = vcmp.eq.f32.partialorder %v2864, inf
    %v3682 = vsel %vm3681, %v2864, %v3680
    %vm3683 = vcmp.eq.f32.partialorder %v2864, 0.0
    %v3684 = vand.u32 %v2864, 2147483648
    %v3685 = vsel %vm3683, %v3684, %v3682
    %v3686 = vrsqrt.pop %v2866
    %v3687 = vmul.f32 %v2866, %v3686
    %vm3688 = vcmp.eq.f32.partialorder %v2866, inf
    %v3689 = vsel %vm3688, %v2866, %v3687
    %vm3690 = vcmp.eq.f32.partialorder %v2866, 0.0
    %v3691 = vand.u32 %v2866, 2147483648
    %v3692 = vsel %vm3690, %v3691, %v3689
    %v3693 = vrsqrt.pop %v2868
    %v3694 = vmul.f32 %v2868, %v3693
    %vm3695 = vcmp.eq.f32.partialorder %v2868, inf
    %v3696 = vsel %vm3695, %v2868, %v3694
    %vm3697 = vcmp.eq.f32.partialorder %v2868, 0.0
    %v3698 = vand.u32 %v2868, 2147483648
    %v3699 = vsel %vm3697, %v3698, %v3696
    %v3700 = vrsqrt.pop %v2870
    %v3701 = vmul.f32 %v2870, %v3700
    %vm3702 = vcmp.eq.f32.partialorder %v2870, inf
    %v3703 = vsel %vm3702, %v2870, %v3701
    %vm3704 = vcmp.eq.f32.partialorder %v2870, 0.0
    %v3705 = vand.u32 %v2870, 2147483648
    %v3706 = vsel %vm3704, %v3705, %v3703
    %v3707 = vrsqrt.pop %v2872
    %v3708 = vmul.f32 %v2872, %v3707
    %vm3709 = vcmp.eq.f32.partialorder %v2872, inf
    %v3710 = vsel %vm3709, %v2872, %v3708
    %vm3711 = vcmp.eq.f32.partialorder %v2872, 0.0
    %v3712 = vand.u32 %v2872, 2147483648
    %v3713 = vsel %vm3711, %v3712, %v3710
    %v3714 = vrsqrt.pop %v2874
    %v3715 = vmul.f32 %v2874, %v3714
    %vm3716 = vcmp.eq.f32.partialorder %v2874, inf
    %v3717 = vsel %vm3716, %v2874, %v3715
    %vm3718 = vcmp.eq.f32.partialorder %v2874, 0.0
    %v3719 = vand.u32 %v2874, 2147483648
    %v3720 = vsel %vm3718, %v3719, %v3717
    %v3721 = vrsqrt.pop %v2876
    %v3722 = vmul.f32 %v2876, %v3721
    %vm3723 = vcmp.eq.f32.partialorder %v2876, inf
    %v3724 = vsel %vm3723, %v2876, %v3722
    %vm3725 = vcmp.eq.f32.partialorder %v2876, 0.0
    %v3726 = vand.u32 %v2876, 2147483648
    %v3727 = vsel %vm3725, %v3726, %v3724
    %v3728 = vrsqrt.pop %v2878
    %v3729 = vmul.f32 %v2878, %v3728
    %vm3730 = vcmp.eq.f32.partialorder %v2878, inf
    %v3731 = vsel %vm3730, %v2878, %v3729
    %vm3732 = vcmp.eq.f32.partialorder %v2878, 0.0
    %v3733 = vand.u32 %v2878, 2147483648
    %v3734 = vsel %vm3732, %v3733, %v3731
    %v3735 = vrsqrt.pop %v2880
    %v3736 = vmul.f32 %v2880, %v3735
    %vm3737 = vcmp.eq.f32.partialorder %v2880, inf
    %v3738 = vsel %vm3737, %v2880, %v3736
    %vm3739 = vcmp.eq.f32.partialorder %v2880, 0.0
    %v3740 = vand.u32 %v2880, 2147483648
    %v3741 = vsel %vm3739, %v3740, %v3738
    %v3742 = vrsqrt.pop %v2882
    %v3743 = vmul.f32 %v2882, %v3742
    %vm3744 = vcmp.eq.f32.partialorder %v2882, inf
    %v3745 = vsel %vm3744, %v2882, %v3743
    %vm3746 = vcmp.eq.f32.partialorder %v2882, 0.0
    %v3747 = vand.u32 %v2882, 2147483648
    %v3748 = vsel %vm3746, %v3747, %v3745
    %v3749 = vrsqrt.pop %v2884
    %v3750 = vmul.f32 %v2884, %v3749
    %vm3751 = vcmp.eq.f32.partialorder %v2884, inf
    %v3752 = vsel %vm3751, %v2884, %v3750
    %vm3753 = vcmp.eq.f32.partialorder %v2884, 0.0
    %v3754 = vand.u32 %v2884, 2147483648
    %v3755 = vsel %vm3753, %v3754, %v3752
    %v3756 = vrsqrt.pop %v2886
    %v3757 = vmul.f32 %v2886, %v3756
    %vm3758 = vcmp.eq.f32.partialorder %v2886, inf
    %v3759 = vsel %vm3758, %v2886, %v3757
    %vm3760 = vcmp.eq.f32.partialorder %v2886, 0.0
    %v3761 = vand.u32 %v2886, 2147483648
    %v3762 = vsel %vm3760, %v3761, %v3759
    %v3763 = vrsqrt.pop %v2888
    %v3764 = vmul.f32 %v2888, %v3763
    %vm3765 = vcmp.eq.f32.partialorder %v2888, inf
    %v3766 = vsel %vm3765, %v2888, %v3764
    %vm3767 = vcmp.eq.f32.partialorder %v2888, 0.0
    %v3768 = vand.u32 %v2888, 2147483648
    %v3769 = vsel %vm3767, %v3768, %v3766
    %v3770 = vrsqrt.pop %v2890
    %v3771 = vmul.f32 %v2890, %v3770
    %vm3772 = vcmp.eq.f32.partialorder %v2890, inf
    %v3773 = vsel %vm3772, %v2890, %v3771
    %vm3774 = vcmp.eq.f32.partialorder %v2890, 0.0
    %v3775 = vand.u32 %v2890, 2147483648
    %v3776 = vsel %vm3774, %v3775, %v3773
    %v3777 = vrsqrt.pop %v2892
    %v3778 = vmul.f32 %v2892, %v3777
    %vm3779 = vcmp.eq.f32.partialorder %v2892, inf
    %v3780 = vsel %vm3779, %v2892, %v3778
    %vm3781 = vcmp.eq.f32.partialorder %v2892, 0.0
    %v3782 = vand.u32 %v2892, 2147483648
    %v3783 = vsel %vm3781, %v3782, %v3780
    %v3784 = vrsqrt.pop %v2894
    %v3785 = vmul.f32 %v2894, %v3784
    %vm3786 = vcmp.eq.f32.partialorder %v2894, inf
    %v3787 = vsel %vm3786, %v2894, %v3785
    %vm3788 = vcmp.eq.f32.partialorder %v2894, 0.0
    %v3789 = vand.u32 %v2894, 2147483648
    %v3790 = vsel %vm3788, %v3789, %v3787
    %v3791 = vmax.f32 %v2901, 1e-07
    %v3792 = vmax.f32 %v2908, 1e-07
    %v3793 = vmax.f32 %v2915, 1e-07
    %v3794 = vmax.f32 %v2922, 1e-07
    %v3795 = vmax.f32 %v2929, 1e-07
    %v3796 = vmax.f32 %v2936, 1e-07
    %v3797 = vmax.f32 %v2943, 1e-07
    %v3798 = vmax.f32 %v2950, 1e-07
    %v3799 = vmax.f32 %v2957, 1e-07
    %v3800 = vmax.f32 %v2964, 1e-07
    %v3801 = vmax.f32 %v2971, 1e-07
    %v3802 = vmax.f32 %v2978, 1e-07
    %v3803 = vmax.f32 %v2985, 1e-07
    %v3804 = vmax.f32 %v2992, 1e-07
    %v3805 = vmax.f32 %v2999, 1e-07
    %v3806 = vmax.f32 %v3006, 1e-07
    %v3807 = vmax.f32 %v3013, 1e-07
    %v3808 = vmax.f32 %v3020, 1e-07
    %v3809 = vmax.f32 %v3027, 1e-07
    %v3810 = vmax.f32 %v3034, 1e-07
    %v3811 = vmax.f32 %v3041, 1e-07
    %v3812 = vmax.f32 %v3048, 1e-07
    %v3813 = vmax.f32 %v3055, 1e-07
    %v3814 = vmax.f32 %v3062, 1e-07
    %v3815 = vmax.f32 %v3069, 1e-07
    %v3816 = vmax.f32 %v3076, 1e-07
    %v3817 = vmax.f32 %v3083, 1e-07
    %v3818 = vmax.f32 %v3090, 1e-07
    %v3819 = vmax.f32 %v3097, 1e-07
    %v3820 = vmax.f32 %v3104, 1e-07
    %v3821 = vmax.f32 %v3111, 1e-07
    %v3822 = vmax.f32 %v3118, 1e-07
    %v3823 = vmax.f32 %v3125, 1e-07
    %v3824 = vmax.f32 %v3132, 1e-07
    %v3825 = vmax.f32 %v3139, 1e-07
    %v3826 = vmax.f32 %v3146, 1e-07
    %v3827 = vmax.f32 %v3153, 1e-07
    %v3828 = vmax.f32 %v3160, 1e-07
    %v3829 = vmax.f32 %v3167, 1e-07
    %v3830 = vmax.f32 %v3174, 1e-07
    %v3831 = vmax.f32 %v3181, 1e-07
    %v3832 = vmax.f32 %v3188, 1e-07
    %v3833 = vmax.f32 %v3195, 1e-07
    %v3834 = vmax.f32 %v3202, 1e-07
    %v3835 = vmax.f32 %v3209, 1e-07
    %v3836 = vmax.f32 %v3216, 1e-07
    %v3837 = vmax.f32 %v3223, 1e-07
    %v3838 = vmax.f32 %v3230, 1e-07
    %v3839 = vmax.f32 %v3237, 1e-07
    %v3840 = vmax.f32 %v3244, 1e-07
    %v3841 = vmax.f32 %v3251, 1e-07
    %v3842 = vmax.f32 %v3258, 1e-07
    %v3843 = vmax.f32 %v3265, 1e-07
    %v3844 = vmax.f32 %v3272, 1e-07
    %v3845 = vmax.f32 %v3279, 1e-07
    %v3846 = vmax.f32 %v3286, 1e-07
    %v3847 = vmax.f32 %v3293, 1e-07
    %v3848 = vmax.f32 %v3300, 1e-07
    %v3849 = vmax.f32 %v3307, 1e-07
    %v3850 = vmax.f32 %v3314, 1e-07
    %v3851 = vmax.f32 %v3321, 1e-07
    %v3852 = vmax.f32 %v3328, 1e-07
    %v3853 = vmax.f32 %v3335, 1e-07
    %v3854 = vmax.f32 %v3342, 1e-07
    %v3855 = vmax.f32 %v3349, 1e-07
    %v3856 = vmax.f32 %v3356, 1e-07
    %v3857 = vmax.f32 %v3363, 1e-07
    %v3858 = vmax.f32 %v3370, 1e-07
    %v3859 = vmax.f32 %v3377, 1e-07
    %v3860 = vmax.f32 %v3384, 1e-07
    %v3861 = vmax.f32 %v3391, 1e-07
    %v3862 = vmax.f32 %v3398, 1e-07
    %v3863 = vmax.f32 %v3405, 1e-07
    %v3864 = vmax.f32 %v3412, 1e-07
    %v3865 = vmax.f32 %v3419, 1e-07
    %v3866 = vmax.f32 %v3426, 1e-07
    %v3867 = vmax.f32 %v3433, 1e-07
    %v3868 = vmax.f32 %v3440, 1e-07
    %v3869 = vmax.f32 %v3447, 1e-07
    %v3870 = vmax.f32 %v3454, 1e-07
    %v3871 = vmax.f32 %v3461, 1e-07
    %v3872 = vmax.f32 %v3468, 1e-07
    %v3873 = vmax.f32 %v3475, 1e-07
    %v3874 = vmax.f32 %v3482, 1e-07
    %v3875 = vmax.f32 %v3489, 1e-07
    %v3876 = vmax.f32 %v3496, 1e-07
    %v3877 = vmax.f32 %v3503, 1e-07
    %v3878 = vmax.f32 %v3510, 1e-07
    %v3879 = vmax.f32 %v3517, 1e-07
    %v3880 = vmax.f32 %v3524, 1e-07
    %v3881 = vmax.f32 %v3531, 1e-07
    %v3882 = vmax.f32 %v3538, 1e-07
    %v3883 = vmax.f32 %v3545, 1e-07
    %v3884 = vmax.f32 %v3552, 1e-07
    %v3885 = vmax.f32 %v3559, 1e-07
    %v3886 = vmax.f32 %v3566, 1e-07
    %v3887 = vmax.f32 %v3573, 1e-07
    %v3888 = vmax.f32 %v3580, 1e-07
    %v3889 = vmax.f32 %v3587, 1e-07
    %v3890 = vmax.f32 %v3594, 1e-07
    %v3891 = vmax.f32 %v3601, 1e-07
    %v3892 = vmax.f32 %v3608, 1e-07
    %v3893 = vmax.f32 %v3615, 1e-07
    %v3894 = vmax.f32 %v3622, 1e-07
    %v3895 = vmax.f32 %v3629, 1e-07
    %v3896 = vmax.f32 %v3636, 1e-07
    %v3897 = vmax.f32 %v3643, 1e-07
    %v3898 = vmax.f32 %v3650, 1e-07
    %v3899 = vmax.f32 %v3657, 1e-07
    %v3900 = vmax.f32 %v3664, 1e-07
    %v3901 = vmax.f32 %v3671, 1e-07
    %v3902 = vmax.f32 %v3678, 1e-07
    %v3903 = vmax.f32 %v3685, 1e-07
    %v3904 = vmax.f32 %v3692, 1e-07
    %v3905 = vmax.f32 %v3699, 1e-07
    %v3906 = vmax.f32 %v3706, 1e-07
    %v3907 = vmax.f32 %v3713, 1e-07
    %v3908 = vmax.f32 %v3720, 1e-07
    %v3909 = vmax.f32 %v3727, 1e-07
    %v3910 = vmax.f32 %v3734, 1e-07
    %v3911 = vmax.f32 %v3741, 1e-07
    %v3912 = vmax.f32 %v3748, 1e-07
    %v3913 = vmax.f32 %v3755, 1e-07
    %v3914 = vmax.f32 %v3762, 1e-07
    %v3915 = vmax.f32 %v3769, 1e-07
    %v3916 = vmax.f32 %v3776, 1e-07
    %v3917 = vmax.f32 %v3783, 1e-07
    %v3918 = vmax.f32 %v3790, 1e-07
    %v3919 = vrcp.pop %v1550
    %v3920 = vrcp.pop %v1551
    %v3921 = vrcp.pop %v1552
    %v3922 = vrcp.pop %v1553
    %v3923 = vrcp.pop %v1554
    %v3924 = vrcp.pop %v1555
    %v3925 = vrcp.pop %v1556
    %v3926 = vrcp.pop %v1557
    %v3927 = vrcp.pop %v1558
    %v3928 = vrcp.pop %v1559
    %v3929 = vrcp.pop %v1560
    %v3930 = vrcp.pop %v1561
    %v3931 = vrcp.pop %v1562
    %v3932 = vrcp.pop %v1563
    %v3933 = vrcp.pop %v1564
    %v3934 = vrcp.pop %v1565
    %v3935 = vrcp.pop %v1566
    %v3936 = vrcp.pop %v1567
    %v3937 = vrcp.pop %v1568
    %v3938 = vrcp.pop %v1569
    %v3939 = vrcp.pop %v1570
    %v3940 = vrcp.pop %v1571
    %v3941 = vrcp.pop %v1572
    %v3942 = vrcp.pop %v1573
    %v3943 = vrcp.pop %v1574
    %v3944 = vrcp.pop %v1575
    %v3945 = vrcp.pop %v1576
    %v3946 = vrcp.pop %v1577
    %v3947 = vrcp.pop %v1578
    %v3948 = vrcp.pop %v1579
    %v3949 = vrcp.pop %v1580
    %v3950 = vrcp.pop %v1581
    %v3951 = vrcp.pop %v1582
    %v3952 = vrcp.pop %v1583
    %v3953 = vrcp.pop %v1584
    %v3954 = vrcp.pop %v1585
    %v3955 = vrcp.pop %v1586
    %v3956 = vrcp.pop %v1587
    %v3957 = vrcp.pop %v1588
    %v3958 = vrcp.pop %v1589
    %v3959 = vrcp.pop %v1590
    %v3960 = vrcp.pop %v1591
    %v3961 = vrcp.pop %v1592
    %v3962 = vrcp.pop %v1593
    %v3963 = vrcp.pop %v1594
    %v3964 = vrcp.pop %v1595
    %v3965 = vrcp.pop %v1596
    %v3966 = vrcp.pop %v1597
    %v3967 = vrcp.pop %v1598
    %v3968 = vrcp.pop %v1599
    %v3969 = vrcp.pop %v1600
    %v3970 = vrcp.pop %v1601
    %v3971 = vrcp.pop %v1602
    %v3972 = vrcp.pop %v1603
    %v3973 = vrcp.pop %v1604
    %v3974 = vrcp.pop %v1605
    %v3975 = vrcp.pop %v1606
    %v3976 = vrcp.pop %v1607
    %v3977 = vrcp.pop %v1608
    %v3978 = vrcp.pop %v1609
    %v3979 = vrcp.pop %v1610
    %v3980 = vrcp.pop %v1611
    %v3981 = vrcp.pop %v1612
    %v3982 = vrcp.pop %v1613
    %v3983 = vrcp.pop %v1614
    %v3984 = vrcp.pop %v1615
    %v3985 = vrcp.pop %v1616
    %v3986 = vrcp.pop %v1617
    %v3987 = vrcp.pop %v1618
    %v3988 = vrcp.pop %v1619
    %v3989 = vrcp.pop %v1620
    %v3990 = vrcp.pop %v1621
    %v3991 = vrcp.pop %v1622
    %v3992 = vrcp.pop %v1623
    %v3993 = vrcp.pop %v1624
    %v3994 = vrcp.pop %v1625
    %v3995 = vrcp.pop %v1626
    %v3996 = vrcp.pop %v1627
    %v3997 = vrcp.pop %v1628
    %v3998 = vrcp.pop %v1629
    %v3999 = vrcp.pop %v1630
    %v4000 = vrcp.pop %v1631
    %v4001 = vrcp.pop %v1632
    %v4002 = vrcp.pop %v1633
    %v4003 = vrcp.pop %v1634
    %v4004 = vrcp.pop %v1635
    %v4005 = vrcp.pop %v1636
    %v4006 = vrcp.pop %v1637
    %v4007 = vrcp.pop %v1638
    %v4008 = vrcp.pop %v1639
    %v4009 = vrcp.pop %v1640
    %v4010 = vrcp.pop %v1641
    %v4011 = vrcp.pop %v1642
    %v4012 = vrcp.pop %v1643
    %v4013 = vrcp.pop %v1644
    %v4014 = vrcp.pop %v1645
    %v4015 = vrcp.pop %v1646
    %v4016 = vrcp.pop %v1647
    %v4017 = vrcp.pop %v1648
    %v4018 = vrcp.pop %v1649
    %v4019 = vrcp.pop %v1650
    %v4020 = vrcp.pop %v1651
    %v4021 = vrcp.pop %v1652
    %v4022 = vrcp.pop %v1653
    %v4023 = vrcp.pop %v1654
    %v4024 = vrcp.pop %v1655
    %v4025 = vrcp.pop %v1656
    %v4026 = vrcp.pop %v1657
    %v4027 = vrcp.pop %v1658
    %v4028 = vrcp.pop %v1659
    %v4029 = vrcp.pop %v1660
    %v4030 = vrcp.pop %v1661
    %v4031 = vrcp.pop %v1662
    %v4032 = vrcp.pop %v1663
    %v4033 = vrcp.pop %v1664
    %v4034 = vrcp.pop %v1665
    %v4035 = vrcp.pop %v1666
    %v4036 = vrcp.pop %v1667
    %v4037 = vrcp.pop %v1668
    %v4038 = vrcp.pop %v1669
    %v4039 = vrcp.pop %v1670
    %v4040 = vrcp.pop %v1671
    %v4041 = vrcp.pop %v1672
    %v4042 = vrcp.pop %v1673
    %v4043 = vrcp.pop %v1674
    %v4044 = vrcp.pop %v1675
    %v4045 = vrcp.pop %v1676
    %v4046 = vrcp.pop %v1677
    %v4047 = vmul.f32 %v3791, %v3919
    %v4048 = vmul.f32 %v3792, %v3920
    %v4049 = vmul.f32 %v3793, %v3921
    %v4050 = vmul.f32 %v3794, %v3922
    %v4051 = vmul.f32 %v3795, %v3923
    %v4052 = vmul.f32 %v3796, %v3924
    %v4053 = vmul.f32 %v3797, %v3925
    %v4054 = vmul.f32 %v3798, %v3926
    %v4055 = vmul.f32 %v3799, %v3927
    %v4056 = vmul.f32 %v3800, %v3928
    %v4057 = vmul.f32 %v3801, %v3929
    %v4058 = vmul.f32 %v3802, %v3930
    %v4059 = vmul.f32 %v3803, %v3931
    %v4060 = vmul.f32 %v3804, %v3932
    %v4061 = vmul.f32 %v3805, %v3933
    %v4062 = vmul.f32 %v3806, %v3934
    %v4063 = vmul.f32 %v3807, %v3935
    %v4064 = vmul.f32 %v3808, %v3936
    %v4065 = vmul.f32 %v3809, %v3937
    %v4066 = vmul.f32 %v3810, %v3938
    %v4067 = vmul.f32 %v3811, %v3939
    %v4068 = vmul.f32 %v3812, %v3940
    %v4069 = vmul.f32 %v3813, %v3941
    %v4070 = vmul.f32 %v3814, %v3942
    %v4071 = vmul.f32 %v3815, %v3943
    %v4072 = vmul.f32 %v3816, %v3944
    %v4073 = vmul.f32 %v3817, %v3945
    %v4074 = vmul.f32 %v3818, %v3946
    %v4075 = vmul.f32 %v3819, %v3947
    %v4076 = vmul.f32 %v3820, %v3948
    %v4077 = vmul.f32 %v3821, %v3949
    %v4078 = vmul.f32 %v3822, %v3950
    %v4079 = vmul.f32 %v3823, %v3951
    %v4080 = vmul.f32 %v3824, %v3952
    %v4081 = vmul.f32 %v3825, %v3953
    %v4082 = vmul.f32 %v3826, %v3954
    %v4083 = vmul.f32 %v3827, %v3955
    %v4084 = vmul.f32 %v3828, %v3956
    %v4085 = vmul.f32 %v3829, %v3957
    %v4086 = vmul.f32 %v3830, %v3958
    %v4087 = vmul.f32 %v3831, %v3959
    %v4088 = vmul.f32 %v3832, %v3960
    %v4089 = vmul.f32 %v3833, %v3961
    %v4090 = vmul.f32 %v3834, %v3962
    %v4091 = vmul.f32 %v3835, %v3963
    %v4092 = vmul.f32 %v3836, %v3964
    %v4093 = vmul.f32 %v3837, %v3965
    %v4094 = vmul.f32 %v3838, %v3966
    %v4095 = vmul.f32 %v3839, %v3967
    %v4096 = vmul.f32 %v3840, %v3968
    %v4097 = vmul.f32 %v3841, %v3969
    %v4098 = vmul.f32 %v3842, %v3970
    %v4099 = vmul.f32 %v3843, %v3971
    %v4100 = vmul.f32 %v3844, %v3972
    %v4101 = vmul.f32 %v3845, %v3973
    %v4102 = vmul.f32 %v3846, %v3974
    %v4103 = vmul.f32 %v3847, %v3975
    %v4104 = vmul.f32 %v3848, %v3976
    %v4105 = vmul.f32 %v3849, %v3977
    %v4106 = vmul.f32 %v3850, %v3978
    %v4107 = vmul.f32 %v3851, %v3979
    %v4108 = vmul.f32 %v3852, %v3980
    %v4109 = vmul.f32 %v3853, %v3981
    %v4110 = vmul.f32 %v3854, %v3982
    %v4111 = vmul.f32 %v3855, %v3983
    %v4112 = vmul.f32 %v3856, %v3984
    %v4113 = vmul.f32 %v3857, %v3985
    %v4114 = vmul.f32 %v3858, %v3986
    %v4115 = vmul.f32 %v3859, %v3987
    %v4116 = vmul.f32 %v3860, %v3988
    %v4117 = vmul.f32 %v3861, %v3989
    %v4118 = vmul.f32 %v3862, %v3990
    %v4119 = vmul.f32 %v3863, %v3991
    %v4120 = vmul.f32 %v3864, %v3992
    %v4121 = vmul.f32 %v3865, %v3993
    %v4122 = vmul.f32 %v3866, %v3994
    %v4123 = vmul.f32 %v3867, %v3995
    %v4124 = vmul.f32 %v3868, %v3996
    %v4125 = vmul.f32 %v3869, %v3997
    %v4126 = vmul.f32 %v3870, %v3998
    %v4127 = vmul.f32 %v3871, %v3999
    %v4128 = vmul.f32 %v3872, %v4000
    %v4129 = vmul.f32 %v3873, %v4001
    %v4130 = vmul.f32 %v3874, %v4002
    %v4131 = vmul.f32 %v3875, %v4003
    %v4132 = vmul.f32 %v3876, %v4004
    %v4133 = vmul.f32 %v3877, %v4005
    %v4134 = vmul.f32 %v3878, %v4006
    %v4135 = vmul.f32 %v3879, %v4007
    %v4136 = vmul.f32 %v3880, %v4008
    %v4137 = vmul.f32 %v3881, %v4009
    %v4138 = vmul.f32 %v3882, %v4010
    %v4139 = vmul.f32 %v3883, %v4011
    %v4140 = vmul.f32 %v3884, %v4012
    %v4141 = vmul.f32 %v3885, %v4013
    %v4142 = vmul.f32 %v3886, %v4014
    %v4143 = vmul.f32 %v3887, %v4015
    %v4144 = vmul.f32 %v3888, %v4016
    %v4145 = vmul.f32 %v3889, %v4017
    %v4146 = vmul.f32 %v3890, %v4018
    %v4147 = vmul.f32 %v3891, %v4019
    %v4148 = vmul.f32 %v3892, %v4020
    %v4149 = vmul.f32 %v3893, %v4021
    %v4150 = vmul.f32 %v3894, %v4022
    %v4151 = vmul.f32 %v3895, %v4023
    %v4152 = vmul.f32 %v3896, %v4024
    %v4153 = vmul.f32 %v3897, %v4025
    %v4154 = vmul.f32 %v3898, %v4026
    %v4155 = vmul.f32 %v3899, %v4027
    %v4156 = vmul.f32 %v3900, %v4028
    %v4157 = vmul.f32 %v3901, %v4029
    %v4158 = vmul.f32 %v3902, %v4030
    %v4159 = vmul.f32 %v3903, %v4031
    %v4160 = vmul.f32 %v3904, %v4032
    %v4161 = vmul.f32 %v3905, %v4033
    %v4162 = vmul.f32 %v3906, %v4034
    %v4163 = vmul.f32 %v3907, %v4035
    %v4164 = vmul.f32 %v3908, %v4036
    %v4165 = vmul.f32 %v3909, %v4037
    %v4166 = vmul.f32 %v3910, %v4038
    %v4167 = vmul.f32 %v3911, %v4039
    %v4168 = vmul.f32 %v3912, %v4040
    %v4169 = vmul.f32 %v3913, %v4041
    %v4170 = vmul.f32 %v3914, %v4042
    %v4171 = vmul.f32 %v3915, %v4043
    %v4172 = vmul.f32 %v3916, %v4044
    %v4173 = vmul.f32 %v3917, %v4045
    %v4174 = vmul.f32 %v3918, %v4046
    %v4175 = vmax.f32 %v1550, -0.9999999
    %v4176 = vmax.f32 %v1551, -0.9999999
    %v4177 = vmax.f32 %v1552, -0.9999999
    %v4178 = vmax.f32 %v1553, -0.9999999
    %v4179 = vmax.f32 %v1554, -0.9999999
    %v4180 = vmax.f32 %v1555, -0.9999999
    %v4181 = vmax.f32 %v1556, -0.9999999
    %v4182 = vmax.f32 %v1557, -0.9999999
    %v4183 = vmax.f32 %v1558, -0.9999999
    %v4184 = vmax.f32 %v1559, -0.9999999
    %v4185 = vmax.f32 %v1560, -0.9999999
    %v4186 = vmax.f32 %v1561, -0.9999999
    %v4187 = vmax.f32 %v1562, -0.9999999
    %v4188 = vmax.f32 %v1563, -0.9999999
    %v4189 = vmax.f32 %v1564, -0.9999999
    %v4190 = vmax.f32 %v1565, -0.9999999
    %v4191 = vmax.f32 %v1566, -0.9999999
    %v4192 = vmax.f32 %v1567, -0.9999999
    %v4193 = vmax.f32 %v1568, -0.9999999
    %v4194 = vmax.f32 %v1569, -0.9999999
    %v4195 = vmax.f32 %v1570, -0.9999999
    %v4196 = vmax.f32 %v1571, -0.9999999
    %v4197 = vmax.f32 %v1572, -0.9999999
    %v4198 = vmax.f32 %v1573, -0.9999999
    %v4199 = vmax.f32 %v1574, -0.9999999
    %v4200 = vmax.f32 %v1575, -0.9999999
    %v4201 = vmax.f32 %v1576, -0.9999999
    %v4202 = vmax.f32 %v1577, -0.9999999
    %v4203 = vmax.f32 %v1578, -0.9999999
    %v4204 = vmax.f32 %v1579, -0.9999999
    %v4205 = vmax.f32 %v1580, -0.9999999
    %v4206 = vmax.f32 %v1581, -0.9999999
    %v4207 = vmax.f32 %v1582, -0.9999999
    %v4208 = vmax.f32 %v1583, -0.9999999
    %v4209 = vmax.f32 %v1584, -0.9999999
    %v4210 = vmax.f32 %v1585, -0.9999999
    %v4211 = vmax.f32 %v1586, -0.9999999
    %v4212 = vmax.f32 %v1587, -0.9999999
    %v4213 = vmax.f32 %v1588, -0.9999999
    %v4214 = vmax.f32 %v1589, -0.9999999
    %v4215 = vmax.f32 %v1590, -0.9999999
    %v4216 = vmax.f32 %v1591, -0.9999999
    %v4217 = vmax.f32 %v1592, -0.9999999
    %v4218 = vmax.f32 %v1593, -0.9999999
    %v4219 = vmax.f32 %v1594, -0.9999999
    %v4220 = vmax.f32 %v1595, -0.9999999
    %v4221 = vmax.f32 %v1596, -0.9999999
    %v4222 = vmax.f32 %v1597, -0.9999999
    %v4223 = vmax.f32 %v1598, -0.9999999
    %v4224 = vmax.f32 %v1599, -0.9999999
    %v4225 = vmax.f32 %v1600, -0.9999999
    %v4226 = vmax.f32 %v1601, -0.9999999
    %v4227 = vmax.f32 %v1602, -0.9999999
    %v4228 = vmax.f32 %v1603, -0.9999999
    %v4229 = vmax.f32 %v1604, -0.9999999
    %v4230 = vmax.f32 %v1605, -0.9999999
    %v4231 = vmax.f32 %v1606, -0.9999999
    %v4232 = vmax.f32 %v1607, -0.9999999
    %v4233 = vmax.f32 %v1608, -0.9999999
    %v4234 = vmax.f32 %v1609, -0.9999999
    %v4235 = vmax.f32 %v1610, -0.9999999
    %v4236 = vmax.f32 %v1611, -0.9999999
    %v4237 = vmax.f32 %v1612, -0.9999999
    %v4238 = vmax.f32 %v1613, -0.9999999
    %v4239 = vmax.f32 %v1614, -0.9999999
    %v4240 = vmax.f32 %v1615, -0.9999999
    %v4241 = vmax.f32 %v1616, -0.9999999
    %v4242 = vmax.f32 %v1617, -0.9999999
    %v4243 = vmax.f32 %v1618, -0.9999999
    %v4244 = vmax.f32 %v1619, -0.9999999
    %v4245 = vmax.f32 %v1620, -0.9999999
    %v4246 = vmax.f32 %v1621, -0.9999999
    %v4247 = vmax.f32 %v1622, -0.9999999
    %v4248 = vmax.f32 %v1623, -0.9999999
    %v4249 = vmax.f32 %v1624, -0.9999999
    %v4250 = vmax.f32 %v1625, -0.9999999
    %v4251 = vmax.f32 %v1626, -0.9999999
    %v4252 = vmax.f32 %v1627, -0.9999999
    %v4253 = vmax.f32 %v1628, -0.9999999
    %v4254 = vmax.f32 %v1629, -0.9999999
    %v4255 = vmax.f32 %v1630, -0.9999999
    %v4256 = vmax.f32 %v1631, -0.9999999
    %v4257 = vmax.f32 %v1632, -0.9999999
    %v4258 = vmax.f32 %v1633, -0.9999999
    %v4259 = vmax.f32 %v1634, -0.9999999
    %v4260 = vmax.f32 %v1635, -0.9999999
    %v4261 = vmax.f32 %v1636, -0.9999999
    %v4262 = vmax.f32 %v1637, -0.9999999
    %v4263 = vmax.f32 %v1638, -0.9999999
    %v4264 = vmax.f32 %v1639, -0.9999999
    %v4265 = vmax.f32 %v1640, -0.9999999
    %v4266 = vmax.f32 %v1641, -0.9999999
    %v4267 = vmax.f32 %v1642, -0.9999999
    %v4268 = vmax.f32 %v1643, -0.9999999
    %v4269 = vmax.f32 %v1644, -0.9999999
    %v4270 = vmax.f32 %v1645, -0.9999999
    %v4271 = vmax.f32 %v1646, -0.9999999
    %v4272 = vmax.f32 %v1647, -0.9999999
    %v4273 = vmax.f32 %v1648, -0.9999999
    %v4274 = vmax.f32 %v1649, -0.9999999
    %v4275 = vmax.f32 %v1650, -0.9999999
    %v4276 = vmax.f32 %v1651, -0.9999999
    %v4277 = vmax.f32 %v1652, -0.9999999
    %v4278 = vmax.f32 %v1653, -0.9999999
    %v4279 = vmax.f32 %v1654, -0.9999999
    %v4280 = vmax.f32 %v1655, -0.9999999
    %v4281 = vmax.f32 %v1656, -0.9999999
    %v4282 = vmax.f32 %v1657, -0.9999999
    %v4283 = vmax.f32 %v1658, -0.9999999
    %v4284 = vmax.f32 %v1659, -0.9999999
    %v4285 = vmax.f32 %v1660, -0.9999999
    %v4286 = vmax.f32 %v1661, -0.9999999
    %v4287 = vmax.f32 %v1662, -0.9999999
    %v4288 = vmax.f32 %v1663, -0.9999999
    %v4289 = vmax.f32 %v1664, -0.9999999
    %v4290 = vmax.f32 %v1665, -0.9999999
    %v4291 = vmax.f32 %v1666, -0.9999999
    %v4292 = vmax.f32 %v1667, -0.9999999
    %v4293 = vmax.f32 %v1668, -0.9999999
    %v4294 = vmax.f32 %v1669, -0.9999999
    %v4295 = vmax.f32 %v1670, -0.9999999
    %v4296 = vmax.f32 %v1671, -0.9999999
    %v4297 = vmax.f32 %v1672, -0.9999999
    %v4298 = vmax.f32 %v1673, -0.9999999
    %v4299 = vmax.f32 %v1674, -0.9999999
    %v4300 = vmax.f32 %v1675, -0.9999999
    %v4301 = vmax.f32 %v1676, -0.9999999
    %v4302 = vmax.f32 %v1677, -0.9999999
    %v4303 = vmin.f32 %v4175, 0.9999999
    %v4304 = vmin.f32 %v4176, 0.9999999
    %v4305 = vmin.f32 %v4177, 0.9999999
    %v4306 = vmin.f32 %v4178, 0.9999999
    %v4307 = vmin.f32 %v4179, 0.9999999
    %v4308 = vmin.f32 %v4180, 0.9999999
    %v4309 = vmin.f32 %v4181, 0.9999999
    %v4310 = vmin.f32 %v4182, 0.9999999
    %v4311 = vmin.f32 %v4183, 0.9999999
    %v4312 = vmin.f32 %v4184, 0.9999999
    %v4313 = vmin.f32 %v4185, 0.9999999
    %v4314 = vmin.f32 %v4186, 0.9999999
    %v4315 = vmin.f32 %v4187, 0.9999999
    %v4316 = vmin.f32 %v4188, 0.9999999
    %v4317 = vmin.f32 %v4189, 0.9999999
    %v4318 = vmin.f32 %v4190, 0.9999999
    %v4319 = vmin.f32 %v4191, 0.9999999
    %v4320 = vmin.f32 %v4192, 0.9999999
    %v4321 = vmin.f32 %v4193, 0.9999999
    %v4322 = vmin.f32 %v4194, 0.9999999
    %v4323 = vmin.f32 %v4195, 0.9999999
    %v4324 = vmin.f32 %v4196, 0.9999999
    %v4325 = vmin.f32 %v4197, 0.9999999
    %v4326 = vmin.f32 %v4198, 0.9999999
    %v4327 = vmin.f32 %v4199, 0.9999999
    %v4328 = vmin.f32 %v4200, 0.9999999
    %v4329 = vmin.f32 %v4201, 0.9999999
    %v4330 = vmin.f32 %v4202, 0.9999999
    %v4331 = vmin.f32 %v4203, 0.9999999
    %v4332 = vmin.f32 %v4204, 0.9999999
    %v4333 = vmin.f32 %v4205, 0.9999999
    %v4334 = vmin.f32 %v4206, 0.9999999
    %v4335 = vmin.f32 %v4207, 0.9999999
    %v4336 = vmin.f32 %v4208, 0.9999999
    %v4337 = vmin.f32 %v4209, 0.9999999
    %v4338 = vmin.f32 %v4210, 0.9999999
    %v4339 = vmin.f32 %v4211, 0.9999999
    %v4340 = vmin.f32 %v4212, 0.9999999
    %v4341 = vmin.f32 %v4213, 0.9999999
    %v4342 = vmin.f32 %v4214, 0.9999999
    %v4343 = vmin.f32 %v4215, 0.9999999
    %v4344 = vmin.f32 %v4216, 0.9999999
    %v4345 = vmin.f32 %v4217, 0.9999999
    %v4346 = vmin.f32 %v4218, 0.9999999
    %v4347 = vmin.f32 %v4219, 0.9999999
    %v4348 = vmin.f32 %v4220, 0.9999999
    %v4349 = vmin.f32 %v4221, 0.9999999
    %v4350 = vmin.f32 %v4222, 0.9999999
    %v4351 = vmin.f32 %v4223, 0.9999999
    %v4352 = vmin.f32 %v4224, 0.9999999
    %v4353 = vmin.f32 %v4225, 0.9999999
    %v4354 = vmin.f32 %v4226, 0.9999999
    %v4355 = vmin.f32 %v4227, 0.9999999
    %v4356 = vmin.f32 %v4228, 0.9999999
    %v4357 = vmin.f32 %v4229, 0.9999999
    %v4358 = vmin.f32 %v4230, 0.9999999
    %v4359 = vmin.f32 %v4231, 0.9999999
    %v4360 = vmin.f32 %v4232, 0.9999999
    %v4361 = vmin.f32 %v4233, 0.9999999
    %v4362 = vmin.f32 %v4234, 0.9999999
    %v4363 = vmin.f32 %v4235, 0.9999999
    %v4364 = vmin.f32 %v4236, 0.9999999
    %v4365 = vmin.f32 %v4237, 0.9999999
    %v4366 = vmin.f32 %v4238, 0.9999999
    %v4367 = vmin.f32 %v4239, 0.9999999
    %v4368 = vmin.f32 %v4240, 0.9999999
    %v4369 = vmin.f32 %v4241, 0.9999999
    %v4370 = vmin.f32 %v4242, 0.9999999
    %v4371 = vmin.f32 %v4243, 0.9999999
    %v4372 = vmin.f32 %v4244, 0.9999999
    %v4373 = vmin.f32 %v4245, 0.9999999
    %v4374 = vmin.f32 %v4246, 0.9999999
    %v4375 = vmin.f32 %v4247, 0.9999999
    %v4376 = vmin.f32 %v4248, 0.9999999
    %v4377 = vmin.f32 %v4249, 0.9999999
    %v4378 = vmin.f32 %v4250, 0.9999999
    %v4379 = vmin.f32 %v4251, 0.9999999
    %v4380 = vmin.f32 %v4252, 0.9999999
    %v4381 = vmin.f32 %v4253, 0.9999999
    %v4382 = vmin.f32 %v4254, 0.9999999
    %v4383 = vmin.f32 %v4255, 0.9999999
    %v4384 = vmin.f32 %v4256, 0.9999999
    %v4385 = vmin.f32 %v4257, 0.9999999
    %v4386 = vmin.f32 %v4258, 0.9999999
    %v4387 = vmin.f32 %v4259, 0.9999999
    %v4388 = vmin.f32 %v4260, 0.9999999
    %v4389 = vmin.f32 %v4261, 0.9999999
    %v4390 = vmin.f32 %v4262, 0.9999999
    %v4391 = vmin.f32 %v4263, 0.9999999
    %v4392 = vmin.f32 %v4264, 0.9999999
    %v4393 = vmin.f32 %v4265, 0.9999999
    %v4394 = vmin.f32 %v4266, 0.9999999
    %v4395 = vmin.f32 %v4267, 0.9999999
    %v4396 = vmin.f32 %v4268, 0.9999999
    %v4397 = vmin.f32 %v4269, 0.9999999
    %v4398 = vmin.f32 %v4270, 0.9999999
    %v4399 = vmin.f32 %v4271, 0.9999999
    %v4400 = vmin.f32 %v4272, 0.9999999
    %v4401 = vmin.f32 %v4273, 0.9999999
    %v4402 = vmin.f32 %v4274, 0.9999999
    %v4403 = vmin.f32 %v4275, 0.9999999
    %v4404 = vmin.f32 %v4276, 0.9999999
    %v4405 = vmin.f32 %v4277, 0.9999999
    %v4406 = vmin.f32 %v4278, 0.9999999
    %v4407 = vmin.f32 %v4279, 0.9999999
    %v4408 = vmin.f32 %v4280, 0.9999999
    %v4409 = vmin.f32 %v4281, 0.9999999
    %v4410 = vmin.f32 %v4282, 0.9999999
    %v4411 = vmin.f32 %v4283, 0.9999999
    %v4412 = vmin.f32 %v4284, 0.9999999
    %v4413 = vmin.f32 %v4285, 0.9999999
    %v4414 = vmin.f32 %v4286, 0.9999999
    %v4415 = vmin.f32 %v4287, 0.9999999
    %v4416 = vmin.f32 %v4288, 0.9999999
    %v4417 = vmin.f32 %v4289, 0.9999999
    %v4418 = vmin.f32 %v4290, 0.9999999
    %v4419 = vmin.f32 %v4291, 0.9999999
    %v4420 = vmin.f32 %v4292, 0.9999999
    %v4421 = vmin.f32 %v4293, 0.9999999
    %v4422 = vmin.f32 %v4294, 0.9999999
    %v4423 = vmin.f32 %v4295, 0.9999999
    %v4424 = vmin.f32 %v4296, 0.9999999
    %v4425 = vmin.f32 %v4297, 0.9999999
    %v4426 = vmin.f32 %v4298, 0.9999999
    %v4427 = vmin.f32 %v4299, 0.9999999
    %v4428 = vmin.f32 %v4300, 0.9999999
    %v4429 = vmin.f32 %v4301, 0.9999999
    %v4430 = vmin.f32 %v4302, 0.9999999
    %v4431 = vadd.f32 %v4303, 1.0
    %v4432 = vadd.f32 %v4304, 1.0
    %v4433 = vadd.f32 %v4305, 1.0
    %v4434 = vadd.f32 %v4306, 1.0
    %v4435 = vadd.f32 %v4307, 1.0
    %v4436 = vadd.f32 %v4308, 1.0
    %v4437 = vadd.f32 %v4309, 1.0
    %v4438 = vadd.f32 %v4310, 1.0
    %v4439 = vadd.f32 %v4311, 1.0
    %v4440 = vadd.f32 %v4312, 1.0
    %v4441 = vadd.f32 %v4313, 1.0
    %v4442 = vadd.f32 %v4314, 1.0
    %v4443 = vadd.f32 %v4315, 1.0
    %v4444 = vadd.f32 %v4316, 1.0
    %v4445 = vadd.f32 %v4317, 1.0
    %v4446 = vadd.f32 %v4318, 1.0
    %v4447 = vadd.f32 %v4319, 1.0
    %v4448 = vadd.f32 %v4320, 1.0
    %v4449 = vadd.f32 %v4321, 1.0
    %v4450 = vadd.f32 %v4322, 1.0
    %v4451 = vadd.f32 %v4323, 1.0
    %v4452 = vadd.f32 %v4324, 1.0
    %v4453 = vadd.f32 %v4325, 1.0
    %v4454 = vadd.f32 %v4326, 1.0
    %v4455 = vadd.f32 %v4327, 1.0
    %v4456 = vadd.f32 %v4328, 1.0
    %v4457 = vadd.f32 %v4329, 1.0
    %v4458 = vadd.f32 %v4330, 1.0
    %v4459 = vadd.f32 %v4331, 1.0
    %v4460 = vadd.f32 %v4332, 1.0
    %v4461 = vadd.f32 %v4333, 1.0
    %v4462 = vadd.f32 %v4334, 1.0
    %v4463 = vadd.f32 %v4335, 1.0
    %v4464 = vadd.f32 %v4336, 1.0
    %v4465 = vadd.f32 %v4337, 1.0
    %v4466 = vadd.f32 %v4338, 1.0
    %v4467 = vadd.f32 %v4339, 1.0
    %v4468 = vadd.f32 %v4340, 1.0
    %v4469 = vadd.f32 %v4341, 1.0
    %v4470 = vadd.f32 %v4342, 1.0
    %v4471 = vadd.f32 %v4343, 1.0
    %v4472 = vadd.f32 %v4344, 1.0
    %v4473 = vadd.f32 %v4345, 1.0
    %v4474 = vadd.f32 %v4346, 1.0
    %v4475 = vadd.f32 %v4347, 1.0
    %v4476 = vadd.f32 %v4348, 1.0
    %v4477 = vadd.f32 %v4349, 1.0
    %v4478 = vadd.f32 %v4350, 1.0
    %v4479 = vadd.f32 %v4351, 1.0
    %v4480 = vadd.f32 %v4352, 1.0
    %v4481 = vadd.f32 %v4353, 1.0
    %v4482 = vadd.f32 %v4354, 1.0
    %v4483 = vadd.f32 %v4355, 1.0
    %v4484 = vadd.f32 %v4356, 1.0
    %v4485 = vadd.f32 %v4357, 1.0
    %v4486 = vadd.f32 %v4358, 1.0
    %v4487 = vadd.f32 %v4359, 1.0
    %v4488 = vadd.f32 %v4360, 1.0
    %v4489 = vadd.f32 %v4361, 1.0
    %v4490 = vadd.f32 %v4362, 1.0
    %v4491 = vadd.f32 %v4363, 1.0
    %v4492 = vadd.f32 %v4364, 1.0
    %v4493 = vadd.f32 %v4365, 1.0
    %v4494 = vadd.f32 %v4366, 1.0
    %v4495 = vadd.f32 %v4367, 1.0
    %v4496 = vadd.f32 %v4368, 1.0
    %v4497 = vadd.f32 %v4369, 1.0
    %v4498 = vadd.f32 %v4370, 1.0
    %v4499 = vadd.f32 %v4371, 1.0
    %v4500 = vadd.f32 %v4372, 1.0
    %v4501 = vadd.f32 %v4373, 1.0
    %v4502 = vadd.f32 %v4374, 1.0
    %v4503 = vadd.f32 %v4375, 1.0
    %v4504 = vadd.f32 %v4376, 1.0
    %v4505 = vadd.f32 %v4377, 1.0
    %v4506 = vadd.f32 %v4378, 1.0
    %v4507 = vadd.f32 %v4379, 1.0
    %v4508 = vadd.f32 %v4380, 1.0
    %v4509 = vadd.f32 %v4381, 1.0
    %v4510 = vadd.f32 %v4382, 1.0
    %v4511 = vadd.f32 %v4383, 1.0
    %v4512 = vadd.f32 %v4384, 1.0
    %v4513 = vadd.f32 %v4385, 1.0
    %v4514 = vadd.f32 %v4386, 1.0
    %v4515 = vadd.f32 %v4387, 1.0
    %v4516 = vadd.f32 %v4388, 1.0
    %v4517 = vadd.f32 %v4389, 1.0
    %v4518 = vadd.f32 %v4390, 1.0
    %v4519 = vadd.f32 %v4391, 1.0
    %v4520 = vadd.f32 %v4392, 1.0
    %v4521 = vadd.f32 %v4393, 1.0
    %v4522 = vadd.f32 %v4394, 1.0
    %v4523 = vadd.f32 %v4395, 1.0
    %v4524 = vadd.f32 %v4396, 1.0
    %v4525 = vadd.f32 %v4397, 1.0
    %v4526 = vadd.f32 %v4398, 1.0
    %v4527 = vadd.f32 %v4399, 1.0
    %v4528 = vadd.f32 %v4400, 1.0
    %v4529 = vadd.f32 %v4401, 1.0
    %v4530 = vadd.f32 %v4402, 1.0
    %v4531 = vadd.f32 %v4403, 1.0
    %v4532 = vadd.f32 %v4404, 1.0
    %v4533 = vadd.f32 %v4405, 1.0
    %v4534 = vadd.f32 %v4406, 1.0
    %v4535 = vadd.f32 %v4407, 1.0
    %v4536 = vadd.f32 %v4408, 1.0
    %v4537 = vadd.f32 %v4409, 1.0
    %v4538 = vadd.f32 %v4410, 1.0
    %v4539 = vadd.f32 %v4411, 1.0
    %v4540 = vadd.f32 %v4412, 1.0
    %v4541 = vadd.f32 %v4413, 1.0
    %v4542 = vadd.f32 %v4414, 1.0
    %v4543 = vadd.f32 %v4415, 1.0
    %v4544 = vadd.f32 %v4416, 1.0
    %v4545 = vadd.f32 %v4417, 1.0
    %v4546 = vadd.f32 %v4418, 1.0
    %v4547 = vadd.f32 %v4419, 1.0
    %v4548 = vadd.f32 %v4420, 1.0
    %v4549 = vadd.f32 %v4421, 1.0
    %v4550 = vadd.f32 %v4422, 1.0
    %v4551 = vadd.f32 %v4423, 1.0
    %v4552 = vadd.f32 %v4424, 1.0
    %v4553 = vadd.f32 %v4425, 1.0
    %v4554 = vadd.f32 %v4426, 1.0
    %v4555 = vadd.f32 %v4427, 1.0
    %v4556 = vadd.f32 %v4428, 1.0
    %v4557 = vadd.f32 %v4429, 1.0
    %v4558 = vadd.f32 %v4430, 1.0
    %v4559 = vsub.f32 1.0, %v4303
    %v4560 = vsub.f32 1.0, %v4304
    %v4561 = vsub.f32 1.0, %v4305
    %v4562 = vsub.f32 1.0, %v4306
    %v4563 = vsub.f32 1.0, %v4307
    %v4564 = vsub.f32 1.0, %v4308
    %v4565 = vsub.f32 1.0, %v4309
    %v4566 = vsub.f32 1.0, %v4310
    %v4567 = vsub.f32 1.0, %v4311
    %v4568 = vsub.f32 1.0, %v4312
    %v4569 = vsub.f32 1.0, %v4313
    %v4570 = vsub.f32 1.0, %v4314
    %v4571 = vsub.f32 1.0, %v4315
    %v4572 = vsub.f32 1.0, %v4316
    %v4573 = vsub.f32 1.0, %v4317
    %v4574 = vsub.f32 1.0, %v4318
    %v4575 = vsub.f32 1.0, %v4319
    %v4576 = vsub.f32 1.0, %v4320
    %v4577 = vsub.f32 1.0, %v4321
    %v4578 = vsub.f32 1.0, %v4322
    %v4579 = vsub.f32 1.0, %v4323
    %v4580 = vsub.f32 1.0, %v4324
    %v4581 = vsub.f32 1.0, %v4325
    %v4582 = vsub.f32 1.0, %v4326
    %v4583 = vsub.f32 1.0, %v4327
    %v4584 = vsub.f32 1.0, %v4328
    %v4585 = vsub.f32 1.0, %v4329
    %v4586 = vsub.f32 1.0, %v4330
    %v4587 = vsub.f32 1.0, %v4331
    %v4588 = vsub.f32 1.0, %v4332
    %v4589 = vsub.f32 1.0, %v4333
    %v4590 = vsub.f32 1.0, %v4334
    %v4591 = vsub.f32 1.0, %v4335
    %v4592 = vsub.f32 1.0, %v4336
    %v4593 = vsub.f32 1.0, %v4337
    %v4594 = vsub.f32 1.0, %v4338
    %v4595 = vsub.f32 1.0, %v4339
    %v4596 = vsub.f32 1.0, %v4340
    %v4597 = vsub.f32 1.0, %v4341
    %v4598 = vsub.f32 1.0, %v4342
    %v4599 = vsub.f32 1.0, %v4343
    %v4600 = vsub.f32 1.0, %v4344
    %v4601 = vsub.f32 1.0, %v4345
    %v4602 = vsub.f32 1.0, %v4346
    %v4603 = vsub.f32 1.0, %v4347
    %v4604 = vsub.f32 1.0, %v4348
    %v4605 = vsub.f32 1.0, %v4349
    %v4606 = vsub.f32 1.0, %v4350
    %v4607 = vsub.f32 1.0, %v4351
    %v4608 = vsub.f32 1.0, %v4352
    %v4609 = vsub.f32 1.0, %v4353
    %v4610 = vsub.f32 1.0, %v4354
    %v4611 = vsub.f32 1.0, %v4355
    %v4612 = vsub.f32 1.0, %v4356
    %v4613 = vsub.f32 1.0, %v4357
    %v4614 = vsub.f32 1.0, %v4358
    %v4615 = vsub.f32 1.0, %v4359
    %v4616 = vsub.f32 1.0, %v4360
    %v4617 = vsub.f32 1.0, %v4361
    %v4618 = vsub.f32 1.0, %v4362
    %v4619 = vsub.f32 1.0, %v4363
    %v4620 = vsub.f32 1.0, %v4364
    %v4621 = vsub.f32 1.0, %v4365
    %v4622 = vsub.f32 1.0, %v4366
    %v4623 = vsub.f32 1.0, %v4367
    %v4624 = vsub.f32 1.0, %v4368
    %v4625 = vsub.f32 1.0, %v4369
    %v4626 = vsub.f32 1.0, %v4370
    %v4627 = vsub.f32 1.0, %v4371
    %v4628 = vsub.f32 1.0, %v4372
    %v4629 = vsub.f32 1.0, %v4373
    %v4630 = vsub.f32 1.0, %v4374
    %v4631 = vsub.f32 1.0, %v4375
    %v4632 = vsub.f32 1.0, %v4376
    %v4633 = vsub.f32 1.0, %v4377
    %v4634 = vsub.f32 1.0, %v4378
    %v4635 = vsub.f32 1.0, %v4379
    %v4636 = vsub.f32 1.0, %v4380
    %v4637 = vsub.f32 1.0, %v4381
    %v4638 = vsub.f32 1.0, %v4382
    %v4639 = vsub.f32 1.0, %v4383
    %v4640 = vsub.f32 1.0, %v4384
    %v4641 = vsub.f32 1.0, %v4385
    %v4642 = vsub.f32 1.0, %v4386
    %v4643 = vsub.f32 1.0, %v4387
    %v4644 = vsub.f32 1.0, %v4388
    %v4645 = vsub.f32 1.0, %v4389
    %v4646 = vsub.f32 1.0, %v4390
    %v4647 = vsub.f32 1.0, %v4391
    %v4648 = vsub.f32 1.0, %v4392
    %v4649 = vsub.f32 1.0, %v4393
    %v4650 = vsub.f32 1.0, %v4394
    %v4651 = vsub.f32 1.0, %v4395
    %v4652 = vsub.f32 1.0, %v4396
    %v4653 = vsub.f32 1.0, %v4397
    %v4654 = vsub.f32 1.0, %v4398
    %v4655 = vsub.f32 1.0, %v4399
    %v4656 = vsub.f32 1.0, %v4400
    %v4657 = vsub.f32 1.0, %v4401
    %v4658 = vsub.f32 1.0, %v4402
    %v4659 = vsub.f32 1.0, %v4403
    %v4660 = vsub.f32 1.0, %v4404
    %v4661 = vsub.f32 1.0, %v4405
    %v4662 = vsub.f32 1.0, %v4406
    %v4663 = vsub.f32 1.0, %v4407
    %v4664 = vsub.f32 1.0, %v4408
    %v4665 = vsub.f32 1.0, %v4409
    %v4666 = vsub.f32 1.0, %v4410
    %v4667 = vsub.f32 1.0, %v4411
    %v4668 = vsub.f32 1.0, %v4412
    %v4669 = vsub.f32 1.0, %v4413
    %v4670 = vsub.f32 1.0, %v4414
    %v4671 = vsub.f32 1.0, %v4415
    %v4672 = vsub.f32 1.0, %v4416
    %v4673 = vsub.f32 1.0, %v4417
    %v4674 = vsub.f32 1.0, %v4418
    %v4675 = vsub.f32 1.0, %v4419
    %v4676 = vsub.f32 1.0, %v4420
    %v4677 = vsub.f32 1.0, %v4421
    %v4678 = vsub.f32 1.0, %v4422
    %v4679 = vsub.f32 1.0, %v4423
    %v4680 = vsub.f32 1.0, %v4424
    %v4681 = vsub.f32 1.0, %v4425
    %v4682 = vsub.f32 1.0, %v4426
    %v4683 = vsub.f32 1.0, %v4427
    %v4684 = vsub.f32 1.0, %v4428
    %v4685 = vsub.f32 1.0, %v4429
    %v4686 = vsub.f32 1.0, %v4430
    %v4687 = vrcp.pop %v4559
    %v4688 = vmul.f32 %v4431, %v4687
    %v4689 = vrcp.pop %v4560
    %v4690 = vmul.f32 %v4432, %v4689
    %v4691 = vrcp.pop %v4561
    %v4692 = vmul.f32 %v4433, %v4691
    %v4693 = vrcp.pop %v4562
    %v4694 = vmul.f32 %v4434, %v4693
    %v4695 = vrcp.pop %v4563
    %v4696 = vmul.f32 %v4435, %v4695
    %v4697 = vrcp.pop %v4564
    %v4698 = vmul.f32 %v4436, %v4697
    %v4699 = vrcp.pop %v4565
    %v4700 = vmul.f32 %v4437, %v4699
    %v4701 = vrcp.pop %v4566
    %v4702 = vmul.f32 %v4438, %v4701
    %v4703 = vrcp.pop %v4567
    %v4704 = vmul.f32 %v4439, %v4703
    %v4705 = vrcp.pop %v4568
    %v4706 = vmul.f32 %v4440, %v4705
    %v4707 = vrcp.pop %v4569
    %v4708 = vmul.f32 %v4441, %v4707
    %v4709 = vrcp.pop %v4570
    %v4710 = vmul.f32 %v4442, %v4709
    %v4711 = vrcp.pop %v4571
    %v4712 = vmul.f32 %v4443, %v4711
    %v4713 = vrcp.pop %v4572
    %v4714 = vmul.f32 %v4444, %v4713
    %v4715 = vrcp.pop %v4573
    %v4716 = vmul.f32 %v4445, %v4715
    %v4717 = vrcp.pop %v4574
    %v4718 = vmul.f32 %v4446, %v4717
    %v4719 = vrcp.pop %v4575
    %v4720 = vmul.f32 %v4447, %v4719
    %v4721 = vrcp.pop %v4576
    %v4722 = vmul.f32 %v4448, %v4721
    %v4723 = vrcp.pop %v4577
    %v4724 = vmul.f32 %v4449, %v4723
    %v4725 = vrcp.pop %v4578
    %v4726 = vmul.f32 %v4450, %v4725
    %v4727 = vrcp.pop %v4579
    %v4728 = vmul.f32 %v4451, %v4727
    %v4729 = vrcp.pop %v4580
    %v4730 = vmul.f32 %v4452, %v4729
    %v4731 = vrcp.pop %v4581
    %v4732 = vmul.f32 %v4453, %v4731
    %v4733 = vrcp.pop %v4582
    %v4734 = vmul.f32 %v4454, %v4733
    %v4735 = vrcp.pop %v4583
    %v4736 = vmul.f32 %v4455, %v4735
    %v4737 = vrcp.pop %v4584
    %v4738 = vmul.f32 %v4456, %v4737
    %v4739 = vrcp.pop %v4585
    %v4740 = vmul.f32 %v4457, %v4739
    %v4741 = vrcp.pop %v4586
    %v4742 = vmul.f32 %v4458, %v4741
    %v4743 = vrcp.pop %v4587
    %v4744 = vmul.f32 %v4459, %v4743
    %v4745 = vrcp.pop %v4588
    %v4746 = vmul.f32 %v4460, %v4745
    %v4747 = vrcp.pop %v4589
    %v4748 = vmul.f32 %v4461, %v4747
    %v4749 = vrcp.pop %v4590
    %v4750 = vmul.f32 %v4462, %v4749
    %v4751 = vrcp.pop %v4591
    %v4752 = vmul.f32 %v4463, %v4751
    %v4753 = vrcp.pop %v4592
    %v4754 = vmul.f32 %v4464, %v4753
    %v4755 = vrcp.pop %v4593
    %v4756 = vmul.f32 %v4465, %v4755
    %v4757 = vrcp.pop %v4594
    %v4758 = vmul.f32 %v4466, %v4757
    %v4759 = vrcp.pop %v4595
    %v4760 = vmul.f32 %v4467, %v4759
    %v4761 = vrcp.pop %v4596
    %v4762 = vmul.f32 %v4468, %v4761
    %v4763 = vrcp.pop %v4597
    %v4764 = vmul.f32 %v4469, %v4763
    %v4765 = vrcp.pop %v4598
    %v4766 = vmul.f32 %v4470, %v4765
    %v4767 = vrcp.pop %v4599
    %v4768 = vmul.f32 %v4471, %v4767
    %v4769 = vrcp.pop %v4600
    %v4770 = vmul.f32 %v4472, %v4769
    %v4771 = vrcp.pop %v4601
    %v4772 = vmul.f32 %v4473, %v4771
    %v4773 = vrcp.pop %v4602
    %v4774 = vmul.f32 %v4474, %v4773
    %v4775 = vrcp.pop %v4603
    %v4776 = vmul.f32 %v4475, %v4775
    %v4777 = vrcp.pop %v4604
    %v4778 = vmul.f32 %v4476, %v4777
    %v4779 = vrcp.pop %v4605
    %v4780 = vmul.f32 %v4477, %v4779
    %v4781 = vrcp.pop %v4606
    %v4782 = vmul.f32 %v4478, %v4781
    %v4783 = vrcp.pop %v4607
    %v4784 = vmul.f32 %v4479, %v4783
    %v4785 = vrcp.pop %v4608
    %v4786 = vmul.f32 %v4480, %v4785
    %v4787 = vrcp.pop %v4609
    %v4788 = vmul.f32 %v4481, %v4787
    %v4789 = vrcp.pop %v4610
    %v4790 = vmul.f32 %v4482, %v4789
    %v4791 = vrcp.pop %v4611
    %v4792 = vmul.f32 %v4483, %v4791
    %v4793 = vrcp.pop %v4612
    %v4794 = vmul.f32 %v4484, %v4793
    %v4795 = vrcp.pop %v4613
    %v4796 = vmul.f32 %v4485, %v4795
    %v4797 = vrcp.pop %v4614
    %v4798 = vmul.f32 %v4486, %v4797
    %v4799 = vrcp.pop %v4615
    %v4800 = vmul.f32 %v4487, %v4799
    %v4801 = vrcp.pop %v4616
    %v4802 = vmul.f32 %v4488, %v4801
    %v4803 = vrcp.pop %v4617
    %v4804 = vmul.f32 %v4489, %v4803
    %v4805 = vrcp.pop %v4618
    %v4806 = vmul.f32 %v4490, %v4805
    %v4807 = vrcp.pop %v4619
    %v4808 = vmul.f32 %v4491, %v4807
    %v4809 = vrcp.pop %v4620
    %v4810 = vmul.f32 %v4492, %v4809
    %v4811 = vrcp.pop %v4621
    %v4812 = vmul.f32 %v4493, %v4811
    %v4813 = vrcp.pop %v4622
    %v4814 = vmul.f32 %v4494, %v4813
    %v4815 = vrcp.pop %v4623
    %v4816 = vmul.f32 %v4495, %v4815
    %v4817 = vrcp.pop %v4624
    %v4818 = vmul.f32 %v4496, %v4817
    %v4819 = vrcp.pop %v4625
    %v4820 = vmul.f32 %v4497, %v4819
    %v4821 = vrcp.pop %v4626
    %v4822 = vmul.f32 %v4498, %v4821
    %v4823 = vrcp.pop %v4627
    %v4824 = vmul.f32 %v4499, %v4823
    %v4825 = vrcp.pop %v4628
    %v4826 = vmul.f32 %v4500, %v4825
    %v4827 = vrcp.pop %v4629
    %v4828 = vmul.f32 %v4501, %v4827
    %v4829 = vrcp.pop %v4630
    %v4830 = vmul.f32 %v4502, %v4829
    %v4831 = vrcp.pop %v4631
    %v4832 = vmul.f32 %v4503, %v4831
    %v4833 = vrcp.pop %v4632
    %v4834 = vmul.f32 %v4504, %v4833
    %v4835 = vrcp.pop %v4633
    %v4836 = vmul.f32 %v4505, %v4835
    %v4837 = vrcp.pop %v4634
    %v4838 = vmul.f32 %v4506, %v4837
    %v4839 = vrcp.pop %v4635
    %v4840 = vmul.f32 %v4507, %v4839
    %v4841 = vrcp.pop %v4636
    %v4842 = vmul.f32 %v4508, %v4841
    %v4843 = vrcp.pop %v4637
    %v4844 = vmul.f32 %v4509, %v4843
    %v4845 = vrcp.pop %v4638
    %v4846 = vmul.f32 %v4510, %v4845
    %v4847 = vrcp.pop %v4639
    %v4848 = vmul.f32 %v4511, %v4847
    %v4849 = vrcp.pop %v4640
    %v4850 = vmul.f32 %v4512, %v4849
    %v4851 = vrcp.pop %v4641
    %v4852 = vmul.f32 %v4513, %v4851
    %v4853 = vrcp.pop %v4642
    %v4854 = vmul.f32 %v4514, %v4853
    %v4855 = vrcp.pop %v4643
    %v4856 = vmul.f32 %v4515, %v4855
    %v4857 = vrcp.pop %v4644
    %v4858 = vmul.f32 %v4516, %v4857
    %v4859 = vrcp.pop %v4645
    %v4860 = vmul.f32 %v4517, %v4859
    %v4861 = vrcp.pop %v4646
    %v4862 = vmul.f32 %v4518, %v4861
    %v4863 = vrcp.pop %v4647
    %v4864 = vmul.f32 %v4519, %v4863
    %v4865 = vrcp.pop %v4648
    %v4866 = vmul.f32 %v4520, %v4865
    %v4867 = vrcp.pop %v4649
    %v4868 = vmul.f32 %v4521, %v4867
    %v4869 = vrcp.pop %v4650
    %v4870 = vmul.f32 %v4522, %v4869
    %v4871 = vrcp.pop %v4651
    %v4872 = vmul.f32 %v4523, %v4871
    %v4873 = vrcp.pop %v4652
    %v4874 = vmul.f32 %v4524, %v4873
    %v4875 = vrcp.pop %v4653
    %v4876 = vmul.f32 %v4525, %v4875
    %v4877 = vrcp.pop %v4654
    %v4878 = vmul.f32 %v4526, %v4877
    %v4879 = vrcp.pop %v4655
    %v4880 = vmul.f32 %v4527, %v4879
    %v4881 = vrcp.pop %v4656
    %v4882 = vmul.f32 %v4528, %v4881
    %v4883 = vrcp.pop %v4657
    %v4884 = vmul.f32 %v4529, %v4883
    %v4885 = vrcp.pop %v4658
    %v4886 = vmul.f32 %v4530, %v4885
    %v4887 = vrcp.pop %v4659
    %v4888 = vmul.f32 %v4531, %v4887
    %v4889 = vrcp.pop %v4660
    %v4890 = vmul.f32 %v4532, %v4889
    %v4891 = vrcp.pop %v4661
    %v4892 = vmul.f32 %v4533, %v4891
    %v4893 = vrcp.pop %v4662
    %v4894 = vmul.f32 %v4534, %v4893
    %v4895 = vrcp.pop %v4663
    %v4896 = vmul.f32 %v4535, %v4895
    %v4897 = vrcp.pop %v4664
    %v4898 = vmul.f32 %v4536, %v4897
    %v4899 = vrcp.pop %v4665
    %v4900 = vmul.f32 %v4537, %v4899
    %v4901 = vrcp.pop %v4666
    %v4902 = vmul.f32 %v4538, %v4901
    %v4903 = vrcp.pop %v4667
    %v4904 = vmul.f32 %v4539, %v4903
    %v4905 = vrcp.pop %v4668
    %v4906 = vmul.f32 %v4540, %v4905
    %v4907 = vrcp.pop %v4669
    %v4908 = vmul.f32 %v4541, %v4907
    %v4909 = vrcp.pop %v4670
    %v4910 = vmul.f32 %v4542, %v4909
    %v4911 = vrcp.pop %v4671
    %v4912 = vmul.f32 %v4543, %v4911
    %v4913 = vrcp.pop %v4672
    %v4914 = vmul.f32 %v4544, %v4913
    %v4915 = vrcp.pop %v4673
    %v4916 = vmul.f32 %v4545, %v4915
    %v4917 = vrcp.pop %v4674
    %v4918 = vmul.f32 %v4546, %v4917
    %v4919 = vrcp.pop %v4675
    %v4920 = vmul.f32 %v4547, %v4919
    %v4921 = vrcp.pop %v4676
    %v4922 = vmul.f32 %v4548, %v4921
    %v4923 = vrcp.pop %v4677
    %v4924 = vmul.f32 %v4549, %v4923
    %v4925 = vrcp.pop %v4678
    %v4926 = vmul.f32 %v4550, %v4925
    %v4927 = vrcp.pop %v4679
    %v4928 = vmul.f32 %v4551, %v4927
    %v4929 = vrcp.pop %v4680
    %v4930 = vmul.f32 %v4552, %v4929
    %v4931 = vrcp.pop %v4681
    %v4932 = vmul.f32 %v4553, %v4931
    %v4933 = vrcp.pop %v4682
    %v4934 = vmul.f32 %v4554, %v4933
    %v4935 = vrcp.pop %v4683
    %v4936 = vmul.f32 %v4555, %v4935
    %v4937 = vrcp.pop %v4684
    %v4938 = vmul.f32 %v4556, %v4937
    %v4939 = vrcp.pop %v4685
    %v4940 = vmul.f32 %v4557, %v4939
    %v4941 = vrcp.pop %v4686
    %v4942 = vmul.f32 %v4558, %v4941
    %v4943 = vlog2.pop %v4688
    %v4944 = vmul.f32 %v4943, 0.6931472
    %v4945 = vlog2.pop %v4690
    %v4946 = vmul.f32 %v4945, 0.6931472
    %v4947 = vlog2.pop %v4692
    %v4948 = vmul.f32 %v4947, 0.6931472
    %v4949 = vlog2.pop %v4694
    %v4950 = vmul.f32 %v4949, 0.6931472
    %v4951 = vlog2.pop %v4696
    %v4952 = vmul.f32 %v4951, 0.6931472
    %v4953 = vlog2.pop %v4698
    %v4954 = vmul.f32 %v4953, 0.6931472
    %v4955 = vlog2.pop %v4700
    %v4956 = vmul.f32 %v4955, 0.6931472
    %v4957 = vlog2.pop %v4702
    %v4958 = vmul.f32 %v4957, 0.6931472
    %v4959 = vlog2.pop %v4704
    %v4960 = vmul.f32 %v4959, 0.6931472
    %v4961 = vlog2.pop %v4706
    %v4962 = vmul.f32 %v4961, 0.6931472
    %v4963 = vlog2.pop %v4708
    %v4964 = vmul.f32 %v4963, 0.6931472
    %v4965 = vlog2.pop %v4710
    %v4966 = vmul.f32 %v4965, 0.6931472
    %v4967 = vlog2.pop %v4712
    %v4968 = vmul.f32 %v4967, 0.6931472
    %v4969 = vlog2.pop %v4714
    %v4970 = vmul.f32 %v4969, 0.6931472
    %v4971 = vlog2.pop %v4716
    %v4972 = vmul.f32 %v4971, 0.6931472
    %v4973 = vlog2.pop %v4718
    %v4974 = vmul.f32 %v4973, 0.6931472
    %v4975 = vlog2.pop %v4720
    %v4976 = vmul.f32 %v4975, 0.6931472
    %v4977 = vlog2.pop %v4722
    %v4978 = vmul.f32 %v4977, 0.6931472
    %v4979 = vlog2.pop %v4724
    %v4980 = vmul.f32 %v4979, 0.6931472
    %v4981 = vlog2.pop %v4726
    %v4982 = vmul.f32 %v4981, 0.6931472
    %v4983 = vlog2.pop %v4728
    %v4984 = vmul.f32 %v4983, 0.6931472
    %v4985 = vlog2.pop %v4730
    %v4986 = vmul.f32 %v4985, 0.6931472
    %v4987 = vlog2.pop %v4732
    %v4988 = vmul.f32 %v4987, 0.6931472
    %v4989 = vlog2.pop %v4734
    %v4990 = vmul.f32 %v4989, 0.6931472
    %v4991 = vlog2.pop %v4736
    %v4992 = vmul.f32 %v4991, 0.6931472
    %v4993 = vlog2.pop %v4738
    %v4994 = vmul.f32 %v4993, 0.6931472
    %v4995 = vlog2.pop %v4740
    %v4996 = vmul.f32 %v4995, 0.6931472
    %v4997 = vlog2.pop %v4742
    %v4998 = vmul.f32 %v4997, 0.6931472
    %v4999 = vlog2.pop %v4744
    %v5000 = vmul.f32 %v4999, 0.6931472
    %v5001 = vlog2.pop %v4746
    %v5002 = vmul.f32 %v5001, 0.6931472
    %v5003 = vlog2.pop %v4748
    %v5004 = vmul.f32 %v5003, 0.6931472
    %v5005 = vlog2.pop %v4750
    %v5006 = vmul.f32 %v5005, 0.6931472
    %v5007 = vlog2.pop %v4752
    %v5008 = vmul.f32 %v5007, 0.6931472
    %v5009 = vlog2.pop %v4754
    %v5010 = vmul.f32 %v5009, 0.6931472
    %v5011 = vlog2.pop %v4756
    %v5012 = vmul.f32 %v5011, 0.6931472
    %v5013 = vlog2.pop %v4758
    %v5014 = vmul.f32 %v5013, 0.6931472
    %v5015 = vlog2.pop %v4760
    %v5016 = vmul.f32 %v5015, 0.6931472
    %v5017 = vlog2.pop %v4762
    %v5018 = vmul.f32 %v5017, 0.6931472
    %v5019 = vlog2.pop %v4764
    %v5020 = vmul.f32 %v5019, 0.6931472
    %v5021 = vlog2.pop %v4766
    %v5022 = vmul.f32 %v5021, 0.6931472
    %v5023 = vlog2.pop %v4768
    %v5024 = vmul.f32 %v5023, 0.6931472
    %v5025 = vlog2.pop %v4770
    %v5026 = vmul.f32 %v5025, 0.6931472
    %v5027 = vlog2.pop %v4772
    %v5028 = vmul.f32 %v5027, 0.6931472
    %v5029 = vlog2.pop %v4774
    %v5030 = vmul.f32 %v5029, 0.6931472
    %v5031 = vlog2.pop %v4776
    %v5032 = vmul.f32 %v5031, 0.6931472
    %v5033 = vlog2.pop %v4778
    %v5034 = vmul.f32 %v5033, 0.6931472
    %v5035 = vlog2.pop %v4780
    %v5036 = vmul.f32 %v5035, 0.6931472
    %v5037 = vlog2.pop %v4782
    %v5038 = vmul.f32 %v5037, 0.6931472
    %v5039 = vlog2.pop %v4784
    %v5040 = vmul.f32 %v5039, 0.6931472
    %v5041 = vlog2.pop %v4786
    %v5042 = vmul.f32 %v5041, 0.6931472
    %v5043 = vlog2.pop %v4788
    %v5044 = vmul.f32 %v5043, 0.6931472
    %v5045 = vlog2.pop %v4790
    %v5046 = vmul.f32 %v5045, 0.6931472
    %v5047 = vlog2.pop %v4792
    %v5048 = vmul.f32 %v5047, 0.6931472
    %v5049 = vlog2.pop %v4794
    %v5050 = vmul.f32 %v5049, 0.6931472
    %v5051 = vlog2.pop %v4796
    %v5052 = vmul.f32 %v5051, 0.6931472
    %v5053 = vlog2.pop %v4798
    %v5054 = vmul.f32 %v5053, 0.6931472
    %v5055 = vlog2.pop %v4800
    %v5056 = vmul.f32 %v5055, 0.6931472
    %v5057 = vlog2.pop %v4802
    %v5058 = vmul.f32 %v5057, 0.6931472
    %v5059 = vlog2.pop %v4804
    %v5060 = vmul.f32 %v5059, 0.6931472
    %v5061 = vlog2.pop %v4806
    %v5062 = vmul.f32 %v5061, 0.6931472
    %v5063 = vlog2.pop %v4808
    %v5064 = vmul.f32 %v5063, 0.6931472
    %v5065 = vlog2.pop %v4810
    %v5066 = vmul.f32 %v5065, 0.6931472
    %v5067 = vlog2.pop %v4812
    %v5068 = vmul.f32 %v5067, 0.6931472
    %v5069 = vlog2.pop %v4814
    %v5070 = vmul.f32 %v5069, 0.6931472
    %v5071 = vlog2.pop %v4816
    %v5072 = vmul.f32 %v5071, 0.6931472
    %v5073 = vlog2.pop %v4818
    %v5074 = vmul.f32 %v5073, 0.6931472
    %v5075 = vlog2.pop %v4820
    %v5076 = vmul.f32 %v5075, 0.6931472
    %v5077 = vlog2.pop %v4822
    %v5078 = vmul.f32 %v5077, 0.6931472
    %v5079 = vlog2.pop %v4824
    %v5080 = vmul.f32 %v5079, 0.6931472
    %v5081 = vlog2.pop %v4826
    %v5082 = vmul.f32 %v5081, 0.6931472
    %v5083 = vlog2.pop %v4828
    %v5084 = vmul.f32 %v5083, 0.6931472
    %v5085 = vlog2.pop %v4830
    %v5086 = vmul.f32 %v5085, 0.6931472
    %v5087 = vlog2.pop %v4832
    %v5088 = vmul.f32 %v5087, 0.6931472
    %v5089 = vlog2.pop %v4834
    %v5090 = vmul.f32 %v5089, 0.6931472
    %v5091 = vlog2.pop %v4836
    %v5092 = vmul.f32 %v5091, 0.6931472
    %v5093 = vlog2.pop %v4838
    %v5094 = vmul.f32 %v5093, 0.6931472
    %v5095 = vlog2.pop %v4840
    %v5096 = vmul.f32 %v5095, 0.6931472
    %v5097 = vlog2.pop %v4842
    %v5098 = vmul.f32 %v5097, 0.6931472
    %v5099 = vlog2.pop %v4844
    %v5100 = vmul.f32 %v5099, 0.6931472
    %v5101 = vlog2.pop %v4846
    %v5102 = vmul.f32 %v5101, 0.6931472
    %v5103 = vlog2.pop %v4848
    %v5104 = vmul.f32 %v5103, 0.6931472
    %v5105 = vlog2.pop %v4850
    %v5106 = vmul.f32 %v5105, 0.6931472
    %v5107 = vlog2.pop %v4852
    %v5108 = vmul.f32 %v5107, 0.6931472
    %v5109 = vlog2.pop %v4854
    %v5110 = vmul.f32 %v5109, 0.6931472
    %v5111 = vlog2.pop %v4856
    %v5112 = vmul.f32 %v5111, 0.6931472
    %v5113 = vlog2.pop %v4858
    %v5114 = vmul.f32 %v5113, 0.6931472
    %v5115 = vlog2.pop %v4860
    %v5116 = vmul.f32 %v5115, 0.6931472
    %v5117 = vlog2.pop %v4862
    %v5118 = vmul.f32 %v5117, 0.6931472
    %v5119 = vlog2.pop %v4864
    %v5120 = vmul.f32 %v5119, 0.6931472
    %v5121 = vlog2.pop %v4866
    %v5122 = vmul.f32 %v5121, 0.6931472
    %v5123 = vlog2.pop %v4868
    %v5124 = vmul.f32 %v5123, 0.6931472
    %v5125 = vlog2.pop %v4870
    %v5126 = vmul.f32 %v5125, 0.6931472
    %v5127 = vlog2.pop %v4872
    %v5128 = vmul.f32 %v5127, 0.6931472
    %v5129 = vlog2.pop %v4874
    %v5130 = vmul.f32 %v5129, 0.6931472
    %v5131 = vlog2.pop %v4876
    %v5132 = vmul.f32 %v5131, 0.6931472
    %v5133 = vlog2.pop %v4878
    %v5134 = vmul.f32 %v5133, 0.6931472
    %v5135 = vlog2.pop %v4880
    %v5136 = vmul.f32 %v5135, 0.6931472
    %v5137 = vlog2.pop %v4882
    %v5138 = vmul.f32 %v5137, 0.6931472
    %v5139 = vlog2.pop %v4884
    %v5140 = vmul.f32 %v5139, 0.6931472
    %v5141 = vlog2.pop %v4886
    %v5142 = vmul.f32 %v5141, 0.6931472
    %v5143 = vlog2.pop %v4888
    %v5144 = vmul.f32 %v5143, 0.6931472
    %v5145 = vlog2.pop %v4890
    %v5146 = vmul.f32 %v5145, 0.6931472
    %v5147 = vlog2.pop %v4892
    %v5148 = vmul.f32 %v5147, 0.6931472
    %v5149 = vlog2.pop %v4894
    %v5150 = vmul.f32 %v5149, 0.6931472
    %v5151 = vlog2.pop %v4896
    %v5152 = vmul.f32 %v5151, 0.6931472
    %v5153 = vlog2.pop %v4898
    %v5154 = vmul.f32 %v5153, 0.6931472
    %v5155 = vlog2.pop %v4900
    %v5156 = vmul.f32 %v5155, 0.6931472
    %v5157 = vlog2.pop %v4902
    %v5158 = vmul.f32 %v5157, 0.6931472
    %v5159 = vlog2.pop %v4904
    %v5160 = vmul.f32 %v5159, 0.6931472
    %v5161 = vlog2.pop %v4906
    %v5162 = vmul.f32 %v5161, 0.6931472
    %v5163 = vlog2.pop %v4908
    %v5164 = vmul.f32 %v5163, 0.6931472
    %v5165 = vlog2.pop %v4910
    %v5166 = vmul.f32 %v5165, 0.6931472
    %v5167 = vlog2.pop %v4912
    %v5168 = vmul.f32 %v5167, 0.6931472
    %v5169 = vlog2.pop %v4914
    %v5170 = vmul.f32 %v5169, 0.6931472
    %v5171 = vlog2.pop %v4916
    %v5172 = vmul.f32 %v5171, 0.6931472
    %v5173 = vlog2.pop %v4918
    %v5174 = vmul.f32 %v5173, 0.6931472
    %v5175 = vlog2.pop %v4920
    %v5176 = vmul.f32 %v5175, 0.6931472
    %v5177 = vlog2.pop %v4922
    %v5178 = vmul.f32 %v5177, 0.6931472
    %v5179 = vlog2.pop %v4924
    %v5180 = vmul.f32 %v5179, 0.6931472
    %v5181 = vlog2.pop %v4926
    %v5182 = vmul.f32 %v5181, 0.6931472
    %v5183 = vlog2.pop %v4928
    %v5184 = vmul.f32 %v5183, 0.6931472
    %v5185 = vlog2.pop %v4930
    %v5186 = vmul.f32 %v5185, 0.6931472
    %v5187 = vlog2.pop %v4932
    %v5188 = vmul.f32 %v5187, 0.6931472
    %v5189 = vlog2.pop %v4934
    %v5190 = vmul.f32 %v5189, 0.6931472
    %v5191 = vlog2.pop %v4936
    %v5192 = vmul.f32 %v5191, 0.6931472
    %v5193 = vlog2.pop %v4938
    %v5194 = vmul.f32 %v5193, 0.6931472
    %v5195 = vlog2.pop %v4940
    %v5196 = vmul.f32 %v5195, 0.6931472
    %v5197 = vlog2.pop %v4942
    %v5198 = vmul.f32 %v5197, 0.6931472
    %v5199 = vmul.f32 %v4944, 0.5
    %v5200 = vmul.f32 %v4946, 0.5
    %v5201 = vmul.f32 %v4948, 0.5
    %v5202 = vmul.f32 %v4950, 0.5
    %v5203 = vmul.f32 %v4952, 0.5
    %v5204 = vmul.f32 %v4954, 0.5
    %v5205 = vmul.f32 %v4956, 0.5
    %v5206 = vmul.f32 %v4958, 0.5
    %v5207 = vmul.f32 %v4960, 0.5
    %v5208 = vmul.f32 %v4962, 0.5
    %v5209 = vmul.f32 %v4964, 0.5
    %v5210 = vmul.f32 %v4966, 0.5
    %v5211 = vmul.f32 %v4968, 0.5
    %v5212 = vmul.f32 %v4970, 0.5
    %v5213 = vmul.f32 %v4972, 0.5
    %v5214 = vmul.f32 %v4974, 0.5
    %v5215 = vmul.f32 %v4976, 0.5
    %v5216 = vmul.f32 %v4978, 0.5
    %v5217 = vmul.f32 %v4980, 0.5
    %v5218 = vmul.f32 %v4982, 0.5
    %v5219 = vmul.f32 %v4984, 0.5
    %v5220 = vmul.f32 %v4986, 0.5
    %v5221 = vmul.f32 %v4988, 0.5
    %v5222 = vmul.f32 %v4990, 0.5
    %v5223 = vmul.f32 %v4992, 0.5
    %v5224 = vmul.f32 %v4994, 0.5
    %v5225 = vmul.f32 %v4996, 0.5
    %v5226 = vmul.f32 %v4998, 0.5
    %v5227 = vmul.f32 %v5000, 0.5
    %v5228 = vmul.f32 %v5002, 0.5
    %v5229 = vmul.f32 %v5004, 0.5
    %v5230 = vmul.f32 %v5006, 0.5
    %v5231 = vmul.f32 %v5008, 0.5
    %v5232 = vmul.f32 %v5010, 0.5
    %v5233 = vmul.f32 %v5012, 0.5
    %v5234 = vmul.f32 %v5014, 0.5
    %v5235 = vmul.f32 %v5016, 0.5
    %v5236 = vmul.f32 %v5018, 0.5
    %v5237 = vmul.f32 %v5020, 0.5
    %v5238 = vmul.f32 %v5022, 0.5
    %v5239 = vmul.f32 %v5024, 0.5
    %v5240 = vmul.f32 %v5026, 0.5
    %v5241 = vmul.f32 %v5028, 0.5
    %v5242 = vmul.f32 %v5030, 0.5
    %v5243 = vmul.f32 %v5032, 0.5
    %v5244 = vmul.f32 %v5034, 0.5
    %v5245 = vmul.f32 %v5036, 0.5
    %v5246 = vmul.f32 %v5038, 0.5
    %v5247 = vmul.f32 %v5040, 0.5
    %v5248 = vmul.f32 %v5042, 0.5
    %v5249 = vmul.f32 %v5044, 0.5
    %v5250 = vmul.f32 %v5046, 0.5
    %v5251 = vmul.f32 %v5048, 0.5
    %v5252 = vmul.f32 %v5050, 0.5
    %v5253 = vmul.f32 %v5052, 0.5
    %v5254 = vmul.f32 %v5054, 0.5
    %v5255 = vmul.f32 %v5056, 0.5
    %v5256 = vmul.f32 %v5058, 0.5
    %v5257 = vmul.f32 %v5060, 0.5
    %v5258 = vmul.f32 %v5062, 0.5
    %v5259 = vmul.f32 %v5064, 0.5
    %v5260 = vmul.f32 %v5066, 0.5
    %v5261 = vmul.f32 %v5068, 0.5
    %v5262 = vmul.f32 %v5070, 0.5
    %v5263 = vmul.f32 %v5072, 0.5
    %v5264 = vmul.f32 %v5074, 0.5
    %v5265 = vmul.f32 %v5076, 0.5
    %v5266 = vmul.f32 %v5078, 0.5
    %v5267 = vmul.f32 %v5080, 0.5
    %v5268 = vmul.f32 %v5082, 0.5
    %v5269 = vmul.f32 %v5084, 0.5
    %v5270 = vmul.f32 %v5086, 0.5
    %v5271 = vmul.f32 %v5088, 0.5
    %v5272 = vmul.f32 %v5090, 0.5
    %v5273 = vmul.f32 %v5092, 0.5
    %v5274 = vmul.f32 %v5094, 0.5
    %v5275 = vmul.f32 %v5096, 0.5
    %v5276 = vmul.f32 %v5098, 0.5
    %v5277 = vmul.f32 %v5100, 0.5
    %v5278 = vmul.f32 %v5102, 0.5
    %v5279 = vmul.f32 %v5104, 0.5
    %v5280 = vmul.f32 %v5106, 0.5
    %v5281 = vmul.f32 %v5108, 0.5
    %v5282 = vmul.f32 %v5110, 0.5
    %v5283 = vmul.f32 %v5112, 0.5
    %v5284 = vmul.f32 %v5114, 0.5
    %v5285 = vmul.f32 %v5116, 0.5
    %v5286 = vmul.f32 %v5118, 0.5
    %v5287 = vmul.f32 %v5120, 0.5
    %v5288 = vmul.f32 %v5122, 0.5
    %v5289 = vmul.f32 %v5124, 0.5
    %v5290 = vmul.f32 %v5126, 0.5
    %v5291 = vmul.f32 %v5128, 0.5
    %v5292 = vmul.f32 %v5130, 0.5
    %v5293 = vmul.f32 %v5132, 0.5
    %v5294 = vmul.f32 %v5134, 0.5
    %v5295 = vmul.f32 %v5136, 0.5
    %v5296 = vmul.f32 %v5138, 0.5
    %v5297 = vmul.f32 %v5140, 0.5
    %v5298 = vmul.f32 %v5142, 0.5
    %v5299 = vmul.f32 %v5144, 0.5
    %v5300 = vmul.f32 %v5146, 0.5
    %v5301 = vmul.f32 %v5148, 0.5
    %v5302 = vmul.f32 %v5150, 0.5
    %v5303 = vmul.f32 %v5152, 0.5
    %v5304 = vmul.f32 %v5154, 0.5
    %v5305 = vmul.f32 %v5156, 0.5
    %v5306 = vmul.f32 %v5158, 0.5
    %v5307 = vmul.f32 %v5160, 0.5
    %v5308 = vmul.f32 %v5162, 0.5
    %v5309 = vmul.f32 %v5164, 0.5
    %v5310 = vmul.f32 %v5166, 0.5
    %v5311 = vmul.f32 %v5168, 0.5
    %v5312 = vmul.f32 %v5170, 0.5
    %v5313 = vmul.f32 %v5172, 0.5
    %v5314 = vmul.f32 %v5174, 0.5
    %v5315 = vmul.f32 %v5176, 0.5
    %v5316 = vmul.f32 %v5178, 0.5
    %v5317 = vmul.f32 %v5180, 0.5
    %v5318 = vmul.f32 %v5182, 0.5
    %v5319 = vmul.f32 %v5184, 0.5
    %v5320 = vmul.f32 %v5186, 0.5
    %v5321 = vmul.f32 %v5188, 0.5
    %v5322 = vmul.f32 %v5190, 0.5
    %v5323 = vmul.f32 %v5192, 0.5
    %v5324 = vmul.f32 %v5194, 0.5
    %v5325 = vmul.f32 %v5196, 0.5
    %v5326 = vmul.f32 %v5198, 0.5
    %v5327 = vmul.f32 %v4047, %v5199
    %v5328 = vmul.f32 %v4048, %v5200
    %v5329 = vmul.f32 %v4049, %v5201
    %v5330 = vmul.f32 %v4050, %v5202
    %v5331 = vmul.f32 %v4051, %v5203
    %v5332 = vmul.f32 %v4052, %v5204
    %v5333 = vmul.f32 %v4053, %v5205
    %v5334 = vmul.f32 %v4054, %v5206
    %v5335 = vmul.f32 %v4055, %v5207
    %v5336 = vmul.f32 %v4056, %v5208
    %v5337 = vmul.f32 %v4057, %v5209
    %v5338 = vmul.f32 %v4058, %v5210
    %v5339 = vmul.f32 %v4059, %v5211
    %v5340 = vmul.f32 %v4060, %v5212
    %v5341 = vmul.f32 %v4061, %v5213
    %v5342 = vmul.f32 %v4062, %v5214
    %v5343 = vmul.f32 %v4063, %v5215
    %v5344 = vmul.f32 %v4064, %v5216
    %v5345 = vmul.f32 %v4065, %v5217
    %v5346 = vmul.f32 %v4066, %v5218
    %v5347 = vmul.f32 %v4067, %v5219
    %v5348 = vmul.f32 %v4068, %v5220
    %v5349 = vmul.f32 %v4069, %v5221
    %v5350 = vmul.f32 %v4070, %v5222
    %v5351 = vmul.f32 %v4071, %v5223
    %v5352 = vmul.f32 %v4072, %v5224
    %v5353 = vmul.f32 %v4073, %v5225
    %v5354 = vmul.f32 %v4074, %v5226
    %v5355 = vmul.f32 %v4075, %v5227
    %v5356 = vmul.f32 %v4076, %v5228
    %v5357 = vmul.f32 %v4077, %v5229
    %v5358 = vmul.f32 %v4078, %v5230
    %v5359 = vmul.f32 %v4079, %v5231
    %v5360 = vmul.f32 %v4080, %v5232
    %v5361 = vmul.f32 %v4081, %v5233
    %v5362 = vmul.f32 %v4082, %v5234
    %v5363 = vmul.f32 %v4083, %v5235
    %v5364 = vmul.f32 %v4084, %v5236
    %v5365 = vmul.f32 %v4085, %v5237
    %v5366 = vmul.f32 %v4086, %v5238
    %v5367 = vmul.f32 %v4087, %v5239
    %v5368 = vmul.f32 %v4088, %v5240
    %v5369 = vmul.f32 %v4089, %v5241
    %v5370 = vmul.f32 %v4090, %v5242
    %v5371 = vmul.f32 %v4091, %v5243
    %v5372 = vmul.f32 %v4092, %v5244
    %v5373 = vmul.f32 %v4093, %v5245
    %v5374 = vmul.f32 %v4094, %v5246
    %v5375 = vmul.f32 %v4095, %v5247
    %v5376 = vmul.f32 %v4096, %v5248
    %v5377 = vmul.f32 %v4097, %v5249
    %v5378 = vmul.f32 %v4098, %v5250
    %v5379 = vmul.f32 %v4099, %v5251
    %v5380 = vmul.f32 %v4100, %v5252
    %v5381 = vmul.f32 %v4101, %v5253
    %v5382 = vmul.f32 %v4102, %v5254
    %v5383 = vmul.f32 %v4103, %v5255
    %v5384 = vmul.f32 %v4104, %v5256
    %v5385 = vmul.f32 %v4105, %v5257
    %v5386 = vmul.f32 %v4106, %v5258
    %v5387 = vmul.f32 %v4107, %v5259
    %v5388 = vmul.f32 %v4108, %v5260
    %v5389 = vmul.f32 %v4109, %v5261
    %v5390 = vmul.f32 %v4110, %v5262
    %v5391 = vmul.f32 %v4111, %v5263
    %v5392 = vmul.f32 %v4112, %v5264
    %v5393 = vmul.f32 %v4113, %v5265
    %v5394 = vmul.f32 %v4114, %v5266
    %v5395 = vmul.f32 %v4115, %v5267
    %v5396 = vmul.f32 %v4116, %v5268
    %v5397 = vmul.f32 %v4117, %v5269
    %v5398 = vmul.f32 %v4118, %v5270
    %v5399 = vmul.f32 %v4119, %v5271
    %v5400 = vmul.f32 %v4120, %v5272
    %v5401 = vmul.f32 %v4121, %v5273
    %v5402 = vmul.f32 %v4122, %v5274
    %v5403 = vmul.f32 %v4123, %v5275
    %v5404 = vmul.f32 %v4124, %v5276
    %v5405 = vmul.f32 %v4125, %v5277
    %v5406 = vmul.f32 %v4126, %v5278
    %v5407 = vmul.f32 %v4127, %v5279
    %v5408 = vmul.f32 %v4128, %v5280
    %v5409 = vmul.f32 %v4129, %v5281
    %v5410 = vmul.f32 %v4130, %v5282
    %v5411 = vmul.f32 %v4131, %v5283
    %v5412 = vmul.f32 %v4132, %v5284
    %v5413 = vmul.f32 %v4133, %v5285
    %v5414 = vmul.f32 %v4134, %v5286
    %v5415 = vmul.f32 %v4135, %v5287
    %v5416 = vmul.f32 %v4136, %v5288
    %v5417 = vmul.f32 %v4137, %v5289
    %v5418 = vmul.f32 %v4138, %v5290
    %v5419 = vmul.f32 %v4139, %v5291
    %v5420 = vmul.f32 %v4140, %v5292
    %v5421 = vmul.f32 %v4141, %v5293
    %v5422 = vmul.f32 %v4142, %v5294
    %v5423 = vmul.f32 %v4143, %v5295
    %v5424 = vmul.f32 %v4144, %v5296
    %v5425 = vmul.f32 %v4145, %v5297
    %v5426 = vmul.f32 %v4146, %v5298
    %v5427 = vmul.f32 %v4147, %v5299
    %v5428 = vmul.f32 %v4148, %v5300
    %v5429 = vmul.f32 %v4149, %v5301
    %v5430 = vmul.f32 %v4150, %v5302
    %v5431 = vmul.f32 %v4151, %v5303
    %v5432 = vmul.f32 %v4152, %v5304
    %v5433 = vmul.f32 %v4153, %v5305
    %v5434 = vmul.f32 %v4154, %v5306
    %v5435 = vmul.f32 %v4155, %v5307
    %v5436 = vmul.f32 %v4156, %v5308
    %v5437 = vmul.f32 %v4157, %v5309
    %v5438 = vmul.f32 %v4158, %v5310
    %v5439 = vmul.f32 %v4159, %v5311
    %v5440 = vmul.f32 %v4160, %v5312
    %v5441 = vmul.f32 %v4161, %v5313
    %v5442 = vmul.f32 %v4162, %v5314
    %v5443 = vmul.f32 %v4163, %v5315
    %v5444 = vmul.f32 %v4164, %v5316
    %v5445 = vmul.f32 %v4165, %v5317
    %v5446 = vmul.f32 %v4166, %v5318
    %v5447 = vmul.f32 %v4167, %v5319
    %v5448 = vmul.f32 %v4168, %v5320
    %v5449 = vmul.f32 %v4169, %v5321
    %v5450 = vmul.f32 %v4170, %v5322
    %v5451 = vmul.f32 %v4171, %v5323
    %v5452 = vmul.f32 %v4172, %v5324
    %v5453 = vmul.f32 %v4173, %v5325
    %v5454 = vmul.f32 %v4174, %v5326
    %v5455 = vtanh.pop %v5327
    %v5456 = vtanh.pop %v5328
    %v5457 = vtanh.pop %v5329
    %v5458 = vtanh.pop %v5330
    %v5459 = vtanh.pop %v5331
    %v5460 = vtanh.pop %v5332
    %v5461 = vtanh.pop %v5333
    %v5462 = vtanh.pop %v5334
    %v5463 = vtanh.pop %v5335
    %v5464 = vtanh.pop %v5336
    %v5465 = vtanh.pop %v5337
    %v5466 = vtanh.pop %v5338
    %v5467 = vtanh.pop %v5339
    %v5468 = vtanh.pop %v5340
    %v5469 = vtanh.pop %v5341
    %v5470 = vtanh.pop %v5342
    %v5471 = vtanh.pop %v5343
    %v5472 = vtanh.pop %v5344
    %v5473 = vtanh.pop %v5345
    %v5474 = vtanh.pop %v5346
    %v5475 = vtanh.pop %v5347
    %v5476 = vtanh.pop %v5348
    %v5477 = vtanh.pop %v5349
    %v5478 = vtanh.pop %v5350
    %v5479 = vtanh.pop %v5351
    %v5480 = vtanh.pop %v5352
    %v5481 = vtanh.pop %v5353
    %v5482 = vtanh.pop %v5354
    %v5483 = vtanh.pop %v5355
    %v5484 = vtanh.pop %v5356
    %v5485 = vtanh.pop %v5357
    %v5486 = vtanh.pop %v5358
    %v5487 = vtanh.pop %v5359
    %v5488 = vtanh.pop %v5360
    %v5489 = vtanh.pop %v5361
    %v5490 = vtanh.pop %v5362
    %v5491 = vtanh.pop %v5363
    %v5492 = vtanh.pop %v5364
    %v5493 = vtanh.pop %v5365
    %v5494 = vtanh.pop %v5366
    %v5495 = vtanh.pop %v5367
    %v5496 = vtanh.pop %v5368
    %v5497 = vtanh.pop %v5369
    %v5498 = vtanh.pop %v5370
    %v5499 = vtanh.pop %v5371
    %v5500 = vtanh.pop %v5372
    %v5501 = vtanh.pop %v5373
    %v5502 = vtanh.pop %v5374
    %v5503 = vtanh.pop %v5375
    %v5504 = vtanh.pop %v5376
    %v5505 = vtanh.pop %v5377
    %v5506 = vtanh.pop %v5378
    %v5507 = vtanh.pop %v5379
    %v5508 = vtanh.pop %v5380
    %v5509 = vtanh.pop %v5381
    %v5510 = vtanh.pop %v5382
    %v5511 = vtanh.pop %v5383
    %v5512 = vtanh.pop %v5384
    %v5513 = vtanh.pop %v5385
    %v5514 = vtanh.pop %v5386
    %v5515 = vtanh.pop %v5387
    %v5516 = vtanh.pop %v5388
    %v5517 = vtanh.pop %v5389
    %v5518 = vtanh.pop %v5390
    %v5519 = vtanh.pop %v5391
    %v5520 = vtanh.pop %v5392
    %v5521 = vtanh.pop %v5393
    %v5522 = vtanh.pop %v5394
    %v5523 = vtanh.pop %v5395
    %v5524 = vtanh.pop %v5396
    %v5525 = vtanh.pop %v5397
    %v5526 = vtanh.pop %v5398
    %v5527 = vtanh.pop %v5399
    %v5528 = vtanh.pop %v5400
    %v5529 = vtanh.pop %v5401
    %v5530 = vtanh.pop %v5402
    %v5531 = vtanh.pop %v5403
    %v5532 = vtanh.pop %v5404
    %v5533 = vtanh.pop %v5405
    %v5534 = vtanh.pop %v5406
    %v5535 = vtanh.pop %v5407
    %v5536 = vtanh.pop %v5408
    %v5537 = vtanh.pop %v5409
    %v5538 = vtanh.pop %v5410
    %v5539 = vtanh.pop %v5411
    %v5540 = vtanh.pop %v5412
    %v5541 = vtanh.pop %v5413
    %v5542 = vtanh.pop %v5414
    %v5543 = vtanh.pop %v5415
    %v5544 = vtanh.pop %v5416
    %v5545 = vtanh.pop %v5417
    %v5546 = vtanh.pop %v5418
    %v5547 = vtanh.pop %v5419
    %v5548 = vtanh.pop %v5420
    %v5549 = vtanh.pop %v5421
    %v5550 = vtanh.pop %v5422
    %v5551 = vtanh.pop %v5423
    %v5552 = vtanh.pop %v5424
    %v5553 = vtanh.pop %v5425
    %v5554 = vtanh.pop %v5426
    %v5555 = vtanh.pop %v5427
    %v5556 = vtanh.pop %v5428
    %v5557 = vtanh.pop %v5429
    %v5558 = vtanh.pop %v5430
    %v5559 = vtanh.pop %v5431
    %v5560 = vtanh.pop %v5432
    %v5561 = vtanh.pop %v5433
    %v5562 = vtanh.pop %v5434
    %v5563 = vtanh.pop %v5435
    %v5564 = vtanh.pop %v5436
    %v5565 = vtanh.pop %v5437
    %v5566 = vtanh.pop %v5438
    %v5567 = vtanh.pop %v5439
    %v5568 = vtanh.pop %v5440
    %v5569 = vtanh.pop %v5441
    %v5570 = vtanh.pop %v5442
    %v5571 = vtanh.pop %v5443
    %v5572 = vtanh.pop %v5444
    %v5573 = vtanh.pop %v5445
    %v5574 = vtanh.pop %v5446
    %v5575 = vtanh.pop %v5447
    %v5576 = vtanh.pop %v5448
    %v5577 = vtanh.pop %v5449
    %v5578 = vtanh.pop %v5450
    %v5579 = vtanh.pop %v5451
    %v5580 = vtanh.pop %v5452
    %v5581 = vtanh.pop %v5453
    %v5582 = vtanh.pop %v5454
    %v5583 = vmul.f32 %v5455, %v2001
    %v5584 = vmul.f32 %v5456, %v2004
    %v5585 = vmul.f32 %v5457, %v2009
    %v5586 = vmul.f32 %v5458, %v2012
    %v5587 = vmul.f32 %v5459, %v2017
    %v5588 = vmul.f32 %v5460, %v2020
    %v5589 = vmul.f32 %v5461, %v2025
    %v5590 = vmul.f32 %v5462, %v2028
    %v5591 = vmul.f32 %v5463, %v2033
    %v5592 = vmul.f32 %v5464, %v2036
    %v5593 = vmul.f32 %v5465, %v2041
    %v5594 = vmul.f32 %v5466, %v2044
    %v5595 = vmul.f32 %v5467, %v2049
    %v5596 = vmul.f32 %v5468, %v2052
    %v5597 = vmul.f32 %v5469, %v2057
    %v5598 = vmul.f32 %v5470, %v2060
    %v5599 = vmul.f32 %v5471, %v2065
    %v5600 = vmul.f32 %v5472, %v2068
    %v5601 = vmul.f32 %v5473, %v2073
    %v5602 = vmul.f32 %v5474, %v2076
    %v5603 = vmul.f32 %v5475, %v2081
    %v5604 = vmul.f32 %v5476, %v2084
    %v5605 = vmul.f32 %v5477, %v2089
    %v5606 = vmul.f32 %v5478, %v2092
    %v5607 = vmul.f32 %v5479, %v2097
    %v5608 = vmul.f32 %v5480, %v2100
    %v5609 = vmul.f32 %v5481, %v2105
    %v5610 = vmul.f32 %v5482, %v2108
    %v5611 = vmul.f32 %v5483, %v2113
    %v5612 = vmul.f32 %v5484, %v2116
    %v5613 = vmul.f32 %v5485, %v2121
    %v5614 = vmul.f32 %v5486, %v2124
    %v5615 = vmul.f32 %v5487, %v2129
    %v5616 = vmul.f32 %v5488, %v2132
    %v5617 = vmul.f32 %v5489, %v2137
    %v5618 = vmul.f32 %v5490, %v2140
    %v5619 = vmul.f32 %v5491, %v2145
    %v5620 = vmul.f32 %v5492, %v2148
    %v5621 = vmul.f32 %v5493, %v2153
    %v5622 = vmul.f32 %v5494, %v2156
    %v5623 = vmul.f32 %v5495, %v2161
    %v5624 = vmul.f32 %v5496, %v2164
    %v5625 = vmul.f32 %v5497, %v2169
    %v5626 = vmul.f32 %v5498, %v2172
    %v5627 = vmul.f32 %v5499, %v2177
    %v5628 = vmul.f32 %v5500, %v2180
    %v5629 = vmul.f32 %v5501, %v2185
    %v5630 = vmul.f32 %v5502, %v2188
    %v5631 = vmul.f32 %v5503, %v2193
    %v5632 = vmul.f32 %v5504, %v2196
    %v5633 = vmul.f32 %v5505, %v2201
    %v5634 = vmul.f32 %v5506, %v2204
    %v5635 = vmul.f32 %v5507, %v2209
    %v5636 = vmul.f32 %v5508, %v2212
    %v5637 = vmul.f32 %v5509, %v2217
    %v5638 = vmul.f32 %v5510, %v2220
    %v5639 = vmul.f32 %v5511, %v2225
    %v5640 = vmul.f32 %v5512, %v2228
    %v5641 = vmul.f32 %v5513, %v2233
    %v5642 = vmul.f32 %v5514, %v2236
    %v5643 = vmul.f32 %v5515, %v2241
    %v5644 = vmul.f32 %v5516, %v2244
    %v5645 = vmul.f32 %v5517, %v2249
    %v5646 = vmul.f32 %v5518, %v2252
    %v5647 = vmul.f32 %v5519, %v2257
    %v5648 = vmul.f32 %v5520, %v2260
    %v5649 = vmul.f32 %v5521, %v2265
    %v5650 = vmul.f32 %v5522, %v2268
    %v5651 = vmul.f32 %v5523, %v2273
    %v5652 = vmul.f32 %v5524, %v2276
    %v5653 = vmul.f32 %v5525, %v2281
    %v5654 = vmul.f32 %v5526, %v2284
    %v5655 = vmul.f32 %v5527, %v2289
    %v5656 = vmul.f32 %v5528, %v2292
    %v5657 = vmul.f32 %v5529, %v2297
    %v5658 = vmul.f32 %v5530, %v2300
    %v5659 = vmul.f32 %v5531, %v2305
    %v5660 = vmul.f32 %v5532, %v2308
    %v5661 = vmul.f32 %v5533, %v2313
    %v5662 = vmul.f32 %v5534, %v2316
    %v5663 = vmul.f32 %v5535, %v2321
    %v5664 = vmul.f32 %v5536, %v2324
    %v5665 = vmul.f32 %v5537, %v2329
    %v5666 = vmul.f32 %v5538, %v2332
    %v5667 = vmul.f32 %v5539, %v2337
    %v5668 = vmul.f32 %v5540, %v2340
    %v5669 = vmul.f32 %v5541, %v2345
    %v5670 = vmul.f32 %v5542, %v2348
    %v5671 = vmul.f32 %v5543, %v2353
    %v5672 = vmul.f32 %v5544, %v2356
    %v5673 = vmul.f32 %v5545, %v2361
    %v5674 = vmul.f32 %v5546, %v2364
    %v5675 = vmul.f32 %v5547, %v2369
    %v5676 = vmul.f32 %v5548, %v2372
    %v5677 = vmul.f32 %v5549, %v2377
    %v5678 = vmul.f32 %v5550, %v2380
    %v5679 = vmul.f32 %v5551, %v2385
    %v5680 = vmul.f32 %v5552, %v2388
    %v5681 = vmul.f32 %v5553, %v2393
    %v5682 = vmul.f32 %v5554, %v2396
    %v5683 = vmul.f32 %v5555, %v2401
    %v5684 = vmul.f32 %v5556, %v2404
    %v5685 = vmul.f32 %v5557, %v2409
    %v5686 = vmul.f32 %v5558, %v2412
    %v5687 = vmul.f32 %v5559, %v2417
    %v5688 = vmul.f32 %v5560, %v2420
    %v5689 = vmul.f32 %v5561, %v2425
    %v5690 = vmul.f32 %v5562, %v2428
    %v5691 = vmul.f32 %v5563, %v2433
    %v5692 = vmul.f32 %v5564, %v2436
    %v5693 = vmul.f32 %v5565, %v2441
    %v5694 = vmul.f32 %v5566, %v2444
    %v5695 = vmul.f32 %v5567, %v2449
    %v5696 = vmul.f32 %v5568, %v2452
    %v5697 = vmul.f32 %v5569, %v2457
    %v5698 = vmul.f32 %v5570, %v2460
    %v5699 = vmul.f32 %v5571, %v2465
    %v5700 = vmul.f32 %v5572, %v2468
    %v5701 = vmul.f32 %v5573, %v2473
    %v5702 = vmul.f32 %v5574, %v2476
    %v5703 = vmul.f32 %v5575, %v2481
    %v5704 = vmul.f32 %v5576, %v2484
    %v5705 = vmul.f32 %v5577, %v2489
    %v5706 = vmul.f32 %v5578, %v2492
    %v5707 = vmul.f32 %v5579, %v2497
    %v5708 = vmul.f32 %v5580, %v2500
    %v5709 = vmul.f32 %v5581, %v2505
    %v5710 = vmul.f32 %v5582, %v2508
    %v5711 = vrcp.pop %v3791
    %v5712 = vrcp.pop %v3792
    %v5713 = vrcp.pop %v3793
    %v5714 = vrcp.pop %v3794
    %v5715 = vrcp.pop %v3795
    %v5716 = vrcp.pop %v3796
    %v5717 = vrcp.pop %v3797
    %v5718 = vrcp.pop %v3798
    %v5719 = vrcp.pop %v3799
    %v5720 = vrcp.pop %v3800
    %v5721 = vrcp.pop %v3801
    %v5722 = vrcp.pop %v3802
    %v5723 = vrcp.pop %v3803
    %v5724 = vrcp.pop %v3804
    %v5725 = vrcp.pop %v3805
    %v5726 = vrcp.pop %v3806
    %v5727 = vrcp.pop %v3807
    %v5728 = vrcp.pop %v3808
    %v5729 = vrcp.pop %v3809
    %v5730 = vrcp.pop %v3810
    %v5731 = vrcp.pop %v3811
    %v5732 = vrcp.pop %v3812
    %v5733 = vrcp.pop %v3813
    %v5734 = vrcp.pop %v3814
    %v5735 = vrcp.pop %v3815
    %v5736 = vrcp.pop %v3816
    %v5737 = vrcp.pop %v3817
    %v5738 = vrcp.pop %v3818
    %v5739 = vrcp.pop %v3819
    %v5740 = vrcp.pop %v3820
    %v5741 = vrcp.pop %v3821
    %v5742 = vrcp.pop %v3822
    %v5743 = vrcp.pop %v3823
    %v5744 = vrcp.pop %v3824
    %v5745 = vrcp.pop %v3825
    %v5746 = vrcp.pop %v3826
    %v5747 = vrcp.pop %v3827
    %v5748 = vrcp.pop %v3828
    %v5749 = vrcp.pop %v3829
    %v5750 = vrcp.pop %v3830
    %v5751 = vrcp.pop %v3831
    %v5752 = vrcp.pop %v3832
    %v5753 = vrcp.pop %v3833
    %v5754 = vrcp.pop %v3834
    %v5755 = vrcp.pop %v3835
    %v5756 = vrcp.pop %v3836
    %v5757 = vrcp.pop %v3837
    %v5758 = vrcp.pop %v3838
    %v5759 = vrcp.pop %v3839
    %v5760 = vrcp.pop %v3840
    %v5761 = vrcp.pop %v3841
    %v5762 = vrcp.pop %v3842
    %v5763 = vrcp.pop %v3843
    %v5764 = vrcp.pop %v3844
    %v5765 = vrcp.pop %v3845
    %v5766 = vrcp.pop %v3846
    %v5767 = vrcp.pop %v3847
    %v5768 = vrcp.pop %v3848
    %v5769 = vrcp.pop %v3849
    %v5770 = vrcp.pop %v3850
    %v5771 = vrcp.pop %v3851
    %v5772 = vrcp.pop %v3852
    %v5773 = vrcp.pop %v3853
    %v5774 = vrcp.pop %v3854
    %v5775 = vrcp.pop %v3855
    %v5776 = vrcp.pop %v3856
    %v5777 = vrcp.pop %v3857
    %v5778 = vrcp.pop %v3858
    %v5779 = vrcp.pop %v3859
    %v5780 = vrcp.pop %v3860
    %v5781 = vrcp.pop %v3861
    %v5782 = vrcp.pop %v3862
    %v5783 = vrcp.pop %v3863
    %v5784 = vrcp.pop %v3864
    %v5785 = vrcp.pop %v3865
    %v5786 = vrcp.pop %v3866
    %v5787 = vrcp.pop %v3867
    %v5788 = vrcp.pop %v3868
    %v5789 = vrcp.pop %v3869
    %v5790 = vrcp.pop %v3870
    %v5791 = vrcp.pop %v3871
    %v5792 = vrcp.pop %v3872
    %v5793 = vrcp.pop %v3873
    %v5794 = vrcp.pop %v3874
    %v5795 = vrcp.pop %v3875
    %v5796 = vrcp.pop %v3876
    %v5797 = vrcp.pop %v3877
    %v5798 = vrcp.pop %v3878
    %v5799 = vrcp.pop %v3879
    %v5800 = vrcp.pop %v3880
    %v5801 = vrcp.pop %v3881
    %v5802 = vrcp.pop %v3882
    %v5803 = vrcp.pop %v3883
    %v5804 = vrcp.pop %v3884
    %v5805 = vrcp.pop %v3885
    %v5806 = vrcp.pop %v3886
    %v5807 = vrcp.pop %v3887
    %v5808 = vrcp.pop %v3888
    %v5809 = vrcp.pop %v3889
    %v5810 = vrcp.pop %v3890
    %v5811 = vrcp.pop %v3891
    %v5812 = vrcp.pop %v3892
    %v5813 = vrcp.pop %v3893
    %v5814 = vrcp.pop %v3894
    %v5815 = vrcp.pop %v3895
    %v5816 = vrcp.pop %v3896
    %v5817 = vrcp.pop %v3897
    %v5818 = vrcp.pop %v3898
    %v5819 = vrcp.pop %v3899
    %v5820 = vrcp.pop %v3900
    %v5821 = vrcp.pop %v3901
    %v5822 = vrcp.pop %v3902
    %v5823 = vrcp.pop %v3903
    %v5824 = vrcp.pop %v3904
    %v5825 = vrcp.pop %v3905
    %v5826 = vrcp.pop %v3906
    %v5827 = vrcp.pop %v3907
    %v5828 = vrcp.pop %v3908
    %v5829 = vrcp.pop %v3909
    %v5830 = vrcp.pop %v3910
    %v5831 = vrcp.pop %v3911
    %v5832 = vrcp.pop %v3912
    %v5833 = vrcp.pop %v3913
    %v5834 = vrcp.pop %v3914
    %v5835 = vrcp.pop %v3915
    %v5836 = vrcp.pop %v3916
    %v5837 = vrcp.pop %v3917
    %v5838 = vrcp.pop %v3918
    %v5839 = vmul.f32 %v5583, %v5711
    %v5840 = vmul.f32 %v5584, %v5712
    %v5841 = vmul.f32 %v5585, %v5713
    %v5842 = vmul.f32 %v5586, %v5714
    %v5843 = vmul.f32 %v5587, %v5715
    %v5844 = vmul.f32 %v5588, %v5716
    %v5845 = vmul.f32 %v5589, %v5717
    %v5846 = vmul.f32 %v5590, %v5718
    %v5847 = vmul.f32 %v5591, %v5719
    %v5848 = vmul.f32 %v5592, %v5720
    %v5849 = vmul.f32 %v5593, %v5721
    %v5850 = vmul.f32 %v5594, %v5722
    %v5851 = vmul.f32 %v5595, %v5723
    %v5852 = vmul.f32 %v5596, %v5724
    %v5853 = vmul.f32 %v5597, %v5725
    %v5854 = vmul.f32 %v5598, %v5726
    %v5855 = vmul.f32 %v5599, %v5727
    %v5856 = vmul.f32 %v5600, %v5728
    %v5857 = vmul.f32 %v5601, %v5729
    %v5858 = vmul.f32 %v5602, %v5730
    %v5859 = vmul.f32 %v5603, %v5731
    %v5860 = vmul.f32 %v5604, %v5732
    %v5861 = vmul.f32 %v5605, %v5733
    %v5862 = vmul.f32 %v5606, %v5734
    %v5863 = vmul.f32 %v5607, %v5735
    %v5864 = vmul.f32 %v5608, %v5736
    %v5865 = vmul.f32 %v5609, %v5737
    %v5866 = vmul.f32 %v5610, %v5738
    %v5867 = vmul.f32 %v5611, %v5739
    %v5868 = vmul.f32 %v5612, %v5740
    %v5869 = vmul.f32 %v5613, %v5741
    %v5870 = vmul.f32 %v5614, %v5742
    %v5871 = vmul.f32 %v5615, %v5743
    %v5872 = vmul.f32 %v5616, %v5744
    %v5873 = vmul.f32 %v5617, %v5745
    %v5874 = vmul.f32 %v5618, %v5746
    %v5875 = vmul.f32 %v5619, %v5747
    %v5876 = vmul.f32 %v5620, %v5748
    %v5877 = vmul.f32 %v5621, %v5749
    %v5878 = vmul.f32 %v5622, %v5750
    %v5879 = vmul.f32 %v5623, %v5751
    %v5880 = vmul.f32 %v5624, %v5752
    %v5881 = vmul.f32 %v5625, %v5753
    %v5882 = vmul.f32 %v5626, %v5754
    %v5883 = vmul.f32 %v5627, %v5755
    %v5884 = vmul.f32 %v5628, %v5756
    %v5885 = vmul.f32 %v5629, %v5757
    %v5886 = vmul.f32 %v5630, %v5758
    %v5887 = vmul.f32 %v5631, %v5759
    %v5888 = vmul.f32 %v5632, %v5760
    %v5889 = vmul.f32 %v5633, %v5761
    %v5890 = vmul.f32 %v5634, %v5762
    %v5891 = vmul.f32 %v5635, %v5763
    %v5892 = vmul.f32 %v5636, %v5764
    %v5893 = vmul.f32 %v5637, %v5765
    %v5894 = vmul.f32 %v5638, %v5766
    %v5895 = vmul.f32 %v5639, %v5767
    %v5896 = vmul.f32 %v5640, %v5768
    %v5897 = vmul.f32 %v5641, %v5769
    %v5898 = vmul.f32 %v5642, %v5770
    %v5899 = vmul.f32 %v5643, %v5771
    %v5900 = vmul.f32 %v5644, %v5772
    %v5901 = vmul.f32 %v5645, %v5773
    %v5902 = vmul.f32 %v5646, %v5774
    %v5903 = vmul.f32 %v5647, %v5775
    %v5904 = vmul.f32 %v5648, %v5776
    %v5905 = vmul.f32 %v5649, %v5777
    %v5906 = vmul.f32 %v5650, %v5778
    %v5907 = vmul.f32 %v5651, %v5779
    %v5908 = vmul.f32 %v5652, %v5780
    %v5909 = vmul.f32 %v5653, %v5781
    %v5910 = vmul.f32 %v5654, %v5782
    %v5911 = vmul.f32 %v5655, %v5783
    %v5912 = vmul.f32 %v5656, %v5784
    %v5913 = vmul.f32 %v5657, %v5785
    %v5914 = vmul.f32 %v5658, %v5786
    %v5915 = vmul.f32 %v5659, %v5787
    %v5916 = vmul.f32 %v5660, %v5788
    %v5917 = vmul.f32 %v5661, %v5789
    %v5918 = vmul.f32 %v5662, %v5790
    %v5919 = vmul.f32 %v5663, %v5791
    %v5920 = vmul.f32 %v5664, %v5792
    %v5921 = vmul.f32 %v5665, %v5793
    %v5922 = vmul.f32 %v5666, %v5794
    %v5923 = vmul.f32 %v5667, %v5795
    %v5924 = vmul.f32 %v5668, %v5796
    %v5925 = vmul.f32 %v5669, %v5797
    %v5926 = vmul.f32 %v5670, %v5798
    %v5927 = vmul.f32 %v5671, %v5799
    %v5928 = vmul.f32 %v5672, %v5800
    %v5929 = vmul.f32 %v5673, %v5801
    %v5930 = vmul.f32 %v5674, %v5802
    %v5931 = vmul.f32 %v5675, %v5803
    %v5932 = vmul.f32 %v5676, %v5804
    %v5933 = vmul.f32 %v5677, %v5805
    %v5934 = vmul.f32 %v5678, %v5806
    %v5935 = vmul.f32 %v5679, %v5807
    %v5936 = vmul.f32 %v5680, %v5808
    %v5937 = vmul.f32 %v5681, %v5809
    %v5938 = vmul.f32 %v5682, %v5810
    %v5939 = vmul.f32 %v5683, %v5811
    %v5940 = vmul.f32 %v5684, %v5812
    %v5941 = vmul.f32 %v5685, %v5813
    %v5942 = vmul.f32 %v5686, %v5814
    %v5943 = vmul.f32 %v5687, %v5815
    %v5944 = vmul.f32 %v5688, %v5816
    %v5945 = vmul.f32 %v5689, %v5817
    %v5946 = vmul.f32 %v5690, %v5818
    %v5947 = vmul.f32 %v5691, %v5819
    %v5948 = vmul.f32 %v5692, %v5820
    %v5949 = vmul.f32 %v5693, %v5821
    %v5950 = vmul.f32 %v5694, %v5822
    %v5951 = vmul.f32 %v5695, %v5823
    %v5952 = vmul.f32 %v5696, %v5824
    %v5953 = vmul.f32 %v5697, %v5825
    %v5954 = vmul.f32 %v5698, %v5826
    %v5955 = vmul.f32 %v5699, %v5827
    %v5956 = vmul.f32 %v5700, %v5828
    %v5957 = vmul.f32 %v5701, %v5829
    %v5958 = vmul.f32 %v5702, %v5830
    %v5959 = vmul.f32 %v5703, %v5831
    %v5960 = vmul.f32 %v5704, %v5832
    %v5961 = vmul.f32 %v5705, %v5833
    %v5962 = vmul.f32 %v5706, %v5834
    %v5963 = vmul.f32 %v5707, %v5835
    %v5964 = vmul.f32 %v5708, %v5836
    %v5965 = vmul.f32 %v5709, %v5837
    %v5966 = vmul.f32 %v5710, %v5838
    %v5967 = vand.u32 2147483647, %v2001
    %v5968 = vand.u32 2147483647, %v2004
    %v5969 = vand.u32 2147483647, %v2009
    %v5970 = vand.u32 2147483647, %v2012
    %v5971 = vand.u32 2147483647, %v2017
    %v5972 = vand.u32 2147483647, %v2020
    %v5973 = vand.u32 2147483647, %v2025
    %v5974 = vand.u32 2147483647, %v2028
    %v5975 = vand.u32 2147483647, %v2033
    %v5976 = vand.u32 2147483647, %v2036
    %v5977 = vand.u32 2147483647, %v2041
    %v5978 = vand.u32 2147483647, %v2044
    %v5979 = vand.u32 2147483647, %v2049
    %v5980 = vand.u32 2147483647, %v2052
    %v5981 = vand.u32 2147483647, %v2057
    %v5982 = vand.u32 2147483647, %v2060
    %v5983 = vand.u32 2147483647, %v2065
    %v5984 = vand.u32 2147483647, %v2068
    %v5985 = vand.u32 2147483647, %v2073
    %v5986 = vand.u32 2147483647, %v2076
    %v5987 = vand.u32 2147483647, %v2081
    %v5988 = vand.u32 2147483647, %v2084
    %v5989 = vand.u32 2147483647, %v2089
    %v5990 = vand.u32 2147483647, %v2092
    %v5991 = vand.u32 2147483647, %v2097
    %v5992 = vand.u32 2147483647, %v2100
    %v5993 = vand.u32 2147483647, %v2105
    %v5994 = vand.u32 2147483647, %v2108
    %v5995 = vand.u32 2147483647, %v2113
    %v5996 = vand.u32 2147483647, %v2116
    %v5997 = vand.u32 2147483647, %v2121
    %v5998 = vand.u32 2147483647, %v2124
    %v5999 = vand.u32 2147483647, %v2129
    %v6000 = vand.u32 2147483647, %v2132
    %v6001 = vand.u32 2147483647, %v2137
    %v6002 = vand.u32 2147483647, %v2140
    %v6003 = vand.u32 2147483647, %v2145
    %v6004 = vand.u32 2147483647, %v2148
    %v6005 = vand.u32 2147483647, %v2153
    %v6006 = vand.u32 2147483647, %v2156
    %v6007 = vand.u32 2147483647, %v2161
    %v6008 = vand.u32 2147483647, %v2164
    %v6009 = vand.u32 2147483647, %v2169
    %v6010 = vand.u32 2147483647, %v2172
    %v6011 = vand.u32 2147483647, %v2177
    %v6012 = vand.u32 2147483647, %v2180
    %v6013 = vand.u32 2147483647, %v2185
    %v6014 = vand.u32 2147483647, %v2188
    %v6015 = vand.u32 2147483647, %v2193
    %v6016 = vand.u32 2147483647, %v2196
    %v6017 = vand.u32 2147483647, %v2201
    %v6018 = vand.u32 2147483647, %v2204
    %v6019 = vand.u32 2147483647, %v2209
    %v6020 = vand.u32 2147483647, %v2212
    %v6021 = vand.u32 2147483647, %v2217
    %v6022 = vand.u32 2147483647, %v2220
    %v6023 = vand.u32 2147483647, %v2225
    %v6024 = vand.u32 2147483647, %v2228
    %v6025 = vand.u32 2147483647, %v2233
    %v6026 = vand.u32 2147483647, %v2236
    %v6027 = vand.u32 2147483647, %v2241
    %v6028 = vand.u32 2147483647, %v2244
    %v6029 = vand.u32 2147483647, %v2249
    %v6030 = vand.u32 2147483647, %v2252
    %v6031 = vand.u32 2147483647, %v2257
    %v6032 = vand.u32 2147483647, %v2260
    %v6033 = vand.u32 2147483647, %v2265
    %v6034 = vand.u32 2147483647, %v2268
    %v6035 = vand.u32 2147483647, %v2273
    %v6036 = vand.u32 2147483647, %v2276
    %v6037 = vand.u32 2147483647, %v2281
    %v6038 = vand.u32 2147483647, %v2284
    %v6039 = vand.u32 2147483647, %v2289
    %v6040 = vand.u32 2147483647, %v2292
    %v6041 = vand.u32 2147483647, %v2297
    %v6042 = vand.u32 2147483647, %v2300
    %v6043 = vand.u32 2147483647, %v2305
    %v6044 = vand.u32 2147483647, %v2308
    %v6045 = vand.u32 2147483647, %v2313
    %v6046 = vand.u32 2147483647, %v2316
    %v6047 = vand.u32 2147483647, %v2321
    %v6048 = vand.u32 2147483647, %v2324
    %v6049 = vand.u32 2147483647, %v2329
    %v6050 = vand.u32 2147483647, %v2332
    %v6051 = vand.u32 2147483647, %v2337
    %v6052 = vand.u32 2147483647, %v2340
    %v6053 = vand.u32 2147483647, %v2345
    %v6054 = vand.u32 2147483647, %v2348
    %v6055 = vand.u32 2147483647, %v2353
    %v6056 = vand.u32 2147483647, %v2356
    %v6057 = vand.u32 2147483647, %v2361
    %v6058 = vand.u32 2147483647, %v2364
    %v6059 = vand.u32 2147483647, %v2369
    %v6060 = vand.u32 2147483647, %v2372
    %v6061 = vand.u32 2147483647, %v2377
    %v6062 = vand.u32 2147483647, %v2380
    %v6063 = vand.u32 2147483647, %v2385
    %v6064 = vand.u32 2147483647, %v2388
    %v6065 = vand.u32 2147483647, %v2393
    %v6066 = vand.u32 2147483647, %v2396
    %v6067 = vand.u32 2147483647, %v2401
    %v6068 = vand.u32 2147483647, %v2404
    %v6069 = vand.u32 2147483647, %v2409
    %v6070 = vand.u32 2147483647, %v2412
    %v6071 = vand.u32 2147483647, %v2417
    %v6072 = vand.u32 2147483647, %v2420
    %v6073 = vand.u32 2147483647, %v2425
    %v6074 = vand.u32 2147483647, %v2428
    %v6075 = vand.u32 2147483647, %v2433
    %v6076 = vand.u32 2147483647, %v2436
    %v6077 = vand.u32 2147483647, %v2441
    %v6078 = vand.u32 2147483647, %v2444
    %v6079 = vand.u32 2147483647, %v2449
    %v6080 = vand.u32 2147483647, %v2452
    %v6081 = vand.u32 2147483647, %v2457
    %v6082 = vand.u32 2147483647, %v2460
    %v6083 = vand.u32 2147483647, %v2465
    %v6084 = vand.u32 2147483647, %v2468
    %v6085 = vand.u32 2147483647, %v2473
    %v6086 = vand.u32 2147483647, %v2476
    %v6087 = vand.u32 2147483647, %v2481
    %v6088 = vand.u32 2147483647, %v2484
    %v6089 = vand.u32 2147483647, %v2489
    %v6090 = vand.u32 2147483647, %v2492
    %v6091 = vand.u32 2147483647, %v2497
    %v6092 = vand.u32 2147483647, %v2500
    %v6093 = vand.u32 2147483647, %v2505
    %v6094 = vand.u32 2147483647, %v2508
    %6095 = vmax.xlane.f32.xlu0 %v5967
    %v6096 = vpop.xlane.xlu0 %6095
    %6097 = vmax.xlane.f32.xlu0 %v5968
    %v6098 = vpop.xlane.xlu0 %6097
    %6099 = vmax.xlane.f32.xlu0 %v5969
    %v6100 = vpop.xlane.xlu0 %6099
    %6101 = vmax.xlane.f32.xlu0 %v5970
    %v6102 = vpop.xlane.xlu0 %6101
    %6103 = vmax.xlane.f32.xlu0 %v5971
    %v6104 = vpop.xlane.xlu0 %6103
    %6105 = vmax.xlane.f32.xlu0 %v5972
    %v6106 = vpop.xlane.xlu0 %6105
    %6107 = vmax.xlane.f32.xlu0 %v5973
    %v6108 = vpop.xlane.xlu0 %6107
    %6109 = vmax.xlane.f32.xlu0 %v5974
    %v6110 = vpop.xlane.xlu0 %6109
    %6111 = vmax.xlane.f32.xlu0 %v5975
    %v6112 = vpop.xlane.xlu0 %6111
    %6113 = vmax.xlane.f32.xlu0 %v5976
    %v6114 = vpop.xlane.xlu0 %6113
    %6115 = vmax.xlane.f32.xlu0 %v5977
    %v6116 = vpop.xlane.xlu0 %6115
    %6117 = vmax.xlane.f32.xlu0 %v5978
    %v6118 = vpop.xlane.xlu0 %6117
    %6119 = vmax.xlane.f32.xlu0 %v5979
    %v6120 = vpop.xlane.xlu0 %6119
    %6121 = vmax.xlane.f32.xlu0 %v5980
    %v6122 = vpop.xlane.xlu0 %6121
    %6123 = vmax.xlane.f32.xlu0 %v5981
    %v6124 = vpop.xlane.xlu0 %6123
    %6125 = vmax.xlane.f32.xlu0 %v5982
    %v6126 = vpop.xlane.xlu0 %6125
    %6127 = vmax.xlane.f32.xlu0 %v5983
    %v6128 = vpop.xlane.xlu0 %6127
    %6129 = vmax.xlane.f32.xlu0 %v5984
    %v6130 = vpop.xlane.xlu0 %6129
    %6131 = vmax.xlane.f32.xlu0 %v5985
    %v6132 = vpop.xlane.xlu0 %6131
    %6133 = vmax.xlane.f32.xlu0 %v5986
    %v6134 = vpop.xlane.xlu0 %6133
    %6135 = vmax.xlane.f32.xlu0 %v5987
    %v6136 = vpop.xlane.xlu0 %6135
    %6137 = vmax.xlane.f32.xlu0 %v5988
    %v6138 = vpop.xlane.xlu0 %6137
    %6139 = vmax.xlane.f32.xlu0 %v5989
    %v6140 = vpop.xlane.xlu0 %6139
    %6141 = vmax.xlane.f32.xlu0 %v5990
    %v6142 = vpop.xlane.xlu0 %6141
    %6143 = vmax.xlane.f32.xlu0 %v5991
    %v6144 = vpop.xlane.xlu0 %6143
    %6145 = vmax.xlane.f32.xlu0 %v5992
    %v6146 = vpop.xlane.xlu0 %6145
    %6147 = vmax.xlane.f32.xlu0 %v5993
    %v6148 = vpop.xlane.xlu0 %6147
    %6149 = vmax.xlane.f32.xlu0 %v5994
    %v6150 = vpop.xlane.xlu0 %6149
    %6151 = vmax.xlane.f32.xlu0 %v5995
    %v6152 = vpop.xlane.xlu0 %6151
    %6153 = vmax.xlane.f32.xlu0 %v5996
    %v6154 = vpop.xlane.xlu0 %6153
    %6155 = vmax.xlane.f32.xlu0 %v5997
    %v6156 = vpop.xlane.xlu0 %6155
    %6157 = vmax.xlane.f32.xlu0 %v5998
    %v6158 = vpop.xlane.xlu0 %6157
    %6159 = vmax.xlane.f32.xlu0 %v5999
    %v6160 = vpop.xlane.xlu0 %6159
    %6161 = vmax.xlane.f32.xlu0 %v6000
    %v6162 = vpop.xlane.xlu0 %6161
    %6163 = vmax.xlane.f32.xlu0 %v6001
    %v6164 = vpop.xlane.xlu0 %6163
    %6165 = vmax.xlane.f32.xlu0 %v6002
    %v6166 = vpop.xlane.xlu0 %6165
    %6167 = vmax.xlane.f32.xlu0 %v6003
    %v6168 = vpop.xlane.xlu0 %6167
    %6169 = vmax.xlane.f32.xlu0 %v6004
    %v6170 = vpop.xlane.xlu0 %6169
    %6171 = vmax.xlane.f32.xlu0 %v6005
    %v6172 = vpop.xlane.xlu0 %6171
    %6173 = vmax.xlane.f32.xlu0 %v6006
    %v6174 = vpop.xlane.xlu0 %6173
    %6175 = vmax.xlane.f32.xlu0 %v6007
    %v6176 = vpop.xlane.xlu0 %6175
    %6177 = vmax.xlane.f32.xlu0 %v6008
    %v6178 = vpop.xlane.xlu0 %6177
    %6179 = vmax.xlane.f32.xlu0 %v6009
    %v6180 = vpop.xlane.xlu0 %6179
    %6181 = vmax.xlane.f32.xlu0 %v6010
    %v6182 = vpop.xlane.xlu0 %6181
    %6183 = vmax.xlane.f32.xlu0 %v6011
    %v6184 = vpop.xlane.xlu0 %6183
    %6185 = vmax.xlane.f32.xlu0 %v6012
    %v6186 = vpop.xlane.xlu0 %6185
    %6187 = vmax.xlane.f32.xlu0 %v6013
    %v6188 = vpop.xlane.xlu0 %6187
    %6189 = vmax.xlane.f32.xlu0 %v6014
    %v6190 = vpop.xlane.xlu0 %6189
    %6191 = vmax.xlane.f32.xlu0 %v6015
    %v6192 = vpop.xlane.xlu0 %6191
    %6193 = vmax.xlane.f32.xlu0 %v6016
    %v6194 = vpop.xlane.xlu0 %6193
    %6195 = vmax.xlane.f32.xlu0 %v6017
    %v6196 = vpop.xlane.xlu0 %6195
    %6197 = vmax.xlane.f32.xlu0 %v6018
    %v6198 = vpop.xlane.xlu0 %6197
    %6199 = vmax.xlane.f32.xlu0 %v6019
    %v6200 = vpop.xlane.xlu0 %6199
    %6201 = vmax.xlane.f32.xlu0 %v6020
    %v6202 = vpop.xlane.xlu0 %6201
    %6203 = vmax.xlane.f32.xlu0 %v6021
    %v6204 = vpop.xlane.xlu0 %6203
    %6205 = vmax.xlane.f32.xlu0 %v6022
    %v6206 = vpop.xlane.xlu0 %6205
    %6207 = vmax.xlane.f32.xlu0 %v6023
    %v6208 = vpop.xlane.xlu0 %6207
    %6209 = vmax.xlane.f32.xlu0 %v6024
    %v6210 = vpop.xlane.xlu0 %6209
    %6211 = vmax.xlane.f32.xlu0 %v6025
    %v6212 = vpop.xlane.xlu0 %6211
    %6213 = vmax.xlane.f32.xlu0 %v6026
    %v6214 = vpop.xlane.xlu0 %6213
    %6215 = vmax.xlane.f32.xlu0 %v6027
    %v6216 = vpop.xlane.xlu0 %6215
    %6217 = vmax.xlane.f32.xlu0 %v6028
    %v6218 = vpop.xlane.xlu0 %6217
    %6219 = vmax.xlane.f32.xlu0 %v6029
    %v6220 = vpop.xlane.xlu0 %6219
    %6221 = vmax.xlane.f32.xlu0 %v6030
    %v6222 = vpop.xlane.xlu0 %6221
    %6223 = vmax.xlane.f32.xlu0 %v6031
    %v6224 = vpop.xlane.xlu0 %6223
    %6225 = vmax.xlane.f32.xlu0 %v6032
    %v6226 = vpop.xlane.xlu0 %6225
    %6227 = vmax.xlane.f32.xlu0 %v6033
    %v6228 = vpop.xlane.xlu0 %6227
    %6229 = vmax.xlane.f32.xlu0 %v6034
    %v6230 = vpop.xlane.xlu0 %6229
    %6231 = vmax.xlane.f32.xlu0 %v6035
    %v6232 = vpop.xlane.xlu0 %6231
    %6233 = vmax.xlane.f32.xlu0 %v6036
    %v6234 = vpop.xlane.xlu0 %6233
    %6235 = vmax.xlane.f32.xlu0 %v6037
    %v6236 = vpop.xlane.xlu0 %6235
    %6237 = vmax.xlane.f32.xlu0 %v6038
    %v6238 = vpop.xlane.xlu0 %6237
    %6239 = vmax.xlane.f32.xlu0 %v6039
    %v6240 = vpop.xlane.xlu0 %6239
    %6241 = vmax.xlane.f32.xlu0 %v6040
    %v6242 = vpop.xlane.xlu0 %6241
    %6243 = vmax.xlane.f32.xlu0 %v6041
    %v6244 = vpop.xlane.xlu0 %6243
    %6245 = vmax.xlane.f32.xlu0 %v6042
    %v6246 = vpop.xlane.xlu0 %6245
    %6247 = vmax.xlane.f32.xlu0 %v6043
    %v6248 = vpop.xlane.xlu0 %6247
    %6249 = vmax.xlane.f32.xlu0 %v6044
    %v6250 = vpop.xlane.xlu0 %6249
    %6251 = vmax.xlane.f32.xlu0 %v6045
    %v6252 = vpop.xlane.xlu0 %6251
    %6253 = vmax.xlane.f32.xlu0 %v6046
    %v6254 = vpop.xlane.xlu0 %6253
    %6255 = vmax.xlane.f32.xlu0 %v6047
    %v6256 = vpop.xlane.xlu0 %6255
    %6257 = vmax.xlane.f32.xlu0 %v6048
    %v6258 = vpop.xlane.xlu0 %6257
    %6259 = vmax.xlane.f32.xlu0 %v6049
    %v6260 = vpop.xlane.xlu0 %6259
    %6261 = vmax.xlane.f32.xlu0 %v6050
    %v6262 = vpop.xlane.xlu0 %6261
    %6263 = vmax.xlane.f32.xlu0 %v6051
    %v6264 = vpop.xlane.xlu0 %6263
    %6265 = vmax.xlane.f32.xlu0 %v6052
    %v6266 = vpop.xlane.xlu0 %6265
    %6267 = vmax.xlane.f32.xlu0 %v6053
    %v6268 = vpop.xlane.xlu0 %6267
    %6269 = vmax.xlane.f32.xlu0 %v6054
    %v6270 = vpop.xlane.xlu0 %6269
    %6271 = vmax.xlane.f32.xlu0 %v6055
    %v6272 = vpop.xlane.xlu0 %6271
    %6273 = vmax.xlane.f32.xlu0 %v6056
    %v6274 = vpop.xlane.xlu0 %6273
    %6275 = vmax.xlane.f32.xlu0 %v6057
    %v6276 = vpop.xlane.xlu0 %6275
    %6277 = vmax.xlane.f32.xlu0 %v6058
    %v6278 = vpop.xlane.xlu0 %6277
    %6279 = vmax.xlane.f32.xlu0 %v6059
    %v6280 = vpop.xlane.xlu0 %6279
    %6281 = vmax.xlane.f32.xlu0 %v6060
    %v6282 = vpop.xlane.xlu0 %6281
    %6283 = vmax.xlane.f32.xlu0 %v6061
    %v6284 = vpop.xlane.xlu0 %6283
    %6285 = vmax.xlane.f32.xlu0 %v6062
    %v6286 = vpop.xlane.xlu0 %6285
    %6287 = vmax.xlane.f32.xlu0 %v6063
    %v6288 = vpop.xlane.xlu0 %6287
    %6289 = vmax.xlane.f32.xlu0 %v6064
    %v6290 = vpop.xlane.xlu0 %6289
    %6291 = vmax.xlane.f32.xlu0 %v6065
    %v6292 = vpop.xlane.xlu0 %6291
    %6293 = vmax.xlane.f32.xlu0 %v6066
    %v6294 = vpop.xlane.xlu0 %6293
    %6295 = vmax.xlane.f32.xlu0 %v6067
    %v6296 = vpop.xlane.xlu0 %6295
    %6297 = vmax.xlane.f32.xlu0 %v6068
    %v6298 = vpop.xlane.xlu0 %6297
    %6299 = vmax.xlane.f32.xlu0 %v6069
    %v6300 = vpop.xlane.xlu0 %6299
    %6301 = vmax.xlane.f32.xlu0 %v6070
    %v6302 = vpop.xlane.xlu0 %6301
    %6303 = vmax.xlane.f32.xlu0 %v6071
    %v6304 = vpop.xlane.xlu0 %6303
    %6305 = vmax.xlane.f32.xlu0 %v6072
    %v6306 = vpop.xlane.xlu0 %6305
    %6307 = vmax.xlane.f32.xlu0 %v6073
    %v6308 = vpop.xlane.xlu0 %6307
    %6309 = vmax.xlane.f32.xlu0 %v6074
    %v6310 = vpop.xlane.xlu0 %6309
    %6311 = vmax.xlane.f32.xlu0 %v6075
    %v6312 = vpop.xlane.xlu0 %6311
    %6313 = vmax.xlane.f32.xlu0 %v6076
    %v6314 = vpop.xlane.xlu0 %6313
    %6315 = vmax.xlane.f32.xlu0 %v6077
    %v6316 = vpop.xlane.xlu0 %6315
    %6317 = vmax.xlane.f32.xlu0 %v6078
    %v6318 = vpop.xlane.xlu0 %6317
    %6319 = vmax.xlane.f32.xlu0 %v6079
    %v6320 = vpop.xlane.xlu0 %6319
    %6321 = vmax.xlane.f32.xlu0 %v6080
    %v6322 = vpop.xlane.xlu0 %6321
    %6323 = vmax.xlane.f32.xlu0 %v6081
    %v6324 = vpop.xlane.xlu0 %6323
    %6325 = vmax.xlane.f32.xlu0 %v6082
    %v6326 = vpop.xlane.xlu0 %6325
    %6327 = vmax.xlane.f32.xlu0 %v6083
    %v6328 = vpop.xlane.xlu0 %6327
    %6329 = vmax.xlane.f32.xlu0 %v6084
    %v6330 = vpop.xlane.xlu0 %6329
    %6331 = vmax.xlane.f32.xlu0 %v6085
    %v6332 = vpop.xlane.xlu0 %6331
    %6333 = vmax.xlane.f32.xlu0 %v6086
    %v6334 = vpop.xlane.xlu0 %6333
    %6335 = vmax.xlane.f32.xlu0 %v6087
    %v6336 = vpop.xlane.xlu0 %6335
    %6337 = vmax.xlane.f32.xlu0 %v6088
    %v6338 = vpop.xlane.xlu0 %6337
    %6339 = vmax.xlane.f32.xlu0 %v6089
    %v6340 = vpop.xlane.xlu0 %6339
    %6341 = vmax.xlane.f32.xlu0 %v6090
    %v6342 = vpop.xlane.xlu0 %6341
    %6343 = vmax.xlane.f32.xlu0 %v6091
    %v6344 = vpop.xlane.xlu0 %6343
    %6345 = vmax.xlane.f32.xlu0 %v6092
    %v6346 = vpop.xlane.xlu0 %6345
    %6347 = vmax.xlane.f32.xlu0 %v6093
    %v6348 = vpop.xlane.xlu0 %6347
    %6349 = vmax.xlane.f32.xlu0 %v6094
    %v6350 = vpop.xlane.xlu0 %6349
    %vm6351 = vcmp.eq.f32.partialorder %v6096, 0.0
    %vm6352 = vcmp.eq.f32.partialorder %v6098, 0.0
    %vm6353 = vcmp.eq.f32.partialorder %v6100, 0.0
    %vm6354 = vcmp.eq.f32.partialorder %v6102, 0.0
    %vm6355 = vcmp.eq.f32.partialorder %v6104, 0.0
    %vm6356 = vcmp.eq.f32.partialorder %v6106, 0.0
    %vm6357 = vcmp.eq.f32.partialorder %v6108, 0.0
    %vm6358 = vcmp.eq.f32.partialorder %v6110, 0.0
    %vm6359 = vcmp.eq.f32.partialorder %v6112, 0.0
    %vm6360 = vcmp.eq.f32.partialorder %v6114, 0.0
    %vm6361 = vcmp.eq.f32.partialorder %v6116, 0.0
    %vm6362 = vcmp.eq.f32.partialorder %v6118, 0.0
    %vm6363 = vcmp.eq.f32.partialorder %v6120, 0.0
    %vm6364 = vcmp.eq.f32.partialorder %v6122, 0.0
    %vm6365 = vcmp.eq.f32.partialorder %v6124, 0.0
    %vm6366 = vcmp.eq.f32.partialorder %v6126, 0.0
    %vm6367 = vcmp.eq.f32.partialorder %v6128, 0.0
    %vm6368 = vcmp.eq.f32.partialorder %v6130, 0.0
    %vm6369 = vcmp.eq.f32.partialorder %v6132, 0.0
    %vm6370 = vcmp.eq.f32.partialorder %v6134, 0.0
    %vm6371 = vcmp.eq.f32.partialorder %v6136, 0.0
    %vm6372 = vcmp.eq.f32.partialorder %v6138, 0.0
    %vm6373 = vcmp.eq.f32.partialorder %v6140, 0.0
    %vm6374 = vcmp.eq.f32.partialorder %v6142, 0.0
    %vm6375 = vcmp.eq.f32.partialorder %v6144, 0.0
    %vm6376 = vcmp.eq.f32.partialorder %v6146, 0.0
    %vm6377 = vcmp.eq.f32.partialorder %v6148, 0.0
    %vm6378 = vcmp.eq.f32.partialorder %v6150, 0.0
    %vm6379 = vcmp.eq.f32.partialorder %v6152, 0.0
    %vm6380 = vcmp.eq.f32.partialorder %v6154, 0.0
    %vm6381 = vcmp.eq.f32.partialorder %v6156, 0.0
    %vm6382 = vcmp.eq.f32.partialorder %v6158, 0.0
    %vm6383 = vcmp.eq.f32.partialorder %v6160, 0.0
    %vm6384 = vcmp.eq.f32.partialorder %v6162, 0.0
    %vm6385 = vcmp.eq.f32.partialorder %v6164, 0.0
    %vm6386 = vcmp.eq.f32.partialorder %v6166, 0.0
    %vm6387 = vcmp.eq.f32.partialorder %v6168, 0.0
    %vm6388 = vcmp.eq.f32.partialorder %v6170, 0.0
    %vm6389 = vcmp.eq.f32.partialorder %v6172, 0.0
    %vm6390 = vcmp.eq.f32.partialorder %v6174, 0.0
    %vm6391 = vcmp.eq.f32.partialorder %v6176, 0.0
    %vm6392 = vcmp.eq.f32.partialorder %v6178, 0.0
    %vm6393 = vcmp.eq.f32.partialorder %v6180, 0.0
    %vm6394 = vcmp.eq.f32.partialorder %v6182, 0.0
    %vm6395 = vcmp.eq.f32.partialorder %v6184, 0.0
    %vm6396 = vcmp.eq.f32.partialorder %v6186, 0.0
    %vm6397 = vcmp.eq.f32.partialorder %v6188, 0.0
    %vm6398 = vcmp.eq.f32.partialorder %v6190, 0.0
    %vm6399 = vcmp.eq.f32.partialorder %v6192, 0.0
    %vm6400 = vcmp.eq.f32.partialorder %v6194, 0.0
    %vm6401 = vcmp.eq.f32.partialorder %v6196, 0.0
    %vm6402 = vcmp.eq.f32.partialorder %v6198, 0.0
    %vm6403 = vcmp.eq.f32.partialorder %v6200, 0.0
    %vm6404 = vcmp.eq.f32.partialorder %v6202, 0.0
    %vm6405 = vcmp.eq.f32.partialorder %v6204, 0.0
    %vm6406 = vcmp.eq.f32.partialorder %v6206, 0.0
    %vm6407 = vcmp.eq.f32.partialorder %v6208, 0.0
    %vm6408 = vcmp.eq.f32.partialorder %v6210, 0.0
    %vm6409 = vcmp.eq.f32.partialorder %v6212, 0.0
    %vm6410 = vcmp.eq.f32.partialorder %v6214, 0.0
    %vm6411 = vcmp.eq.f32.partialorder %v6216, 0.0
    %vm6412 = vcmp.eq.f32.partialorder %v6218, 0.0
    %vm6413 = vcmp.eq.f32.partialorder %v6220, 0.0
    %vm6414 = vcmp.eq.f32.partialorder %v6222, 0.0
    %vm6415 = vcmp.eq.f32.partialorder %v6224, 0.0
    %vm6416 = vcmp.eq.f32.partialorder %v6226, 0.0
    %vm6417 = vcmp.eq.f32.partialorder %v6228, 0.0
    %vm6418 = vcmp.eq.f32.partialorder %v6230, 0.0
    %vm6419 = vcmp.eq.f32.partialorder %v6232, 0.0
    %vm6420 = vcmp.eq.f32.partialorder %v6234, 0.0
    %vm6421 = vcmp.eq.f32.partialorder %v6236, 0.0
    %vm6422 = vcmp.eq.f32.partialorder %v6238, 0.0
    %vm6423 = vcmp.eq.f32.partialorder %v6240, 0.0
    %vm6424 = vcmp.eq.f32.partialorder %v6242, 0.0
    %vm6425 = vcmp.eq.f32.partialorder %v6244, 0.0
    %vm6426 = vcmp.eq.f32.partialorder %v6246, 0.0
    %vm6427 = vcmp.eq.f32.partialorder %v6248, 0.0
    %vm6428 = vcmp.eq.f32.partialorder %v6250, 0.0
    %vm6429 = vcmp.eq.f32.partialorder %v6252, 0.0
    %vm6430 = vcmp.eq.f32.partialorder %v6254, 0.0
    %vm6431 = vcmp.eq.f32.partialorder %v6256, 0.0
    %vm6432 = vcmp.eq.f32.partialorder %v6258, 0.0
    %vm6433 = vcmp.eq.f32.partialorder %v6260, 0.0
    %vm6434 = vcmp.eq.f32.partialorder %v6262, 0.0
    %vm6435 = vcmp.eq.f32.partialorder %v6264, 0.0
    %vm6436 = vcmp.eq.f32.partialorder %v6266, 0.0
    %vm6437 = vcmp.eq.f32.partialorder %v6268, 0.0
    %vm6438 = vcmp.eq.f32.partialorder %v6270, 0.0
    %vm6439 = vcmp.eq.f32.partialorder %v6272, 0.0
    %vm6440 = vcmp.eq.f32.partialorder %v6274, 0.0
    %vm6441 = vcmp.eq.f32.partialorder %v6276, 0.0
    %vm6442 = vcmp.eq.f32.partialorder %v6278, 0.0
    %vm6443 = vcmp.eq.f32.partialorder %v6280, 0.0
    %vm6444 = vcmp.eq.f32.partialorder %v6282, 0.0
    %vm6445 = vcmp.eq.f32.partialorder %v6284, 0.0
    %vm6446 = vcmp.eq.f32.partialorder %v6286, 0.0
    %vm6447 = vcmp.eq.f32.partialorder %v6288, 0.0
    %vm6448 = vcmp.eq.f32.partialorder %v6290, 0.0
    %vm6449 = vcmp.eq.f32.partialorder %v6292, 0.0
    %vm6450 = vcmp.eq.f32.partialorder %v6294, 0.0
    %vm6451 = vcmp.eq.f32.partialorder %v6296, 0.0
    %vm6452 = vcmp.eq.f32.partialorder %v6298, 0.0
    %vm6453 = vcmp.eq.f32.partialorder %v6300, 0.0
    %vm6454 = vcmp.eq.f32.partialorder %v6302, 0.0
    %vm6455 = vcmp.eq.f32.partialorder %v6304, 0.0
    %vm6456 = vcmp.eq.f32.partialorder %v6306, 0.0
    %vm6457 = vcmp.eq.f32.partialorder %v6308, 0.0
    %vm6458 = vcmp.eq.f32.partialorder %v6310, 0.0
    %vm6459 = vcmp.eq.f32.partialorder %v6312, 0.0
    %vm6460 = vcmp.eq.f32.partialorder %v6314, 0.0
    %vm6461 = vcmp.eq.f32.partialorder %v6316, 0.0
    %vm6462 = vcmp.eq.f32.partialorder %v6318, 0.0
    %vm6463 = vcmp.eq.f32.partialorder %v6320, 0.0
    %vm6464 = vcmp.eq.f32.partialorder %v6322, 0.0
    %vm6465 = vcmp.eq.f32.partialorder %v6324, 0.0
    %vm6466 = vcmp.eq.f32.partialorder %v6326, 0.0
    %vm6467 = vcmp.eq.f32.partialorder %v6328, 0.0
    %vm6468 = vcmp.eq.f32.partialorder %v6330, 0.0
    %vm6469 = vcmp.eq.f32.partialorder %v6332, 0.0
    %vm6470 = vcmp.eq.f32.partialorder %v6334, 0.0
    %vm6471 = vcmp.eq.f32.partialorder %v6336, 0.0
    %vm6472 = vcmp.eq.f32.partialorder %v6338, 0.0
    %vm6473 = vcmp.eq.f32.partialorder %v6340, 0.0
    %vm6474 = vcmp.eq.f32.partialorder %v6342, 0.0
    %vm6475 = vcmp.eq.f32.partialorder %v6344, 0.0
    %vm6476 = vcmp.eq.f32.partialorder %v6346, 0.0
    %vm6477 = vcmp.eq.f32.partialorder %v6348, 0.0
    %vm6478 = vcmp.eq.f32.partialorder %v6350, 0.0
    %v6479 = vsel %vm6351, 1, 0
    %v6480 = vsel %vm6352, 1, 0
    %v6481 = vsel %vm6353, 1, 0
    %v6482 = vsel %vm6354, 1, 0
    %v6483 = vsel %vm6355, 1, 0
    %v6484 = vsel %vm6356, 1, 0
    %v6485 = vsel %vm6357, 1, 0
    %v6486 = vsel %vm6358, 1, 0
    %v6487 = vsel %vm6359, 1, 0
    %v6488 = vsel %vm6360, 1, 0
    %v6489 = vsel %vm6361, 1, 0
    %v6490 = vsel %vm6362, 1, 0
    %v6491 = vsel %vm6363, 1, 0
    %v6492 = vsel %vm6364, 1, 0
    %v6493 = vsel %vm6365, 1, 0
    %v6494 = vsel %vm6366, 1, 0
    %v6495 = vsel %vm6367, 1, 0
    %v6496 = vsel %vm6368, 1, 0
    %v6497 = vsel %vm6369, 1, 0
    %v6498 = vsel %vm6370, 1, 0
    %v6499 = vsel %vm6371, 1, 0
    %v6500 = vsel %vm6372, 1, 0
    %v6501 = vsel %vm6373, 1, 0
    %v6502 = vsel %vm6374, 1, 0
    %v6503 = vsel %vm6375, 1, 0
    %v6504 = vsel %vm6376, 1, 0
    %v6505 = vsel %vm6377, 1, 0
    %v6506 = vsel %vm6378, 1, 0
    %v6507 = vsel %vm6379, 1, 0
    %v6508 = vsel %vm6380, 1, 0
    %v6509 = vsel %vm6381, 1, 0
    %v6510 = vsel %vm6382, 1, 0
    %v6511 = vsel %vm6383, 1, 0
    %v6512 = vsel %vm6384, 1, 0
    %v6513 = vsel %vm6385, 1, 0
    %v6514 = vsel %vm6386, 1, 0
    %v6515 = vsel %vm6387, 1, 0
    %v6516 = vsel %vm6388, 1, 0
    %v6517 = vsel %vm6389, 1, 0
    %v6518 = vsel %vm6390, 1, 0
    %v6519 = vsel %vm6391, 1, 0
    %v6520 = vsel %vm6392, 1, 0
    %v6521 = vsel %vm6393, 1, 0
    %v6522 = vsel %vm6394, 1, 0
    %v6523 = vsel %vm6395, 1, 0
    %v6524 = vsel %vm6396, 1, 0
    %v6525 = vsel %vm6397, 1, 0
    %v6526 = vsel %vm6398, 1, 0
    %v6527 = vsel %vm6399, 1, 0
    %v6528 = vsel %vm6400, 1, 0
    %v6529 = vsel %vm6401, 1, 0
    %v6530 = vsel %vm6402, 1, 0
    %v6531 = vsel %vm6403, 1, 0
    %v6532 = vsel %vm6404, 1, 0
    %v6533 = vsel %vm6405, 1, 0
    %v6534 = vsel %vm6406, 1, 0
    %v6535 = vsel %vm6407, 1, 0
    %v6536 = vsel %vm6408, 1, 0
    %v6537 = vsel %vm6409, 1, 0
    %v6538 = vsel %vm6410, 1, 0
    %v6539 = vsel %vm6411, 1, 0
    %v6540 = vsel %vm6412, 1, 0
    %v6541 = vsel %vm6413, 1, 0
    %v6542 = vsel %vm6414, 1, 0
    %v6543 = vsel %vm6415, 1, 0
    %v6544 = vsel %vm6416, 1, 0
    %v6545 = vsel %vm6417, 1, 0
    %v6546 = vsel %vm6418, 1, 0
    %v6547 = vsel %vm6419, 1, 0
    %v6548 = vsel %vm6420, 1, 0
    %v6549 = vsel %vm6421, 1, 0
    %v6550 = vsel %vm6422, 1, 0
    %v6551 = vsel %vm6423, 1, 0
    %v6552 = vsel %vm6424, 1, 0
    %v6553 = vsel %vm6425, 1, 0
    %v6554 = vsel %vm6426, 1, 0
    %v6555 = vsel %vm6427, 1, 0
    %v6556 = vsel %vm6428, 1, 0
    %v6557 = vsel %vm6429, 1, 0
    %v6558 = vsel %vm6430, 1, 0
    %v6559 = vsel %vm6431, 1, 0
    %v6560 = vsel %vm6432, 1, 0
    %v6561 = vsel %vm6433, 1, 0
    %v6562 = vsel %vm6434, 1, 0
    %v6563 = vsel %vm6435, 1, 0
    %v6564 = vsel %vm6436, 1, 0
    %v6565 = vsel %vm6437, 1, 0
    %v6566 = vsel %vm6438, 1, 0
    %v6567 = vsel %vm6439, 1, 0
    %v6568 = vsel %vm6440, 1, 0
    %v6569 = vsel %vm6441, 1, 0
    %v6570 = vsel %vm6442, 1, 0
    %v6571 = vsel %vm6443, 1, 0
    %v6572 = vsel %vm6444, 1, 0
    %v6573 = vsel %vm6445, 1, 0
    %v6574 = vsel %vm6446, 1, 0
    %v6575 = vsel %vm6447, 1, 0
    %v6576 = vsel %vm6448, 1, 0
    %v6577 = vsel %vm6449, 1, 0
    %v6578 = vsel %vm6450, 1, 0
    %v6579 = vsel %vm6451, 1, 0
    %v6580 = vsel %vm6452, 1, 0
    %v6581 = vsel %vm6453, 1, 0
    %v6582 = vsel %vm6454, 1, 0
    %v6583 = vsel %vm6455, 1, 0
    %v6584 = vsel %vm6456, 1, 0
    %v6585 = vsel %vm6457, 1, 0
    %v6586 = vsel %vm6458, 1, 0
    %v6587 = vsel %vm6459, 1, 0
    %v6588 = vsel %vm6460, 1, 0
    %v6589 = vsel %vm6461, 1, 0
    %v6590 = vsel %vm6462, 1, 0
    %v6591 = vsel %vm6463, 1, 0
    %v6592 = vsel %vm6464, 1, 0
    %v6593 = vsel %vm6465, 1, 0
    %v6594 = vsel %vm6466, 1, 0
    %v6595 = vsel %vm6467, 1, 0
    %v6596 = vsel %vm6468, 1, 0
    %v6597 = vsel %vm6469, 1, 0
    %v6598 = vsel %vm6470, 1, 0
    %v6599 = vsel %vm6471, 1, 0
    %v6600 = vsel %vm6472, 1, 0
    %v6601 = vsel %vm6473, 1, 0
    %v6602 = vsel %vm6474, 1, 0
    %v6603 = vsel %vm6475, 1, 0
    %v6604 = vsel %vm6476, 1, 0
    %v6605 = vsel %vm6477, 1, 0
    %v6606 = vsel %vm6478, 1, 0
    %vm6607 = vcmp.eq.s32.totalorder %v6479, 1
    %vm6608 = vcmp.eq.s32.totalorder %v6480, 1
    %vm6609 = vcmp.eq.s32.totalorder %v6481, 1
    %vm6610 = vcmp.eq.s32.totalorder %v6482, 1
    %vm6611 = vcmp.eq.s32.totalorder %v6483, 1
    %vm6612 = vcmp.eq.s32.totalorder %v6484, 1
    %vm6613 = vcmp.eq.s32.totalorder %v6485, 1
    %vm6614 = vcmp.eq.s32.totalorder %v6486, 1
    %vm6615 = vcmp.eq.s32.totalorder %v6487, 1
    %vm6616 = vcmp.eq.s32.totalorder %v6488, 1
    %vm6617 = vcmp.eq.s32.totalorder %v6489, 1
    %vm6618 = vcmp.eq.s32.totalorder %v6490, 1
    %vm6619 = vcmp.eq.s32.totalorder %v6491, 1
    %vm6620 = vcmp.eq.s32.totalorder %v6492, 1
    %vm6621 = vcmp.eq.s32.totalorder %v6493, 1
    %vm6622 = vcmp.eq.s32.totalorder %v6494, 1
    %vm6623 = vcmp.eq.s32.totalorder %v6495, 1
    %vm6624 = vcmp.eq.s32.totalorder %v6496, 1
    %vm6625 = vcmp.eq.s32.totalorder %v6497, 1
    %vm6626 = vcmp.eq.s32.totalorder %v6498, 1
    %vm6627 = vcmp.eq.s32.totalorder %v6499, 1
    %vm6628 = vcmp.eq.s32.totalorder %v6500, 1
    %vm6629 = vcmp.eq.s32.totalorder %v6501, 1
    %vm6630 = vcmp.eq.s32.totalorder %v6502, 1
    %vm6631 = vcmp.eq.s32.totalorder %v6503, 1
    %vm6632 = vcmp.eq.s32.totalorder %v6504, 1
    %vm6633 = vcmp.eq.s32.totalorder %v6505, 1
    %vm6634 = vcmp.eq.s32.totalorder %v6506, 1
    %vm6635 = vcmp.eq.s32.totalorder %v6507, 1
    %vm6636 = vcmp.eq.s32.totalorder %v6508, 1
    %vm6637 = vcmp.eq.s32.totalorder %v6509, 1
    %vm6638 = vcmp.eq.s32.totalorder %v6510, 1
    %vm6639 = vcmp.eq.s32.totalorder %v6511, 1
    %vm6640 = vcmp.eq.s32.totalorder %v6512, 1
    %vm6641 = vcmp.eq.s32.totalorder %v6513, 1
    %vm6642 = vcmp.eq.s32.totalorder %v6514, 1
    %vm6643 = vcmp.eq.s32.totalorder %v6515, 1
    %vm6644 = vcmp.eq.s32.totalorder %v6516, 1
    %vm6645 = vcmp.eq.s32.totalorder %v6517, 1
    %vm6646 = vcmp.eq.s32.totalorder %v6518, 1
    %vm6647 = vcmp.eq.s32.totalorder %v6519, 1
    %vm6648 = vcmp.eq.s32.totalorder %v6520, 1
    %vm6649 = vcmp.eq.s32.totalorder %v6521, 1
    %vm6650 = vcmp.eq.s32.totalorder %v6522, 1
    %vm6651 = vcmp.eq.s32.totalorder %v6523, 1
    %vm6652 = vcmp.eq.s32.totalorder %v6524, 1
    %vm6653 = vcmp.eq.s32.totalorder %v6525, 1
    %vm6654 = vcmp.eq.s32.totalorder %v6526, 1
    %vm6655 = vcmp.eq.s32.totalorder %v6527, 1
    %vm6656 = vcmp.eq.s32.totalorder %v6528, 1
    %vm6657 = vcmp.eq.s32.totalorder %v6529, 1
    %vm6658 = vcmp.eq.s32.totalorder %v6530, 1
    %vm6659 = vcmp.eq.s32.totalorder %v6531, 1
    %vm6660 = vcmp.eq.s32.totalorder %v6532, 1
    %vm6661 = vcmp.eq.s32.totalorder %v6533, 1
    %vm6662 = vcmp.eq.s32.totalorder %v6534, 1
    %vm6663 = vcmp.eq.s32.totalorder %v6535, 1
    %vm6664 = vcmp.eq.s32.totalorder %v6536, 1
    %vm6665 = vcmp.eq.s32.totalorder %v6537, 1
    %vm6666 = vcmp.eq.s32.totalorder %v6538, 1
    %vm6667 = vcmp.eq.s32.totalorder %v6539, 1
    %vm6668 = vcmp.eq.s32.totalorder %v6540, 1
    %vm6669 = vcmp.eq.s32.totalorder %v6541, 1
    %vm6670 = vcmp.eq.s32.totalorder %v6542, 1
    %vm6671 = vcmp.eq.s32.totalorder %v6543, 1
    %vm6672 = vcmp.eq.s32.totalorder %v6544, 1
    %vm6673 = vcmp.eq.s32.totalorder %v6545, 1
    %vm6674 = vcmp.eq.s32.totalorder %v6546, 1
    %vm6675 = vcmp.eq.s32.totalorder %v6547, 1
    %vm6676 = vcmp.eq.s32.totalorder %v6548, 1
    %vm6677 = vcmp.eq.s32.totalorder %v6549, 1
    %vm6678 = vcmp.eq.s32.totalorder %v6550, 1
    %vm6679 = vcmp.eq.s32.totalorder %v6551, 1
    %vm6680 = vcmp.eq.s32.totalorder %v6552, 1
    %vm6681 = vcmp.eq.s32.totalorder %v6553, 1
    %vm6682 = vcmp.eq.s32.totalorder %v6554, 1
    %vm6683 = vcmp.eq.s32.totalorder %v6555, 1
    %vm6684 = vcmp.eq.s32.totalorder %v6556, 1
    %vm6685 = vcmp.eq.s32.totalorder %v6557, 1
    %vm6686 = vcmp.eq.s32.totalorder %v6558, 1
    %vm6687 = vcmp.eq.s32.totalorder %v6559, 1
    %vm6688 = vcmp.eq.s32.totalorder %v6560, 1
    %vm6689 = vcmp.eq.s32.totalorder %v6561, 1
    %vm6690 = vcmp.eq.s32.totalorder %v6562, 1
    %vm6691 = vcmp.eq.s32.totalorder %v6563, 1
    %vm6692 = vcmp.eq.s32.totalorder %v6564, 1
    %vm6693 = vcmp.eq.s32.totalorder %v6565, 1
    %vm6694 = vcmp.eq.s32.totalorder %v6566, 1
    %vm6695 = vcmp.eq.s32.totalorder %v6567, 1
    %vm6696 = vcmp.eq.s32.totalorder %v6568, 1
    %vm6697 = vcmp.eq.s32.totalorder %v6569, 1
    %vm6698 = vcmp.eq.s32.totalorder %v6570, 1
    %vm6699 = vcmp.eq.s32.totalorder %v6571, 1
    %vm6700 = vcmp.eq.s32.totalorder %v6572, 1
    %vm6701 = vcmp.eq.s32.totalorder %v6573, 1
    %vm6702 = vcmp.eq.s32.totalorder %v6574, 1
    %vm6703 = vcmp.eq.s32.totalorder %v6575, 1
    %vm6704 = vcmp.eq.s32.totalorder %v6576, 1
    %vm6705 = vcmp.eq.s32.totalorder %v6577, 1
    %vm6706 = vcmp.eq.s32.totalorder %v6578, 1
    %vm6707 = vcmp.eq.s32.totalorder %v6579, 1
    %vm6708 = vcmp.eq.s32.totalorder %v6580, 1
    %vm6709 = vcmp.eq.s32.totalorder %v6581, 1
    %vm6710 = vcmp.eq.s32.totalorder %v6582, 1
    %vm6711 = vcmp.eq.s32.totalorder %v6583, 1
    %vm6712 = vcmp.eq.s32.totalorder %v6584, 1
    %vm6713 = vcmp.eq.s32.totalorder %v6585, 1
    %vm6714 = vcmp.eq.s32.totalorder %v6586, 1
    %vm6715 = vcmp.eq.s32.totalorder %v6587, 1
    %vm6716 = vcmp.eq.s32.totalorder %v6588, 1
    %vm6717 = vcmp.eq.s32.totalorder %v6589, 1
    %vm6718 = vcmp.eq.s32.totalorder %v6590, 1
    %vm6719 = vcmp.eq.s32.totalorder %v6591, 1
    %vm6720 = vcmp.eq.s32.totalorder %v6592, 1
    %vm6721 = vcmp.eq.s32.totalorder %v6593, 1
    %vm6722 = vcmp.eq.s32.totalorder %v6594, 1
    %vm6723 = vcmp.eq.s32.totalorder %v6595, 1
    %vm6724 = vcmp.eq.s32.totalorder %v6596, 1
    %vm6725 = vcmp.eq.s32.totalorder %v6597, 1
    %vm6726 = vcmp.eq.s32.totalorder %v6598, 1
    %vm6727 = vcmp.eq.s32.totalorder %v6599, 1
    %vm6728 = vcmp.eq.s32.totalorder %v6600, 1
    %vm6729 = vcmp.eq.s32.totalorder %v6601, 1
    %vm6730 = vcmp.eq.s32.totalorder %v6602, 1
    %vm6731 = vcmp.eq.s32.totalorder %v6603, 1
    %vm6732 = vcmp.eq.s32.totalorder %v6604, 1
    %vm6733 = vcmp.eq.s32.totalorder %v6605, 1
    %vm6734 = vcmp.eq.s32.totalorder %v6606, 1
    %v6735 = vsel %vm6607, 0.0, %v5839
    %v6736 = vsel %vm6608, 0.0, %v5840
    %v6737 = vsel %vm6609, 0.0, %v5841
    %v6738 = vsel %vm6610, 0.0, %v5842
    %v6739 = vsel %vm6611, 0.0, %v5843
    %v6740 = vsel %vm6612, 0.0, %v5844
    %v6741 = vsel %vm6613, 0.0, %v5845
    %v6742 = vsel %vm6614, 0.0, %v5846
    %v6743 = vsel %vm6615, 0.0, %v5847
    %v6744 = vsel %vm6616, 0.0, %v5848
    %v6745 = vsel %vm6617, 0.0, %v5849
    %v6746 = vsel %vm6618, 0.0, %v5850
    %v6747 = vsel %vm6619, 0.0, %v5851
    %v6748 = vsel %vm6620, 0.0, %v5852
    %v6749 = vsel %vm6621, 0.0, %v5853
    %v6750 = vsel %vm6622, 0.0, %v5854
    %v6751 = vsel %vm6623, 0.0, %v5855
    %v6752 = vsel %vm6624, 0.0, %v5856
    %v6753 = vsel %vm6625, 0.0, %v5857
    %v6754 = vsel %vm6626, 0.0, %v5858
    %v6755 = vsel %vm6627, 0.0, %v5859
    %v6756 = vsel %vm6628, 0.0, %v5860
    %v6757 = vsel %vm6629, 0.0, %v5861
    %v6758 = vsel %vm6630, 0.0, %v5862
    %v6759 = vsel %vm6631, 0.0, %v5863
    %v6760 = vsel %vm6632, 0.0, %v5864
    %v6761 = vsel %vm6633, 0.0, %v5865
    %v6762 = vsel %vm6634, 0.0, %v5866
    %v6763 = vsel %vm6635, 0.0, %v5867
    %v6764 = vsel %vm6636, 0.0, %v5868
    %v6765 = vsel %vm6637, 0.0, %v5869
    %v6766 = vsel %vm6638, 0.0, %v5870
    %v6767 = vsel %vm6639, 0.0, %v5871
    %v6768 = vsel %vm6640, 0.0, %v5872
    %v6769 = vsel %vm6641, 0.0, %v5873
    %v6770 = vsel %vm6642, 0.0, %v5874
    %v6771 = vsel %vm6643, 0.0, %v5875
    %v6772 = vsel %vm6644, 0.0, %v5876
    %v6773 = vsel %vm6645, 0.0, %v5877
    %v6774 = vsel %vm6646, 0.0, %v5878
    %v6775 = vsel %vm6647, 0.0, %v5879
    %v6776 = vsel %vm6648, 0.0, %v5880
    %v6777 = vsel %vm6649, 0.0, %v5881
    %v6778 = vsel %vm6650, 0.0, %v5882
    %v6779 = vsel %vm6651, 0.0, %v5883
    %v6780 = vsel %vm6652, 0.0, %v5884
    %v6781 = vsel %vm6653, 0.0, %v5885
    %v6782 = vsel %vm6654, 0.0, %v5886
    %v6783 = vsel %vm6655, 0.0, %v5887
    %v6784 = vsel %vm6656, 0.0, %v5888
    %v6785 = vsel %vm6657, 0.0, %v5889
    %v6786 = vsel %vm6658, 0.0, %v5890
    %v6787 = vsel %vm6659, 0.0, %v5891
    %v6788 = vsel %vm6660, 0.0, %v5892
    %v6789 = vsel %vm6661, 0.0, %v5893
    %v6790 = vsel %vm6662, 0.0, %v5894
    %v6791 = vsel %vm6663, 0.0, %v5895
    %v6792 = vsel %vm6664, 0.0, %v5896
    %v6793 = vsel %vm6665, 0.0, %v5897
    %v6794 = vsel %vm6666, 0.0, %v5898
    %v6795 = vsel %vm6667, 0.0, %v5899
    %v6796 = vsel %vm6668, 0.0, %v5900
    %v6797 = vsel %vm6669, 0.0, %v5901
    %v6798 = vsel %vm6670, 0.0, %v5902
    %v6799 = vsel %vm6671, 0.0, %v5903
    %v6800 = vsel %vm6672, 0.0, %v5904
    %v6801 = vsel %vm6673, 0.0, %v5905
    %v6802 = vsel %vm6674, 0.0, %v5906
    %v6803 = vsel %vm6675, 0.0, %v5907
    %v6804 = vsel %vm6676, 0.0, %v5908
    %v6805 = vsel %vm6677, 0.0, %v5909
    %v6806 = vsel %vm6678, 0.0, %v5910
    %v6807 = vsel %vm6679, 0.0, %v5911
    %v6808 = vsel %vm6680, 0.0, %v5912
    %v6809 = vsel %vm6681, 0.0, %v5913
    %v6810 = vsel %vm6682, 0.0, %v5914
    %v6811 = vsel %vm6683, 0.0, %v5915
    %v6812 = vsel %vm6684, 0.0, %v5916
    %v6813 = vsel %vm6685, 0.0, %v5917
    %v6814 = vsel %vm6686, 0.0, %v5918
    %v6815 = vsel %vm6687, 0.0, %v5919
    %v6816 = vsel %vm6688, 0.0, %v5920
    %v6817 = vsel %vm6689, 0.0, %v5921
    %v6818 = vsel %vm6690, 0.0, %v5922
    %v6819 = vsel %vm6691, 0.0, %v5923
    %v6820 = vsel %vm6692, 0.0, %v5924
    %v6821 = vsel %vm6693, 0.0, %v5925
    %v6822 = vsel %vm6694, 0.0, %v5926
    %v6823 = vsel %vm6695, 0.0, %v5927
    %v6824 = vsel %vm6696, 0.0, %v5928
    %v6825 = vsel %vm6697, 0.0, %v5929
    %v6826 = vsel %vm6698, 0.0, %v5930
    %v6827 = vsel %vm6699, 0.0, %v5931
    %v6828 = vsel %vm6700, 0.0, %v5932
    %v6829 = vsel %vm6701, 0.0, %v5933
    %v6830 = vsel %vm6702, 0.0, %v5934
    %v6831 = vsel %vm6703, 0.0, %v5935
    %v6832 = vsel %vm6704, 0.0, %v5936
    %v6833 = vsel %vm6705, 0.0, %v5937
    %v6834 = vsel %vm6706, 0.0, %v5938
    %v6835 = vsel %vm6707, 0.0, %v5939
    %v6836 = vsel %vm6708, 0.0, %v5940
    %v6837 = vsel %vm6709, 0.0, %v5941
    %v6838 = vsel %vm6710, 0.0, %v5942
    %v6839 = vsel %vm6711, 0.0, %v5943
    %v6840 = vsel %vm6712, 0.0, %v5944
    %v6841 = vsel %vm6713, 0.0, %v5945
    %v6842 = vsel %vm6714, 0.0, %v5946
    %v6843 = vsel %vm6715, 0.0, %v5947
    %v6844 = vsel %vm6716, 0.0, %v5948
    %v6845 = vsel %vm6717, 0.0, %v5949
    %v6846 = vsel %vm6718, 0.0, %v5950
    %v6847 = vsel %vm6719, 0.0, %v5951
    %v6848 = vsel %vm6720, 0.0, %v5952
    %v6849 = vsel %vm6721, 0.0, %v5953
    %v6850 = vsel %vm6722, 0.0, %v5954
    %v6851 = vsel %vm6723, 0.0, %v5955
    %v6852 = vsel %vm6724, 0.0, %v5956
    %v6853 = vsel %vm6725, 0.0, %v5957
    %v6854 = vsel %vm6726, 0.0, %v5958
    %v6855 = vsel %vm6727, 0.0, %v5959
    %v6856 = vsel %vm6728, 0.0, %v5960
    %v6857 = vsel %vm6729, 0.0, %v5961
    %v6858 = vsel %vm6730, 0.0, %v5962
    %v6859 = vsel %vm6731, 0.0, %v5963
    %v6860 = vsel %vm6732, 0.0, %v5964
    %v6861 = vsel %vm6733, 0.0, %v5965
    %v6862 = vsel %vm6734, 0.0, %v5966
    %v6863 = vmul.f32 %v6735, %v6735
    %v6864 = vmul.f32 %v6736, %v6736
    %v6865 = vmul.f32 %v6737, %v6737
    %v6866 = vmul.f32 %v6738, %v6738
    %v6867 = vmul.f32 %v6739, %v6739
    %v6868 = vmul.f32 %v6740, %v6740
    %v6869 = vmul.f32 %v6741, %v6741
    %v6870 = vmul.f32 %v6742, %v6742
    %v6871 = vmul.f32 %v6743, %v6743
    %v6872 = vmul.f32 %v6744, %v6744
    %v6873 = vmul.f32 %v6745, %v6745
    %v6874 = vmul.f32 %v6746, %v6746
    %v6875 = vmul.f32 %v6747, %v6747
    %v6876 = vmul.f32 %v6748, %v6748
    %v6877 = vmul.f32 %v6749, %v6749
    %v6878 = vmul.f32 %v6750, %v6750
    %v6879 = vmul.f32 %v6751, %v6751
    %v6880 = vmul.f32 %v6752, %v6752
    %v6881 = vmul.f32 %v6753, %v6753
    %v6882 = vmul.f32 %v6754, %v6754
    %v6883 = vmul.f32 %v6755, %v6755
    %v6884 = vmul.f32 %v6756, %v6756
    %v6885 = vmul.f32 %v6757, %v6757
    %v6886 = vmul.f32 %v6758, %v6758
    %v6887 = vmul.f32 %v6759, %v6759
    %v6888 = vmul.f32 %v6760, %v6760
    %v6889 = vmul.f32 %v6761, %v6761
    %v6890 = vmul.f32 %v6762, %v6762
    %v6891 = vmul.f32 %v6763, %v6763
    %v6892 = vmul.f32 %v6764, %v6764
    %v6893 = vmul.f32 %v6765, %v6765
    %v6894 = vmul.f32 %v6766, %v6766
    %v6895 = vmul.f32 %v6767, %v6767
    %v6896 = vmul.f32 %v6768, %v6768
    %v6897 = vmul.f32 %v6769, %v6769
    %v6898 = vmul.f32 %v6770, %v6770
    %v6899 = vmul.f32 %v6771, %v6771
    %v6900 = vmul.f32 %v6772, %v6772
    %v6901 = vmul.f32 %v6773, %v6773
    %v6902 = vmul.f32 %v6774, %v6774
    %v6903 = vmul.f32 %v6775, %v6775
    %v6904 = vmul.f32 %v6776, %v6776
    %v6905 = vmul.f32 %v6777, %v6777
    %v6906 = vmul.f32 %v6778, %v6778
    %v6907 = vmul.f32 %v6779, %v6779
    %v6908 = vmul.f32 %v6780, %v6780
    %v6909 = vmul.f32 %v6781, %v6781
    %v6910 = vmul.f32 %v6782, %v6782
    %v6911 = vmul.f32 %v6783, %v6783
    %v6912 = vmul.f32 %v6784, %v6784
    %v6913 = vmul.f32 %v6785, %v6785
    %v6914 = vmul.f32 %v6786, %v6786
    %v6915 = vmul.f32 %v6787, %v6787
    %v6916 = vmul.f32 %v6788, %v6788
    %v6917 = vmul.f32 %v6789, %v6789
    %v6918 = vmul.f32 %v6790, %v6790
    %v6919 = vmul.f32 %v6791, %v6791
    %v6920 = vmul.f32 %v6792, %v6792
    %v6921 = vmul.f32 %v6793, %v6793
    %v6922 = vmul.f32 %v6794, %v6794
    %v6923 = vmul.f32 %v6795, %v6795
    %v6924 = vmul.f32 %v6796, %v6796
    %v6925 = vmul.f32 %v6797, %v6797
    %v6926 = vmul.f32 %v6798, %v6798
    %v6927 = vmul.f32 %v6799, %v6799
    %v6928 = vmul.f32 %v6800, %v6800
    %v6929 = vmul.f32 %v6801, %v6801
    %v6930 = vmul.f32 %v6802, %v6802
    %v6931 = vmul.f32 %v6803, %v6803
    %v6932 = vmul.f32 %v6804, %v6804
    %v6933 = vmul.f32 %v6805, %v6805
    %v6934 = vmul.f32 %v6806, %v6806
    %v6935 = vmul.f32 %v6807, %v6807
    %v6936 = vmul.f32 %v6808, %v6808
    %v6937 = vmul.f32 %v6809, %v6809
    %v6938 = vmul.f32 %v6810, %v6810
    %v6939 = vmul.f32 %v6811, %v6811
    %v6940 = vmul.f32 %v6812, %v6812
    %v6941 = vmul.f32 %v6813, %v6813
    %v6942 = vmul.f32 %v6814, %v6814
    %v6943 = vmul.f32 %v6815, %v6815
    %v6944 = vmul.f32 %v6816, %v6816
    %v6945 = vmul.f32 %v6817, %v6817
    %v6946 = vmul.f32 %v6818, %v6818
    %v6947 = vmul.f32 %v6819, %v6819
    %v6948 = vmul.f32 %v6820, %v6820
    %v6949 = vmul.f32 %v6821, %v6821
    %v6950 = vmul.f32 %v6822, %v6822
    %v6951 = vmul.f32 %v6823, %v6823
    %v6952 = vmul.f32 %v6824, %v6824
    %v6953 = vmul.f32 %v6825, %v6825
    %v6954 = vmul.f32 %v6826, %v6826
    %v6955 = vmul.f32 %v6827, %v6827
    %v6956 = vmul.f32 %v6828, %v6828
    %v6957 = vmul.f32 %v6829, %v6829
    %v6958 = vmul.f32 %v6830, %v6830
    %v6959 = vmul.f32 %v6831, %v6831
    %v6960 = vmul.f32 %v6832, %v6832
    %v6961 = vmul.f32 %v6833, %v6833
    %v6962 = vmul.f32 %v6834, %v6834
    %v6963 = vmul.f32 %v6835, %v6835
    %v6964 = vmul.f32 %v6836, %v6836
    %v6965 = vmul.f32 %v6837, %v6837
    %v6966 = vmul.f32 %v6838, %v6838
    %v6967 = vmul.f32 %v6839, %v6839
    %v6968 = vmul.f32 %v6840, %v6840
    %v6969 = vmul.f32 %v6841, %v6841
    %v6970 = vmul.f32 %v6842, %v6842
    %v6971 = vmul.f32 %v6843, %v6843
    %v6972 = vmul.f32 %v6844, %v6844
    %v6973 = vmul.f32 %v6845, %v6845
    %v6974 = vmul.f32 %v6846, %v6846
    %v6975 = vmul.f32 %v6847, %v6847
    %v6976 = vmul.f32 %v6848, %v6848
    %v6977 = vmul.f32 %v6849, %v6849
    %v6978 = vmul.f32 %v6850, %v6850
    %v6979 = vmul.f32 %v6851, %v6851
    %v6980 = vmul.f32 %v6852, %v6852
    %v6981 = vmul.f32 %v6853, %v6853
    %v6982 = vmul.f32 %v6854, %v6854
    %v6983 = vmul.f32 %v6855, %v6855
    %v6984 = vmul.f32 %v6856, %v6856
    %v6985 = vmul.f32 %v6857, %v6857
    %v6986 = vmul.f32 %v6858, %v6858
    %v6987 = vmul.f32 %v6859, %v6859
    %v6988 = vmul.f32 %v6860, %v6860
    %v6989 = vmul.f32 %v6861, %v6861
    %v6990 = vmul.f32 %v6862, %v6862
    %6991 = vadd.xlane.f32.xlu0 %v6863
    %v6992 = vpop.xlane.xlu0 %6991
    %6993 = vadd.xlane.f32.xlu0 %v6864
    %v6994 = vpop.xlane.xlu0 %6993
    %6995 = vadd.xlane.f32.xlu0 %v6865
    %v6996 = vpop.xlane.xlu0 %6995
    %6997 = vadd.xlane.f32.xlu0 %v6866
    %v6998 = vpop.xlane.xlu0 %6997
    %6999 = vadd.xlane.f32.xlu0 %v6867
    %v7000 = vpop.xlane.xlu0 %6999
    %7001 = vadd.xlane.f32.xlu0 %v6868
    %v7002 = vpop.xlane.xlu0 %7001
    %7003 = vadd.xlane.f32.xlu0 %v6869
    %v7004 = vpop.xlane.xlu0 %7003
    %7005 = vadd.xlane.f32.xlu0 %v6870
    %v7006 = vpop.xlane.xlu0 %7005
    %7007 = vadd.xlane.f32.xlu0 %v6871
    %v7008 = vpop.xlane.xlu0 %7007
    %7009 = vadd.xlane.f32.xlu0 %v6872
    %v7010 = vpop.xlane.xlu0 %7009
    %7011 = vadd.xlane.f32.xlu0 %v6873
    %v7012 = vpop.xlane.xlu0 %7011
    %7013 = vadd.xlane.f32.xlu0 %v6874
    %v7014 = vpop.xlane.xlu0 %7013
    %7015 = vadd.xlane.f32.xlu0 %v6875
    %v7016 = vpop.xlane.xlu0 %7015
    %7017 = vadd.xlane.f32.xlu0 %v6876
    %v7018 = vpop.xlane.xlu0 %7017
    %7019 = vadd.xlane.f32.xlu0 %v6877
    %v7020 = vpop.xlane.xlu0 %7019
    %7021 = vadd.xlane.f32.xlu0 %v6878
    %v7022 = vpop.xlane.xlu0 %7021
    %7023 = vadd.xlane.f32.xlu0 %v6879
    %v7024 = vpop.xlane.xlu0 %7023
    %7025 = vadd.xlane.f32.xlu0 %v6880
    %v7026 = vpop.xlane.xlu0 %7025
    %7027 = vadd.xlane.f32.xlu0 %v6881
    %v7028 = vpop.xlane.xlu0 %7027
    %7029 = vadd.xlane.f32.xlu0 %v6882
    %v7030 = vpop.xlane.xlu0 %7029
    %7031 = vadd.xlane.f32.xlu0 %v6883
    %v7032 = vpop.xlane.xlu0 %7031
    %7033 = vadd.xlane.f32.xlu0 %v6884
    %v7034 = vpop.xlane.xlu0 %7033
    %7035 = vadd.xlane.f32.xlu0 %v6885
    %v7036 = vpop.xlane.xlu0 %7035
    %7037 = vadd.xlane.f32.xlu0 %v6886
    %v7038 = vpop.xlane.xlu0 %7037
    %7039 = vadd.xlane.f32.xlu0 %v6887
    %v7040 = vpop.xlane.xlu0 %7039
    %7041 = vadd.xlane.f32.xlu0 %v6888
    %v7042 = vpop.xlane.xlu0 %7041
    %7043 = vadd.xlane.f32.xlu0 %v6889
    %v7044 = vpop.xlane.xlu0 %7043
    %7045 = vadd.xlane.f32.xlu0 %v6890
    %v7046 = vpop.xlane.xlu0 %7045
    %7047 = vadd.xlane.f32.xlu0 %v6891
    %v7048 = vpop.xlane.xlu0 %7047
    %7049 = vadd.xlane.f32.xlu0 %v6892
    %v7050 = vpop.xlane.xlu0 %7049
    %7051 = vadd.xlane.f32.xlu0 %v6893
    %v7052 = vpop.xlane.xlu0 %7051
    %7053 = vadd.xlane.f32.xlu0 %v6894
    %v7054 = vpop.xlane.xlu0 %7053
    %7055 = vadd.xlane.f32.xlu0 %v6895
    %v7056 = vpop.xlane.xlu0 %7055
    %7057 = vadd.xlane.f32.xlu0 %v6896
    %v7058 = vpop.xlane.xlu0 %7057
    %7059 = vadd.xlane.f32.xlu0 %v6897
    %v7060 = vpop.xlane.xlu0 %7059
    %7061 = vadd.xlane.f32.xlu0 %v6898
    %v7062 = vpop.xlane.xlu0 %7061
    %7063 = vadd.xlane.f32.xlu0 %v6899
    %v7064 = vpop.xlane.xlu0 %7063
    %7065 = vadd.xlane.f32.xlu0 %v6900
    %v7066 = vpop.xlane.xlu0 %7065
    %7067 = vadd.xlane.f32.xlu0 %v6901
    %v7068 = vpop.xlane.xlu0 %7067
    %7069 = vadd.xlane.f32.xlu0 %v6902
    %v7070 = vpop.xlane.xlu0 %7069
    %7071 = vadd.xlane.f32.xlu0 %v6903
    %v7072 = vpop.xlane.xlu0 %7071
    %7073 = vadd.xlane.f32.xlu0 %v6904
    %v7074 = vpop.xlane.xlu0 %7073
    %7075 = vadd.xlane.f32.xlu0 %v6905
    %v7076 = vpop.xlane.xlu0 %7075
    %7077 = vadd.xlane.f32.xlu0 %v6906
    %v7078 = vpop.xlane.xlu0 %7077
    %7079 = vadd.xlane.f32.xlu0 %v6907
    %v7080 = vpop.xlane.xlu0 %7079
    %7081 = vadd.xlane.f32.xlu0 %v6908
    %v7082 = vpop.xlane.xlu0 %7081
    %7083 = vadd.xlane.f32.xlu0 %v6909
    %v7084 = vpop.xlane.xlu0 %7083
    %7085 = vadd.xlane.f32.xlu0 %v6910
    %v7086 = vpop.xlane.xlu0 %7085
    %7087 = vadd.xlane.f32.xlu0 %v6911
    %v7088 = vpop.xlane.xlu0 %7087
    %7089 = vadd.xlane.f32.xlu0 %v6912
    %v7090 = vpop.xlane.xlu0 %7089
    %7091 = vadd.xlane.f32.xlu0 %v6913
    %v7092 = vpop.xlane.xlu0 %7091
    %7093 = vadd.xlane.f32.xlu0 %v6914
    %v7094 = vpop.xlane.xlu0 %7093
    %7095 = vadd.xlane.f32.xlu0 %v6915
    %v7096 = vpop.xlane.xlu0 %7095
    %7097 = vadd.xlane.f32.xlu0 %v6916
    %v7098 = vpop.xlane.xlu0 %7097
    %7099 = vadd.xlane.f32.xlu0 %v6917
    %v7100 = vpop.xlane.xlu0 %7099
    %7101 = vadd.xlane.f32.xlu0 %v6918
    %v7102 = vpop.xlane.xlu0 %7101
    %7103 = vadd.xlane.f32.xlu0 %v6919
    %v7104 = vpop.xlane.xlu0 %7103
    %7105 = vadd.xlane.f32.xlu0 %v6920
    %v7106 = vpop.xlane.xlu0 %7105
    %7107 = vadd.xlane.f32.xlu0 %v6921
    %v7108 = vpop.xlane.xlu0 %7107
    %7109 = vadd.xlane.f32.xlu0 %v6922
    %v7110 = vpop.xlane.xlu0 %7109
    %7111 = vadd.xlane.f32.xlu0 %v6923
    %v7112 = vpop.xlane.xlu0 %7111
    %7113 = vadd.xlane.f32.xlu0 %v6924
    %v7114 = vpop.xlane.xlu0 %7113
    %7115 = vadd.xlane.f32.xlu0 %v6925
    %v7116 = vpop.xlane.xlu0 %7115
    %7117 = vadd.xlane.f32.xlu0 %v6926
    %v7118 = vpop.xlane.xlu0 %7117
    %7119 = vadd.xlane.f32.xlu0 %v6927
    %v7120 = vpop.xlane.xlu0 %7119
    %7121 = vadd.xlane.f32.xlu0 %v6928
    %v7122 = vpop.xlane.xlu0 %7121
    %7123 = vadd.xlane.f32.xlu0 %v6929
    %v7124 = vpop.xlane.xlu0 %7123
    %7125 = vadd.xlane.f32.xlu0 %v6930
    %v7126 = vpop.xlane.xlu0 %7125
    %7127 = vadd.xlane.f32.xlu0 %v6931
    %v7128 = vpop.xlane.xlu0 %7127
    %7129 = vadd.xlane.f32.xlu0 %v6932
    %v7130 = vpop.xlane.xlu0 %7129
    %7131 = vadd.xlane.f32.xlu0 %v6933
    %v7132 = vpop.xlane.xlu0 %7131
    %7133 = vadd.xlane.f32.xlu0 %v6934
    %v7134 = vpop.xlane.xlu0 %7133
    %7135 = vadd.xlane.f32.xlu0 %v6935
    %v7136 = vpop.xlane.xlu0 %7135
    %7137 = vadd.xlane.f32.xlu0 %v6936
    %v7138 = vpop.xlane.xlu0 %7137
    %7139 = vadd.xlane.f32.xlu0 %v6937
    %v7140 = vpop.xlane.xlu0 %7139
    %7141 = vadd.xlane.f32.xlu0 %v6938
    %v7142 = vpop.xlane.xlu0 %7141
    %7143 = vadd.xlane.f32.xlu0 %v6939
    %v7144 = vpop.xlane.xlu0 %7143
    %7145 = vadd.xlane.f32.xlu0 %v6940
    %v7146 = vpop.xlane.xlu0 %7145
    %7147 = vadd.xlane.f32.xlu0 %v6941
    %v7148 = vpop.xlane.xlu0 %7147
    %7149 = vadd.xlane.f32.xlu0 %v6942
    %v7150 = vpop.xlane.xlu0 %7149
    %7151 = vadd.xlane.f32.xlu0 %v6943
    %v7152 = vpop.xlane.xlu0 %7151
    %7153 = vadd.xlane.f32.xlu0 %v6944
    %v7154 = vpop.xlane.xlu0 %7153
    %7155 = vadd.xlane.f32.xlu0 %v6945
    %v7156 = vpop.xlane.xlu0 %7155
    %7157 = vadd.xlane.f32.xlu0 %v6946
    %v7158 = vpop.xlane.xlu0 %7157
    %7159 = vadd.xlane.f32.xlu0 %v6947
    %v7160 = vpop.xlane.xlu0 %7159
    %7161 = vadd.xlane.f32.xlu0 %v6948
    %v7162 = vpop.xlane.xlu0 %7161
    %7163 = vadd.xlane.f32.xlu0 %v6949
    %v7164 = vpop.xlane.xlu0 %7163
    %7165 = vadd.xlane.f32.xlu0 %v6950
    %v7166 = vpop.xlane.xlu0 %7165
    %7167 = vadd.xlane.f32.xlu0 %v6951
    %v7168 = vpop.xlane.xlu0 %7167
    %7169 = vadd.xlane.f32.xlu0 %v6952
    %v7170 = vpop.xlane.xlu0 %7169
    %7171 = vadd.xlane.f32.xlu0 %v6953
    %v7172 = vpop.xlane.xlu0 %7171
    %7173 = vadd.xlane.f32.xlu0 %v6954
    %v7174 = vpop.xlane.xlu0 %7173
    %7175 = vadd.xlane.f32.xlu0 %v6955
    %v7176 = vpop.xlane.xlu0 %7175
    %7177 = vadd.xlane.f32.xlu0 %v6956
    %v7178 = vpop.xlane.xlu0 %7177
    %7179 = vadd.xlane.f32.xlu0 %v6957
    %v7180 = vpop.xlane.xlu0 %7179
    %7181 = vadd.xlane.f32.xlu0 %v6958
    %v7182 = vpop.xlane.xlu0 %7181
    %7183 = vadd.xlane.f32.xlu0 %v6959
    %v7184 = vpop.xlane.xlu0 %7183
    %7185 = vadd.xlane.f32.xlu0 %v6960
    %v7186 = vpop.xlane.xlu0 %7185
    %7187 = vadd.xlane.f32.xlu0 %v6961
    %v7188 = vpop.xlane.xlu0 %7187
    %7189 = vadd.xlane.f32.xlu0 %v6962
    %v7190 = vpop.xlane.xlu0 %7189
    %7191 = vadd.xlane.f32.xlu0 %v6963
    %v7192 = vpop.xlane.xlu0 %7191
    %7193 = vadd.xlane.f32.xlu0 %v6964
    %v7194 = vpop.xlane.xlu0 %7193
    %7195 = vadd.xlane.f32.xlu0 %v6965
    %v7196 = vpop.xlane.xlu0 %7195
    %7197 = vadd.xlane.f32.xlu0 %v6966
    %v7198 = vpop.xlane.xlu0 %7197
    %7199 = vadd.xlane.f32.xlu0 %v6967
    %v7200 = vpop.xlane.xlu0 %7199
    %7201 = vadd.xlane.f32.xlu0 %v6968
    %v7202 = vpop.xlane.xlu0 %7201
    %7203 = vadd.xlane.f32.xlu0 %v6969
    %v7204 = vpop.xlane.xlu0 %7203
    %7205 = vadd.xlane.f32.xlu0 %v6970
    %v7206 = vpop.xlane.xlu0 %7205
    %7207 = vadd.xlane.f32.xlu0 %v6971
    %v7208 = vpop.xlane.xlu0 %7207
    %7209 = vadd.xlane.f32.xlu0 %v6972
    %v7210 = vpop.xlane.xlu0 %7209
    %7211 = vadd.xlane.f32.xlu0 %v6973
    %v7212 = vpop.xlane.xlu0 %7211
    %7213 = vadd.xlane.f32.xlu0 %v6974
    %v7214 = vpop.xlane.xlu0 %7213
    %7215 = vadd.xlane.f32.xlu0 %v6975
    %v7216 = vpop.xlane.xlu0 %7215
    %7217 = vadd.xlane.f32.xlu0 %v6976
    %v7218 = vpop.xlane.xlu0 %7217
    %7219 = vadd.xlane.f32.xlu0 %v6977
    %v7220 = vpop.xlane.xlu0 %7219
    %7221 = vadd.xlane.f32.xlu0 %v6978
    %v7222 = vpop.xlane.xlu0 %7221
    %7223 = vadd.xlane.f32.xlu0 %v6979
    %v7224 = vpop.xlane.xlu0 %7223
    %7225 = vadd.xlane.f32.xlu0 %v6980
    %v7226 = vpop.xlane.xlu0 %7225
    %7227 = vadd.xlane.f32.xlu0 %v6981
    %v7228 = vpop.xlane.xlu0 %7227
    %7229 = vadd.xlane.f32.xlu0 %v6982
    %v7230 = vpop.xlane.xlu0 %7229
    %7231 = vadd.xlane.f32.xlu0 %v6983
    %v7232 = vpop.xlane.xlu0 %7231
    %7233 = vadd.xlane.f32.xlu0 %v6984
    %v7234 = vpop.xlane.xlu0 %7233
    %7235 = vadd.xlane.f32.xlu0 %v6985
    %v7236 = vpop.xlane.xlu0 %7235
    %7237 = vadd.xlane.f32.xlu0 %v6986
    %v7238 = vpop.xlane.xlu0 %7237
    %7239 = vadd.xlane.f32.xlu0 %v6987
    %v7240 = vpop.xlane.xlu0 %7239
    %7241 = vadd.xlane.f32.xlu0 %v6988
    %v7242 = vpop.xlane.xlu0 %7241
    %7243 = vadd.xlane.f32.xlu0 %v6989
    %v7244 = vpop.xlane.xlu0 %7243
    %7245 = vadd.xlane.f32.xlu0 %v6990
    %v7246 = vpop.xlane.xlu0 %7245
    %v7247 = vrsqrt.pop %v6992
    %v7248 = vmul.f32 %v6992, %v7247
    %vm7249 = vcmp.eq.f32.partialorder %v6992, inf
    %v7250 = vsel %vm7249, %v6992, %v7248
    %vm7251 = vcmp.eq.f32.partialorder %v6992, 0.0
    %v7252 = vand.u32 %v6992, 2147483648
    %v7253 = vsel %vm7251, %v7252, %v7250
    %v7254 = vrsqrt.pop %v6994
    %v7255 = vmul.f32 %v6994, %v7254
    %vm7256 = vcmp.eq.f32.partialorder %v6994, inf
    %v7257 = vsel %vm7256, %v6994, %v7255
    %vm7258 = vcmp.eq.f32.partialorder %v6994, 0.0
    %v7259 = vand.u32 %v6994, 2147483648
    %v7260 = vsel %vm7258, %v7259, %v7257
    %v7261 = vrsqrt.pop %v6996
    %v7262 = vmul.f32 %v6996, %v7261
    %vm7263 = vcmp.eq.f32.partialorder %v6996, inf
    %v7264 = vsel %vm7263, %v6996, %v7262
    %vm7265 = vcmp.eq.f32.partialorder %v6996, 0.0
    %v7266 = vand.u32 %v6996, 2147483648
    %v7267 = vsel %vm7265, %v7266, %v7264
    %v7268 = vrsqrt.pop %v6998
    %v7269 = vmul.f32 %v6998, %v7268
    %vm7270 = vcmp.eq.f32.partialorder %v6998, inf
    %v7271 = vsel %vm7270, %v6998, %v7269
    %vm7272 = vcmp.eq.f32.partialorder %v6998, 0.0
    %v7273 = vand.u32 %v6998, 2147483648
    %v7274 = vsel %vm7272, %v7273, %v7271
    %v7275 = vrsqrt.pop %v7000
    %v7276 = vmul.f32 %v7000, %v7275
    %vm7277 = vcmp.eq.f32.partialorder %v7000, inf
    %v7278 = vsel %vm7277, %v7000, %v7276
    %vm7279 = vcmp.eq.f32.partialorder %v7000, 0.0
    %v7280 = vand.u32 %v7000, 2147483648
    %v7281 = vsel %vm7279, %v7280, %v7278
    %v7282 = vrsqrt.pop %v7002
    %v7283 = vmul.f32 %v7002, %v7282
    %vm7284 = vcmp.eq.f32.partialorder %v7002, inf
    %v7285 = vsel %vm7284, %v7002, %v7283
    %vm7286 = vcmp.eq.f32.partialorder %v7002, 0.0
    %v7287 = vand.u32 %v7002, 2147483648
    %v7288 = vsel %vm7286, %v7287, %v7285
    %v7289 = vrsqrt.pop %v7004
    %v7290 = vmul.f32 %v7004, %v7289
    %vm7291 = vcmp.eq.f32.partialorder %v7004, inf
    %v7292 = vsel %vm7291, %v7004, %v7290
    %vm7293 = vcmp.eq.f32.partialorder %v7004, 0.0
    %v7294 = vand.u32 %v7004, 2147483648
    %v7295 = vsel %vm7293, %v7294, %v7292
    %v7296 = vrsqrt.pop %v7006
    %v7297 = vmul.f32 %v7006, %v7296
    %vm7298 = vcmp.eq.f32.partialorder %v7006, inf
    %v7299 = vsel %vm7298, %v7006, %v7297
    %vm7300 = vcmp.eq.f32.partialorder %v7006, 0.0
    %v7301 = vand.u32 %v7006, 2147483648
    %v7302 = vsel %vm7300, %v7301, %v7299
    %v7303 = vrsqrt.pop %v7008
    %v7304 = vmul.f32 %v7008, %v7303
    %vm7305 = vcmp.eq.f32.partialorder %v7008, inf
    %v7306 = vsel %vm7305, %v7008, %v7304
    %vm7307 = vcmp.eq.f32.partialorder %v7008, 0.0
    %v7308 = vand.u32 %v7008, 2147483648
    %v7309 = vsel %vm7307, %v7308, %v7306
    %v7310 = vrsqrt.pop %v7010
    %v7311 = vmul.f32 %v7010, %v7310
    %vm7312 = vcmp.eq.f32.partialorder %v7010, inf
    %v7313 = vsel %vm7312, %v7010, %v7311
    %vm7314 = vcmp.eq.f32.partialorder %v7010, 0.0
    %v7315 = vand.u32 %v7010, 2147483648
    %v7316 = vsel %vm7314, %v7315, %v7313
    %v7317 = vrsqrt.pop %v7012
    %v7318 = vmul.f32 %v7012, %v7317
    %vm7319 = vcmp.eq.f32.partialorder %v7012, inf
    %v7320 = vsel %vm7319, %v7012, %v7318
    %vm7321 = vcmp.eq.f32.partialorder %v7012, 0.0
    %v7322 = vand.u32 %v7012, 2147483648
    %v7323 = vsel %vm7321, %v7322, %v7320
    %v7324 = vrsqrt.pop %v7014
    %v7325 = vmul.f32 %v7014, %v7324
    %vm7326 = vcmp.eq.f32.partialorder %v7014, inf
    %v7327 = vsel %vm7326, %v7014, %v7325
    %vm7328 = vcmp.eq.f32.partialorder %v7014, 0.0
    %v7329 = vand.u32 %v7014, 2147483648
    %v7330 = vsel %vm7328, %v7329, %v7327
    %v7331 = vrsqrt.pop %v7016
    %v7332 = vmul.f32 %v7016, %v7331
    %vm7333 = vcmp.eq.f32.partialorder %v7016, inf
    %v7334 = vsel %vm7333, %v7016, %v7332
    %vm7335 = vcmp.eq.f32.partialorder %v7016, 0.0
    %v7336 = vand.u32 %v7016, 2147483648
    %v7337 = vsel %vm7335, %v7336, %v7334
    %v7338 = vrsqrt.pop %v7018
    %v7339 = vmul.f32 %v7018, %v7338
    %vm7340 = vcmp.eq.f32.partialorder %v7018, inf
    %v7341 = vsel %vm7340, %v7018, %v7339
    %vm7342 = vcmp.eq.f32.partialorder %v7018, 0.0
    %v7343 = vand.u32 %v7018, 2147483648
    %v7344 = vsel %vm7342, %v7343, %v7341
    %v7345 = vrsqrt.pop %v7020
    %v7346 = vmul.f32 %v7020, %v7345
    %vm7347 = vcmp.eq.f32.partialorder %v7020, inf
    %v7348 = vsel %vm7347, %v7020, %v7346
    %vm7349 = vcmp.eq.f32.partialorder %v7020, 0.0
    %v7350 = vand.u32 %v7020, 2147483648
    %v7351 = vsel %vm7349, %v7350, %v7348
    %v7352 = vrsqrt.pop %v7022
    %v7353 = vmul.f32 %v7022, %v7352
    %vm7354 = vcmp.eq.f32.partialorder %v7022, inf
    %v7355 = vsel %vm7354, %v7022, %v7353
    %vm7356 = vcmp.eq.f32.partialorder %v7022, 0.0
    %v7357 = vand.u32 %v7022, 2147483648
    %v7358 = vsel %vm7356, %v7357, %v7355
    %v7359 = vrsqrt.pop %v7024
    %v7360 = vmul.f32 %v7024, %v7359
    %vm7361 = vcmp.eq.f32.partialorder %v7024, inf
    %v7362 = vsel %vm7361, %v7024, %v7360
    %vm7363 = vcmp.eq.f32.partialorder %v7024, 0.0
    %v7364 = vand.u32 %v7024, 2147483648
    %v7365 = vsel %vm7363, %v7364, %v7362
    %v7366 = vrsqrt.pop %v7026
    %v7367 = vmul.f32 %v7026, %v7366
    %vm7368 = vcmp.eq.f32.partialorder %v7026, inf
    %v7369 = vsel %vm7368, %v7026, %v7367
    %vm7370 = vcmp.eq.f32.partialorder %v7026, 0.0
    %v7371 = vand.u32 %v7026, 2147483648
    %v7372 = vsel %vm7370, %v7371, %v7369
    %v7373 = vrsqrt.pop %v7028
    %v7374 = vmul.f32 %v7028, %v7373
    %vm7375 = vcmp.eq.f32.partialorder %v7028, inf
    %v7376 = vsel %vm7375, %v7028, %v7374
    %vm7377 = vcmp.eq.f32.partialorder %v7028, 0.0
    %v7378 = vand.u32 %v7028, 2147483648
    %v7379 = vsel %vm7377, %v7378, %v7376
    %v7380 = vrsqrt.pop %v7030
    %v7381 = vmul.f32 %v7030, %v7380
    %vm7382 = vcmp.eq.f32.partialorder %v7030, inf
    %v7383 = vsel %vm7382, %v7030, %v7381
    %vm7384 = vcmp.eq.f32.partialorder %v7030, 0.0
    %v7385 = vand.u32 %v7030, 2147483648
    %v7386 = vsel %vm7384, %v7385, %v7383
    %v7387 = vrsqrt.pop %v7032
    %v7388 = vmul.f32 %v7032, %v7387
    %vm7389 = vcmp.eq.f32.partialorder %v7032, inf
    %v7390 = vsel %vm7389, %v7032, %v7388
    %vm7391 = vcmp.eq.f32.partialorder %v7032, 0.0
    %v7392 = vand.u32 %v7032, 2147483648
    %v7393 = vsel %vm7391, %v7392, %v7390
    %v7394 = vrsqrt.pop %v7034
    %v7395 = vmul.f32 %v7034, %v7394
    %vm7396 = vcmp.eq.f32.partialorder %v7034, inf
    %v7397 = vsel %vm7396, %v7034, %v7395
    %vm7398 = vcmp.eq.f32.partialorder %v7034, 0.0
    %v7399 = vand.u32 %v7034, 2147483648
    %v7400 = vsel %vm7398, %v7399, %v7397
    %v7401 = vrsqrt.pop %v7036
    %v7402 = vmul.f32 %v7036, %v7401
    %vm7403 = vcmp.eq.f32.partialorder %v7036, inf
    %v7404 = vsel %vm7403, %v7036, %v7402
    %vm7405 = vcmp.eq.f32.partialorder %v7036, 0.0
    %v7406 = vand.u32 %v7036, 2147483648
    %v7407 = vsel %vm7405, %v7406, %v7404
    %v7408 = vrsqrt.pop %v7038
    %v7409 = vmul.f32 %v7038, %v7408
    %vm7410 = vcmp.eq.f32.partialorder %v7038, inf
    %v7411 = vsel %vm7410, %v7038, %v7409
    %vm7412 = vcmp.eq.f32.partialorder %v7038, 0.0
    %v7413 = vand.u32 %v7038, 2147483648
    %v7414 = vsel %vm7412, %v7413, %v7411
    %v7415 = vrsqrt.pop %v7040
    %v7416 = vmul.f32 %v7040, %v7415
    %vm7417 = vcmp.eq.f32.partialorder %v7040, inf
    %v7418 = vsel %vm7417, %v7040, %v7416
    %vm7419 = vcmp.eq.f32.partialorder %v7040, 0.0
    %v7420 = vand.u32 %v7040, 2147483648
    %v7421 = vsel %vm7419, %v7420, %v7418
    %v7422 = vrsqrt.pop %v7042
    %v7423 = vmul.f32 %v7042, %v7422
    %vm7424 = vcmp.eq.f32.partialorder %v7042, inf
    %v7425 = vsel %vm7424, %v7042, %v7423
    %vm7426 = vcmp.eq.f32.partialorder %v7042, 0.0
    %v7427 = vand.u32 %v7042, 2147483648
    %v7428 = vsel %vm7426, %v7427, %v7425
    %v7429 = vrsqrt.pop %v7044
    %v7430 = vmul.f32 %v7044, %v7429
    %vm7431 = vcmp.eq.f32.partialorder %v7044, inf
    %v7432 = vsel %vm7431, %v7044, %v7430
    %vm7433 = vcmp.eq.f32.partialorder %v7044, 0.0
    %v7434 = vand.u32 %v7044, 2147483648
    %v7435 = vsel %vm7433, %v7434, %v7432
    %v7436 = vrsqrt.pop %v7046
    %v7437 = vmul.f32 %v7046, %v7436
    %vm7438 = vcmp.eq.f32.partialorder %v7046, inf
    %v7439 = vsel %vm7438, %v7046, %v7437
    %vm7440 = vcmp.eq.f32.partialorder %v7046, 0.0
    %v7441 = vand.u32 %v7046, 2147483648
    %v7442 = vsel %vm7440, %v7441, %v7439
    %v7443 = vrsqrt.pop %v7048
    %v7444 = vmul.f32 %v7048, %v7443
    %vm7445 = vcmp.eq.f32.partialorder %v7048, inf
    %v7446 = vsel %vm7445, %v7048, %v7444
    %vm7447 = vcmp.eq.f32.partialorder %v7048, 0.0
    %v7448 = vand.u32 %v7048, 2147483648
    %v7449 = vsel %vm7447, %v7448, %v7446
    %v7450 = vrsqrt.pop %v7050
    %v7451 = vmul.f32 %v7050, %v7450
    %vm7452 = vcmp.eq.f32.partialorder %v7050, inf
    %v7453 = vsel %vm7452, %v7050, %v7451
    %vm7454 = vcmp.eq.f32.partialorder %v7050, 0.0
    %v7455 = vand.u32 %v7050, 2147483648
    %v7456 = vsel %vm7454, %v7455, %v7453
    %v7457 = vrsqrt.pop %v7052
    %v7458 = vmul.f32 %v7052, %v7457
    %vm7459 = vcmp.eq.f32.partialorder %v7052, inf
    %v7460 = vsel %vm7459, %v7052, %v7458
    %vm7461 = vcmp.eq.f32.partialorder %v7052, 0.0
    %v7462 = vand.u32 %v7052, 2147483648
    %v7463 = vsel %vm7461, %v7462, %v7460
    %v7464 = vrsqrt.pop %v7054
    %v7465 = vmul.f32 %v7054, %v7464
    %vm7466 = vcmp.eq.f32.partialorder %v7054, inf
    %v7467 = vsel %vm7466, %v7054, %v7465
    %vm7468 = vcmp.eq.f32.partialorder %v7054, 0.0
    %v7469 = vand.u32 %v7054, 2147483648
    %v7470 = vsel %vm7468, %v7469, %v7467
    %v7471 = vrsqrt.pop %v7056
    %v7472 = vmul.f32 %v7056, %v7471
    %vm7473 = vcmp.eq.f32.partialorder %v7056, inf
    %v7474 = vsel %vm7473, %v7056, %v7472
    %vm7475 = vcmp.eq.f32.partialorder %v7056, 0.0
    %v7476 = vand.u32 %v7056, 2147483648
    %v7477 = vsel %vm7475, %v7476, %v7474
    %v7478 = vrsqrt.pop %v7058
    %v7479 = vmul.f32 %v7058, %v7478
    %vm7480 = vcmp.eq.f32.partialorder %v7058, inf
    %v7481 = vsel %vm7480, %v7058, %v7479
    %vm7482 = vcmp.eq.f32.partialorder %v7058, 0.0
    %v7483 = vand.u32 %v7058, 2147483648
    %v7484 = vsel %vm7482, %v7483, %v7481
    %v7485 = vrsqrt.pop %v7060
    %v7486 = vmul.f32 %v7060, %v7485
    %vm7487 = vcmp.eq.f32.partialorder %v7060, inf
    %v7488 = vsel %vm7487, %v7060, %v7486
    %vm7489 = vcmp.eq.f32.partialorder %v7060, 0.0
    %v7490 = vand.u32 %v7060, 2147483648
    %v7491 = vsel %vm7489, %v7490, %v7488
    %v7492 = vrsqrt.pop %v7062
    %v7493 = vmul.f32 %v7062, %v7492
    %vm7494 = vcmp.eq.f32.partialorder %v7062, inf
    %v7495 = vsel %vm7494, %v7062, %v7493
    %vm7496 = vcmp.eq.f32.partialorder %v7062, 0.0
    %v7497 = vand.u32 %v7062, 2147483648
    %v7498 = vsel %vm7496, %v7497, %v7495
    %v7499 = vrsqrt.pop %v7064
    %v7500 = vmul.f32 %v7064, %v7499
    %vm7501 = vcmp.eq.f32.partialorder %v7064, inf
    %v7502 = vsel %vm7501, %v7064, %v7500
    %vm7503 = vcmp.eq.f32.partialorder %v7064, 0.0
    %v7504 = vand.u32 %v7064, 2147483648
    %v7505 = vsel %vm7503, %v7504, %v7502
    %v7506 = vrsqrt.pop %v7066
    %v7507 = vmul.f32 %v7066, %v7506
    %vm7508 = vcmp.eq.f32.partialorder %v7066, inf
    %v7509 = vsel %vm7508, %v7066, %v7507
    %vm7510 = vcmp.eq.f32.partialorder %v7066, 0.0
    %v7511 = vand.u32 %v7066, 2147483648
    %v7512 = vsel %vm7510, %v7511, %v7509
    %v7513 = vrsqrt.pop %v7068
    %v7514 = vmul.f32 %v7068, %v7513
    %vm7515 = vcmp.eq.f32.partialorder %v7068, inf
    %v7516 = vsel %vm7515, %v7068, %v7514
    %vm7517 = vcmp.eq.f32.partialorder %v7068, 0.0
    %v7518 = vand.u32 %v7068, 2147483648
    %v7519 = vsel %vm7517, %v7518, %v7516
    %v7520 = vrsqrt.pop %v7070
    %v7521 = vmul.f32 %v7070, %v7520
    %vm7522 = vcmp.eq.f32.partialorder %v7070, inf
    %v7523 = vsel %vm7522, %v7070, %v7521
    %vm7524 = vcmp.eq.f32.partialorder %v7070, 0.0
    %v7525 = vand.u32 %v7070, 2147483648
    %v7526 = vsel %vm7524, %v7525, %v7523
    %v7527 = vrsqrt.pop %v7072
    %v7528 = vmul.f32 %v7072, %v7527
    %vm7529 = vcmp.eq.f32.partialorder %v7072, inf
    %v7530 = vsel %vm7529, %v7072, %v7528
    %vm7531 = vcmp.eq.f32.partialorder %v7072, 0.0
    %v7532 = vand.u32 %v7072, 2147483648
    %v7533 = vsel %vm7531, %v7532, %v7530
    %v7534 = vrsqrt.pop %v7074
    %v7535 = vmul.f32 %v7074, %v7534
    %vm7536 = vcmp.eq.f32.partialorder %v7074, inf
    %v7537 = vsel %vm7536, %v7074, %v7535
    %vm7538 = vcmp.eq.f32.partialorder %v7074, 0.0
    %v7539 = vand.u32 %v7074, 2147483648
    %v7540 = vsel %vm7538, %v7539, %v7537
    %v7541 = vrsqrt.pop %v7076
    %v7542 = vmul.f32 %v7076, %v7541
    %vm7543 = vcmp.eq.f32.partialorder %v7076, inf
    %v7544 = vsel %vm7543, %v7076, %v7542
    %vm7545 = vcmp.eq.f32.partialorder %v7076, 0.0
    %v7546 = vand.u32 %v7076, 2147483648
    %v7547 = vsel %vm7545, %v7546, %v7544
    %v7548 = vrsqrt.pop %v7078
    %v7549 = vmul.f32 %v7078, %v7548
    %vm7550 = vcmp.eq.f32.partialorder %v7078, inf
    %v7551 = vsel %vm7550, %v7078, %v7549
    %vm7552 = vcmp.eq.f32.partialorder %v7078, 0.0
    %v7553 = vand.u32 %v7078, 2147483648
    %v7554 = vsel %vm7552, %v7553, %v7551
    %v7555 = vrsqrt.pop %v7080
    %v7556 = vmul.f32 %v7080, %v7555
    %vm7557 = vcmp.eq.f32.partialorder %v7080, inf
    %v7558 = vsel %vm7557, %v7080, %v7556
    %vm7559 = vcmp.eq.f32.partialorder %v7080, 0.0
    %v7560 = vand.u32 %v7080, 2147483648
    %v7561 = vsel %vm7559, %v7560, %v7558
    %v7562 = vrsqrt.pop %v7082
    %v7563 = vmul.f32 %v7082, %v7562
    %vm7564 = vcmp.eq.f32.partialorder %v7082, inf
    %v7565 = vsel %vm7564, %v7082, %v7563
    %vm7566 = vcmp.eq.f32.partialorder %v7082, 0.0
    %v7567 = vand.u32 %v7082, 2147483648
    %v7568 = vsel %vm7566, %v7567, %v7565
    %v7569 = vrsqrt.pop %v7084
    %v7570 = vmul.f32 %v7084, %v7569
    %vm7571 = vcmp.eq.f32.partialorder %v7084, inf
    %v7572 = vsel %vm7571, %v7084, %v7570
    %vm7573 = vcmp.eq.f32.partialorder %v7084, 0.0
    %v7574 = vand.u32 %v7084, 2147483648
    %v7575 = vsel %vm7573, %v7574, %v7572
    %v7576 = vrsqrt.pop %v7086
    %v7577 = vmul.f32 %v7086, %v7576
    %vm7578 = vcmp.eq.f32.partialorder %v7086, inf
    %v7579 = vsel %vm7578, %v7086, %v7577
    %vm7580 = vcmp.eq.f32.partialorder %v7086, 0.0
    %v7581 = vand.u32 %v7086, 2147483648
    %v7582 = vsel %vm7580, %v7581, %v7579
    %v7583 = vrsqrt.pop %v7088
    %v7584 = vmul.f32 %v7088, %v7583
    %vm7585 = vcmp.eq.f32.partialorder %v7088, inf
    %v7586 = vsel %vm7585, %v7088, %v7584
    %vm7587 = vcmp.eq.f32.partialorder %v7088, 0.0
    %v7588 = vand.u32 %v7088, 2147483648
    %v7589 = vsel %vm7587, %v7588, %v7586
    %v7590 = vrsqrt.pop %v7090
    %v7591 = vmul.f32 %v7090, %v7590
    %vm7592 = vcmp.eq.f32.partialorder %v7090, inf
    %v7593 = vsel %vm7592, %v7090, %v7591
    %vm7594 = vcmp.eq.f32.partialorder %v7090, 0.0
    %v7595 = vand.u32 %v7090, 2147483648
    %v7596 = vsel %vm7594, %v7595, %v7593
    %v7597 = vrsqrt.pop %v7092
    %v7598 = vmul.f32 %v7092, %v7597
    %vm7599 = vcmp.eq.f32.partialorder %v7092, inf
    %v7600 = vsel %vm7599, %v7092, %v7598
    %vm7601 = vcmp.eq.f32.partialorder %v7092, 0.0
    %v7602 = vand.u32 %v7092, 2147483648
    %v7603 = vsel %vm7601, %v7602, %v7600
    %v7604 = vrsqrt.pop %v7094
    %v7605 = vmul.f32 %v7094, %v7604
    %vm7606 = vcmp.eq.f32.partialorder %v7094, inf
    %v7607 = vsel %vm7606, %v7094, %v7605
    %vm7608 = vcmp.eq.f32.partialorder %v7094, 0.0
    %v7609 = vand.u32 %v7094, 2147483648
    %v7610 = vsel %vm7608, %v7609, %v7607
    %v7611 = vrsqrt.pop %v7096
    %v7612 = vmul.f32 %v7096, %v7611
    %vm7613 = vcmp.eq.f32.partialorder %v7096, inf
    %v7614 = vsel %vm7613, %v7096, %v7612
    %vm7615 = vcmp.eq.f32.partialorder %v7096, 0.0
    %v7616 = vand.u32 %v7096, 2147483648
    %v7617 = vsel %vm7615, %v7616, %v7614
    %v7618 = vrsqrt.pop %v7098
    %v7619 = vmul.f32 %v7098, %v7618
    %vm7620 = vcmp.eq.f32.partialorder %v7098, inf
    %v7621 = vsel %vm7620, %v7098, %v7619
    %vm7622 = vcmp.eq.f32.partialorder %v7098, 0.0
    %v7623 = vand.u32 %v7098, 2147483648
    %v7624 = vsel %vm7622, %v7623, %v7621
    %v7625 = vrsqrt.pop %v7100
    %v7626 = vmul.f32 %v7100, %v7625
    %vm7627 = vcmp.eq.f32.partialorder %v7100, inf
    %v7628 = vsel %vm7627, %v7100, %v7626
    %vm7629 = vcmp.eq.f32.partialorder %v7100, 0.0
    %v7630 = vand.u32 %v7100, 2147483648
    %v7631 = vsel %vm7629, %v7630, %v7628
    %v7632 = vrsqrt.pop %v7102
    %v7633 = vmul.f32 %v7102, %v7632
    %vm7634 = vcmp.eq.f32.partialorder %v7102, inf
    %v7635 = vsel %vm7634, %v7102, %v7633
    %vm7636 = vcmp.eq.f32.partialorder %v7102, 0.0
    %v7637 = vand.u32 %v7102, 2147483648
    %v7638 = vsel %vm7636, %v7637, %v7635
    %v7639 = vrsqrt.pop %v7104
    %v7640 = vmul.f32 %v7104, %v7639
    %vm7641 = vcmp.eq.f32.partialorder %v7104, inf
    %v7642 = vsel %vm7641, %v7104, %v7640
    %vm7643 = vcmp.eq.f32.partialorder %v7104, 0.0
    %v7644 = vand.u32 %v7104, 2147483648
    %v7645 = vsel %vm7643, %v7644, %v7642
    %v7646 = vrsqrt.pop %v7106
    %v7647 = vmul.f32 %v7106, %v7646
    %vm7648 = vcmp.eq.f32.partialorder %v7106, inf
    %v7649 = vsel %vm7648, %v7106, %v7647
    %vm7650 = vcmp.eq.f32.partialorder %v7106, 0.0
    %v7651 = vand.u32 %v7106, 2147483648
    %v7652 = vsel %vm7650, %v7651, %v7649
    %v7653 = vrsqrt.pop %v7108
    %v7654 = vmul.f32 %v7108, %v7653
    %vm7655 = vcmp.eq.f32.partialorder %v7108, inf
    %v7656 = vsel %vm7655, %v7108, %v7654
    %vm7657 = vcmp.eq.f32.partialorder %v7108, 0.0
    %v7658 = vand.u32 %v7108, 2147483648
    %v7659 = vsel %vm7657, %v7658, %v7656
    %v7660 = vrsqrt.pop %v7110
    %v7661 = vmul.f32 %v7110, %v7660
    %vm7662 = vcmp.eq.f32.partialorder %v7110, inf
    %v7663 = vsel %vm7662, %v7110, %v7661
    %vm7664 = vcmp.eq.f32.partialorder %v7110, 0.0
    %v7665 = vand.u32 %v7110, 2147483648
    %v7666 = vsel %vm7664, %v7665, %v7663
    %v7667 = vrsqrt.pop %v7112
    %v7668 = vmul.f32 %v7112, %v7667
    %vm7669 = vcmp.eq.f32.partialorder %v7112, inf
    %v7670 = vsel %vm7669, %v7112, %v7668
    %vm7671 = vcmp.eq.f32.partialorder %v7112, 0.0
    %v7672 = vand.u32 %v7112, 2147483648
    %v7673 = vsel %vm7671, %v7672, %v7670
    %v7674 = vrsqrt.pop %v7114
    %v7675 = vmul.f32 %v7114, %v7674
    %vm7676 = vcmp.eq.f32.partialorder %v7114, inf
    %v7677 = vsel %vm7676, %v7114, %v7675
    %vm7678 = vcmp.eq.f32.partialorder %v7114, 0.0
    %v7679 = vand.u32 %v7114, 2147483648
    %v7680 = vsel %vm7678, %v7679, %v7677
    %v7681 = vrsqrt.pop %v7116
    %v7682 = vmul.f32 %v7116, %v7681
    %vm7683 = vcmp.eq.f32.partialorder %v7116, inf
    %v7684 = vsel %vm7683, %v7116, %v7682
    %vm7685 = vcmp.eq.f32.partialorder %v7116, 0.0
    %v7686 = vand.u32 %v7116, 2147483648
    %v7687 = vsel %vm7685, %v7686, %v7684
    %v7688 = vrsqrt.pop %v7118
    %v7689 = vmul.f32 %v7118, %v7688
    %vm7690 = vcmp.eq.f32.partialorder %v7118, inf
    %v7691 = vsel %vm7690, %v7118, %v7689
    %vm7692 = vcmp.eq.f32.partialorder %v7118, 0.0
    %v7693 = vand.u32 %v7118, 2147483648
    %v7694 = vsel %vm7692, %v7693, %v7691
    %v7695 = vrsqrt.pop %v7120
    %v7696 = vmul.f32 %v7120, %v7695
    %vm7697 = vcmp.eq.f32.partialorder %v7120, inf
    %v7698 = vsel %vm7697, %v7120, %v7696
    %vm7699 = vcmp.eq.f32.partialorder %v7120, 0.0
    %v7700 = vand.u32 %v7120, 2147483648
    %v7701 = vsel %vm7699, %v7700, %v7698
    %v7702 = vrsqrt.pop %v7122
    %v7703 = vmul.f32 %v7122, %v7702
    %vm7704 = vcmp.eq.f32.partialorder %v7122, inf
    %v7705 = vsel %vm7704, %v7122, %v7703
    %vm7706 = vcmp.eq.f32.partialorder %v7122, 0.0
    %v7707 = vand.u32 %v7122, 2147483648
    %v7708 = vsel %vm7706, %v7707, %v7705
    %v7709 = vrsqrt.pop %v7124
    %v7710 = vmul.f32 %v7124, %v7709
    %vm7711 = vcmp.eq.f32.partialorder %v7124, inf
    %v7712 = vsel %vm7711, %v7124, %v7710
    %vm7713 = vcmp.eq.f32.partialorder %v7124, 0.0
    %v7714 = vand.u32 %v7124, 2147483648
    %v7715 = vsel %vm7713, %v7714, %v7712
    %v7716 = vrsqrt.pop %v7126
    %v7717 = vmul.f32 %v7126, %v7716
    %vm7718 = vcmp.eq.f32.partialorder %v7126, inf
    %v7719 = vsel %vm7718, %v7126, %v7717
    %vm7720 = vcmp.eq.f32.partialorder %v7126, 0.0
    %v7721 = vand.u32 %v7126, 2147483648
    %v7722 = vsel %vm7720, %v7721, %v7719
    %v7723 = vrsqrt.pop %v7128
    %v7724 = vmul.f32 %v7128, %v7723
    %vm7725 = vcmp.eq.f32.partialorder %v7128, inf
    %v7726 = vsel %vm7725, %v7128, %v7724
    %vm7727 = vcmp.eq.f32.partialorder %v7128, 0.0
    %v7728 = vand.u32 %v7128, 2147483648
    %v7729 = vsel %vm7727, %v7728, %v7726
    %v7730 = vrsqrt.pop %v7130
    %v7731 = vmul.f32 %v7130, %v7730
    %vm7732 = vcmp.eq.f32.partialorder %v7130, inf
    %v7733 = vsel %vm7732, %v7130, %v7731
    %vm7734 = vcmp.eq.f32.partialorder %v7130, 0.0
    %v7735 = vand.u32 %v7130, 2147483648
    %v7736 = vsel %vm7734, %v7735, %v7733
    %v7737 = vrsqrt.pop %v7132
    %v7738 = vmul.f32 %v7132, %v7737
    %vm7739 = vcmp.eq.f32.partialorder %v7132, inf
    %v7740 = vsel %vm7739, %v7132, %v7738
    %vm7741 = vcmp.eq.f32.partialorder %v7132, 0.0
    %v7742 = vand.u32 %v7132, 2147483648
    %v7743 = vsel %vm7741, %v7742, %v7740
    %v7744 = vrsqrt.pop %v7134
    %v7745 = vmul.f32 %v7134, %v7744
    %vm7746 = vcmp.eq.f32.partialorder %v7134, inf
    %v7747 = vsel %vm7746, %v7134, %v7745
    %vm7748 = vcmp.eq.f32.partialorder %v7134, 0.0
    %v7749 = vand.u32 %v7134, 2147483648
    %v7750 = vsel %vm7748, %v7749, %v7747
    %v7751 = vrsqrt.pop %v7136
    %v7752 = vmul.f32 %v7136, %v7751
    %vm7753 = vcmp.eq.f32.partialorder %v7136, inf
    %v7754 = vsel %vm7753, %v7136, %v7752
    %vm7755 = vcmp.eq.f32.partialorder %v7136, 0.0
    %v7756 = vand.u32 %v7136, 2147483648
    %v7757 = vsel %vm7755, %v7756, %v7754
    %v7758 = vrsqrt.pop %v7138
    %v7759 = vmul.f32 %v7138, %v7758
    %vm7760 = vcmp.eq.f32.partialorder %v7138, inf
    %v7761 = vsel %vm7760, %v7138, %v7759
    %vm7762 = vcmp.eq.f32.partialorder %v7138, 0.0
    %v7763 = vand.u32 %v7138, 2147483648
    %v7764 = vsel %vm7762, %v7763, %v7761
    %v7765 = vrsqrt.pop %v7140
    %v7766 = vmul.f32 %v7140, %v7765
    %vm7767 = vcmp.eq.f32.partialorder %v7140, inf
    %v7768 = vsel %vm7767, %v7140, %v7766
    %vm7769 = vcmp.eq.f32.partialorder %v7140, 0.0
    %v7770 = vand.u32 %v7140, 2147483648
    %v7771 = vsel %vm7769, %v7770, %v7768
    %v7772 = vrsqrt.pop %v7142
    %v7773 = vmul.f32 %v7142, %v7772
    %vm7774 = vcmp.eq.f32.partialorder %v7142, inf
    %v7775 = vsel %vm7774, %v7142, %v7773
    %vm7776 = vcmp.eq.f32.partialorder %v7142, 0.0
    %v7777 = vand.u32 %v7142, 2147483648
    %v7778 = vsel %vm7776, %v7777, %v7775
    %v7779 = vrsqrt.pop %v7144
    %v7780 = vmul.f32 %v7144, %v7779
    %vm7781 = vcmp.eq.f32.partialorder %v7144, inf
    %v7782 = vsel %vm7781, %v7144, %v7780
    %vm7783 = vcmp.eq.f32.partialorder %v7144, 0.0
    %v7784 = vand.u32 %v7144, 2147483648
    %v7785 = vsel %vm7783, %v7784, %v7782
    %v7786 = vrsqrt.pop %v7146
    %v7787 = vmul.f32 %v7146, %v7786
    %vm7788 = vcmp.eq.f32.partialorder %v7146, inf
    %v7789 = vsel %vm7788, %v7146, %v7787
    %vm7790 = vcmp.eq.f32.partialorder %v7146, 0.0
    %v7791 = vand.u32 %v7146, 2147483648
    %v7792 = vsel %vm7790, %v7791, %v7789
    %v7793 = vrsqrt.pop %v7148
    %v7794 = vmul.f32 %v7148, %v7793
    %vm7795 = vcmp.eq.f32.partialorder %v7148, inf
    %v7796 = vsel %vm7795, %v7148, %v7794
    %vm7797 = vcmp.eq.f32.partialorder %v7148, 0.0
    %v7798 = vand.u32 %v7148, 2147483648
    %v7799 = vsel %vm7797, %v7798, %v7796
    %v7800 = vrsqrt.pop %v7150
    %v7801 = vmul.f32 %v7150, %v7800
    %vm7802 = vcmp.eq.f32.partialorder %v7150, inf
    %v7803 = vsel %vm7802, %v7150, %v7801
    %vm7804 = vcmp.eq.f32.partialorder %v7150, 0.0
    %v7805 = vand.u32 %v7150, 2147483648
    %v7806 = vsel %vm7804, %v7805, %v7803
    %v7807 = vrsqrt.pop %v7152
    %v7808 = vmul.f32 %v7152, %v7807
    %vm7809 = vcmp.eq.f32.partialorder %v7152, inf
    %v7810 = vsel %vm7809, %v7152, %v7808
    %vm7811 = vcmp.eq.f32.partialorder %v7152, 0.0
    %v7812 = vand.u32 %v7152, 2147483648
    %v7813 = vsel %vm7811, %v7812, %v7810
    %v7814 = vrsqrt.pop %v7154
    %v7815 = vmul.f32 %v7154, %v7814
    %vm7816 = vcmp.eq.f32.partialorder %v7154, inf
    %v7817 = vsel %vm7816, %v7154, %v7815
    %vm7818 = vcmp.eq.f32.partialorder %v7154, 0.0
    %v7819 = vand.u32 %v7154, 2147483648
    %v7820 = vsel %vm7818, %v7819, %v7817
    %v7821 = vrsqrt.pop %v7156
    %v7822 = vmul.f32 %v7156, %v7821
    %vm7823 = vcmp.eq.f32.partialorder %v7156, inf
    %v7824 = vsel %vm7823, %v7156, %v7822
    %vm7825 = vcmp.eq.f32.partialorder %v7156, 0.0
    %v7826 = vand.u32 %v7156, 2147483648
    %v7827 = vsel %vm7825, %v7826, %v7824
    %v7828 = vrsqrt.pop %v7158
    %v7829 = vmul.f32 %v7158, %v7828
    %vm7830 = vcmp.eq.f32.partialorder %v7158, inf
    %v7831 = vsel %vm7830, %v7158, %v7829
    %vm7832 = vcmp.eq.f32.partialorder %v7158, 0.0
    %v7833 = vand.u32 %v7158, 2147483648
    %v7834 = vsel %vm7832, %v7833, %v7831
    %v7835 = vrsqrt.pop %v7160
    %v7836 = vmul.f32 %v7160, %v7835
    %vm7837 = vcmp.eq.f32.partialorder %v7160, inf
    %v7838 = vsel %vm7837, %v7160, %v7836
    %vm7839 = vcmp.eq.f32.partialorder %v7160, 0.0
    %v7840 = vand.u32 %v7160, 2147483648
    %v7841 = vsel %vm7839, %v7840, %v7838
    %v7842 = vrsqrt.pop %v7162
    %v7843 = vmul.f32 %v7162, %v7842
    %vm7844 = vcmp.eq.f32.partialorder %v7162, inf
    %v7845 = vsel %vm7844, %v7162, %v7843
    %vm7846 = vcmp.eq.f32.partialorder %v7162, 0.0
    %v7847 = vand.u32 %v7162, 2147483648
    %v7848 = vsel %vm7846, %v7847, %v7845
    %v7849 = vrsqrt.pop %v7164
    %v7850 = vmul.f32 %v7164, %v7849
    %vm7851 = vcmp.eq.f32.partialorder %v7164, inf
    %v7852 = vsel %vm7851, %v7164, %v7850
    %vm7853 = vcmp.eq.f32.partialorder %v7164, 0.0
    %v7854 = vand.u32 %v7164, 2147483648
    %v7855 = vsel %vm7853, %v7854, %v7852
    %v7856 = vrsqrt.pop %v7166
    %v7857 = vmul.f32 %v7166, %v7856
    %vm7858 = vcmp.eq.f32.partialorder %v7166, inf
    %v7859 = vsel %vm7858, %v7166, %v7857
    %vm7860 = vcmp.eq.f32.partialorder %v7166, 0.0
    %v7861 = vand.u32 %v7166, 2147483648
    %v7862 = vsel %vm7860, %v7861, %v7859
    %v7863 = vrsqrt.pop %v7168
    %v7864 = vmul.f32 %v7168, %v7863
    %vm7865 = vcmp.eq.f32.partialorder %v7168, inf
    %v7866 = vsel %vm7865, %v7168, %v7864
    %vm7867 = vcmp.eq.f32.partialorder %v7168, 0.0
    %v7868 = vand.u32 %v7168, 2147483648
    %v7869 = vsel %vm7867, %v7868, %v7866
    %v7870 = vrsqrt.pop %v7170
    %v7871 = vmul.f32 %v7170, %v7870
    %vm7872 = vcmp.eq.f32.partialorder %v7170, inf
    %v7873 = vsel %vm7872, %v7170, %v7871
    %vm7874 = vcmp.eq.f32.partialorder %v7170, 0.0
    %v7875 = vand.u32 %v7170, 2147483648
    %v7876 = vsel %vm7874, %v7875, %v7873
    %v7877 = vrsqrt.pop %v7172
    %v7878 = vmul.f32 %v7172, %v7877
    %vm7879 = vcmp.eq.f32.partialorder %v7172, inf
    %v7880 = vsel %vm7879, %v7172, %v7878
    %vm7881 = vcmp.eq.f32.partialorder %v7172, 0.0
    %v7882 = vand.u32 %v7172, 2147483648
    %v7883 = vsel %vm7881, %v7882, %v7880
    %v7884 = vrsqrt.pop %v7174
    %v7885 = vmul.f32 %v7174, %v7884
    %vm7886 = vcmp.eq.f32.partialorder %v7174, inf
    %v7887 = vsel %vm7886, %v7174, %v7885
    %vm7888 = vcmp.eq.f32.partialorder %v7174, 0.0
    %v7889 = vand.u32 %v7174, 2147483648
    %v7890 = vsel %vm7888, %v7889, %v7887
    %v7891 = vrsqrt.pop %v7176
    %v7892 = vmul.f32 %v7176, %v7891
    %vm7893 = vcmp.eq.f32.partialorder %v7176, inf
    %v7894 = vsel %vm7893, %v7176, %v7892
    %vm7895 = vcmp.eq.f32.partialorder %v7176, 0.0
    %v7896 = vand.u32 %v7176, 2147483648
    %v7897 = vsel %vm7895, %v7896, %v7894
    %v7898 = vrsqrt.pop %v7178
    %v7899 = vmul.f32 %v7178, %v7898
    %vm7900 = vcmp.eq.f32.partialorder %v7178, inf
    %v7901 = vsel %vm7900, %v7178, %v7899
    %vm7902 = vcmp.eq.f32.partialorder %v7178, 0.0
    %v7903 = vand.u32 %v7178, 2147483648
    %v7904 = vsel %vm7902, %v7903, %v7901
    %v7905 = vrsqrt.pop %v7180
    %v7906 = vmul.f32 %v7180, %v7905
    %vm7907 = vcmp.eq.f32.partialorder %v7180, inf
    %v7908 = vsel %vm7907, %v7180, %v7906
    %vm7909 = vcmp.eq.f32.partialorder %v7180, 0.0
    %v7910 = vand.u32 %v7180, 2147483648
    %v7911 = vsel %vm7909, %v7910, %v7908
    %v7912 = vrsqrt.pop %v7182
    %v7913 = vmul.f32 %v7182, %v7912
    %vm7914 = vcmp.eq.f32.partialorder %v7182, inf
    %v7915 = vsel %vm7914, %v7182, %v7913
    %vm7916 = vcmp.eq.f32.partialorder %v7182, 0.0
    %v7917 = vand.u32 %v7182, 2147483648
    %v7918 = vsel %vm7916, %v7917, %v7915
    %v7919 = vrsqrt.pop %v7184
    %v7920 = vmul.f32 %v7184, %v7919
    %vm7921 = vcmp.eq.f32.partialorder %v7184, inf
    %v7922 = vsel %vm7921, %v7184, %v7920
    %vm7923 = vcmp.eq.f32.partialorder %v7184, 0.0
    %v7924 = vand.u32 %v7184, 2147483648
    %v7925 = vsel %vm7923, %v7924, %v7922
    %v7926 = vrsqrt.pop %v7186
    %v7927 = vmul.f32 %v7186, %v7926
    %vm7928 = vcmp.eq.f32.partialorder %v7186, inf
    %v7929 = vsel %vm7928, %v7186, %v7927
    %vm7930 = vcmp.eq.f32.partialorder %v7186, 0.0
    %v7931 = vand.u32 %v7186, 2147483648
    %v7932 = vsel %vm7930, %v7931, %v7929
    %v7933 = vrsqrt.pop %v7188
    %v7934 = vmul.f32 %v7188, %v7933
    %vm7935 = vcmp.eq.f32.partialorder %v7188, inf
    %v7936 = vsel %vm7935, %v7188, %v7934
    %vm7937 = vcmp.eq.f32.partialorder %v7188, 0.0
    %v7938 = vand.u32 %v7188, 2147483648
    %v7939 = vsel %vm7937, %v7938, %v7936
    %v7940 = vrsqrt.pop %v7190
    %v7941 = vmul.f32 %v7190, %v7940
    %vm7942 = vcmp.eq.f32.partialorder %v7190, inf
    %v7943 = vsel %vm7942, %v7190, %v7941
    %vm7944 = vcmp.eq.f32.partialorder %v7190, 0.0
    %v7945 = vand.u32 %v7190, 2147483648
    %v7946 = vsel %vm7944, %v7945, %v7943
    %v7947 = vrsqrt.pop %v7192
    %v7948 = vmul.f32 %v7192, %v7947
    %vm7949 = vcmp.eq.f32.partialorder %v7192, inf
    %v7950 = vsel %vm7949, %v7192, %v7948
    %vm7951 = vcmp.eq.f32.partialorder %v7192, 0.0
    %v7952 = vand.u32 %v7192, 2147483648
    %v7953 = vsel %vm7951, %v7952, %v7950
    %v7954 = vrsqrt.pop %v7194
    %v7955 = vmul.f32 %v7194, %v7954
    %vm7956 = vcmp.eq.f32.partialorder %v7194, inf
    %v7957 = vsel %vm7956, %v7194, %v7955
    %vm7958 = vcmp.eq.f32.partialorder %v7194, 0.0
    %v7959 = vand.u32 %v7194, 2147483648
    %v7960 = vsel %vm7958, %v7959, %v7957
    %v7961 = vrsqrt.pop %v7196
    %v7962 = vmul.f32 %v7196, %v7961
    %vm7963 = vcmp.eq.f32.partialorder %v7196, inf
    %v7964 = vsel %vm7963, %v7196, %v7962
    %vm7965 = vcmp.eq.f32.partialorder %v7196, 0.0
    %v7966 = vand.u32 %v7196, 2147483648
    %v7967 = vsel %vm7965, %v7966, %v7964
    %v7968 = vrsqrt.pop %v7198
    %v7969 = vmul.f32 %v7198, %v7968
    %vm7970 = vcmp.eq.f32.partialorder %v7198, inf
    %v7971 = vsel %vm7970, %v7198, %v7969
    %vm7972 = vcmp.eq.f32.partialorder %v7198, 0.0
    %v7973 = vand.u32 %v7198, 2147483648
    %v7974 = vsel %vm7972, %v7973, %v7971
    %v7975 = vrsqrt.pop %v7200
    %v7976 = vmul.f32 %v7200, %v7975
    %vm7977 = vcmp.eq.f32.partialorder %v7200, inf
    %v7978 = vsel %vm7977, %v7200, %v7976
    %vm7979 = vcmp.eq.f32.partialorder %v7200, 0.0
    %v7980 = vand.u32 %v7200, 2147483648
    %v7981 = vsel %vm7979, %v7980, %v7978
    %v7982 = vrsqrt.pop %v7202
    %v7983 = vmul.f32 %v7202, %v7982
    %vm7984 = vcmp.eq.f32.partialorder %v7202, inf
    %v7985 = vsel %vm7984, %v7202, %v7983
    %vm7986 = vcmp.eq.f32.partialorder %v7202, 0.0
    %v7987 = vand.u32 %v7202, 2147483648
    %v7988 = vsel %vm7986, %v7987, %v7985
    %v7989 = vrsqrt.pop %v7204
    %v7990 = vmul.f32 %v7204, %v7989
    %vm7991 = vcmp.eq.f32.partialorder %v7204, inf
    %v7992 = vsel %vm7991, %v7204, %v7990
    %vm7993 = vcmp.eq.f32.partialorder %v7204, 0.0
    %v7994 = vand.u32 %v7204, 2147483648
    %v7995 = vsel %vm7993, %v7994, %v7992
    %v7996 = vrsqrt.pop %v7206
    %v7997 = vmul.f32 %v7206, %v7996
    %vm7998 = vcmp.eq.f32.partialorder %v7206, inf
    %v7999 = vsel %vm7998, %v7206, %v7997
    %vm8000 = vcmp.eq.f32.partialorder %v7206, 0.0
    %v8001 = vand.u32 %v7206, 2147483648
    %v8002 = vsel %vm8000, %v8001, %v7999
    %v8003 = vrsqrt.pop %v7208
    %v8004 = vmul.f32 %v7208, %v8003
    %vm8005 = vcmp.eq.f32.partialorder %v7208, inf
    %v8006 = vsel %vm8005, %v7208, %v8004
    %vm8007 = vcmp.eq.f32.partialorder %v7208, 0.0
    %v8008 = vand.u32 %v7208, 2147483648
    %v8009 = vsel %vm8007, %v8008, %v8006
    %v8010 = vrsqrt.pop %v7210
    %v8011 = vmul.f32 %v7210, %v8010
    %vm8012 = vcmp.eq.f32.partialorder %v7210, inf
    %v8013 = vsel %vm8012, %v7210, %v8011
    %vm8014 = vcmp.eq.f32.partialorder %v7210, 0.0
    %v8015 = vand.u32 %v7210, 2147483648
    %v8016 = vsel %vm8014, %v8015, %v8013
    %v8017 = vrsqrt.pop %v7212
    %v8018 = vmul.f32 %v7212, %v8017
    %vm8019 = vcmp.eq.f32.partialorder %v7212, inf
    %v8020 = vsel %vm8019, %v7212, %v8018
    %vm8021 = vcmp.eq.f32.partialorder %v7212, 0.0
    %v8022 = vand.u32 %v7212, 2147483648
    %v8023 = vsel %vm8021, %v8022, %v8020
    %v8024 = vrsqrt.pop %v7214
    %v8025 = vmul.f32 %v7214, %v8024
    %vm8026 = vcmp.eq.f32.partialorder %v7214, inf
    %v8027 = vsel %vm8026, %v7214, %v8025
    %vm8028 = vcmp.eq.f32.partialorder %v7214, 0.0
    %v8029 = vand.u32 %v7214, 2147483648
    %v8030 = vsel %vm8028, %v8029, %v8027
    %v8031 = vrsqrt.pop %v7216
    %v8032 = vmul.f32 %v7216, %v8031
    %vm8033 = vcmp.eq.f32.partialorder %v7216, inf
    %v8034 = vsel %vm8033, %v7216, %v8032
    %vm8035 = vcmp.eq.f32.partialorder %v7216, 0.0
    %v8036 = vand.u32 %v7216, 2147483648
    %v8037 = vsel %vm8035, %v8036, %v8034
    %v8038 = vrsqrt.pop %v7218
    %v8039 = vmul.f32 %v7218, %v8038
    %vm8040 = vcmp.eq.f32.partialorder %v7218, inf
    %v8041 = vsel %vm8040, %v7218, %v8039
    %vm8042 = vcmp.eq.f32.partialorder %v7218, 0.0
    %v8043 = vand.u32 %v7218, 2147483648
    %v8044 = vsel %vm8042, %v8043, %v8041
    %v8045 = vrsqrt.pop %v7220
    %v8046 = vmul.f32 %v7220, %v8045
    %vm8047 = vcmp.eq.f32.partialorder %v7220, inf
    %v8048 = vsel %vm8047, %v7220, %v8046
    %vm8049 = vcmp.eq.f32.partialorder %v7220, 0.0
    %v8050 = vand.u32 %v7220, 2147483648
    %v8051 = vsel %vm8049, %v8050, %v8048
    %v8052 = vrsqrt.pop %v7222
    %v8053 = vmul.f32 %v7222, %v8052
    %vm8054 = vcmp.eq.f32.partialorder %v7222, inf
    %v8055 = vsel %vm8054, %v7222, %v8053
    %vm8056 = vcmp.eq.f32.partialorder %v7222, 0.0
    %v8057 = vand.u32 %v7222, 2147483648
    %v8058 = vsel %vm8056, %v8057, %v8055
    %v8059 = vrsqrt.pop %v7224
    %v8060 = vmul.f32 %v7224, %v8059
    %vm8061 = vcmp.eq.f32.partialorder %v7224, inf
    %v8062 = vsel %vm8061, %v7224, %v8060
    %vm8063 = vcmp.eq.f32.partialorder %v7224, 0.0
    %v8064 = vand.u32 %v7224, 2147483648
    %v8065 = vsel %vm8063, %v8064, %v8062
    %v8066 = vrsqrt.pop %v7226
    %v8067 = vmul.f32 %v7226, %v8066
    %vm8068 = vcmp.eq.f32.partialorder %v7226, inf
    %v8069 = vsel %vm8068, %v7226, %v8067
    %vm8070 = vcmp.eq.f32.partialorder %v7226, 0.0
    %v8071 = vand.u32 %v7226, 2147483648
    %v8072 = vsel %vm8070, %v8071, %v8069
    %v8073 = vrsqrt.pop %v7228
    %v8074 = vmul.f32 %v7228, %v8073
    %vm8075 = vcmp.eq.f32.partialorder %v7228, inf
    %v8076 = vsel %vm8075, %v7228, %v8074
    %vm8077 = vcmp.eq.f32.partialorder %v7228, 0.0
    %v8078 = vand.u32 %v7228, 2147483648
    %v8079 = vsel %vm8077, %v8078, %v8076
    %v8080 = vrsqrt.pop %v7230
    %v8081 = vmul.f32 %v7230, %v8080
    %vm8082 = vcmp.eq.f32.partialorder %v7230, inf
    %v8083 = vsel %vm8082, %v7230, %v8081
    %vm8084 = vcmp.eq.f32.partialorder %v7230, 0.0
    %v8085 = vand.u32 %v7230, 2147483648
    %v8086 = vsel %vm8084, %v8085, %v8083
    %v8087 = vrsqrt.pop %v7232
    %v8088 = vmul.f32 %v7232, %v8087
    %vm8089 = vcmp.eq.f32.partialorder %v7232, inf
    %v8090 = vsel %vm8089, %v7232, %v8088
    %vm8091 = vcmp.eq.f32.partialorder %v7232, 0.0
    %v8092 = vand.u32 %v7232, 2147483648
    %v8093 = vsel %vm8091, %v8092, %v8090
    %v8094 = vrsqrt.pop %v7234
    %v8095 = vmul.f32 %v7234, %v8094
    %vm8096 = vcmp.eq.f32.partialorder %v7234, inf
    %v8097 = vsel %vm8096, %v7234, %v8095
    %vm8098 = vcmp.eq.f32.partialorder %v7234, 0.0
    %v8099 = vand.u32 %v7234, 2147483648
    %v8100 = vsel %vm8098, %v8099, %v8097
    %v8101 = vrsqrt.pop %v7236
    %v8102 = vmul.f32 %v7236, %v8101
    %vm8103 = vcmp.eq.f32.partialorder %v7236, inf
    %v8104 = vsel %vm8103, %v7236, %v8102
    %vm8105 = vcmp.eq.f32.partialorder %v7236, 0.0
    %v8106 = vand.u32 %v7236, 2147483648
    %v8107 = vsel %vm8105, %v8106, %v8104
    %v8108 = vrsqrt.pop %v7238
    %v8109 = vmul.f32 %v7238, %v8108
    %vm8110 = vcmp.eq.f32.partialorder %v7238, inf
    %v8111 = vsel %vm8110, %v7238, %v8109
    %vm8112 = vcmp.eq.f32.partialorder %v7238, 0.0
    %v8113 = vand.u32 %v7238, 2147483648
    %v8114 = vsel %vm8112, %v8113, %v8111
    %v8115 = vrsqrt.pop %v7240
    %v8116 = vmul.f32 %v7240, %v8115
    %vm8117 = vcmp.eq.f32.partialorder %v7240, inf
    %v8118 = vsel %vm8117, %v7240, %v8116
    %vm8119 = vcmp.eq.f32.partialorder %v7240, 0.0
    %v8120 = vand.u32 %v7240, 2147483648
    %v8121 = vsel %vm8119, %v8120, %v8118
    %v8122 = vrsqrt.pop %v7242
    %v8123 = vmul.f32 %v7242, %v8122
    %vm8124 = vcmp.eq.f32.partialorder %v7242, inf
    %v8125 = vsel %vm8124, %v7242, %v8123
    %vm8126 = vcmp.eq.f32.partialorder %v7242, 0.0
    %v8127 = vand.u32 %v7242, 2147483648
    %v8128 = vsel %vm8126, %v8127, %v8125
    %v8129 = vrsqrt.pop %v7244
    %v8130 = vmul.f32 %v7244, %v8129
    %vm8131 = vcmp.eq.f32.partialorder %v7244, inf
    %v8132 = vsel %vm8131, %v7244, %v8130
    %vm8133 = vcmp.eq.f32.partialorder %v7244, 0.0
    %v8134 = vand.u32 %v7244, 2147483648
    %v8135 = vsel %vm8133, %v8134, %v8132
    %v8136 = vrsqrt.pop %v7246
    %v8137 = vmul.f32 %v7246, %v8136
    %vm8138 = vcmp.eq.f32.partialorder %v7246, inf
    %v8139 = vsel %vm8138, %v7246, %v8137
    %vm8140 = vcmp.eq.f32.partialorder %v7246, 0.0
    %v8141 = vand.u32 %v7246, 2147483648
    %v8142 = vsel %vm8140, %v8141, %v8139
    %v8143 = vmax.f32 %v7253, 1e-07
    %v8144 = vmax.f32 %v7260, 1e-07
    %v8145 = vmax.f32 %v7267, 1e-07
    %v8146 = vmax.f32 %v7274, 1e-07
    %v8147 = vmax.f32 %v7281, 1e-07
    %v8148 = vmax.f32 %v7288, 1e-07
    %v8149 = vmax.f32 %v7295, 1e-07
    %v8150 = vmax.f32 %v7302, 1e-07
    %v8151 = vmax.f32 %v7309, 1e-07
    %v8152 = vmax.f32 %v7316, 1e-07
    %v8153 = vmax.f32 %v7323, 1e-07
    %v8154 = vmax.f32 %v7330, 1e-07
    %v8155 = vmax.f32 %v7337, 1e-07
    %v8156 = vmax.f32 %v7344, 1e-07
    %v8157 = vmax.f32 %v7351, 1e-07
    %v8158 = vmax.f32 %v7358, 1e-07
    %v8159 = vmax.f32 %v7365, 1e-07
    %v8160 = vmax.f32 %v7372, 1e-07
    %v8161 = vmax.f32 %v7379, 1e-07
    %v8162 = vmax.f32 %v7386, 1e-07
    %v8163 = vmax.f32 %v7393, 1e-07
    %v8164 = vmax.f32 %v7400, 1e-07
    %v8165 = vmax.f32 %v7407, 1e-07
    %v8166 = vmax.f32 %v7414, 1e-07
    %v8167 = vmax.f32 %v7421, 1e-07
    %v8168 = vmax.f32 %v7428, 1e-07
    %v8169 = vmax.f32 %v7435, 1e-07
    %v8170 = vmax.f32 %v7442, 1e-07
    %v8171 = vmax.f32 %v7449, 1e-07
    %v8172 = vmax.f32 %v7456, 1e-07
    %v8173 = vmax.f32 %v7463, 1e-07
    %v8174 = vmax.f32 %v7470, 1e-07
    %v8175 = vmax.f32 %v7477, 1e-07
    %v8176 = vmax.f32 %v7484, 1e-07
    %v8177 = vmax.f32 %v7491, 1e-07
    %v8178 = vmax.f32 %v7498, 1e-07
    %v8179 = vmax.f32 %v7505, 1e-07
    %v8180 = vmax.f32 %v7512, 1e-07
    %v8181 = vmax.f32 %v7519, 1e-07
    %v8182 = vmax.f32 %v7526, 1e-07
    %v8183 = vmax.f32 %v7533, 1e-07
    %v8184 = vmax.f32 %v7540, 1e-07
    %v8185 = vmax.f32 %v7547, 1e-07
    %v8186 = vmax.f32 %v7554, 1e-07
    %v8187 = vmax.f32 %v7561, 1e-07
    %v8188 = vmax.f32 %v7568, 1e-07
    %v8189 = vmax.f32 %v7575, 1e-07
    %v8190 = vmax.f32 %v7582, 1e-07
    %v8191 = vmax.f32 %v7589, 1e-07
    %v8192 = vmax.f32 %v7596, 1e-07
    %v8193 = vmax.f32 %v7603, 1e-07
    %v8194 = vmax.f32 %v7610, 1e-07
    %v8195 = vmax.f32 %v7617, 1e-07
    %v8196 = vmax.f32 %v7624, 1e-07
    %v8197 = vmax.f32 %v7631, 1e-07
    %v8198 = vmax.f32 %v7638, 1e-07
    %v8199 = vmax.f32 %v7645, 1e-07
    %v8200 = vmax.f32 %v7652, 1e-07
    %v8201 = vmax.f32 %v7659, 1e-07
    %v8202 = vmax.f32 %v7666, 1e-07
    %v8203 = vmax.f32 %v7673, 1e-07
    %v8204 = vmax.f32 %v7680, 1e-07
    %v8205 = vmax.f32 %v7687, 1e-07
    %v8206 = vmax.f32 %v7694, 1e-07
    %v8207 = vmax.f32 %v7701, 1e-07
    %v8208 = vmax.f32 %v7708, 1e-07
    %v8209 = vmax.f32 %v7715, 1e-07
    %v8210 = vmax.f32 %v7722, 1e-07
    %v8211 = vmax.f32 %v7729, 1e-07
    %v8212 = vmax.f32 %v7736, 1e-07
    %v8213 = vmax.f32 %v7743, 1e-07
    %v8214 = vmax.f32 %v7750, 1e-07
    %v8215 = vmax.f32 %v7757, 1e-07
    %v8216 = vmax.f32 %v7764, 1e-07
    %v8217 = vmax.f32 %v7771, 1e-07
    %v8218 = vmax.f32 %v7778, 1e-07
    %v8219 = vmax.f32 %v7785, 1e-07
    %v8220 = vmax.f32 %v7792, 1e-07
    %v8221 = vmax.f32 %v7799, 1e-07
    %v8222 = vmax.f32 %v7806, 1e-07
    %v8223 = vmax.f32 %v7813, 1e-07
    %v8224 = vmax.f32 %v7820, 1e-07
    %v8225 = vmax.f32 %v7827, 1e-07
    %v8226 = vmax.f32 %v7834, 1e-07
    %v8227 = vmax.f32 %v7841, 1e-07
    %v8228 = vmax.f32 %v7848, 1e-07
    %v8229 = vmax.f32 %v7855, 1e-07
    %v8230 = vmax.f32 %v7862, 1e-07
    %v8231 = vmax.f32 %v7869, 1e-07
    %v8232 = vmax.f32 %v7876, 1e-07
    %v8233 = vmax.f32 %v7883, 1e-07
    %v8234 = vmax.f32 %v7890, 1e-07
    %v8235 = vmax.f32 %v7897, 1e-07
    %v8236 = vmax.f32 %v7904, 1e-07
    %v8237 = vmax.f32 %v7911, 1e-07
    %v8238 = vmax.f32 %v7918, 1e-07
    %v8239 = vmax.f32 %v7925, 1e-07
    %v8240 = vmax.f32 %v7932, 1e-07
    %v8241 = vmax.f32 %v7939, 1e-07
    %v8242 = vmax.f32 %v7946, 1e-07
    %v8243 = vmax.f32 %v7953, 1e-07
    %v8244 = vmax.f32 %v7960, 1e-07
    %v8245 = vmax.f32 %v7967, 1e-07
    %v8246 = vmax.f32 %v7974, 1e-07
    %v8247 = vmax.f32 %v7981, 1e-07
    %v8248 = vmax.f32 %v7988, 1e-07
    %v8249 = vmax.f32 %v7995, 1e-07
    %v8250 = vmax.f32 %v8002, 1e-07
    %v8251 = vmax.f32 %v8009, 1e-07
    %v8252 = vmax.f32 %v8016, 1e-07
    %v8253 = vmax.f32 %v8023, 1e-07
    %v8254 = vmax.f32 %v8030, 1e-07
    %v8255 = vmax.f32 %v8037, 1e-07
    %v8256 = vmax.f32 %v8044, 1e-07
    %v8257 = vmax.f32 %v8051, 1e-07
    %v8258 = vmax.f32 %v8058, 1e-07
    %v8259 = vmax.f32 %v8065, 1e-07
    %v8260 = vmax.f32 %v8072, 1e-07
    %v8261 = vmax.f32 %v8079, 1e-07
    %v8262 = vmax.f32 %v8086, 1e-07
    %v8263 = vmax.f32 %v8093, 1e-07
    %v8264 = vmax.f32 %v8100, 1e-07
    %v8265 = vmax.f32 %v8107, 1e-07
    %v8266 = vmax.f32 %v8114, 1e-07
    %v8267 = vmax.f32 %v8121, 1e-07
    %v8268 = vmax.f32 %v8128, 1e-07
    %v8269 = vmax.f32 %v8135, 1e-07
    %v8270 = vmax.f32 %v8142, 1e-07
    %v8271 = vmax.f32 %v8143, -0.9999999
    %v8272 = vmax.f32 %v8144, -0.9999999
    %v8273 = vmax.f32 %v8145, -0.9999999
    %v8274 = vmax.f32 %v8146, -0.9999999
    %v8275 = vmax.f32 %v8147, -0.9999999
    %v8276 = vmax.f32 %v8148, -0.9999999
    %v8277 = vmax.f32 %v8149, -0.9999999
    %v8278 = vmax.f32 %v8150, -0.9999999
    %v8279 = vmax.f32 %v8151, -0.9999999
    %v8280 = vmax.f32 %v8152, -0.9999999
    %v8281 = vmax.f32 %v8153, -0.9999999
    %v8282 = vmax.f32 %v8154, -0.9999999
    %v8283 = vmax.f32 %v8155, -0.9999999
    %v8284 = vmax.f32 %v8156, -0.9999999
    %v8285 = vmax.f32 %v8157, -0.9999999
    %v8286 = vmax.f32 %v8158, -0.9999999
    %v8287 = vmax.f32 %v8159, -0.9999999
    %v8288 = vmax.f32 %v8160, -0.9999999
    %v8289 = vmax.f32 %v8161, -0.9999999
    %v8290 = vmax.f32 %v8162, -0.9999999
    %v8291 = vmax.f32 %v8163, -0.9999999
    %v8292 = vmax.f32 %v8164, -0.9999999
    %v8293 = vmax.f32 %v8165, -0.9999999
    %v8294 = vmax.f32 %v8166, -0.9999999
    %v8295 = vmax.f32 %v8167, -0.9999999
    %v8296 = vmax.f32 %v8168, -0.9999999
    %v8297 = vmax.f32 %v8169, -0.9999999
    %v8298 = vmax.f32 %v8170, -0.9999999
    %v8299 = vmax.f32 %v8171, -0.9999999
    %v8300 = vmax.f32 %v8172, -0.9999999
    %v8301 = vmax.f32 %v8173, -0.9999999
    %v8302 = vmax.f32 %v8174, -0.9999999
    %v8303 = vmax.f32 %v8175, -0.9999999
    %v8304 = vmax.f32 %v8176, -0.9999999
    %v8305 = vmax.f32 %v8177, -0.9999999
    %v8306 = vmax.f32 %v8178, -0.9999999
    %v8307 = vmax.f32 %v8179, -0.9999999
    %v8308 = vmax.f32 %v8180, -0.9999999
    %v8309 = vmax.f32 %v8181, -0.9999999
    %v8310 = vmax.f32 %v8182, -0.9999999
    %v8311 = vmax.f32 %v8183, -0.9999999
    %v8312 = vmax.f32 %v8184, -0.9999999
    %v8313 = vmax.f32 %v8185, -0.9999999
    %v8314 = vmax.f32 %v8186, -0.9999999
    %v8315 = vmax.f32 %v8187, -0.9999999
    %v8316 = vmax.f32 %v8188, -0.9999999
    %v8317 = vmax.f32 %v8189, -0.9999999
    %v8318 = vmax.f32 %v8190, -0.9999999
    %v8319 = vmax.f32 %v8191, -0.9999999
    %v8320 = vmax.f32 %v8192, -0.9999999
    %v8321 = vmax.f32 %v8193, -0.9999999
    %v8322 = vmax.f32 %v8194, -0.9999999
    %v8323 = vmax.f32 %v8195, -0.9999999
    %v8324 = vmax.f32 %v8196, -0.9999999
    %v8325 = vmax.f32 %v8197, -0.9999999
    %v8326 = vmax.f32 %v8198, -0.9999999
    %v8327 = vmax.f32 %v8199, -0.9999999
    %v8328 = vmax.f32 %v8200, -0.9999999
    %v8329 = vmax.f32 %v8201, -0.9999999
    %v8330 = vmax.f32 %v8202, -0.9999999
    %v8331 = vmax.f32 %v8203, -0.9999999
    %v8332 = vmax.f32 %v8204, -0.9999999
    %v8333 = vmax.f32 %v8205, -0.9999999
    %v8334 = vmax.f32 %v8206, -0.9999999
    %v8335 = vmax.f32 %v8207, -0.9999999
    %v8336 = vmax.f32 %v8208, -0.9999999
    %v8337 = vmax.f32 %v8209, -0.9999999
    %v8338 = vmax.f32 %v8210, -0.9999999
    %v8339 = vmax.f32 %v8211, -0.9999999
    %v8340 = vmax.f32 %v8212, -0.9999999
    %v8341 = vmax.f32 %v8213, -0.9999999
    %v8342 = vmax.f32 %v8214, -0.9999999
    %v8343 = vmax.f32 %v8215, -0.9999999
    %v8344 = vmax.f32 %v8216, -0.9999999
    %v8345 = vmax.f32 %v8217, -0.9999999
    %v8346 = vmax.f32 %v8218, -0.9999999
    %v8347 = vmax.f32 %v8219, -0.9999999
    %v8348 = vmax.f32 %v8220, -0.9999999
    %v8349 = vmax.f32 %v8221, -0.9999999
    %v8350 = vmax.f32 %v8222, -0.9999999
    %v8351 = vmax.f32 %v8223, -0.9999999
    %v8352 = vmax.f32 %v8224, -0.9999999
    %v8353 = vmax.f32 %v8225, -0.9999999
    %v8354 = vmax.f32 %v8226, -0.9999999
    %v8355 = vmax.f32 %v8227, -0.9999999
    %v8356 = vmax.f32 %v8228, -0.9999999
    %v8357 = vmax.f32 %v8229, -0.9999999
    %v8358 = vmax.f32 %v8230, -0.9999999
    %v8359 = vmax.f32 %v8231, -0.9999999
    %v8360 = vmax.f32 %v8232, -0.9999999
    %v8361 = vmax.f32 %v8233, -0.9999999
    %v8362 = vmax.f32 %v8234, -0.9999999
    %v8363 = vmax.f32 %v8235, -0.9999999
    %v8364 = vmax.f32 %v8236, -0.9999999
    %v8365 = vmax.f32 %v8237, -0.9999999
    %v8366 = vmax.f32 %v8238, -0.9999999
    %v8367 = vmax.f32 %v8239, -0.9999999
    %v8368 = vmax.f32 %v8240, -0.9999999
    %v8369 = vmax.f32 %v8241, -0.9999999
    %v8370 = vmax.f32 %v8242, -0.9999999
    %v8371 = vmax.f32 %v8243, -0.9999999
    %v8372 = vmax.f32 %v8244, -0.9999999
    %v8373 = vmax.f32 %v8245, -0.9999999
    %v8374 = vmax.f32 %v8246, -0.9999999
    %v8375 = vmax.f32 %v8247, -0.9999999
    %v8376 = vmax.f32 %v8248, -0.9999999
    %v8377 = vmax.f32 %v8249, -0.9999999
    %v8378 = vmax.f32 %v8250, -0.9999999
    %v8379 = vmax.f32 %v8251, -0.9999999
    %v8380 = vmax.f32 %v8252, -0.9999999
    %v8381 = vmax.f32 %v8253, -0.9999999
    %v8382 = vmax.f32 %v8254, -0.9999999
    %v8383 = vmax.f32 %v8255, -0.9999999
    %v8384 = vmax.f32 %v8256, -0.9999999
    %v8385 = vmax.f32 %v8257, -0.9999999
    %v8386 = vmax.f32 %v8258, -0.9999999
    %v8387 = vmax.f32 %v8259, -0.9999999
    %v8388 = vmax.f32 %v8260, -0.9999999
    %v8389 = vmax.f32 %v8261, -0.9999999
    %v8390 = vmax.f32 %v8262, -0.9999999
    %v8391 = vmax.f32 %v8263, -0.9999999
    %v8392 = vmax.f32 %v8264, -0.9999999
    %v8393 = vmax.f32 %v8265, -0.9999999
    %v8394 = vmax.f32 %v8266, -0.9999999
    %v8395 = vmax.f32 %v8267, -0.9999999
    %v8396 = vmax.f32 %v8268, -0.9999999
    %v8397 = vmax.f32 %v8269, -0.9999999
    %v8398 = vmax.f32 %v8270, -0.9999999
    %v8399 = vmin.f32 %v8271, 0.9999999
    %v8400 = vmin.f32 %v8272, 0.9999999
    %v8401 = vmin.f32 %v8273, 0.9999999
    %v8402 = vmin.f32 %v8274, 0.9999999
    %v8403 = vmin.f32 %v8275, 0.9999999
    %v8404 = vmin.f32 %v8276, 0.9999999
    %v8405 = vmin.f32 %v8277, 0.9999999
    %v8406 = vmin.f32 %v8278, 0.9999999
    %v8407 = vmin.f32 %v8279, 0.9999999
    %v8408 = vmin.f32 %v8280, 0.9999999
    %v8409 = vmin.f32 %v8281, 0.9999999
    %v8410 = vmin.f32 %v8282, 0.9999999
    %v8411 = vmin.f32 %v8283, 0.9999999
    %v8412 = vmin.f32 %v8284, 0.9999999
    %v8413 = vmin.f32 %v8285, 0.9999999
    %v8414 = vmin.f32 %v8286, 0.9999999
    %v8415 = vmin.f32 %v8287, 0.9999999
    %v8416 = vmin.f32 %v8288, 0.9999999
    %v8417 = vmin.f32 %v8289, 0.9999999
    %v8418 = vmin.f32 %v8290, 0.9999999
    %v8419 = vmin.f32 %v8291, 0.9999999
    %v8420 = vmin.f32 %v8292, 0.9999999
    %v8421 = vmin.f32 %v8293, 0.9999999
    %v8422 = vmin.f32 %v8294, 0.9999999
    %v8423 = vmin.f32 %v8295, 0.9999999
    %v8424 = vmin.f32 %v8296, 0.9999999
    %v8425 = vmin.f32 %v8297, 0.9999999
    %v8426 = vmin.f32 %v8298, 0.9999999
    %v8427 = vmin.f32 %v8299, 0.9999999
    %v8428 = vmin.f32 %v8300, 0.9999999
    %v8429 = vmin.f32 %v8301, 0.9999999
    %v8430 = vmin.f32 %v8302, 0.9999999
    %v8431 = vmin.f32 %v8303, 0.9999999
    %v8432 = vmin.f32 %v8304, 0.9999999
    %v8433 = vmin.f32 %v8305, 0.9999999
    %v8434 = vmin.f32 %v8306, 0.9999999
    %v8435 = vmin.f32 %v8307, 0.9999999
    %v8436 = vmin.f32 %v8308, 0.9999999
    %v8437 = vmin.f32 %v8309, 0.9999999
    %v8438 = vmin.f32 %v8310, 0.9999999
    %v8439 = vmin.f32 %v8311, 0.9999999
    %v8440 = vmin.f32 %v8312, 0.9999999
    %v8441 = vmin.f32 %v8313, 0.9999999
    %v8442 = vmin.f32 %v8314, 0.9999999
    %v8443 = vmin.f32 %v8315, 0.9999999
    %v8444 = vmin.f32 %v8316, 0.9999999
    %v8445 = vmin.f32 %v8317, 0.9999999
    %v8446 = vmin.f32 %v8318, 0.9999999
    %v8447 = vmin.f32 %v8319, 0.9999999
    %v8448 = vmin.f32 %v8320, 0.9999999
    %v8449 = vmin.f32 %v8321, 0.9999999
    %v8450 = vmin.f32 %v8322, 0.9999999
    %v8451 = vmin.f32 %v8323, 0.9999999
    %v8452 = vmin.f32 %v8324, 0.9999999
    %v8453 = vmin.f32 %v8325, 0.9999999
    %v8454 = vmin.f32 %v8326, 0.9999999
    %v8455 = vmin.f32 %v8327, 0.9999999
    %v8456 = vmin.f32 %v8328, 0.9999999
    %v8457 = vmin.f32 %v8329, 0.9999999
    %v8458 = vmin.f32 %v8330, 0.9999999
    %v8459 = vmin.f32 %v8331, 0.9999999
    %v8460 = vmin.f32 %v8332, 0.9999999
    %v8461 = vmin.f32 %v8333, 0.9999999
    %v8462 = vmin.f32 %v8334, 0.9999999
    %v8463 = vmin.f32 %v8335, 0.9999999
    %v8464 = vmin.f32 %v8336, 0.9999999
    %v8465 = vmin.f32 %v8337, 0.9999999
    %v8466 = vmin.f32 %v8338, 0.9999999
    %v8467 = vmin.f32 %v8339, 0.9999999
    %v8468 = vmin.f32 %v8340, 0.9999999
    %v8469 = vmin.f32 %v8341, 0.9999999
    %v8470 = vmin.f32 %v8342, 0.9999999
    %v8471 = vmin.f32 %v8343, 0.9999999
    %v8472 = vmin.f32 %v8344, 0.9999999
    %v8473 = vmin.f32 %v8345, 0.9999999
    %v8474 = vmin.f32 %v8346, 0.9999999
    %v8475 = vmin.f32 %v8347, 0.9999999
    %v8476 = vmin.f32 %v8348, 0.9999999
    %v8477 = vmin.f32 %v8349, 0.9999999
    %v8478 = vmin.f32 %v8350, 0.9999999
    %v8479 = vmin.f32 %v8351, 0.9999999
    %v8480 = vmin.f32 %v8352, 0.9999999
    %v8481 = vmin.f32 %v8353, 0.9999999
    %v8482 = vmin.f32 %v8354, 0.9999999
    %v8483 = vmin.f32 %v8355, 0.9999999
    %v8484 = vmin.f32 %v8356, 0.9999999
    %v8485 = vmin.f32 %v8357, 0.9999999
    %v8486 = vmin.f32 %v8358, 0.9999999
    %v8487 = vmin.f32 %v8359, 0.9999999
    %v8488 = vmin.f32 %v8360, 0.9999999
    %v8489 = vmin.f32 %v8361, 0.9999999
    %v8490 = vmin.f32 %v8362, 0.9999999
    %v8491 = vmin.f32 %v8363, 0.9999999
    %v8492 = vmin.f32 %v8364, 0.9999999
    %v8493 = vmin.f32 %v8365, 0.9999999
    %v8494 = vmin.f32 %v8366, 0.9999999
    %v8495 = vmin.f32 %v8367, 0.9999999
    %v8496 = vmin.f32 %v8368, 0.9999999
    %v8497 = vmin.f32 %v8369, 0.9999999
    %v8498 = vmin.f32 %v8370, 0.9999999
    %v8499 = vmin.f32 %v8371, 0.9999999
    %v8500 = vmin.f32 %v8372, 0.9999999
    %v8501 = vmin.f32 %v8373, 0.9999999
    %v8502 = vmin.f32 %v8374, 0.9999999
    %v8503 = vmin.f32 %v8375, 0.9999999
    %v8504 = vmin.f32 %v8376, 0.9999999
    %v8505 = vmin.f32 %v8377, 0.9999999
    %v8506 = vmin.f32 %v8378, 0.9999999
    %v8507 = vmin.f32 %v8379, 0.9999999
    %v8508 = vmin.f32 %v8380, 0.9999999
    %v8509 = vmin.f32 %v8381, 0.9999999
    %v8510 = vmin.f32 %v8382, 0.9999999
    %v8511 = vmin.f32 %v8383, 0.9999999
    %v8512 = vmin.f32 %v8384, 0.9999999
    %v8513 = vmin.f32 %v8385, 0.9999999
    %v8514 = vmin.f32 %v8386, 0.9999999
    %v8515 = vmin.f32 %v8387, 0.9999999
    %v8516 = vmin.f32 %v8388, 0.9999999
    %v8517 = vmin.f32 %v8389, 0.9999999
    %v8518 = vmin.f32 %v8390, 0.9999999
    %v8519 = vmin.f32 %v8391, 0.9999999
    %v8520 = vmin.f32 %v8392, 0.9999999
    %v8521 = vmin.f32 %v8393, 0.9999999
    %v8522 = vmin.f32 %v8394, 0.9999999
    %v8523 = vmin.f32 %v8395, 0.9999999
    %v8524 = vmin.f32 %v8396, 0.9999999
    %v8525 = vmin.f32 %v8397, 0.9999999
    %v8526 = vmin.f32 %v8398, 0.9999999
    %v8527 = vadd.f32 %v8399, 1.0
    %v8528 = vadd.f32 %v8400, 1.0
    %v8529 = vadd.f32 %v8401, 1.0
    %v8530 = vadd.f32 %v8402, 1.0
    %v8531 = vadd.f32 %v8403, 1.0
    %v8532 = vadd.f32 %v8404, 1.0
    %v8533 = vadd.f32 %v8405, 1.0
    %v8534 = vadd.f32 %v8406, 1.0
    %v8535 = vadd.f32 %v8407, 1.0
    %v8536 = vadd.f32 %v8408, 1.0
    %v8537 = vadd.f32 %v8409, 1.0
    %v8538 = vadd.f32 %v8410, 1.0
    %v8539 = vadd.f32 %v8411, 1.0
    %v8540 = vadd.f32 %v8412, 1.0
    %v8541 = vadd.f32 %v8413, 1.0
    %v8542 = vadd.f32 %v8414, 1.0
    %v8543 = vadd.f32 %v8415, 1.0
    %v8544 = vadd.f32 %v8416, 1.0
    %v8545 = vadd.f32 %v8417, 1.0
    %v8546 = vadd.f32 %v8418, 1.0
    %v8547 = vadd.f32 %v8419, 1.0
    %v8548 = vadd.f32 %v8420, 1.0
    %v8549 = vadd.f32 %v8421, 1.0
    %v8550 = vadd.f32 %v8422, 1.0
    %v8551 = vadd.f32 %v8423, 1.0
    %v8552 = vadd.f32 %v8424, 1.0
    %v8553 = vadd.f32 %v8425, 1.0
    %v8554 = vadd.f32 %v8426, 1.0
    %v8555 = vadd.f32 %v8427, 1.0
    %v8556 = vadd.f32 %v8428, 1.0
    %v8557 = vadd.f32 %v8429, 1.0
    %v8558 = vadd.f32 %v8430, 1.0
    %v8559 = vadd.f32 %v8431, 1.0
    %v8560 = vadd.f32 %v8432, 1.0
    %v8561 = vadd.f32 %v8433, 1.0
    %v8562 = vadd.f32 %v8434, 1.0
    %v8563 = vadd.f32 %v8435, 1.0
    %v8564 = vadd.f32 %v8436, 1.0
    %v8565 = vadd.f32 %v8437, 1.0
    %v8566 = vadd.f32 %v8438, 1.0
    %v8567 = vadd.f32 %v8439, 1.0
    %v8568 = vadd.f32 %v8440, 1.0
    %v8569 = vadd.f32 %v8441, 1.0
    %v8570 = vadd.f32 %v8442, 1.0
    %v8571 = vadd.f32 %v8443, 1.0
    %v8572 = vadd.f32 %v8444, 1.0
    %v8573 = vadd.f32 %v8445, 1.0
    %v8574 = vadd.f32 %v8446, 1.0
    %v8575 = vadd.f32 %v8447, 1.0
    %v8576 = vadd.f32 %v8448, 1.0
    %v8577 = vadd.f32 %v8449, 1.0
    %v8578 = vadd.f32 %v8450, 1.0
    %v8579 = vadd.f32 %v8451, 1.0
    %v8580 = vadd.f32 %v8452, 1.0
    %v8581 = vadd.f32 %v8453, 1.0
    %v8582 = vadd.f32 %v8454, 1.0
    %v8583 = vadd.f32 %v8455, 1.0
    %v8584 = vadd.f32 %v8456, 1.0
    %v8585 = vadd.f32 %v8457, 1.0
    %v8586 = vadd.f32 %v8458, 1.0
    %v8587 = vadd.f32 %v8459, 1.0
    %v8588 = vadd.f32 %v8460, 1.0
    %v8589 = vadd.f32 %v8461, 1.0
    %v8590 = vadd.f32 %v8462, 1.0
    %v8591 = vadd.f32 %v8463, 1.0
    %v8592 = vadd.f32 %v8464, 1.0
    %v8593 = vadd.f32 %v8465, 1.0
    %v8594 = vadd.f32 %v8466, 1.0
    %v8595 = vadd.f32 %v8467, 1.0
    %v8596 = vadd.f32 %v8468, 1.0
    %v8597 = vadd.f32 %v8469, 1.0
    %v8598 = vadd.f32 %v8470, 1.0
    %v8599 = vadd.f32 %v8471, 1.0
    %v8600 = vadd.f32 %v8472, 1.0
    %v8601 = vadd.f32 %v8473, 1.0
    %v8602 = vadd.f32 %v8474, 1.0
    %v8603 = vadd.f32 %v8475, 1.0
    %v8604 = vadd.f32 %v8476, 1.0
    %v8605 = vadd.f32 %v8477, 1.0
    %v8606 = vadd.f32 %v8478, 1.0
    %v8607 = vadd.f32 %v8479, 1.0
    %v8608 = vadd.f32 %v8480, 1.0
    %v8609 = vadd.f32 %v8481, 1.0
    %v8610 = vadd.f32 %v8482, 1.0
    %v8611 = vadd.f32 %v8483, 1.0
    %v8612 = vadd.f32 %v8484, 1.0
    %v8613 = vadd.f32 %v8485, 1.0
    %v8614 = vadd.f32 %v8486, 1.0
    %v8615 = vadd.f32 %v8487, 1.0
    %v8616 = vadd.f32 %v8488, 1.0
    %v8617 = vadd.f32 %v8489, 1.0
    %v8618 = vadd.f32 %v8490, 1.0
    %v8619 = vadd.f32 %v8491, 1.0
    %v8620 = vadd.f32 %v8492, 1.0
    %v8621 = vadd.f32 %v8493, 1.0
    %v8622 = vadd.f32 %v8494, 1.0
    %v8623 = vadd.f32 %v8495, 1.0
    %v8624 = vadd.f32 %v8496, 1.0
    %v8625 = vadd.f32 %v8497, 1.0
    %v8626 = vadd.f32 %v8498, 1.0
    %v8627 = vadd.f32 %v8499, 1.0
    %v8628 = vadd.f32 %v8500, 1.0
    %v8629 = vadd.f32 %v8501, 1.0
    %v8630 = vadd.f32 %v8502, 1.0
    %v8631 = vadd.f32 %v8503, 1.0
    %v8632 = vadd.f32 %v8504, 1.0
    %v8633 = vadd.f32 %v8505, 1.0
    %v8634 = vadd.f32 %v8506, 1.0
    %v8635 = vadd.f32 %v8507, 1.0
    %v8636 = vadd.f32 %v8508, 1.0
    %v8637 = vadd.f32 %v8509, 1.0
    %v8638 = vadd.f32 %v8510, 1.0
    %v8639 = vadd.f32 %v8511, 1.0
    %v8640 = vadd.f32 %v8512, 1.0
    %v8641 = vadd.f32 %v8513, 1.0
    %v8642 = vadd.f32 %v8514, 1.0
    %v8643 = vadd.f32 %v8515, 1.0
    %v8644 = vadd.f32 %v8516, 1.0
    %v8645 = vadd.f32 %v8517, 1.0
    %v8646 = vadd.f32 %v8518, 1.0
    %v8647 = vadd.f32 %v8519, 1.0
    %v8648 = vadd.f32 %v8520, 1.0
    %v8649 = vadd.f32 %v8521, 1.0
    %v8650 = vadd.f32 %v8522, 1.0
    %v8651 = vadd.f32 %v8523, 1.0
    %v8652 = vadd.f32 %v8524, 1.0
    %v8653 = vadd.f32 %v8525, 1.0
    %v8654 = vadd.f32 %v8526, 1.0
    %v8655 = vsub.f32 1.0, %v8399
    %v8656 = vsub.f32 1.0, %v8400
    %v8657 = vsub.f32 1.0, %v8401
    %v8658 = vsub.f32 1.0, %v8402
    %v8659 = vsub.f32 1.0, %v8403
    %v8660 = vsub.f32 1.0, %v8404
    %v8661 = vsub.f32 1.0, %v8405
    %v8662 = vsub.f32 1.0, %v8406
    %v8663 = vsub.f32 1.0, %v8407
    %v8664 = vsub.f32 1.0, %v8408
    %v8665 = vsub.f32 1.0, %v8409
    %v8666 = vsub.f32 1.0, %v8410
    %v8667 = vsub.f32 1.0, %v8411
    %v8668 = vsub.f32 1.0, %v8412
    %v8669 = vsub.f32 1.0, %v8413
    %v8670 = vsub.f32 1.0, %v8414
    %v8671 = vsub.f32 1.0, %v8415
    %v8672 = vsub.f32 1.0, %v8416
    %v8673 = vsub.f32 1.0, %v8417
    %v8674 = vsub.f32 1.0, %v8418
    %v8675 = vsub.f32 1.0, %v8419
    %v8676 = vsub.f32 1.0, %v8420
    %v8677 = vsub.f32 1.0, %v8421
    %v8678 = vsub.f32 1.0, %v8422
    %v8679 = vsub.f32 1.0, %v8423
    %v8680 = vsub.f32 1.0, %v8424
    %v8681 = vsub.f32 1.0, %v8425
    %v8682 = vsub.f32 1.0, %v8426
    %v8683 = vsub.f32 1.0, %v8427
    %v8684 = vsub.f32 1.0, %v8428
    %v8685 = vsub.f32 1.0, %v8429
    %v8686 = vsub.f32 1.0, %v8430
    %v8687 = vsub.f32 1.0, %v8431
    %v8688 = vsub.f32 1.0, %v8432
    %v8689 = vsub.f32 1.0, %v8433
    %v8690 = vsub.f32 1.0, %v8434
    %v8691 = vsub.f32 1.0, %v8435
    %v8692 = vsub.f32 1.0, %v8436
    %v8693 = vsub.f32 1.0, %v8437
    %v8694 = vsub.f32 1.0, %v8438
    %v8695 = vsub.f32 1.0, %v8439
    %v8696 = vsub.f32 1.0, %v8440
    %v8697 = vsub.f32 1.0, %v8441
    %v8698 = vsub.f32 1.0, %v8442
    %v8699 = vsub.f32 1.0, %v8443
    %v8700 = vsub.f32 1.0, %v8444
    %v8701 = vsub.f32 1.0, %v8445
    %v8702 = vsub.f32 1.0, %v8446
    %v8703 = vsub.f32 1.0, %v8447
    %v8704 = vsub.f32 1.0, %v8448
    %v8705 = vsub.f32 1.0, %v8449
    %v8706 = vsub.f32 1.0, %v8450
    %v8707 = vsub.f32 1.0, %v8451
    %v8708 = vsub.f32 1.0, %v8452
    %v8709 = vsub.f32 1.0, %v8453
    %v8710 = vsub.f32 1.0, %v8454
    %v8711 = vsub.f32 1.0, %v8455
    %v8712 = vsub.f32 1.0, %v8456
    %v8713 = vsub.f32 1.0, %v8457
    %v8714 = vsub.f32 1.0, %v8458
    %v8715 = vsub.f32 1.0, %v8459
    %v8716 = vsub.f32 1.0, %v8460
    %v8717 = vsub.f32 1.0, %v8461
    %v8718 = vsub.f32 1.0, %v8462
    %v8719 = vsub.f32 1.0, %v8463
    %v8720 = vsub.f32 1.0, %v8464
    %v8721 = vsub.f32 1.0, %v8465
    %v8722 = vsub.f32 1.0, %v8466
    %v8723 = vsub.f32 1.0, %v8467
    %v8724 = vsub.f32 1.0, %v8468
    %v8725 = vsub.f32 1.0, %v8469
    %v8726 = vsub.f32 1.0, %v8470
    %v8727 = vsub.f32 1.0, %v8471
    %v8728 = vsub.f32 1.0, %v8472
    %v8729 = vsub.f32 1.0, %v8473
    %v8730 = vsub.f32 1.0, %v8474
    %v8731 = vsub.f32 1.0, %v8475
    %v8732 = vsub.f32 1.0, %v8476
    %v8733 = vsub.f32 1.0, %v8477
    %v8734 = vsub.f32 1.0, %v8478
    %v8735 = vsub.f32 1.0, %v8479
    %v8736 = vsub.f32 1.0, %v8480
    %v8737 = vsub.f32 1.0, %v8481
    %v8738 = vsub.f32 1.0, %v8482
    %v8739 = vsub.f32 1.0, %v8483
    %v8740 = vsub.f32 1.0, %v8484
    %v8741 = vsub.f32 1.0, %v8485
    %v8742 = vsub.f32 1.0, %v8486
    %v8743 = vsub.f32 1.0, %v8487
    %v8744 = vsub.f32 1.0, %v8488
    %v8745 = vsub.f32 1.0, %v8489
    %v8746 = vsub.f32 1.0, %v8490
    %v8747 = vsub.f32 1.0, %v8491
    %v8748 = vsub.f32 1.0, %v8492
    %v8749 = vsub.f32 1.0, %v8493
    %v8750 = vsub.f32 1.0, %v8494
    %v8751 = vsub.f32 1.0, %v8495
    %v8752 = vsub.f32 1.0, %v8496
    %v8753 = vsub.f32 1.0, %v8497
    %v8754 = vsub.f32 1.0, %v8498
    %v8755 = vsub.f32 1.0, %v8499
    %v8756 = vsub.f32 1.0, %v8500
    %v8757 = vsub.f32 1.0, %v8501
    %v8758 = vsub.f32 1.0, %v8502
    %v8759 = vsub.f32 1.0, %v8503
    %v8760 = vsub.f32 1.0, %v8504
    %v8761 = vsub.f32 1.0, %v8505
    %v8762 = vsub.f32 1.0, %v8506
    %v8763 = vsub.f32 1.0, %v8507
    %v8764 = vsub.f32 1.0, %v8508
    %v8765 = vsub.f32 1.0, %v8509
    %v8766 = vsub.f32 1.0, %v8510
    %v8767 = vsub.f32 1.0, %v8511
    %v8768 = vsub.f32 1.0, %v8512
    %v8769 = vsub.f32 1.0, %v8513
    %v8770 = vsub.f32 1.0, %v8514
    %v8771 = vsub.f32 1.0, %v8515
    %v8772 = vsub.f32 1.0, %v8516
    %v8773 = vsub.f32 1.0, %v8517
    %v8774 = vsub.f32 1.0, %v8518
    %v8775 = vsub.f32 1.0, %v8519
    %v8776 = vsub.f32 1.0, %v8520
    %v8777 = vsub.f32 1.0, %v8521
    %v8778 = vsub.f32 1.0, %v8522
    %v8779 = vsub.f32 1.0, %v8523
    %v8780 = vsub.f32 1.0, %v8524
    %v8781 = vsub.f32 1.0, %v8525
    %v8782 = vsub.f32 1.0, %v8526
    %v8783 = vrcp.pop %v8655
    %v8784 = vmul.f32 %v8527, %v8783
    %v8785 = vrcp.pop %v8656
    %v8786 = vmul.f32 %v8528, %v8785
    %v8787 = vrcp.pop %v8657
    %v8788 = vmul.f32 %v8529, %v8787
    %v8789 = vrcp.pop %v8658
    %v8790 = vmul.f32 %v8530, %v8789
    %v8791 = vrcp.pop %v8659
    %v8792 = vmul.f32 %v8531, %v8791
    %v8793 = vrcp.pop %v8660
    %v8794 = vmul.f32 %v8532, %v8793
    %v8795 = vrcp.pop %v8661
    %v8796 = vmul.f32 %v8533, %v8795
    %v8797 = vrcp.pop %v8662
    %v8798 = vmul.f32 %v8534, %v8797
    %v8799 = vrcp.pop %v8663
    %v8800 = vmul.f32 %v8535, %v8799
    %v8801 = vrcp.pop %v8664
    %v8802 = vmul.f32 %v8536, %v8801
    %v8803 = vrcp.pop %v8665
    %v8804 = vmul.f32 %v8537, %v8803
    %v8805 = vrcp.pop %v8666
    %v8806 = vmul.f32 %v8538, %v8805
    %v8807 = vrcp.pop %v8667
    %v8808 = vmul.f32 %v8539, %v8807
    %v8809 = vrcp.pop %v8668
    %v8810 = vmul.f32 %v8540, %v8809
    %v8811 = vrcp.pop %v8669
    %v8812 = vmul.f32 %v8541, %v8811
    %v8813 = vrcp.pop %v8670
    %v8814 = vmul.f32 %v8542, %v8813
    %v8815 = vrcp.pop %v8671
    %v8816 = vmul.f32 %v8543, %v8815
    %v8817 = vrcp.pop %v8672
    %v8818 = vmul.f32 %v8544, %v8817
    %v8819 = vrcp.pop %v8673
    %v8820 = vmul.f32 %v8545, %v8819
    %v8821 = vrcp.pop %v8674
    %v8822 = vmul.f32 %v8546, %v8821
    %v8823 = vrcp.pop %v8675
    %v8824 = vmul.f32 %v8547, %v8823
    %v8825 = vrcp.pop %v8676
    %v8826 = vmul.f32 %v8548, %v8825
    %v8827 = vrcp.pop %v8677
    %v8828 = vmul.f32 %v8549, %v8827
    %v8829 = vrcp.pop %v8678
    %v8830 = vmul.f32 %v8550, %v8829
    %v8831 = vrcp.pop %v8679
    %v8832 = vmul.f32 %v8551, %v8831
    %v8833 = vrcp.pop %v8680
    %v8834 = vmul.f32 %v8552, %v8833
    %v8835 = vrcp.pop %v8681
    %v8836 = vmul.f32 %v8553, %v8835
    %v8837 = vrcp.pop %v8682
    %v8838 = vmul.f32 %v8554, %v8837
    %v8839 = vrcp.pop %v8683
    %v8840 = vmul.f32 %v8555, %v8839
    %v8841 = vrcp.pop %v8684
    %v8842 = vmul.f32 %v8556, %v8841
    %v8843 = vrcp.pop %v8685
    %v8844 = vmul.f32 %v8557, %v8843
    %v8845 = vrcp.pop %v8686
    %v8846 = vmul.f32 %v8558, %v8845
    %v8847 = vrcp.pop %v8687
    %v8848 = vmul.f32 %v8559, %v8847
    %v8849 = vrcp.pop %v8688
    %v8850 = vmul.f32 %v8560, %v8849
    %v8851 = vrcp.pop %v8689
    %v8852 = vmul.f32 %v8561, %v8851
    %v8853 = vrcp.pop %v8690
    %v8854 = vmul.f32 %v8562, %v8853
    %v8855 = vrcp.pop %v8691
    %v8856 = vmul.f32 %v8563, %v8855
    %v8857 = vrcp.pop %v8692
    %v8858 = vmul.f32 %v8564, %v8857
    %v8859 = vrcp.pop %v8693
    %v8860 = vmul.f32 %v8565, %v8859
    %v8861 = vrcp.pop %v8694
    %v8862 = vmul.f32 %v8566, %v8861
    %v8863 = vrcp.pop %v8695
    %v8864 = vmul.f32 %v8567, %v8863
    %v8865 = vrcp.pop %v8696
    %v8866 = vmul.f32 %v8568, %v8865
    %v8867 = vrcp.pop %v8697
    %v8868 = vmul.f32 %v8569, %v8867
    %v8869 = vrcp.pop %v8698
    %v8870 = vmul.f32 %v8570, %v8869
    %v8871 = vrcp.pop %v8699
    %v8872 = vmul.f32 %v8571, %v8871
    %v8873 = vrcp.pop %v8700
    %v8874 = vmul.f32 %v8572, %v8873
    %v8875 = vrcp.pop %v8701
    %v8876 = vmul.f32 %v8573, %v8875
    %v8877 = vrcp.pop %v8702
    %v8878 = vmul.f32 %v8574, %v8877
    %v8879 = vrcp.pop %v8703
    %v8880 = vmul.f32 %v8575, %v8879
    %v8881 = vrcp.pop %v8704
    %v8882 = vmul.f32 %v8576, %v8881
    %v8883 = vrcp.pop %v8705
    %v8884 = vmul.f32 %v8577, %v8883
    %v8885 = vrcp.pop %v8706
    %v8886 = vmul.f32 %v8578, %v8885
    %v8887 = vrcp.pop %v8707
    %v8888 = vmul.f32 %v8579, %v8887
    %v8889 = vrcp.pop %v8708
    %v8890 = vmul.f32 %v8580, %v8889
    %v8891 = vrcp.pop %v8709
    %v8892 = vmul.f32 %v8581, %v8891
    %v8893 = vrcp.pop %v8710
    %v8894 = vmul.f32 %v8582, %v8893
    %v8895 = vrcp.pop %v8711
    %v8896 = vmul.f32 %v8583, %v8895
    %v8897 = vrcp.pop %v8712
    %v8898 = vmul.f32 %v8584, %v8897
    %v8899 = vrcp.pop %v8713
    %v8900 = vmul.f32 %v8585, %v8899
    %v8901 = vrcp.pop %v8714
    %v8902 = vmul.f32 %v8586, %v8901
    %v8903 = vrcp.pop %v8715
    %v8904 = vmul.f32 %v8587, %v8903
    %v8905 = vrcp.pop %v8716
    %v8906 = vmul.f32 %v8588, %v8905
    %v8907 = vrcp.pop %v8717
    %v8908 = vmul.f32 %v8589, %v8907
    %v8909 = vrcp.pop %v8718
    %v8910 = vmul.f32 %v8590, %v8909
    %v8911 = vrcp.pop %v8719
    %v8912 = vmul.f32 %v8591, %v8911
    %v8913 = vrcp.pop %v8720
    %v8914 = vmul.f32 %v8592, %v8913
    %v8915 = vrcp.pop %v8721
    %v8916 = vmul.f32 %v8593, %v8915
    %v8917 = vrcp.pop %v8722
    %v8918 = vmul.f32 %v8594, %v8917
    %v8919 = vrcp.pop %v8723
    %v8920 = vmul.f32 %v8595, %v8919
    %v8921 = vrcp.pop %v8724
    %v8922 = vmul.f32 %v8596, %v8921
    %v8923 = vrcp.pop %v8725
    %v8924 = vmul.f32 %v8597, %v8923
    %v8925 = vrcp.pop %v8726
    %v8926 = vmul.f32 %v8598, %v8925
    %v8927 = vrcp.pop %v8727
    %v8928 = vmul.f32 %v8599, %v8927
    %v8929 = vrcp.pop %v8728
    %v8930 = vmul.f32 %v8600, %v8929
    %v8931 = vrcp.pop %v8729
    %v8932 = vmul.f32 %v8601, %v8931
    %v8933 = vrcp.pop %v8730
    %v8934 = vmul.f32 %v8602, %v8933
    %v8935 = vrcp.pop %v8731
    %v8936 = vmul.f32 %v8603, %v8935
    %v8937 = vrcp.pop %v8732
    %v8938 = vmul.f32 %v8604, %v8937
    %v8939 = vrcp.pop %v8733
    %v8940 = vmul.f32 %v8605, %v8939
    %v8941 = vrcp.pop %v8734
    %v8942 = vmul.f32 %v8606, %v8941
    %v8943 = vrcp.pop %v8735
    %v8944 = vmul.f32 %v8607, %v8943
    %v8945 = vrcp.pop %v8736
    %v8946 = vmul.f32 %v8608, %v8945
    %v8947 = vrcp.pop %v8737
    %v8948 = vmul.f32 %v8609, %v8947
    %v8949 = vrcp.pop %v8738
    %v8950 = vmul.f32 %v8610, %v8949
    %v8951 = vrcp.pop %v8739
    %v8952 = vmul.f32 %v8611, %v8951
    %v8953 = vrcp.pop %v8740
    %v8954 = vmul.f32 %v8612, %v8953
    %v8955 = vrcp.pop %v8741
    %v8956 = vmul.f32 %v8613, %v8955
    %v8957 = vrcp.pop %v8742
    %v8958 = vmul.f32 %v8614, %v8957
    %v8959 = vrcp.pop %v8743
    %v8960 = vmul.f32 %v8615, %v8959
    %v8961 = vrcp.pop %v8744
    %v8962 = vmul.f32 %v8616, %v8961
    %v8963 = vrcp.pop %v8745
    %v8964 = vmul.f32 %v8617, %v8963
    %v8965 = vrcp.pop %v8746
    %v8966 = vmul.f32 %v8618, %v8965
    %v8967 = vrcp.pop %v8747
    %v8968 = vmul.f32 %v8619, %v8967
    %v8969 = vrcp.pop %v8748
    %v8970 = vmul.f32 %v8620, %v8969
    %v8971 = vrcp.pop %v8749
    %v8972 = vmul.f32 %v8621, %v8971
    %v8973 = vrcp.pop %v8750
    %v8974 = vmul.f32 %v8622, %v8973
    %v8975 = vrcp.pop %v8751
    %v8976 = vmul.f32 %v8623, %v8975
    %v8977 = vrcp.pop %v8752
    %v8978 = vmul.f32 %v8624, %v8977
    %v8979 = vrcp.pop %v8753
    %v8980 = vmul.f32 %v8625, %v8979
    %v8981 = vrcp.pop %v8754
    %v8982 = vmul.f32 %v8626, %v8981
    %v8983 = vrcp.pop %v8755
    %v8984 = vmul.f32 %v8627, %v8983
    %v8985 = vrcp.pop %v8756
    %v8986 = vmul.f32 %v8628, %v8985
    %v8987 = vrcp.pop %v8757
    %v8988 = vmul.f32 %v8629, %v8987
    %v8989 = vrcp.pop %v8758
    %v8990 = vmul.f32 %v8630, %v8989
    %v8991 = vrcp.pop %v8759
    %v8992 = vmul.f32 %v8631, %v8991
    %v8993 = vrcp.pop %v8760
    %v8994 = vmul.f32 %v8632, %v8993
    %v8995 = vrcp.pop %v8761
    %v8996 = vmul.f32 %v8633, %v8995
    %v8997 = vrcp.pop %v8762
    %v8998 = vmul.f32 %v8634, %v8997
    %v8999 = vrcp.pop %v8763
    %v9000 = vmul.f32 %v8635, %v8999
    %v9001 = vrcp.pop %v8764
    %v9002 = vmul.f32 %v8636, %v9001
    %v9003 = vrcp.pop %v8765
    %v9004 = vmul.f32 %v8637, %v9003
    %v9005 = vrcp.pop %v8766
    %v9006 = vmul.f32 %v8638, %v9005
    %v9007 = vrcp.pop %v8767
    %v9008 = vmul.f32 %v8639, %v9007
    %v9009 = vrcp.pop %v8768
    %v9010 = vmul.f32 %v8640, %v9009
    %v9011 = vrcp.pop %v8769
    %v9012 = vmul.f32 %v8641, %v9011
    %v9013 = vrcp.pop %v8770
    %v9014 = vmul.f32 %v8642, %v9013
    %v9015 = vrcp.pop %v8771
    %v9016 = vmul.f32 %v8643, %v9015
    %v9017 = vrcp.pop %v8772
    %v9018 = vmul.f32 %v8644, %v9017
    %v9019 = vrcp.pop %v8773
    %v9020 = vmul.f32 %v8645, %v9019
    %v9021 = vrcp.pop %v8774
    %v9022 = vmul.f32 %v8646, %v9021
    %v9023 = vrcp.pop %v8775
    %v9024 = vmul.f32 %v8647, %v9023
    %v9025 = vrcp.pop %v8776
    %v9026 = vmul.f32 %v8648, %v9025
    %v9027 = vrcp.pop %v8777
    %v9028 = vmul.f32 %v8649, %v9027
    %v9029 = vrcp.pop %v8778
    %v9030 = vmul.f32 %v8650, %v9029
    %v9031 = vrcp.pop %v8779
    %v9032 = vmul.f32 %v8651, %v9031
    %v9033 = vrcp.pop %v8780
    %v9034 = vmul.f32 %v8652, %v9033
    %v9035 = vrcp.pop %v8781
    %v9036 = vmul.f32 %v8653, %v9035
    %v9037 = vrcp.pop %v8782
    %v9038 = vmul.f32 %v8654, %v9037
    %v9039 = vlog2.pop %v8784
    %v9040 = vmul.f32 %v9039, 0.6931472
    %v9041 = vlog2.pop %v8786
    %v9042 = vmul.f32 %v9041, 0.6931472
    %v9043 = vlog2.pop %v8788
    %v9044 = vmul.f32 %v9043, 0.6931472
    %v9045 = vlog2.pop %v8790
    %v9046 = vmul.f32 %v9045, 0.6931472
    %v9047 = vlog2.pop %v8792
    %v9048 = vmul.f32 %v9047, 0.6931472
    %v9049 = vlog2.pop %v8794
    %v9050 = vmul.f32 %v9049, 0.6931472
    %v9051 = vlog2.pop %v8796
    %v9052 = vmul.f32 %v9051, 0.6931472
    %v9053 = vlog2.pop %v8798
    %v9054 = vmul.f32 %v9053, 0.6931472
    %v9055 = vlog2.pop %v8800
    %v9056 = vmul.f32 %v9055, 0.6931472
    %v9057 = vlog2.pop %v8802
    %v9058 = vmul.f32 %v9057, 0.6931472
    %v9059 = vlog2.pop %v8804
    %v9060 = vmul.f32 %v9059, 0.6931472
    %v9061 = vlog2.pop %v8806
    %v9062 = vmul.f32 %v9061, 0.6931472
    %v9063 = vlog2.pop %v8808
    %v9064 = vmul.f32 %v9063, 0.6931472
    %v9065 = vlog2.pop %v8810
    %v9066 = vmul.f32 %v9065, 0.6931472
    %v9067 = vlog2.pop %v8812
    %v9068 = vmul.f32 %v9067, 0.6931472
    %v9069 = vlog2.pop %v8814
    %v9070 = vmul.f32 %v9069, 0.6931472
    %v9071 = vlog2.pop %v8816
    %v9072 = vmul.f32 %v9071, 0.6931472
    %v9073 = vlog2.pop %v8818
    %v9074 = vmul.f32 %v9073, 0.6931472
    %v9075 = vlog2.pop %v8820
    %v9076 = vmul.f32 %v9075, 0.6931472
    %v9077 = vlog2.pop %v8822
    %v9078 = vmul.f32 %v9077, 0.6931472
    %v9079 = vlog2.pop %v8824
    %v9080 = vmul.f32 %v9079, 0.6931472
    %v9081 = vlog2.pop %v8826
    %v9082 = vmul.f32 %v9081, 0.6931472
    %v9083 = vlog2.pop %v8828
    %v9084 = vmul.f32 %v9083, 0.6931472
    %v9085 = vlog2.pop %v8830
    %v9086 = vmul.f32 %v9085, 0.6931472
    %v9087 = vlog2.pop %v8832
    %v9088 = vmul.f32 %v9087, 0.6931472
    %v9089 = vlog2.pop %v8834
    %v9090 = vmul.f32 %v9089, 0.6931472
    %v9091 = vlog2.pop %v8836
    %v9092 = vmul.f32 %v9091, 0.6931472
    %v9093 = vlog2.pop %v8838
    %v9094 = vmul.f32 %v9093, 0.6931472
    %v9095 = vlog2.pop %v8840
    %v9096 = vmul.f32 %v9095, 0.6931472
    %v9097 = vlog2.pop %v8842
    %v9098 = vmul.f32 %v9097, 0.6931472
    %v9099 = vlog2.pop %v8844
    %v9100 = vmul.f32 %v9099, 0.6931472
    %v9101 = vlog2.pop %v8846
    %v9102 = vmul.f32 %v9101, 0.6931472
    %v9103 = vlog2.pop %v8848
    %v9104 = vmul.f32 %v9103, 0.6931472
    %v9105 = vlog2.pop %v8850
    %v9106 = vmul.f32 %v9105, 0.6931472
    %v9107 = vlog2.pop %v8852
    %v9108 = vmul.f32 %v9107, 0.6931472
    %v9109 = vlog2.pop %v8854
    %v9110 = vmul.f32 %v9109, 0.6931472
    %v9111 = vlog2.pop %v8856
    %v9112 = vmul.f32 %v9111, 0.6931472
    %v9113 = vlog2.pop %v8858
    %v9114 = vmul.f32 %v9113, 0.6931472
    %v9115 = vlog2.pop %v8860
    %v9116 = vmul.f32 %v9115, 0.6931472
    %v9117 = vlog2.pop %v8862
    %v9118 = vmul.f32 %v9117, 0.6931472
    %v9119 = vlog2.pop %v8864
    %v9120 = vmul.f32 %v9119, 0.6931472
    %v9121 = vlog2.pop %v8866
    %v9122 = vmul.f32 %v9121, 0.6931472
    %v9123 = vlog2.pop %v8868
    %v9124 = vmul.f32 %v9123, 0.6931472
    %v9125 = vlog2.pop %v8870
    %v9126 = vmul.f32 %v9125, 0.6931472
    %v9127 = vlog2.pop %v8872
    %v9128 = vmul.f32 %v9127, 0.6931472
    %v9129 = vlog2.pop %v8874
    %v9130 = vmul.f32 %v9129, 0.6931472
    %v9131 = vlog2.pop %v8876
    %v9132 = vmul.f32 %v9131, 0.6931472
    %v9133 = vlog2.pop %v8878
    %v9134 = vmul.f32 %v9133, 0.6931472
    %v9135 = vlog2.pop %v8880
    %v9136 = vmul.f32 %v9135, 0.6931472
    %v9137 = vlog2.pop %v8882
    %v9138 = vmul.f32 %v9137, 0.6931472
    %v9139 = vlog2.pop %v8884
    %v9140 = vmul.f32 %v9139, 0.6931472
    %v9141 = vlog2.pop %v8886
    %v9142 = vmul.f32 %v9141, 0.6931472
    %v9143 = vlog2.pop %v8888
    %v9144 = vmul.f32 %v9143, 0.6931472
    %v9145 = vlog2.pop %v8890
    %v9146 = vmul.f32 %v9145, 0.6931472
    %v9147 = vlog2.pop %v8892
    %v9148 = vmul.f32 %v9147, 0.6931472
    %v9149 = vlog2.pop %v8894
    %v9150 = vmul.f32 %v9149, 0.6931472
    %v9151 = vlog2.pop %v8896
    %v9152 = vmul.f32 %v9151, 0.6931472
    %v9153 = vlog2.pop %v8898
    %v9154 = vmul.f32 %v9153, 0.6931472
    %v9155 = vlog2.pop %v8900
    %v9156 = vmul.f32 %v9155, 0.6931472
    %v9157 = vlog2.pop %v8902
    %v9158 = vmul.f32 %v9157, 0.6931472
    %v9159 = vlog2.pop %v8904
    %v9160 = vmul.f32 %v9159, 0.6931472
    %v9161 = vlog2.pop %v8906
    %v9162 = vmul.f32 %v9161, 0.6931472
    %v9163 = vlog2.pop %v8908
    %v9164 = vmul.f32 %v9163, 0.6931472
    %v9165 = vlog2.pop %v8910
    %v9166 = vmul.f32 %v9165, 0.6931472
    %v9167 = vlog2.pop %v8912
    %v9168 = vmul.f32 %v9167, 0.6931472
    %v9169 = vlog2.pop %v8914
    %v9170 = vmul.f32 %v9169, 0.6931472
    %v9171 = vlog2.pop %v8916
    %v9172 = vmul.f32 %v9171, 0.6931472
    %v9173 = vlog2.pop %v8918
    %v9174 = vmul.f32 %v9173, 0.6931472
    %v9175 = vlog2.pop %v8920
    %v9176 = vmul.f32 %v9175, 0.6931472
    %v9177 = vlog2.pop %v8922
    %v9178 = vmul.f32 %v9177, 0.6931472
    %v9179 = vlog2.pop %v8924
    %v9180 = vmul.f32 %v9179, 0.6931472
    %v9181 = vlog2.pop %v8926
    %v9182 = vmul.f32 %v9181, 0.6931472
    %v9183 = vlog2.pop %v8928
    %v9184 = vmul.f32 %v9183, 0.6931472
    %v9185 = vlog2.pop %v8930
    %v9186 = vmul.f32 %v9185, 0.6931472
    %v9187 = vlog2.pop %v8932
    %v9188 = vmul.f32 %v9187, 0.6931472
    %v9189 = vlog2.pop %v8934
    %v9190 = vmul.f32 %v9189, 0.6931472
    %v9191 = vlog2.pop %v8936
    %v9192 = vmul.f32 %v9191, 0.6931472
    %v9193 = vlog2.pop %v8938
    %v9194 = vmul.f32 %v9193, 0.6931472
    %v9195 = vlog2.pop %v8940
    %v9196 = vmul.f32 %v9195, 0.6931472
    %v9197 = vlog2.pop %v8942
    %v9198 = vmul.f32 %v9197, 0.6931472
    %v9199 = vlog2.pop %v8944
    %v9200 = vmul.f32 %v9199, 0.6931472
    %v9201 = vlog2.pop %v8946
    %v9202 = vmul.f32 %v9201, 0.6931472
    %v9203 = vlog2.pop %v8948
    %v9204 = vmul.f32 %v9203, 0.6931472
    %v9205 = vlog2.pop %v8950
    %v9206 = vmul.f32 %v9205, 0.6931472
    %v9207 = vlog2.pop %v8952
    %v9208 = vmul.f32 %v9207, 0.6931472
    %v9209 = vlog2.pop %v8954
    %v9210 = vmul.f32 %v9209, 0.6931472
    %v9211 = vlog2.pop %v8956
    %v9212 = vmul.f32 %v9211, 0.6931472
    %v9213 = vlog2.pop %v8958
    %v9214 = vmul.f32 %v9213, 0.6931472
    %v9215 = vlog2.pop %v8960
    %v9216 = vmul.f32 %v9215, 0.6931472
    %v9217 = vlog2.pop %v8962
    %v9218 = vmul.f32 %v9217, 0.6931472
    %v9219 = vlog2.pop %v8964
    %v9220 = vmul.f32 %v9219, 0.6931472
    %v9221 = vlog2.pop %v8966
    %v9222 = vmul.f32 %v9221, 0.6931472
    %v9223 = vlog2.pop %v8968
    %v9224 = vmul.f32 %v9223, 0.6931472
    %v9225 = vlog2.pop %v8970
    %v9226 = vmul.f32 %v9225, 0.6931472
    %v9227 = vlog2.pop %v8972
    %v9228 = vmul.f32 %v9227, 0.6931472
    %v9229 = vlog2.pop %v8974
    %v9230 = vmul.f32 %v9229, 0.6931472
    %v9231 = vlog2.pop %v8976
    %v9232 = vmul.f32 %v9231, 0.6931472
    %v9233 = vlog2.pop %v8978
    %v9234 = vmul.f32 %v9233, 0.6931472
    %v9235 = vlog2.pop %v8980
    %v9236 = vmul.f32 %v9235, 0.6931472
    %v9237 = vlog2.pop %v8982
    %v9238 = vmul.f32 %v9237, 0.6931472
    %v9239 = vlog2.pop %v8984
    %v9240 = vmul.f32 %v9239, 0.6931472
    %v9241 = vlog2.pop %v8986
    %v9242 = vmul.f32 %v9241, 0.6931472
    %v9243 = vlog2.pop %v8988
    %v9244 = vmul.f32 %v9243, 0.6931472
    %v9245 = vlog2.pop %v8990
    %v9246 = vmul.f32 %v9245, 0.6931472
    %v9247 = vlog2.pop %v8992
    %v9248 = vmul.f32 %v9247, 0.6931472
    %v9249 = vlog2.pop %v8994
    %v9250 = vmul.f32 %v9249, 0.6931472
    %v9251 = vlog2.pop %v8996
    %v9252 = vmul.f32 %v9251, 0.6931472
    %v9253 = vlog2.pop %v8998
    %v9254 = vmul.f32 %v9253, 0.6931472
    %v9255 = vlog2.pop %v9000
    %v9256 = vmul.f32 %v9255, 0.6931472
    %v9257 = vlog2.pop %v9002
    %v9258 = vmul.f32 %v9257, 0.6931472
    %v9259 = vlog2.pop %v9004
    %v9260 = vmul.f32 %v9259, 0.6931472
    %v9261 = vlog2.pop %v9006
    %v9262 = vmul.f32 %v9261, 0.6931472
    %v9263 = vlog2.pop %v9008
    %v9264 = vmul.f32 %v9263, 0.6931472
    %v9265 = vlog2.pop %v9010
    %v9266 = vmul.f32 %v9265, 0.6931472
    %v9267 = vlog2.pop %v9012
    %v9268 = vmul.f32 %v9267, 0.6931472
    %v9269 = vlog2.pop %v9014
    %v9270 = vmul.f32 %v9269, 0.6931472
    %v9271 = vlog2.pop %v9016
    %v9272 = vmul.f32 %v9271, 0.6931472
    %v9273 = vlog2.pop %v9018
    %v9274 = vmul.f32 %v9273, 0.6931472
    %v9275 = vlog2.pop %v9020
    %v9276 = vmul.f32 %v9275, 0.6931472
    %v9277 = vlog2.pop %v9022
    %v9278 = vmul.f32 %v9277, 0.6931472
    %v9279 = vlog2.pop %v9024
    %v9280 = vmul.f32 %v9279, 0.6931472
    %v9281 = vlog2.pop %v9026
    %v9282 = vmul.f32 %v9281, 0.6931472
    %v9283 = vlog2.pop %v9028
    %v9284 = vmul.f32 %v9283, 0.6931472
    %v9285 = vlog2.pop %v9030
    %v9286 = vmul.f32 %v9285, 0.6931472
    %v9287 = vlog2.pop %v9032
    %v9288 = vmul.f32 %v9287, 0.6931472
    %v9289 = vlog2.pop %v9034
    %v9290 = vmul.f32 %v9289, 0.6931472
    %v9291 = vlog2.pop %v9036
    %v9292 = vmul.f32 %v9291, 0.6931472
    %v9293 = vlog2.pop %v9038
    %v9294 = vmul.f32 %v9293, 0.6931472
    %v9295 = vmul.f32 %v9040, 0.5
    %v9296 = vmul.f32 %v9042, 0.5
    %v9297 = vmul.f32 %v9044, 0.5
    %v9298 = vmul.f32 %v9046, 0.5
    %v9299 = vmul.f32 %v9048, 0.5
    %v9300 = vmul.f32 %v9050, 0.5
    %v9301 = vmul.f32 %v9052, 0.5
    %v9302 = vmul.f32 %v9054, 0.5
    %v9303 = vmul.f32 %v9056, 0.5
    %v9304 = vmul.f32 %v9058, 0.5
    %v9305 = vmul.f32 %v9060, 0.5
    %v9306 = vmul.f32 %v9062, 0.5
    %v9307 = vmul.f32 %v9064, 0.5
    %v9308 = vmul.f32 %v9066, 0.5
    %v9309 = vmul.f32 %v9068, 0.5
    %v9310 = vmul.f32 %v9070, 0.5
    %v9311 = vmul.f32 %v9072, 0.5
    %v9312 = vmul.f32 %v9074, 0.5
    %v9313 = vmul.f32 %v9076, 0.5
    %v9314 = vmul.f32 %v9078, 0.5
    %v9315 = vmul.f32 %v9080, 0.5
    %v9316 = vmul.f32 %v9082, 0.5
    %v9317 = vmul.f32 %v9084, 0.5
    %v9318 = vmul.f32 %v9086, 0.5
    %v9319 = vmul.f32 %v9088, 0.5
    %v9320 = vmul.f32 %v9090, 0.5
    %v9321 = vmul.f32 %v9092, 0.5
    %v9322 = vmul.f32 %v9094, 0.5
    %v9323 = vmul.f32 %v9096, 0.5
    %v9324 = vmul.f32 %v9098, 0.5
    %v9325 = vmul.f32 %v9100, 0.5
    %v9326 = vmul.f32 %v9102, 0.5
    %v9327 = vmul.f32 %v9104, 0.5
    %v9328 = vmul.f32 %v9106, 0.5
    %v9329 = vmul.f32 %v9108, 0.5
    %v9330 = vmul.f32 %v9110, 0.5
    %v9331 = vmul.f32 %v9112, 0.5
    %v9332 = vmul.f32 %v9114, 0.5
    %v9333 = vmul.f32 %v9116, 0.5
    %v9334 = vmul.f32 %v9118, 0.5
    %v9335 = vmul.f32 %v9120, 0.5
    %v9336 = vmul.f32 %v9122, 0.5
    %v9337 = vmul.f32 %v9124, 0.5
    %v9338 = vmul.f32 %v9126, 0.5
    %v9339 = vmul.f32 %v9128, 0.5
    %v9340 = vmul.f32 %v9130, 0.5
    %v9341 = vmul.f32 %v9132, 0.5
    %v9342 = vmul.f32 %v9134, 0.5
    %v9343 = vmul.f32 %v9136, 0.5
    %v9344 = vmul.f32 %v9138, 0.5
    %v9345 = vmul.f32 %v9140, 0.5
    %v9346 = vmul.f32 %v9142, 0.5
    %v9347 = vmul.f32 %v9144, 0.5
    %v9348 = vmul.f32 %v9146, 0.5
    %v9349 = vmul.f32 %v9148, 0.5
    %v9350 = vmul.f32 %v9150, 0.5
    %v9351 = vmul.f32 %v9152, 0.5
    %v9352 = vmul.f32 %v9154, 0.5
    %v9353 = vmul.f32 %v9156, 0.5
    %v9354 = vmul.f32 %v9158, 0.5
    %v9355 = vmul.f32 %v9160, 0.5
    %v9356 = vmul.f32 %v9162, 0.5
    %v9357 = vmul.f32 %v9164, 0.5
    %v9358 = vmul.f32 %v9166, 0.5
    %v9359 = vmul.f32 %v9168, 0.5
    %v9360 = vmul.f32 %v9170, 0.5
    %v9361 = vmul.f32 %v9172, 0.5
    %v9362 = vmul.f32 %v9174, 0.5
    %v9363 = vmul.f32 %v9176, 0.5
    %v9364 = vmul.f32 %v9178, 0.5
    %v9365 = vmul.f32 %v9180, 0.5
    %v9366 = vmul.f32 %v9182, 0.5
    %v9367 = vmul.f32 %v9184, 0.5
    %v9368 = vmul.f32 %v9186, 0.5
    %v9369 = vmul.f32 %v9188, 0.5
    %v9370 = vmul.f32 %v9190, 0.5
    %v9371 = vmul.f32 %v9192, 0.5
    %v9372 = vmul.f32 %v9194, 0.5
    %v9373 = vmul.f32 %v9196, 0.5
    %v9374 = vmul.f32 %v9198, 0.5
    %v9375 = vmul.f32 %v9200, 0.5
    %v9376 = vmul.f32 %v9202, 0.5
    %v9377 = vmul.f32 %v9204, 0.5
    %v9378 = vmul.f32 %v9206, 0.5
    %v9379 = vmul.f32 %v9208, 0.5
    %v9380 = vmul.f32 %v9210, 0.5
    %v9381 = vmul.f32 %v9212, 0.5
    %v9382 = vmul.f32 %v9214, 0.5
    %v9383 = vmul.f32 %v9216, 0.5
    %v9384 = vmul.f32 %v9218, 0.5
    %v9385 = vmul.f32 %v9220, 0.5
    %v9386 = vmul.f32 %v9222, 0.5
    %v9387 = vmul.f32 %v9224, 0.5
    %v9388 = vmul.f32 %v9226, 0.5
    %v9389 = vmul.f32 %v9228, 0.5
    %v9390 = vmul.f32 %v9230, 0.5
    %v9391 = vmul.f32 %v9232, 0.5
    %v9392 = vmul.f32 %v9234, 0.5
    %v9393 = vmul.f32 %v9236, 0.5
    %v9394 = vmul.f32 %v9238, 0.5
    %v9395 = vmul.f32 %v9240, 0.5
    %v9396 = vmul.f32 %v9242, 0.5
    %v9397 = vmul.f32 %v9244, 0.5
    %v9398 = vmul.f32 %v9246, 0.5
    %v9399 = vmul.f32 %v9248, 0.5
    %v9400 = vmul.f32 %v9250, 0.5
    %v9401 = vmul.f32 %v9252, 0.5
    %v9402 = vmul.f32 %v9254, 0.5
    %v9403 = vmul.f32 %v9256, 0.5
    %v9404 = vmul.f32 %v9258, 0.5
    %v9405 = vmul.f32 %v9260, 0.5
    %v9406 = vmul.f32 %v9262, 0.5
    %v9407 = vmul.f32 %v9264, 0.5
    %v9408 = vmul.f32 %v9266, 0.5
    %v9409 = vmul.f32 %v9268, 0.5
    %v9410 = vmul.f32 %v9270, 0.5
    %v9411 = vmul.f32 %v9272, 0.5
    %v9412 = vmul.f32 %v9274, 0.5
    %v9413 = vmul.f32 %v9276, 0.5
    %v9414 = vmul.f32 %v9278, 0.5
    %v9415 = vmul.f32 %v9280, 0.5
    %v9416 = vmul.f32 %v9282, 0.5
    %v9417 = vmul.f32 %v9284, 0.5
    %v9418 = vmul.f32 %v9286, 0.5
    %v9419 = vmul.f32 %v9288, 0.5
    %v9420 = vmul.f32 %v9290, 0.5
    %v9421 = vmul.f32 %v9292, 0.5
    %v9422 = vmul.f32 %v9294, 0.5
    %v9423 = vmul.f32 %v9295, %v6735
    %v9424 = vmul.f32 %v9296, %v6736
    %v9425 = vmul.f32 %v9297, %v6737
    %v9426 = vmul.f32 %v9298, %v6738
    %v9427 = vmul.f32 %v9299, %v6739
    %v9428 = vmul.f32 %v9300, %v6740
    %v9429 = vmul.f32 %v9301, %v6741
    %v9430 = vmul.f32 %v9302, %v6742
    %v9431 = vmul.f32 %v9303, %v6743
    %v9432 = vmul.f32 %v9304, %v6744
    %v9433 = vmul.f32 %v9305, %v6745
    %v9434 = vmul.f32 %v9306, %v6746
    %v9435 = vmul.f32 %v9307, %v6747
    %v9436 = vmul.f32 %v9308, %v6748
    %v9437 = vmul.f32 %v9309, %v6749
    %v9438 = vmul.f32 %v9310, %v6750
    %v9439 = vmul.f32 %v9311, %v6751
    %v9440 = vmul.f32 %v9312, %v6752
    %v9441 = vmul.f32 %v9313, %v6753
    %v9442 = vmul.f32 %v9314, %v6754
    %v9443 = vmul.f32 %v9315, %v6755
    %v9444 = vmul.f32 %v9316, %v6756
    %v9445 = vmul.f32 %v9317, %v6757
    %v9446 = vmul.f32 %v9318, %v6758
    %v9447 = vmul.f32 %v9319, %v6759
    %v9448 = vmul.f32 %v9320, %v6760
    %v9449 = vmul.f32 %v9321, %v6761
    %v9450 = vmul.f32 %v9322, %v6762
    %v9451 = vmul.f32 %v9323, %v6763
    %v9452 = vmul.f32 %v9324, %v6764
    %v9453 = vmul.f32 %v9325, %v6765
    %v9454 = vmul.f32 %v9326, %v6766
    %v9455 = vmul.f32 %v9327, %v6767
    %v9456 = vmul.f32 %v9328, %v6768
    %v9457 = vmul.f32 %v9329, %v6769
    %v9458 = vmul.f32 %v9330, %v6770
    %v9459 = vmul.f32 %v9331, %v6771
    %v9460 = vmul.f32 %v9332, %v6772
    %v9461 = vmul.f32 %v9333, %v6773
    %v9462 = vmul.f32 %v9334, %v6774
    %v9463 = vmul.f32 %v9335, %v6775
    %v9464 = vmul.f32 %v9336, %v6776
    %v9465 = vmul.f32 %v9337, %v6777
    %v9466 = vmul.f32 %v9338, %v6778
    %v9467 = vmul.f32 %v9339, %v6779
    %v9468 = vmul.f32 %v9340, %v6780
    %v9469 = vmul.f32 %v9341, %v6781
    %v9470 = vmul.f32 %v9342, %v6782
    %v9471 = vmul.f32 %v9343, %v6783
    %v9472 = vmul.f32 %v9344, %v6784
    %v9473 = vmul.f32 %v9345, %v6785
    %v9474 = vmul.f32 %v9346, %v6786
    %v9475 = vmul.f32 %v9347, %v6787
    %v9476 = vmul.f32 %v9348, %v6788
    %v9477 = vmul.f32 %v9349, %v6789
    %v9478 = vmul.f32 %v9350, %v6790
    %v9479 = vmul.f32 %v9351, %v6791
    %v9480 = vmul.f32 %v9352, %v6792
    %v9481 = vmul.f32 %v9353, %v6793
    %v9482 = vmul.f32 %v9354, %v6794
    %v9483 = vmul.f32 %v9355, %v6795
    %v9484 = vmul.f32 %v9356, %v6796
    %v9485 = vmul.f32 %v9357, %v6797
    %v9486 = vmul.f32 %v9358, %v6798
    %v9487 = vmul.f32 %v9359, %v6799
    %v9488 = vmul.f32 %v9360, %v6800
    %v9489 = vmul.f32 %v9361, %v6801
    %v9490 = vmul.f32 %v9362, %v6802
    %v9491 = vmul.f32 %v9363, %v6803
    %v9492 = vmul.f32 %v9364, %v6804
    %v9493 = vmul.f32 %v9365, %v6805
    %v9494 = vmul.f32 %v9366, %v6806
    %v9495 = vmul.f32 %v9367, %v6807
    %v9496 = vmul.f32 %v9368, %v6808
    %v9497 = vmul.f32 %v9369, %v6809
    %v9498 = vmul.f32 %v9370, %v6810
    %v9499 = vmul.f32 %v9371, %v6811
    %v9500 = vmul.f32 %v9372, %v6812
    %v9501 = vmul.f32 %v9373, %v6813
    %v9502 = vmul.f32 %v9374, %v6814
    %v9503 = vmul.f32 %v9375, %v6815
    %v9504 = vmul.f32 %v9376, %v6816
    %v9505 = vmul.f32 %v9377, %v6817
    %v9506 = vmul.f32 %v9378, %v6818
    %v9507 = vmul.f32 %v9379, %v6819
    %v9508 = vmul.f32 %v9380, %v6820
    %v9509 = vmul.f32 %v9381, %v6821
    %v9510 = vmul.f32 %v9382, %v6822
    %v9511 = vmul.f32 %v9383, %v6823
    %v9512 = vmul.f32 %v9384, %v6824
    %v9513 = vmul.f32 %v9385, %v6825
    %v9514 = vmul.f32 %v9386, %v6826
    %v9515 = vmul.f32 %v9387, %v6827
    %v9516 = vmul.f32 %v9388, %v6828
    %v9517 = vmul.f32 %v9389, %v6829
    %v9518 = vmul.f32 %v9390, %v6830
    %v9519 = vmul.f32 %v9391, %v6831
    %v9520 = vmul.f32 %v9392, %v6832
    %v9521 = vmul.f32 %v9393, %v6833
    %v9522 = vmul.f32 %v9394, %v6834
    %v9523 = vmul.f32 %v9395, %v6835
    %v9524 = vmul.f32 %v9396, %v6836
    %v9525 = vmul.f32 %v9397, %v6837
    %v9526 = vmul.f32 %v9398, %v6838
    %v9527 = vmul.f32 %v9399, %v6839
    %v9528 = vmul.f32 %v9400, %v6840
    %v9529 = vmul.f32 %v9401, %v6841
    %v9530 = vmul.f32 %v9402, %v6842
    %v9531 = vmul.f32 %v9403, %v6843
    %v9532 = vmul.f32 %v9404, %v6844
    %v9533 = vmul.f32 %v9405, %v6845
    %v9534 = vmul.f32 %v9406, %v6846
    %v9535 = vmul.f32 %v9407, %v6847
    %v9536 = vmul.f32 %v9408, %v6848
    %v9537 = vmul.f32 %v9409, %v6849
    %v9538 = vmul.f32 %v9410, %v6850
    %v9539 = vmul.f32 %v9411, %v6851
    %v9540 = vmul.f32 %v9412, %v6852
    %v9541 = vmul.f32 %v9413, %v6853
    %v9542 = vmul.f32 %v9414, %v6854
    %v9543 = vmul.f32 %v9415, %v6855
    %v9544 = vmul.f32 %v9416, %v6856
    %v9545 = vmul.f32 %v9417, %v6857
    %v9546 = vmul.f32 %v9418, %v6858
    %v9547 = vmul.f32 %v9419, %v6859
    %v9548 = vmul.f32 %v9420, %v6860
    %v9549 = vmul.f32 %v9421, %v6861
    %v9550 = vmul.f32 %v9422, %v6862
    %v9551 = vrcp.pop %v8143
    %v9552 = vrcp.pop %v8144
    %v9553 = vrcp.pop %v8145
    %v9554 = vrcp.pop %v8146
    %v9555 = vrcp.pop %v8147
    %v9556 = vrcp.pop %v8148
    %v9557 = vrcp.pop %v8149
    %v9558 = vrcp.pop %v8150
    %v9559 = vrcp.pop %v8151
    %v9560 = vrcp.pop %v8152
    %v9561 = vrcp.pop %v8153
    %v9562 = vrcp.pop %v8154
    %v9563 = vrcp.pop %v8155
    %v9564 = vrcp.pop %v8156
    %v9565 = vrcp.pop %v8157
    %v9566 = vrcp.pop %v8158
    %v9567 = vrcp.pop %v8159
    %v9568 = vrcp.pop %v8160
    %v9569 = vrcp.pop %v8161
    %v9570 = vrcp.pop %v8162
    %v9571 = vrcp.pop %v8163
    %v9572 = vrcp.pop %v8164
    %v9573 = vrcp.pop %v8165
    %v9574 = vrcp.pop %v8166
    %v9575 = vrcp.pop %v8167
    %v9576 = vrcp.pop %v8168
    %v9577 = vrcp.pop %v8169
    %v9578 = vrcp.pop %v8170
    %v9579 = vrcp.pop %v8171
    %v9580 = vrcp.pop %v8172
    %v9581 = vrcp.pop %v8173
    %v9582 = vrcp.pop %v8174
    %v9583 = vrcp.pop %v8175
    %v9584 = vrcp.pop %v8176
    %v9585 = vrcp.pop %v8177
    %v9586 = vrcp.pop %v8178
    %v9587 = vrcp.pop %v8179
    %v9588 = vrcp.pop %v8180
    %v9589 = vrcp.pop %v8181
    %v9590 = vrcp.pop %v8182
    %v9591 = vrcp.pop %v8183
    %v9592 = vrcp.pop %v8184
    %v9593 = vrcp.pop %v8185
    %v9594 = vrcp.pop %v8186
    %v9595 = vrcp.pop %v8187
    %v9596 = vrcp.pop %v8188
    %v9597 = vrcp.pop %v8189
    %v9598 = vrcp.pop %v8190
    %v9599 = vrcp.pop %v8191
    %v9600 = vrcp.pop %v8192
    %v9601 = vrcp.pop %v8193
    %v9602 = vrcp.pop %v8194
    %v9603 = vrcp.pop %v8195
    %v9604 = vrcp.pop %v8196
    %v9605 = vrcp.pop %v8197
    %v9606 = vrcp.pop %v8198
    %v9607 = vrcp.pop %v8199
    %v9608 = vrcp.pop %v8200
    %v9609 = vrcp.pop %v8201
    %v9610 = vrcp.pop %v8202
    %v9611 = vrcp.pop %v8203
    %v9612 = vrcp.pop %v8204
    %v9613 = vrcp.pop %v8205
    %v9614 = vrcp.pop %v8206
    %v9615 = vrcp.pop %v8207
    %v9616 = vrcp.pop %v8208
    %v9617 = vrcp.pop %v8209
    %v9618 = vrcp.pop %v8210
    %v9619 = vrcp.pop %v8211
    %v9620 = vrcp.pop %v8212
    %v9621 = vrcp.pop %v8213
    %v9622 = vrcp.pop %v8214
    %v9623 = vrcp.pop %v8215
    %v9624 = vrcp.pop %v8216
    %v9625 = vrcp.pop %v8217
    %v9626 = vrcp.pop %v8218
    %v9627 = vrcp.pop %v8219
    %v9628 = vrcp.pop %v8220
    %v9629 = vrcp.pop %v8221
    %v9630 = vrcp.pop %v8222
    %v9631 = vrcp.pop %v8223
    %v9632 = vrcp.pop %v8224
    %v9633 = vrcp.pop %v8225
    %v9634 = vrcp.pop %v8226
    %v9635 = vrcp.pop %v8227
    %v9636 = vrcp.pop %v8228
    %v9637 = vrcp.pop %v8229
    %v9638 = vrcp.pop %v8230
    %v9639 = vrcp.pop %v8231
    %v9640 = vrcp.pop %v8232
    %v9641 = vrcp.pop %v8233
    %v9642 = vrcp.pop %v8234
    %v9643 = vrcp.pop %v8235
    %v9644 = vrcp.pop %v8236
    %v9645 = vrcp.pop %v8237
    %v9646 = vrcp.pop %v8238
    %v9647 = vrcp.pop %v8239
    %v9648 = vrcp.pop %v8240
    %v9649 = vrcp.pop %v8241
    %v9650 = vrcp.pop %v8242
    %v9651 = vrcp.pop %v8243
    %v9652 = vrcp.pop %v8244
    %v9653 = vrcp.pop %v8245
    %v9654 = vrcp.pop %v8246
    %v9655 = vrcp.pop %v8247
    %v9656 = vrcp.pop %v8248
    %v9657 = vrcp.pop %v8249
    %v9658 = vrcp.pop %v8250
    %v9659 = vrcp.pop %v8251
    %v9660 = vrcp.pop %v8252
    %v9661 = vrcp.pop %v8253
    %v9662 = vrcp.pop %v8254
    %v9663 = vrcp.pop %v8255
    %v9664 = vrcp.pop %v8256
    %v9665 = vrcp.pop %v8257
    %v9666 = vrcp.pop %v8258
    %v9667 = vrcp.pop %v8259
    %v9668 = vrcp.pop %v8260
    %v9669 = vrcp.pop %v8261
    %v9670 = vrcp.pop %v8262
    %v9671 = vrcp.pop %v8263
    %v9672 = vrcp.pop %v8264
    %v9673 = vrcp.pop %v8265
    %v9674 = vrcp.pop %v8266
    %v9675 = vrcp.pop %v8267
    %v9676 = vrcp.pop %v8268
    %v9677 = vrcp.pop %v8269
    %v9678 = vrcp.pop %v8270
    %v9679 = vmul.f32 %v9423, %v9551
    %v9680 = vmul.f32 %v9424, %v9552
    %v9681 = vmul.f32 %v9425, %v9553
    %v9682 = vmul.f32 %v9426, %v9554
    %v9683 = vmul.f32 %v9427, %v9555
    %v9684 = vmul.f32 %v9428, %v9556
    %v9685 = vmul.f32 %v9429, %v9557
    %v9686 = vmul.f32 %v9430, %v9558
    %v9687 = vmul.f32 %v9431, %v9559
    %v9688 = vmul.f32 %v9432, %v9560
    %v9689 = vmul.f32 %v9433, %v9561
    %v9690 = vmul.f32 %v9434, %v9562
    %v9691 = vmul.f32 %v9435, %v9563
    %v9692 = vmul.f32 %v9436, %v9564
    %v9693 = vmul.f32 %v9437, %v9565
    %v9694 = vmul.f32 %v9438, %v9566
    %v9695 = vmul.f32 %v9439, %v9567
    %v9696 = vmul.f32 %v9440, %v9568
    %v9697 = vmul.f32 %v9441, %v9569
    %v9698 = vmul.f32 %v9442, %v9570
    %v9699 = vmul.f32 %v9443, %v9571
    %v9700 = vmul.f32 %v9444, %v9572
    %v9701 = vmul.f32 %v9445, %v9573
    %v9702 = vmul.f32 %v9446, %v9574
    %v9703 = vmul.f32 %v9447, %v9575
    %v9704 = vmul.f32 %v9448, %v9576
    %v9705 = vmul.f32 %v9449, %v9577
    %v9706 = vmul.f32 %v9450, %v9578
    %v9707 = vmul.f32 %v9451, %v9579
    %v9708 = vmul.f32 %v9452, %v9580
    %v9709 = vmul.f32 %v9453, %v9581
    %v9710 = vmul.f32 %v9454, %v9582
    %v9711 = vmul.f32 %v9455, %v9583
    %v9712 = vmul.f32 %v9456, %v9584
    %v9713 = vmul.f32 %v9457, %v9585
    %v9714 = vmul.f32 %v9458, %v9586
    %v9715 = vmul.f32 %v9459, %v9587
    %v9716 = vmul.f32 %v9460, %v9588
    %v9717 = vmul.f32 %v9461, %v9589
    %v9718 = vmul.f32 %v9462, %v9590
    %v9719 = vmul.f32 %v9463, %v9591
    %v9720 = vmul.f32 %v9464, %v9592
    %v9721 = vmul.f32 %v9465, %v9593
    %v9722 = vmul.f32 %v9466, %v9594
    %v9723 = vmul.f32 %v9467, %v9595
    %v9724 = vmul.f32 %v9468, %v9596
    %v9725 = vmul.f32 %v9469, %v9597
    %v9726 = vmul.f32 %v9470, %v9598
    %v9727 = vmul.f32 %v9471, %v9599
    %v9728 = vmul.f32 %v9472, %v9600
    %v9729 = vmul.f32 %v9473, %v9601
    %v9730 = vmul.f32 %v9474, %v9602
    %v9731 = vmul.f32 %v9475, %v9603
    %v9732 = vmul.f32 %v9476, %v9604
    %v9733 = vmul.f32 %v9477, %v9605
    %v9734 = vmul.f32 %v9478, %v9606
    %v9735 = vmul.f32 %v9479, %v9607
    %v9736 = vmul.f32 %v9480, %v9608
    %v9737 = vmul.f32 %v9481, %v9609
    %v9738 = vmul.f32 %v9482, %v9610
    %v9739 = vmul.f32 %v9483, %v9611
    %v9740 = vmul.f32 %v9484, %v9612
    %v9741 = vmul.f32 %v9485, %v9613
    %v9742 = vmul.f32 %v9486, %v9614
    %v9743 = vmul.f32 %v9487, %v9615
    %v9744 = vmul.f32 %v9488, %v9616
    %v9745 = vmul.f32 %v9489, %v9617
    %v9746 = vmul.f32 %v9490, %v9618
    %v9747 = vmul.f32 %v9491, %v9619
    %v9748 = vmul.f32 %v9492, %v9620
    %v9749 = vmul.f32 %v9493, %v9621
    %v9750 = vmul.f32 %v9494, %v9622
    %v9751 = vmul.f32 %v9495, %v9623
    %v9752 = vmul.f32 %v9496, %v9624
    %v9753 = vmul.f32 %v9497, %v9625
    %v9754 = vmul.f32 %v9498, %v9626
    %v9755 = vmul.f32 %v9499, %v9627
    %v9756 = vmul.f32 %v9500, %v9628
    %v9757 = vmul.f32 %v9501, %v9629
    %v9758 = vmul.f32 %v9502, %v9630
    %v9759 = vmul.f32 %v9503, %v9631
    %v9760 = vmul.f32 %v9504, %v9632
    %v9761 = vmul.f32 %v9505, %v9633
    %v9762 = vmul.f32 %v9506, %v9634
    %v9763 = vmul.f32 %v9507, %v9635
    %v9764 = vmul.f32 %v9508, %v9636
    %v9765 = vmul.f32 %v9509, %v9637
    %v9766 = vmul.f32 %v9510, %v9638
    %v9767 = vmul.f32 %v9511, %v9639
    %v9768 = vmul.f32 %v9512, %v9640
    %v9769 = vmul.f32 %v9513, %v9641
    %v9770 = vmul.f32 %v9514, %v9642
    %v9771 = vmul.f32 %v9515, %v9643
    %v9772 = vmul.f32 %v9516, %v9644
    %v9773 = vmul.f32 %v9517, %v9645
    %v9774 = vmul.f32 %v9518, %v9646
    %v9775 = vmul.f32 %v9519, %v9647
    %v9776 = vmul.f32 %v9520, %v9648
    %v9777 = vmul.f32 %v9521, %v9649
    %v9778 = vmul.f32 %v9522, %v9650
    %v9779 = vmul.f32 %v9523, %v9651
    %v9780 = vmul.f32 %v9524, %v9652
    %v9781 = vmul.f32 %v9525, %v9653
    %v9782 = vmul.f32 %v9526, %v9654
    %v9783 = vmul.f32 %v9527, %v9655
    %v9784 = vmul.f32 %v9528, %v9656
    %v9785 = vmul.f32 %v9529, %v9657
    %v9786 = vmul.f32 %v9530, %v9658
    %v9787 = vmul.f32 %v9531, %v9659
    %v9788 = vmul.f32 %v9532, %v9660
    %v9789 = vmul.f32 %v9533, %v9661
    %v9790 = vmul.f32 %v9534, %v9662
    %v9791 = vmul.f32 %v9535, %v9663
    %v9792 = vmul.f32 %v9536, %v9664
    %v9793 = vmul.f32 %v9537, %v9665
    %v9794 = vmul.f32 %v9538, %v9666
    %v9795 = vmul.f32 %v9539, %v9667
    %v9796 = vmul.f32 %v9540, %v9668
    %v9797 = vmul.f32 %v9541, %v9669
    %v9798 = vmul.f32 %v9542, %v9670
    %v9799 = vmul.f32 %v9543, %v9671
    %v9800 = vmul.f32 %v9544, %v9672
    %v9801 = vmul.f32 %v9545, %v9673
    %v9802 = vmul.f32 %v9546, %v9674
    %v9803 = vmul.f32 %v9547, %v9675
    %v9804 = vmul.f32 %v9548, %v9676
    %v9805 = vmul.f32 %v9549, %v9677
    %v9806 = vmul.f32 %v9550, %v9678
    %v9807 = vpack.c.bf16 %v9680, %v9679
    %v9808 = vpack.c.bf16 %v9682, %v9681
    %v9809 = vpack.c.bf16 %v9684, %v9683
    %v9810 = vpack.c.bf16 %v9686, %v9685
    %v9811 = vpack.c.bf16 %v9688, %v9687
    %v9812 = vpack.c.bf16 %v9690, %v9689
    %v9813 = vpack.c.bf16 %v9692, %v9691
    %v9814 = vpack.c.bf16 %v9694, %v9693
    %v9815 = vpack.c.bf16 %v9696, %v9695
    %v9816 = vpack.c.bf16 %v9698, %v9697
    %v9817 = vpack.c.bf16 %v9700, %v9699
    %v9818 = vpack.c.bf16 %v9702, %v9701
    %v9819 = vpack.c.bf16 %v9704, %v9703
    %v9820 = vpack.c.bf16 %v9706, %v9705
    %v9821 = vpack.c.bf16 %v9708, %v9707
    %v9822 = vpack.c.bf16 %v9710, %v9709
    %v9823 = vpack.c.bf16 %v9712, %v9711
    %v9824 = vpack.c.bf16 %v9714, %v9713
    %v9825 = vpack.c.bf16 %v9716, %v9715
    %v9826 = vpack.c.bf16 %v9718, %v9717
    %v9827 = vpack.c.bf16 %v9720, %v9719
    %v9828 = vpack.c.bf16 %v9722, %v9721
    %v9829 = vpack.c.bf16 %v9724, %v9723
    %v9830 = vpack.c.bf16 %v9726, %v9725
    %v9831 = vpack.c.bf16 %v9728, %v9727
    %v9832 = vpack.c.bf16 %v9730, %v9729
    %v9833 = vpack.c.bf16 %v9732, %v9731
    %v9834 = vpack.c.bf16 %v9734, %v9733
    %v9835 = vpack.c.bf16 %v9736, %v9735
    %v9836 = vpack.c.bf16 %v9738, %v9737
    %v9837 = vpack.c.bf16 %v9740, %v9739
    %v9838 = vpack.c.bf16 %v9742, %v9741
    %v9839 = vpack.c.bf16 %v9744, %v9743
    %v9840 = vpack.c.bf16 %v9746, %v9745
    %v9841 = vpack.c.bf16 %v9748, %v9747
    %v9842 = vpack.c.bf16 %v9750, %v9749
    %v9843 = vpack.c.bf16 %v9752, %v9751
    %v9844 = vpack.c.bf16 %v9754, %v9753
    %v9845 = vpack.c.bf16 %v9756, %v9755
    %v9846 = vpack.c.bf16 %v9758, %v9757
    %v9847 = vpack.c.bf16 %v9760, %v9759
    %v9848 = vpack.c.bf16 %v9762, %v9761
    %v9849 = vpack.c.bf16 %v9764, %v9763
    %v9850 = vpack.c.bf16 %v9766, %v9765
    %v9851 = vpack.c.bf16 %v9768, %v9767
    %v9852 = vpack.c.bf16 %v9770, %v9769
    %v9853 = vpack.c.bf16 %v9772, %v9771
    %v9854 = vpack.c.bf16 %v9774, %v9773
    %v9855 = vpack.c.bf16 %v9776, %v9775
    %v9856 = vpack.c.bf16 %v9778, %v9777
    %v9857 = vpack.c.bf16 %v9780, %v9779
    %v9858 = vpack.c.bf16 %v9782, %v9781
    %v9859 = vpack.c.bf16 %v9784, %v9783
    %v9860 = vpack.c.bf16 %v9786, %v9785
    %v9861 = vpack.c.bf16 %v9788, %v9787
    %v9862 = vpack.c.bf16 %v9790, %v9789
    %v9863 = vpack.c.bf16 %v9792, %v9791
    %v9864 = vpack.c.bf16 %v9794, %v9793
    %v9865 = vpack.c.bf16 %v9796, %v9795
    %v9866 = vpack.c.bf16 %v9798, %v9797
    %v9867 = vpack.c.bf16 %v9800, %v9799
    %v9868 = vpack.c.bf16 %v9802, %v9801
    %v9869 = vpack.c.bf16 %v9804, %v9803
    %v9870 = vpack.c.bf16 %v9806, %v9805
    %v9935 = vunpack.c.l.b16 %v9807
    %v9936 = vunpack.c.h.b16 %v9807
    %v9937 = vunpack.c.l.b16 %v9808
    %v9938 = vunpack.c.h.b16 %v9808
    %v9939 = vunpack.c.l.b16 %v9809
    %v9940 = vunpack.c.h.b16 %v9809
    %v9941 = vunpack.c.l.b16 %v9810
    %v9942 = vunpack.c.h.b16 %v9810
    %v9943 = vunpack.c.l.b16 %v9811
    %v9944 = vunpack.c.h.b16 %v9811
    %v9945 = vunpack.c.l.b16 %v9812
    %v9946 = vunpack.c.h.b16 %v9812
    %v9947 = vunpack.c.l.b16 %v9813
    %v9948 = vunpack.c.h.b16 %v9813
    %v9949 = vunpack.c.l.b16 %v9814
    %v9950 = vunpack.c.h.b16 %v9814
    %v9951 = vunpack.c.l.b16 %v9815
    %v9952 = vunpack.c.h.b16 %v9815
    %v9953 = vunpack.c.l.b16 %v9816
    %v9954 = vunpack.c.h.b16 %v9816
    %v9955 = vunpack.c.l.b16 %v9817
    %v9956 = vunpack.c.h.b16 %v9817
    %v9957 = vunpack.c.l.b16 %v9818
    %v9958 = vunpack.c.h.b16 %v9818
    %v9959 = vunpack.c.l.b16 %v9819
    %v9960 = vunpack.c.h.b16 %v9819
    %v9961 = vunpack.c.l.b16 %v9820
    %v9962 = vunpack.c.h.b16 %v9820
    %v9963 = vunpack.c.l.b16 %v9821
    %v9964 = vunpack.c.h.b16 %v9821
    %v9965 = vunpack.c.l.b16 %v9822
    %v9966 = vunpack.c.h.b16 %v9822
    %v9967 = vunpack.c.l.b16 %v9823
    %v9968 = vunpack.c.h.b16 %v9823
    %v9969 = vunpack.c.l.b16 %v9824
    %v9970 = vunpack.c.h.b16 %v9824
    %v9971 = vunpack.c.l.b16 %v9825
    %v9972 = vunpack.c.h.b16 %v9825
    %v9973 = vunpack.c.l.b16 %v9826
    %v9974 = vunpack.c.h.b16 %v9826
    %v9975 = vunpack.c.l.b16 %v9827
    %v9976 = vunpack.c.h.b16 %v9827
    %v9977 = vunpack.c.l.b16 %v9828
    %v9978 = vunpack.c.h.b16 %v9828
    %v9979 = vunpack.c.l.b16 %v9829
    %v9980 = vunpack.c.h.b16 %v9829
    %v9981 = vunpack.c.l.b16 %v9830
    %v9982 = vunpack.c.h.b16 %v9830
    %v9983 = vunpack.c.l.b16 %v9831
    %v9984 = vunpack.c.h.b16 %v9831
    %v9985 = vunpack.c.l.b16 %v9832
    %v9986 = vunpack.c.h.b16 %v9832
    %v9987 = vunpack.c.l.b16 %v9833
    %v9988 = vunpack.c.h.b16 %v9833
    %v9989 = vunpack.c.l.b16 %v9834
    %v9990 = vunpack.c.h.b16 %v9834
    %v9991 = vunpack.c.l.b16 %v9835
    %v9992 = vunpack.c.h.b16 %v9835
    %v9993 = vunpack.c.l.b16 %v9836
    %v9994 = vunpack.c.h.b16 %v9836
    %v9995 = vunpack.c.l.b16 %v9837
    %v9996 = vunpack.c.h.b16 %v9837
    %v9997 = vunpack.c.l.b16 %v9838
    %v9998 = vunpack.c.h.b16 %v9838
    %v9999 = vunpack.c.l.b16 %v9839
    %v10000 = vunpack.c.h.b16 %v9839
    %v10001 = vunpack.c.l.b16 %v9840
    %v10002 = vunpack.c.h.b16 %v9840
    %v10003 = vunpack.c.l.b16 %v9841
    %v10004 = vunpack.c.h.b16 %v9841
    %v10005 = vunpack.c.l.b16 %v9842
    %v10006 = vunpack.c.h.b16 %v9842
    %v10007 = vunpack.c.l.b16 %v9843
    %v10008 = vunpack.c.h.b16 %v9843
    %v10009 = vunpack.c.l.b16 %v9844
    %v10010 = vunpack.c.h.b16 %v9844
    %v10011 = vunpack.c.l.b16 %v9845
    %v10012 = vunpack.c.h.b16 %v9845
    %v10013 = vunpack.c.l.b16 %v9846
    %v10014 = vunpack.c.h.b16 %v9846
    %v10015 = vunpack.c.l.b16 %v9847
    %v10016 = vunpack.c.h.b16 %v9847
    %v10017 = vunpack.c.l.b16 %v9848
    %v10018 = vunpack.c.h.b16 %v9848
    %v10019 = vunpack.c.l.b16 %v9849
    %v10020 = vunpack.c.h.b16 %v9849
    %v10021 = vunpack.c.l.b16 %v9850
    %v10022 = vunpack.c.h.b16 %v9850
    %v10023 = vunpack.c.l.b16 %v9851
    %v10024 = vunpack.c.h.b16 %v9851
    %v10025 = vunpack.c.l.b16 %v9852
    %v10026 = vunpack.c.h.b16 %v9852
    %v10027 = vunpack.c.l.b16 %v9853
    %v10028 = vunpack.c.h.b16 %v9853
    %v10029 = vunpack.c.l.b16 %v9854
    %v10030 = vunpack.c.h.b16 %v9854
    %v10031 = vunpack.c.l.b16 %v9855
    %v10032 = vunpack.c.h.b16 %v9855
    %v10033 = vunpack.c.l.b16 %v9856
    %v10034 = vunpack.c.h.b16 %v9856
    %v10035 = vunpack.c.l.b16 %v9857
    %v10036 = vunpack.c.h.b16 %v9857
    %v10037 = vunpack.c.l.b16 %v9858
    %v10038 = vunpack.c.h.b16 %v9858
    %v10039 = vunpack.c.l.b16 %v9859
    %v10040 = vunpack.c.h.b16 %v9859
    %v10041 = vunpack.c.l.b16 %v9860
    %v10042 = vunpack.c.h.b16 %v9860
    %v10043 = vunpack.c.l.b16 %v9861
    %v10044 = vunpack.c.h.b16 %v9861
    %v10045 = vunpack.c.l.b16 %v9862
    %v10046 = vunpack.c.h.b16 %v9862
    %v10047 = vunpack.c.l.b16 %v9863
    %v10048 = vunpack.c.h.b16 %v9863
    %v10049 = vunpack.c.l.b16 %v9864
    %v10050 = vunpack.c.h.b16 %v9864
    %v10051 = vunpack.c.l.b16 %v9865
    %v10052 = vunpack.c.h.b16 %v9865
    %v10053 = vunpack.c.l.b16 %v9866
    %v10054 = vunpack.c.h.b16 %v9866
    %v10055 = vunpack.c.l.b16 %v9867
    %v10056 = vunpack.c.h.b16 %v9867
    %v10057 = vunpack.c.l.b16 %v9868
    %v10058 = vunpack.c.h.b16 %v9868
    %v10059 = vunpack.c.l.b16 %v9869
    %v10060 = vunpack.c.h.b16 %v9869
    %v10061 = vunpack.c.l.b16 %v9870
    %v10062 = vunpack.c.h.b16 %v9870
    %v10063 = vpack.c.b16 %v9935, %v9935
    %v10064 = vpack.c.b16 %v9936, %v9936
    %v10065 = vpack.c.b16 %v9937, %v9937
    %v10066 = vpack.c.b16 %v9938, %v9938
    %v10067 = vpack.c.b16 %v9939, %v9939
    %v10068 = vpack.c.b16 %v9940, %v9940
    %v10069 = vpack.c.b16 %v9941, %v9941
    %v10070 = vpack.c.b16 %v9942, %v9942
    %v10071 = vpack.c.b16 %v9943, %v9943
    %v10072 = vpack.c.b16 %v9944, %v9944
    %v10073 = vpack.c.b16 %v9945, %v9945
    %v10074 = vpack.c.b16 %v9946, %v9946
    %v10075 = vpack.c.b16 %v9947, %v9947
    %v10076 = vpack.c.b16 %v9948, %v9948
    %v10077 = vpack.c.b16 %v9949, %v9949
    %v10078 = vpack.c.b16 %v9950, %v9950
    %v10079 = vpack.c.b16 %v9951, %v9951
    %v10080 = vpack.c.b16 %v9952, %v9952
    %v10081 = vpack.c.b16 %v9953, %v9953
    %v10082 = vpack.c.b16 %v9954, %v9954
    %v10083 = vpack.c.b16 %v9955, %v9955
    %v10084 = vpack.c.b16 %v9956, %v9956
    %v10085 = vpack.c.b16 %v9957, %v9957
    %v10086 = vpack.c.b16 %v9958, %v9958
    %v10087 = vpack.c.b16 %v9959, %v9959
    %v10088 = vpack.c.b16 %v9960, %v9960
    %v10089 = vpack.c.b16 %v9961, %v9961
    %v10090 = vpack.c.b16 %v9962, %v9962
    %v10091 = vpack.c.b16 %v9963, %v9963
    %v10092 = vpack.c.b16 %v9964, %v9964
    %v10093 = vpack.c.b16 %v9965, %v9965
    %v10094 = vpack.c.b16 %v9966, %v9966
    %v10095 = vpack.c.b16 %v9967, %v9967
    %v10096 = vpack.c.b16 %v9968, %v9968
    %v10097 = vpack.c.b16 %v9969, %v9969
    %v10098 = vpack.c.b16 %v9970, %v9970
    %v10099 = vpack.c.b16 %v9971, %v9971
    %v10100 = vpack.c.b16 %v9972, %v9972
    %v10101 = vpack.c.b16 %v9973, %v9973
    %v10102 = vpack.c.b16 %v9974, %v9974
    %v10103 = vpack.c.b16 %v9975, %v9975
    %v10104 = vpack.c.b16 %v9976, %v9976
    %v10105 = vpack.c.b16 %v9977, %v9977
    %v10106 = vpack.c.b16 %v9978, %v9978
    %v10107 = vpack.c.b16 %v9979, %v9979
    %v10108 = vpack.c.b16 %v9980, %v9980
    %v10109 = vpack.c.b16 %v9981, %v9981
    %v10110 = vpack.c.b16 %v9982, %v9982
    %v10111 = vpack.c.b16 %v9983, %v9983
    %v10112 = vpack.c.b16 %v9984, %v9984
    %v10113 = vpack.c.b16 %v9985, %v9985
    %v10114 = vpack.c.b16 %v9986, %v9986
    %v10115 = vpack.c.b16 %v9987, %v9987
    %v10116 = vpack.c.b16 %v9988, %v9988
    %v10117 = vpack.c.b16 %v9989, %v9989
    %v10118 = vpack.c.b16 %v9990, %v9990
    %v10119 = vpack.c.b16 %v9991, %v9991
    %v10120 = vpack.c.b16 %v9992, %v9992
    %v10121 = vpack.c.b16 %v9993, %v9993
    %v10122 = vpack.c.b16 %v9994, %v9994
    %v10123 = vpack.c.b16 %v9995, %v9995
    %v10124 = vpack.c.b16 %v9996, %v9996
    %v10125 = vpack.c.b16 %v9997, %v9997
    %v10126 = vpack.c.b16 %v9998, %v9998
    %v10127 = vpack.c.b16 %v9999, %v9999
    %v10128 = vpack.c.b16 %v10000, %v10000
    %v10129 = vpack.c.b16 %v10001, %v10001
    %v10130 = vpack.c.b16 %v10002, %v10002
    %v10131 = vpack.c.b16 %v10003, %v10003
    %v10132 = vpack.c.b16 %v10004, %v10004
    %v10133 = vpack.c.b16 %v10005, %v10005
    %v10134 = vpack.c.b16 %v10006, %v10006
    %v10135 = vpack.c.b16 %v10007, %v10007
    %v10136 = vpack.c.b16 %v10008, %v10008
    %v10137 = vpack.c.b16 %v10009, %v10009
    %v10138 = vpack.c.b16 %v10010, %v10010
    %v10139 = vpack.c.b16 %v10011, %v10011
    %v10140 = vpack.c.b16 %v10012, %v10012
    %v10141 = vpack.c.b16 %v10013, %v10013
    %v10142 = vpack.c.b16 %v10014, %v10014
    %v10143 = vpack.c.b16 %v10015, %v10015
    %v10144 = vpack.c.b16 %v10016, %v10016
    %v10145 = vpack.c.b16 %v10017, %v10017
    %v10146 = vpack.c.b16 %v10018, %v10018
    %v10147 = vpack.c.b16 %v10019, %v10019
    %v10148 = vpack.c.b16 %v10020, %v10020
    %v10149 = vpack.c.b16 %v10021, %v10021
    %v10150 = vpack.c.b16 %v10022, %v10022
    %v10151 = vpack.c.b16 %v10023, %v10023
    %v10152 = vpack.c.b16 %v10024, %v10024
    %v10153 = vpack.c.b16 %v10025, %v10025
    %v10154 = vpack.c.b16 %v10026, %v10026
    %v10155 = vpack.c.b16 %v10027, %v10027
    %v10156 = vpack.c.b16 %v10028, %v10028
    %v10157 = vpack.c.b16 %v10029, %v10029
    %v10158 = vpack.c.b16 %v10030, %v10030
    %v10159 = vpack.c.b16 %v10031, %v10031
    %v10160 = vpack.c.b16 %v10032, %v10032
    %v10161 = vpack.c.b16 %v10033, %v10033
    %v10162 = vpack.c.b16 %v10034, %v10034
    %v10163 = vpack.c.b16 %v10035, %v10035
    %v10164 = vpack.c.b16 %v10036, %v10036
    %v10165 = vpack.c.b16 %v10037, %v10037
    %v10166 = vpack.c.b16 %v10038, %v10038
    %v10167 = vpack.c.b16 %v10039, %v10039
    %v10168 = vpack.c.b16 %v10040, %v10040
    %v10169 = vpack.c.b16 %v10041, %v10041
    %v10170 = vpack.c.b16 %v10042, %v10042
    %v10171 = vpack.c.b16 %v10043, %v10043
    %v10172 = vpack.c.b16 %v10044, %v10044
    %v10173 = vpack.c.b16 %v10045, %v10045
    %v10174 = vpack.c.b16 %v10046, %v10046
    %v10175 = vpack.c.b16 %v10047, %v10047
    %v10176 = vpack.c.b16 %v10048, %v10048
    %v10177 = vpack.c.b16 %v10049, %v10049
    %v10178 = vpack.c.b16 %v10050, %v10050
    %v10179 = vpack.c.b16 %v10051, %v10051
    %v10180 = vpack.c.b16 %v10052, %v10052
    %v10181 = vpack.c.b16 %v10053, %v10053
    %v10182 = vpack.c.b16 %v10054, %v10054
    %v10183 = vpack.c.b16 %v10055, %v10055
    %v10184 = vpack.c.b16 %v10056, %v10056
    %v10185 = vpack.c.b16 %v10057, %v10057
    %v10186 = vpack.c.b16 %v10058, %v10058
    %v10187 = vpack.c.b16 %v10059, %v10059
    %v10188 = vpack.c.b16 %v10060, %v10060
    %v10189 = vpack.c.b16 %v10061, %v10061
    %v10190 = vpack.c.b16 %v10062, %v10062
    %10319 = vst [vmem:[#allocation2] sm:$0xf] %v10063
    %10320 = vst [vmem:[#allocation2 + $0x4] sm:$0xf] %v10064
    %10321 = vst [vmem:[#allocation2 + $0x8] sm:$0xf] %v10065
    %10322 = vst [vmem:[#allocation2 + $0xc] sm:$0xf] %v10066
    %10323 = vst [vmem:[#allocation2 + $0x10] sm:$0xf] %v10067
    %10324 = vst [vmem:[#allocation2 + $0x14] sm:$0xf] %v10068
    %10325 = vst [vmem:[#allocation2 + $0x18] sm:$0xf] %v10069
    %10326 = vst [vmem:[#allocation2 + $0x1c] sm:$0xf] %v10070
    %10327 = vst [vmem:[#allocation2 + $0x20] sm:$0xf] %v10071
    %10328 = vst [vmem:[#allocation2 + $0x24] sm:$0xf] %v10072
    %10329 = vst [vmem:[#allocation2 + $0x28] sm:$0xf] %v10073
    %10330 = vst [vmem:[#allocation2 + $0x2c] sm:$0xf] %v10074
    %10331 = vst [vmem:[#allocation2 + $0x30] sm:$0xf] %v10075
    %10332 = vst [vmem:[#allocation2 + $0x34] sm:$0xf] %v10076
    %10333 = vst [vmem:[#allocation2 + $0x38] sm:$0xf] %v10077
    %10334 = vst [vmem:[#allocation2 + $0x3c] sm:$0xf] %v10078
    %10335 = vst [vmem:[#allocation2 + $0x40] sm:$0xf] %v10079
    %10336 = vst [vmem:[#allocation2 + $0x44] sm:$0xf] %v10080
    %10337 = vst [vmem:[#allocation2 + $0x48] sm:$0xf] %v10081
    %10338 = vst [vmem:[#allocation2 + $0x4c] sm:$0xf] %v10082
    %10339 = vst [vmem:[#allocation2 + $0x50] sm:$0xf] %v10083
    %10340 = vst [vmem:[#allocation2 + $0x54] sm:$0xf] %v10084
    %10341 = vst [vmem:[#allocation2 + $0x58] sm:$0xf] %v10085
    %10342 = vst [vmem:[#allocation2 + $0x5c] sm:$0xf] %v10086
    %10343 = vst [vmem:[#allocation2 + $0x60] sm:$0xf] %v10087
    %10344 = vst [vmem:[#allocation2 + $0x64] sm:$0xf] %v10088
    %10345 = vst [vmem:[#allocation2 + $0x68] sm:$0xf] %v10089
    %10346 = vst [vmem:[#allocation2 + $0x6c] sm:$0xf] %v10090
    %10347 = vst [vmem:[#allocation2 + $0x70] sm:$0xf] %v10091
    %10348 = vst [vmem:[#allocation2 + $0x74] sm:$0xf] %v10092
    %10349 = vst [vmem:[#allocation2 + $0x78] sm:$0xf] %v10093
    %10350 = vst [vmem:[#allocation2 + $0x7c] sm:$0xf] %v10094
    %10351 = vst [vmem:[#allocation2 + $0x80] sm:$0xf] %v10095
    %10352 = vst [vmem:[#allocation2 + $0x84] sm:$0xf] %v10096
    %10353 = vst [vmem:[#allocation2 + $0x88] sm:$0xf] %v10097
    %10354 = vst [vmem:[#allocation2 + $0x8c] sm:$0xf] %v10098
    %10355 = vst [vmem:[#allocation2 + $0x90] sm:$0xf] %v10099
    %10356 = vst [vmem:[#allocation2 + $0x94] sm:$0xf] %v10100
    %10357 = vst [vmem:[#allocation2 + $0x98] sm:$0xf] %v10101
    %10358 = vst [vmem:[#allocation2 + $0x9c] sm:$0xf] %v10102
    %10359 = vst [vmem:[#allocation2 + $0xa0] sm:$0xf] %v10103
    %10360 = vst [vmem:[#allocation2 + $0xa4] sm:$0xf] %v10104
    %10361 = vst [vmem:[#allocation2 + $0xa8] sm:$0xf] %v10105
    %10362 = vst [vmem:[#allocation2 + $0xac] sm:$0xf] %v10106
    %10363 = vst [vmem:[#allocation2 + $0xb0] sm:$0xf] %v10107
    %10364 = vst [vmem:[#allocation2 + $0xb4] sm:$0xf] %v10108
    %10365 = vst [vmem:[#allocation2 + $0xb8] sm:$0xf] %v10109
    %10366 = vst [vmem:[#allocation2 + $0xbc] sm:$0xf] %v10110
    %10367 = vst [vmem:[#allocation2 + $0xc0] sm:$0xf] %v10111
    %10368 = vst [vmem:[#allocation2 + $0xc4] sm:$0xf] %v10112
    %10369 = vst [vmem:[#allocation2 + $0xc8] sm:$0xf] %v10113
    %10370 = vst [vmem:[#allocation2 + $0xcc] sm:$0xf] %v10114
    %10371 = vst [vmem:[#allocation2 + $0xd0] sm:$0xf] %v10115
    %10372 = vst [vmem:[#allocation2 + $0xd4] sm:$0xf] %v10116
    %10373 = vst [vmem:[#allocation2 + $0xd8] sm:$0xf] %v10117
    %10374 = vst [vmem:[#allocation2 + $0xdc] sm:$0xf] %v10118
    %10375 = vst [vmem:[#allocation2 + $0xe0] sm:$0xf] %v10119
    %10376 = vst [vmem:[#allocation2 + $0xe4] sm:$0xf] %v10120
    %10377 = vst [vmem:[#allocation2 + $0xe8] sm:$0xf] %v10121
    %10378 = vst [vmem:[#allocation2 + $0xec] sm:$0xf] %v10122
    %10379 = vst [vmem:[#allocation2 + $0xf0] sm:$0xf] %v10123
    %10380 = vst [vmem:[#allocation2 + $0xf4] sm:$0xf] %v10124
    %10381 = vst [vmem:[#allocation2 + $0xf8] sm:$0xf] %v10125
    %10382 = vst [vmem:[#allocation2 + $0xfc] sm:$0xf] %v10126
    %10383 = vst [vmem:[#allocation2 + $0x100] sm:$0xf] %v10127
    %10384 = vst [vmem:[#allocation2 + $0x104] sm:$0xf] %v10128
    %10385 = vst [vmem:[#allocation2 + $0x108] sm:$0xf] %v10129
    %10386 = vst [vmem:[#allocation2 + $0x10c] sm:$0xf] %v10130
    %10387 = vst [vmem:[#allocation2 + $0x110] sm:$0xf] %v10131
    %10388 = vst [vmem:[#allocation2 + $0x114] sm:$0xf] %v10132
    %10389 = vst [vmem:[#allocation2 + $0x118] sm:$0xf] %v10133
    %10390 = vst [vmem:[#allocation2 + $0x11c] sm:$0xf] %v10134
    %10391 = vst [vmem:[#allocation2 + $0x120] sm:$0xf] %v10135
    %10392 = vst [vmem:[#allocation2 + $0x124] sm:$0xf] %v10136
    %10393 = vst [vmem:[#allocation2 + $0x128] sm:$0xf] %v10137
    %10394 = vst [vmem:[#allocation2 + $0x12c] sm:$0xf] %v10138
    %10395 = vst [vmem:[#allocation2 + $0x130] sm:$0xf] %v10139
    %10396 = vst [vmem:[#allocation2 + $0x134] sm:$0xf] %v10140
    %10397 = vst [vmem:[#allocation2 + $0x138] sm:$0xf] %v10141
    %10398 = vst [vmem:[#allocation2 + $0x13c] sm:$0xf] %v10142
    %10399 = vst [vmem:[#allocation2 + $0x140] sm:$0xf] %v10143
    %10400 = vst [vmem:[#allocation2 + $0x144] sm:$0xf] %v10144
    %10401 = vst [vmem:[#allocation2 + $0x148] sm:$0xf] %v10145
    %10402 = vst [vmem:[#allocation2 + $0x14c] sm:$0xf] %v10146
    %10403 = vst [vmem:[#allocation2 + $0x150] sm:$0xf] %v10147
    %10404 = vst [vmem:[#allocation2 + $0x154] sm:$0xf] %v10148
    %10405 = vst [vmem:[#allocation2 + $0x158] sm:$0xf] %v10149
    %10406 = vst [vmem:[#allocation2 + $0x15c] sm:$0xf] %v10150
    %10407 = vst [vmem:[#allocation2 + $0x160] sm:$0xf] %v10151
    %10408 = vst [vmem:[#allocation2 + $0x164] sm:$0xf] %v10152
    %10409 = vst [vmem:[#allocation2 + $0x168] sm:$0xf] %v10153
    %10410 = vst [vmem:[#allocation2 + $0x16c] sm:$0xf] %v10154
    %10411 = vst [vmem:[#allocation2 + $0x170] sm:$0xf] %v10155
    %10412 = vst [vmem:[#allocation2 + $0x174] sm:$0xf] %v10156
    %10413 = vst [vmem:[#allocation2 + $0x178] sm:$0xf] %v10157
    %10414 = vst [vmem:[#allocation2 + $0x17c] sm:$0xf] %v10158
    %10415 = vst [vmem:[#allocation2 + $0x180] sm:$0xf] %v10159
    %10416 = vst [vmem:[#allocation2 + $0x184] sm:$0xf] %v10160
    %10417 = vst [vmem:[#allocation2 + $0x188] sm:$0xf] %v10161
    %10418 = vst [vmem:[#allocation2 + $0x18c] sm:$0xf] %v10162
    %10419 = vst [vmem:[#allocation2 + $0x190] sm:$0xf] %v10163
    %10420 = vst [vmem:[#allocation2 + $0x194] sm:$0xf] %v10164
    %10421 = vst [vmem:[#allocation2 + $0x198] sm:$0xf] %v10165
    %10422 = vst [vmem:[#allocation2 + $0x19c] sm:$0xf] %v10166
    %10423 = vst [vmem:[#allocation2 + $0x1a0] sm:$0xf] %v10167
    %10424 = vst [vmem:[#allocation2 + $0x1a4] sm:$0xf] %v10168
    %10425 = vst [vmem:[#allocation2 + $0x1a8] sm:$0xf] %v10169
    %10426 = vst [vmem:[#allocation2 + $0x1ac] sm:$0xf] %v10170
    %10427 = vst [vmem:[#allocation2 + $0x1b0] sm:$0xf] %v10171
    %10428 = vst [vmem:[#allocation2 + $0x1b4] sm:$0xf] %v10172
    %10429 = vst [vmem:[#allocation2 + $0x1b8] sm:$0xf] %v10173
    %10430 = vst [vmem:[#allocation2 + $0x1bc] sm:$0xf] %v10174
    %10431 = vst [vmem:[#allocation2 + $0x1c0] sm:$0xf] %v10175
    %10432 = vst [vmem:[#allocation2 + $0x1c4] sm:$0xf] %v10176
    %10433 = vst [vmem:[#allocation2 + $0x1c8] sm:$0xf] %v10177
    %10434 = vst [vmem:[#allocation2 + $0x1cc] sm:$0xf] %v10178
    %10435 = vst [vmem:[#allocation2 + $0x1d0] sm:$0xf] %v10179
    %10436 = vst [vmem:[#allocation2 + $0x1d4] sm:$0xf] %v10180
    %10437 = vst [vmem:[#allocation2 + $0x1d8] sm:$0xf] %v10181
    %10438 = vst [vmem:[#allocation2 + $0x1dc] sm:$0xf] %v10182
    %10439 = vst [vmem:[#allocation2 + $0x1e0] sm:$0xf] %v10183
    %10440 = vst [vmem:[#allocation2 + $0x1e4] sm:$0xf] %v10184
    %10441 = vst [vmem:[#allocation2 + $0x1e8] sm:$0xf] %v10185
    %10442 = vst [vmem:[#allocation2 + $0x1ec] sm:$0xf] %v10186
    %10443 = vst [vmem:[#allocation2 + $0x1f0] sm:$0xf] %v10187
    %10444 = vst [vmem:[#allocation2 + $0x1f4] sm:$0xf] %v10188
    %10445 = vst [vmem:[#allocation2 + $0x1f8] sm:$0xf] %v10189
    %10446 = vst [vmem:[#allocation2 + $0x1fc] sm:$0xf] %v10190
    // Predicated region
    $region10: #{tpu_custom_call.1} parent=1 // pred_check
      _
    $region11: #{tpu_custom_call.1} parent=1 // pred_check_branch
      %10448 = sbr.rel (0) target = $region13
    $region12: #{tpu_custom_call.1} parent=1 // pred_region
      %s10450 = ssub.s32 8192, 8192
      %10451 = vsyncadd [#allocation3], %s10450
      %s10452 = sshll.u32 [#allocation2], 4
      %s10453 = int_to_ptr.vmem [resolvable:$true] %s10452
      %10458 = dma.vmem_to_hbm [thread:$0]  %s10453, 8192, %s2, [#allocation3], 64, 64, 4
    $region13: #{tpu_custom_call.1} parent=1 // pred_fallthru
      _
    // Predicated region
    $region14: #{tpu_custom_call.1} parent=1 // pred_check
      _
    $region15: #{tpu_custom_call.1} parent=1 // pred_check_branch
      %10460 = sbr.rel (0) target = $region17
    $region16: #{tpu_custom_call.1} parent=1 // pred_region
      %10461 = dma.done [#allocation3], 8192
    $region17: #{tpu_custom_call.1} parent=1 // pred_fallthru
      _
    %10462 = vsyncpa [#allocation3], 1

</llo_original>
